<compile_context>
chip_gen: v6e
topology: v6e:2x2x1
jax: 0.10.0
libtpu: 0.0.40
codegen_flags: <defaults>
</compile_context>

<pallas_src>
import functools
import math

import jax
import jax.numpy as jnp
from jax.experimental import pallas as pl
from jax.experimental.pallas import tpu as pltpu

LEAKY_SLOPE = 0.2
BN_EPS = 0.8                        # nn.BatchNorm1d(out_feat, 0.8) -> eps = 0.8
HIDDEN = 2048
VMEM_LIMIT = 32 * 1024 * 1024       # safe on v5e/v6e/v7x; actual usage ~10 MiB
MAX_W_TILE_BYTES = 4 * 1024 * 1024  # bf16 weight tile cap (double-buffered)


def _round_up(n, m):
    return ((n + m - 1) // m) * m


def _pick_tn(np_, kp):
    """Largest lane-aligned output tile whose bf16 weight tile fits the cap."""
    for tn in (1024, 512, 256, 128):
        if np_ % tn == 0 and kp * tn * 2 <= MAX_W_TILE_BYTES:
            return tn
    return 128


# ----------------------------------------------------------------------------
# Fused whole-network kernel
# ----------------------------------------------------------------------------
def _cond_flow_kernel(x_ref, w0_ref, b0_ref, w_ref, b_ref, g_ref, be_ref,
                      wl_ref, bl_ref, y_ref, s0, s1, *, batch, tn, nl):
    """grid = (hidden_layer, n_tile).

    Layer 0 (Linear + LeakyReLU, no BN) runs once at the first grid step with
    its small resident weight and stages its output into s1.  Each subsequent
    grid step streams one (2048, tn) weight tile of hidden BN-block `l`,
    computes Linear + BatchNorm1d(train, eps=0.8) + LeakyReLU for that output
    column tile, and ping-pongs activations between s0/s1 (even l: read s1,
    write s0; odd l: read s0, write s1).  The final Linear runs once at the
    very last grid step from the resident last-layer weight.
    """
    l = pl.program_id(0)
    j = pl.program_id(1)
    nt = pl.num_programs(1)

    # --- first layer: Linear + LeakyReLU, staged into s1 ---------------------
    @pl.when((l == 0) & (j == 0))
    def _():
        x = x_ref[...].astype(jnp.bfloat16)
        z = jnp.dot(x, w0_ref[...], preferred_element_type=jnp.float32)
        z = z + b0_ref[...]
        s1[...] = jnp.where(z > 0.0, z, LEAKY_SLOPE * z)
        s0[...] = jnp.zeros_like(s0)   # select below never reads junk VMEM

    # --- hidden BN block l, output-column tile j ------------------------------
    read_s1 = (l % 2) == 0
    h = jnp.where(read_s1, s1[...], s0[...]).astype(jnp.bfloat16)

    z = jnp.dot(h, w_ref[0, 0], preferred_element_type=jnp.float32)
    z = z + b_ref[0]

    # BatchNorm1d training-mode batch statistics (biased variance, eps=0.8),
    # masked to the true batch rows (batch axis is zero-padded to a sublane).
    bp = z.shape[0]
    valid = (jax.lax.broadcasted_iota(jnp.int32, (bp, 1), 0) < batch
             ).astype(jnp.float32)
    inv_b = 1.0 / float(batch)
    mean = jnp.sum(z * valid, axis=0, keepdims=True) * inv_b
    centered = z - mean
    var = jnp.sum((centered * valid) ** 2, axis=0, keepdims=True) * inv_b
    zn = centered * jax.lax.rsqrt(var + BN_EPS)
    zn = zn * g_ref[0] + be_ref[0]
    act = jnp.where(zn > 0.0, zn, LEAKY_SLOPE * zn)

    # Keep activations resident in VMEM for the next layer (ping-pong write).
    col = pl.ds(pl.multiple_of(j * tn, tn), tn)

    @pl.when((l % 2) == 0)
    def _():
        s0[:, col] = act

    @pl.when((l % 2) == 1)
    def _():
        s1[:, col] = act

    # --- final layer: plain Linear, written once at the last grid step -------
    @pl.when((l == nl - 1) & (j == nt - 1))
    def _():
        fin = s0 if (nl - 1) % 2 == 0 else s1      # write buffer of layer nl-1
        hf = fin[...].astype(jnp.bfloat16)
        y = jnp.dot(hf, wl_ref[...], preferred_element_type=jnp.float32)
        y_ref[...] = y + bl_ref[...]


def pallas_cond_flow(x, prep, *, batch):
    """x:(Bp, Kp0) f32 -> (Bp, Npl) f32 through all five layers in one call."""
    bp, kp0 = x.shape
    nl, nt, k, tn = prep["w"].shape
    n = nt * tn
    npl = prep["wl"].shape[1]
    assert k == n == HIDDEN and prep["w0"].shape == (kp0, n)

    kernel = functools.partial(_cond_flow_kernel, batch=batch, tn=tn, nl=nl)
    return pl.pallas_call(
        kernel,
        out_shape=jax.ShapeDtypeStruct((bp, npl), jnp.float32),
        grid_spec=pltpu.PrefetchScalarGridSpec(
            num_scalar_prefetch=0,
            grid=(nl, nt),
            in_specs=[
                pl.BlockSpec((bp, kp0), lambda l, j: (0, 0)),        # input (resident)
                pl.BlockSpec((kp0, n), lambda l, j: (0, 0)),         # first-layer W (resident)
                pl.BlockSpec((1, n), lambda l, j: (0, 0)),           # first-layer b
                pl.BlockSpec((1, 1, k, tn), lambda l, j: (l, j, 0, 0)),  # hidden W tile (streamed)
                pl.BlockSpec((1, 1, tn), lambda l, j: (l, 0, j)),        # hidden bias
                pl.BlockSpec((1, 1, tn), lambda l, j: (l, 0, j)),        # bn gamma
                pl.BlockSpec((1, 1, tn), lambda l, j: (l, 0, j)),        # bn beta
                pl.BlockSpec((k, npl), lambda l, j: (0, 0)),         # last-layer W (resident)
                pl.BlockSpec((1, npl), lambda l, j: (0, 0)),         # last-layer b
            ],
            out_specs=pl.BlockSpec((bp, npl), lambda l, j: (0, 0)),
            scratch_shapes=[pltpu.VMEM((bp, n), jnp.float32),
                            pltpu.VMEM((bp, n), jnp.float32)],
        ),
        compiler_params=pltpu.CompilerParams(
            # The layer axis carries a sequential dependency via VMEM scratch;
            # the n-tile axis must also stay on one core so the scratch holds
            # the FULL previous-layer activation (HBM-BW-bound anyway).
            dimension_semantics=("arbitrary", "arbitrary"),
            vmem_limit_bytes=VMEM_LIMIT),
    )(x, prep["w0"], prep["b0"], prep["w"], prep["b"], prep["g"], prep["be"],
      prep["wl"], prep["bl"])


# ----------------------------------------------------------------------------
# Parameters
# ----------------------------------------------------------------------------
def init_params(key, img_dims):
    """Deterministic init mirroring the PyTorch module's layer shapes."""
    out_dim = math.prod(img_dims)
    inp_dim = out_dim * 2 + 1
    dims = [inp_dim, HIDDEN, HIDDEN, HIDDEN, HIDDEN, out_dim]
    has_bn = [False, True, True, True, False]
    params = []
    for i in range(5):
        fan_in, fan_out = dims[i], dims[i + 1]
        key, kw, kb = jax.random.split(key, 3)
        bound = 1.0 / math.sqrt(fan_in)
        w = jax.random.uniform(kw, (fan_in, fan_out), jnp.float32, -bound, bound)
        b = jax.random.uniform(kb, (fan_out,), jnp.float32, -bound, bound)
        params.append(dict(
            w=w, b=b,
            gamma=jnp.ones((fan_out,), jnp.float32),
            beta=jnp.zeros((fan_out,), jnp.float32),
            bn=has_bn[i]))
    return params


def prepare_params(params):
    """One-time prep: pad to lane-aligned shapes, cast weights to bf16,
    pre-block the three hidden 2048x2048 weights into contiguous (Nt,K,tn)
    slabs and stack them; first/last small weights stay as resident slabs."""
    # First layer (inp_dim -> 2048): small, fully resident in VMEM.
    p0 = params[0]
    k0, n0 = p0["w"].shape
    kp0 = _round_up(k0, 128)
    w0 = jnp.pad(p0["w"], ((0, kp0 - k0), (0, 0))).astype(jnp.bfloat16)
    b0 = p0["b"].reshape(1, n0).astype(jnp.float32)

    # Three hidden BN blocks (2048 -> 2048): streamed as pre-blocked tiles.
    tn = _pick_tn(HIDDEN, HIDDEN)
    nt = HIDDEN // tn

    def blk(w):  # (K, N) -> (Nt, K, tn) contiguous tiles, bf16
        return (w.astype(jnp.bfloat16)
                 .reshape(HIDDEN, nt, tn).transpose(1, 0, 2))

    mids = params[1:4]
    w_stk = jnp.stack([blk(p["w"]) for p in mids])                  # (3,Nt,2048,tn)
    b_stk = jnp.stack([p["b"].reshape(1, HIDDEN).astype(jnp.float32)
                       for p in mids])                              # (3,1,2048)
    g_stk = jnp.stack([p["gamma"].reshape(1, HIDDEN).astype(jnp.float32)
                       for p in mids])
    be_stk = jnp.stack([p["beta"].reshape(1, HIDDEN).astype(jnp.float32)
                        for p in mids])

    # Last layer (2048 -> out_dim): small, fully resident in VMEM.
    pL = params[-1]
    kl, nL = pL["w"].shape
    npl = _round_up(nL, 128)
    wl = jnp.pad(pL["w"], ((0, 0), (0, npl - nL))).astype(jnp.bfloat16)
    bl = jnp.pad(pL["b"], (0, npl - nL)).reshape(1, npl).astype(jnp.float32)

    return dict(w0=w0, b0=b0, w=w_stk, b=b_stk, g=g_stk, be=be_stk,
                wl=wl, bl=bl)


# ----------------------------------------------------------------------------
# Forward
# ----------------------------------------------------------------------------
def cond_flow_forward(prep, x_t, t, cond, *, img_dims):
    """Equivalent of CondFlow.forward (training-mode BatchNorm)."""
    B = x_t.shape[0]
    out_dim = math.prod(img_dims)

    # cat([x_t.view(B,-1), cond.view(B,-1), t], dim=1)
    inp = jnp.concatenate(
        [x_t.reshape(B, -1), cond.reshape(B, -1), t.reshape(B, 1)],
        axis=1).astype(jnp.float32)

    # Pad batch to a full sublane and features to the padded input width
    # (cheap: only the tiny activation is padded per call, never the weights).
    bp = _round_up(max(B, 8), 8)
    kp0 = prep["w0"].shape[0]
    x = jnp.pad(inp, ((0, bp - B), (0, kp0 - inp.shape[1])))

    y = pallas_cond_flow(x, prep, batch=B)       # all 5 layers in one call
    return y[:B, :out_dim].reshape(B, *img_dims)


# ----------------------------------------------------------------------------
# Pure-JAX reference (mirrors the kernel's bf16-weight numerical recipe)
# ----------------------------------------------------------------------------
def ref_forward(params, img_dims, x_t, t, cond):
    B = x_t.shape[0]
    inp = jnp.concatenate(
        [x_t.reshape(B, -1), cond.reshape(B, -1), t.reshape(B, 1)],
        axis=1).astype(jnp.float32)
    h = inp
    for i, p in enumerate(params):
        w = p["w"].astype(jnp.bfloat16)
        z = jnp.dot(h.astype(jnp.bfloat16), w,
                    preferred_element_type=jnp.float32) + p["b"]
        if i == len(params) - 1:
            h = z
            continue
        if p["bn"]:
            mean = jnp.mean(z, axis=0, keepdims=True)
            var = jnp.mean((z - mean) ** 2, axis=0, keepdims=True)
            z = (z - mean) * jax.lax.rsqrt(var + BN_EPS) * p["gamma"] + p["beta"]
        h = jnp.where(z > 0, z, LEAKY_SLOPE * z)
    return h.reshape(B, *img_dims)


# ----------------------------------------------------------------------------
if __name__ == "__main__":
    img_dims = (2, 4, 4)          # prod = 32 -> inp_dim = 65
    B = 2

    key = jax.random.PRNGKey(0)
    kp, kx, kc, kt = jax.random.split(key, 4)

    params = init_params(kp, img_dims)
    prep = prepare_params(params)   # one-time pad/cast/pre-block (not per call)

    x_t = jax.random.normal(kx, (B, *img_dims), jnp.float32)
    cond = jax.random.normal(kc, (B, *img_dims), jnp.float32)
    t = jax.random.uniform(kt, (B, 1), jnp.float32)

    fwd = jax.jit(functools.partial(cond_flow_forward, img_dims=img_dims))
    out = jax.block_until_ready(fwd(prep, x_t, t, cond))

    ref = ref_forward(params, img_dims, x_t, t, cond)
    assert out.shape == (B, *img_dims)
    assert bool(jnp.allclose(out, ref, atol=1e-2, rtol=1e-2)), "mismatch vs ref"

    print("KERNEL_OK")
</pallas_src>

<mosaic_0001>
module attributes {stable_mosaic.version = 11 : i64} {
  func.func @_cond_flow_kernel(%arg0: i32, %arg1: i32, %arg2: memref<8x128xf32, #tpu.memory_space<vmem>>, %arg3: memref<128x2048xbf16, #tpu.memory_space<vmem>>, %arg4: memref<1x2048xf32, #tpu.memory_space<vmem>>, %arg5: memref<1x1x2048x1024xbf16, #tpu.memory_space<vmem>>, %arg6: memref<1x1x1024xf32, #tpu.memory_space<vmem>>, %arg7: memref<1x1x1024xf32, #tpu.memory_space<vmem>>, %arg8: memref<1x1x1024xf32, #tpu.memory_space<vmem>>, %arg9: memref<2048x128xbf16, #tpu.memory_space<vmem>>, %arg10: memref<1x128xf32, #tpu.memory_space<vmem>>, %arg11: memref<8x128xf32, #tpu.memory_space<vmem>>, %arg12: memref<8x2048xf32, #tpu.memory_space<vmem>>, %arg13: memref<8x2048xf32, #tpu.memory_space<vmem>>) attributes {dimension_semantics = [#tpu.dimension_semantics<arbitrary>, #tpu.dimension_semantics<arbitrary>], iteration_bounds = array<i64: 3, 2>, scalar_prefetch = 0 : i64, scratch_operands = 2 : i64, tpu.core_type = #tpu.core_type<tc>, window_params = [{pipeline_mode = #tpu.pipeline_mode<synchronous>, transform_indices = @transform_0, window_bounds = array<i64: 8, 128>}, {pipeline_mode = #tpu.pipeline_mode<synchronous>, transform_indices = @transform_1, window_bounds = array<i64: 128, 2048>}, {pipeline_mode = #tpu.pipeline_mode<synchronous>, transform_indices = @transform_2, window_bounds = array<i64: 1, 2048>}, {transform_indices = @transform_3, window_bounds = array<i64: 1, 1, 2048, 1024>}, {transform_indices = @transform_4, window_bounds = array<i64: 1, 1, 1024>}, {transform_indices = @transform_5, window_bounds = array<i64: 1, 1, 1024>}, {transform_indices = @transform_6, window_bounds = array<i64: 1, 1, 1024>}, {pipeline_mode = #tpu.pipeline_mode<synchronous>, transform_indices = @transform_7, window_bounds = array<i64: 2048, 128>}, {pipeline_mode = #tpu.pipeline_mode<synchronous>, transform_indices = @transform_8, window_bounds = array<i64: 1, 128>}, {pipeline_mode = #tpu.pipeline_mode<synchronous>, transform_indices = @transform_9, window_bounds = array<i64: 8, 128>}]} {
    %c0_i32 = arith.constant 0 : i32
    %0 = arith.cmpi eq, %arg0, %c0_i32 : i32
    %c0_i32_0 = arith.constant 0 : i32
    %1 = arith.cmpi eq, %arg1, %c0_i32_0 : i32
    %2 = arith.andi %0, %1 : i1
    %3 = arith.extui %2 : i1 to i32
    %c0_i32_1 = arith.constant 0 : i32
    %4 = arith.cmpi ne, %3, %c0_i32_1 : i32
    scf.if %4 {
      %c0_50 = arith.constant 0 : index
      %c0_51 = arith.constant 0 : index
      %98 = vector.load %arg2[%c0_50, %c0_51] : memref<8x128xf32, #tpu.memory_space<vmem>>, vector<8x128xf32>
      %99 = arith.truncf %98 : vector<8x128xf32> to vector<8x128xbf16>
      %c0_52 = arith.constant 0 : index
      %c0_53 = arith.constant 0 : index
      %100 = vector.load %arg3[%c0_52, %c0_53] : memref<128x2048xbf16, #tpu.memory_space<vmem>>, vector<128x2048xbf16>
      %cst_54 = arith.constant dense<0.000000e+00> : vector<8x2048xf32>
      %101 = tpu.matmul %99, %100, %cst_54 {dimension_numbers = #tpu.dot_dimension_numbers<[1], [0], [0], [1], [0, 0, 1, 1], [], []>} : vector<8x128xbf16>, vector<128x2048xbf16>, vector<8x2048xf32> -> vector<8x2048xf32>
      %c0_55 = arith.constant 0 : index
      %c0_56 = arith.constant 0 : index
      %102 = vector.load %arg4[%c0_55, %c0_56] : memref<1x2048xf32, #tpu.memory_space<vmem>>, vector<1x2048xf32>
      %103 = vector.broadcast %102 : vector<1x2048xf32> to vector<8x2048xf32>
      %104 = arith.addf %101, %103 : vector<8x2048xf32>
      %cst_57 = arith.constant 0.000000e+00 : f32
      %105 = vector.broadcast %cst_57 : f32 to vector<8x2048xf32>
      %106 = arith.cmpf ogt, %104, %105 : vector<8x2048xf32>
      %cst_58 = arith.constant 2.000000e-01 : f32
      %107 = vector.broadcast %cst_58 : f32 to vector<8x2048xf32>
      %108 = arith.mulf %107, %104 : vector<8x2048xf32>
      %109 = arith.select %106, %104, %108 : vector<8x2048xi1>, vector<8x2048xf32>
      %c0_59 = arith.constant 0 : index
      %c0_60 = arith.constant 0 : index
      %110 = vector.load %arg13[%c0_59, %c0_60] : memref<8x2048xf32, #tpu.memory_space<vmem>>, vector<8x2048xf32>
      tpu.vector_store %arg13[%c0_59, %c0_60], %109 {strides = array<i32>} : memref<8x2048xf32, #tpu.memory_space<vmem>>, vector<8x2048xf32>,
      %cst_61 = arith.constant 0.000000e+00 : f32
      %111 = vector.broadcast %cst_61 : f32 to vector<8x2048xf32>
      %c0_62 = arith.constant 0 : index
      %c0_63 = arith.constant 0 : index
      %112 = vector.load %arg12[%c0_62, %c0_63] : memref<8x2048xf32, #tpu.memory_space<vmem>>, vector<8x2048xf32>
      tpu.vector_store %arg12[%c0_62, %c0_63], %111 {strides = array<i32>} : memref<8x2048xf32, #tpu.memory_space<vmem>>, vector<8x2048xf32>,
    } else {
    }
    %c2_i32 = arith.constant 2 : i32
    %c0_i32_2 = arith.constant 0 : i32
    %5 = arith.cmpi eq, %c2_i32, %c0_i32_2 : i32
    %c1_i32 = arith.constant 1 : i32
    %6 = arith.select %5, %c1_i32, %c2_i32 : i32
    %7 = arith.remsi %arg0, %6 : i32
    %c0_i32_3 = arith.constant 0 : i32
    %8 = arith.cmpi ne, %7, %c0_i32_3 : i32
    %c0_i32_4 = arith.constant 0 : i32
    %9 = arith.cmpi slt, %7, %c0_i32_4 : i32
    %c0_i32_5 = arith.constant 0 : i32
    %10 = arith.cmpi slt, %6, %c0_i32_5 : i32
    %11 = arith.xori %9, %10 : i1
    %12 = arith.andi %11, %8 : i1
    %13 = arith.addi %7, %6 : i32
    %14 = arith.select %12, %13, %7 : i32
    %c0_i32_6 = arith.constant 0 : i32
    %15 = arith.cmpi eq, %14, %c0_i32_6 : i32
    %c0 = arith.constant 0 : index
    %c0_7 = arith.constant 0 : index
    %16 = vector.load %arg13[%c0, %c0_7] : memref<8x2048xf32, #tpu.memory_space<vmem>>, vector<8x2048xf32>
    %c0_8 = arith.constant 0 : index
    %c0_9 = arith.constant 0 : index
    %17 = vector.load %arg12[%c0_8, %c0_9] : memref<8x2048xf32, #tpu.memory_space<vmem>>, vector<8x2048xf32>
    %18 = arith.select %15, %16, %17 : vector<8x2048xf32>
    %19 = arith.truncf %18 : vector<8x2048xf32> to vector<8x2048xbf16>
    %c0_10 = arith.constant 0 : index
    %c0_11 = arith.constant 0 : index
    %c0_12 = arith.constant 0 : index
    %c0_13 = arith.constant 0 : index
    %20 = vector.load %arg5[%c0_10, %c0_11, %c0_12, %c0_13] : memref<1x1x2048x1024xbf16, #tpu.memory_space<vmem>>, vector<1x1x2048x1024xbf16>
    %21 = vector.shape_cast %20 : vector<1x1x2048x1024xbf16> to vector<2048x1024xbf16>
    %cst = arith.constant dense<0.000000e+00> : vector<8x1024xf32>
    %22 = tpu.matmul %19, %21, %cst {dimension_numbers = #tpu.dot_dimension_numbers<[1], [0], [0], [1], [0, 0, 1, 1], [], []>} : vector<8x2048xbf16>, vector<2048x1024xbf16>, vector<8x1024xf32> -> vector<8x1024xf32>
    %c0_14 = arith.constant 0 : index
    %c0_15 = arith.constant 0 : index
    %c0_16 = arith.constant 0 : index
    %23 = vector.load %arg6[%c0_14, %c0_15, %c0_16] : memref<1x1x1024xf32, #tpu.memory_space<vmem>>, vector<1x1x1024xf32>
    %24 = vector.shape_cast %23 : vector<1x1x1024xf32> to vector<1x1024xf32>
    %25 = vector.broadcast %24 : vector<1x1024xf32> to vector<8x1024xf32>
    %26 = arith.addf %22, %25 : vector<8x1024xf32>
    %27 = tpu.iota {dimensions = array<i32: 0>} : vector<8x1xi32>
    %c2_i32_17 = arith.constant 2 : i32
    %28 = vector.broadcast %c2_i32_17 : i32 to vector<8x1xi32>
    %29 = arith.cmpi slt, %27, %28 : vector<8x1xi32>
    %30 = arith.extui %29 : vector<8x1xi1> to vector<8x1xi32>
    %31 = arith.sitofp %30 : vector<8x1xi32> to vector<8x1xf32>
    %32 = vector.broadcast %31 : vector<8x1xf32> to vector<8x1024xf32>
    %33 = arith.mulf %26, %32 : vector<8x1024xf32>
    %cst_18 = arith.constant dense<0.000000e+00> : vector<1024xf32>
    %34 = vector.multi_reduction <add>, %33, %cst_18 [0] : vector<8x1024xf32> to vector<1024xf32>
    %35 = vector.shape_cast %34 : vector<1024xf32> to vector<1x1024xf32>
    %cst_19 = arith.constant 5.000000e-01 : f32
    %36 = vector.broadcast %cst_19 : f32 to vector<1x1024xf32>
    %37 = arith.mulf %35, %36 : vector<1x1024xf32>
    %38 = vector.broadcast %37 : vector<1x1024xf32> to vector<8x1024xf32>
    %39 = arith.subf %26, %38 : vector<8x1024xf32>
    %40 = vector.broadcast %31 : vector<8x1xf32> to vector<8x1024xf32>
    %41 = arith.mulf %39, %40 : vector<8x1024xf32>
    %42 = arith.mulf %41, %41 : vector<8x1024xf32>
    %cst_20 = arith.constant dense<0.000000e+00> : vector<1024xf32>
    %43 = vector.multi_reduction <add>, %42, %cst_20 [0] : vector<8x1024xf32> to vector<1024xf32>
    %44 = vector.shape_cast %43 : vector<1024xf32> to vector<1x1024xf32>
    %cst_21 = arith.constant 5.000000e-01 : f32
    %45 = vector.broadcast %cst_21 : f32 to vector<1x1024xf32>
    %46 = arith.mulf %44, %45 : vector<1x1024xf32>
    %cst_22 = arith.constant 8.000000e-01 : f32
    %47 = vector.broadcast %cst_22 : f32 to vector<1x1024xf32>
    %48 = arith.addf %46, %47 : vector<1x1024xf32>
    %49 = math.rsqrt %48 : vector<1x1024xf32>
    %50 = vector.broadcast %49 : vector<1x1024xf32> to vector<8x1024xf32>
    %51 = arith.mulf %39, %50 : vector<8x1024xf32>
    %c0_23 = arith.constant 0 : index
    %c0_24 = arith.constant 0 : index
    %c0_25 = arith.constant 0 : index
    %52 = vector.load %arg7[%c0_23, %c0_24, %c0_25] : memref<1x1x1024xf32, #tpu.memory_space<vmem>>, vector<1x1x1024xf32>
    %53 = vector.shape_cast %52 : vector<1x1x1024xf32> to vector<1x1024xf32>
    %54 = vector.broadcast %53 : vector<1x1024xf32> to vector<8x1024xf32>
    %55 = arith.mulf %51, %54 : vector<8x1024xf32>
    %c0_26 = arith.constant 0 : index
    %c0_27 = arith.constant 0 : index
    %c0_28 = arith.constant 0 : index
    %56 = vector.load %arg8[%c0_26, %c0_27, %c0_28] : memref<1x1x1024xf32, #tpu.memory_space<vmem>>, vector<1x1x1024xf32>
    %57 = vector.shape_cast %56 : vector<1x1x1024xf32> to vector<1x1024xf32>
    %58 = vector.broadcast %57 : vector<1x1024xf32> to vector<8x1024xf32>
    %59 = arith.addf %55, %58 : vector<8x1024xf32>
    %cst_29 = arith.constant 0.000000e+00 : f32
    %60 = vector.broadcast %cst_29 : f32 to vector<8x1024xf32>
    %61 = arith.cmpf ogt, %59, %60 : vector<8x1024xf32>
    %cst_30 = arith.constant 2.000000e-01 : f32
    %62 = vector.broadcast %cst_30 : f32 to vector<8x1024xf32>
    %63 = arith.mulf %62, %59 : vector<8x1024xf32>
    %64 = arith.select %61, %59, %63 : vector<8x1024xi1>, vector<8x1024xf32>
    %c1024_i32 = arith.constant 1024 : i32
    %65 = arith.muli %arg1, %c1024_i32 : i32
    %66 = tpu.assume_multiple %65, 1024 : i32
    %c2_i32_31 = arith.constant 2 : i32
    %c0_i32_32 = arith.constant 0 : i32
    %67 = arith.cmpi eq, %c2_i32_31, %c0_i32_32 : i32
    %c1_i32_33 = arith.constant 1 : i32
    %68 = arith.select %67, %c1_i32_33, %c2_i32_31 : i32
    %69 = arith.remsi %arg0, %68 : i32
    %c0_i32_34 = arith.constant 0 : i32
    %70 = arith.cmpi ne, %69, %c0_i32_34 : i32
    %c0_i32_35 = arith.constant 0 : i32
    %71 = arith.cmpi slt, %69, %c0_i32_35 : i32
    %c0_i32_36 = arith.constant 0 : i32
    %72 = arith.cmpi slt, %68, %c0_i32_36 : i32
    %73 = arith.xori %71, %72 : i1
    %74 = arith.andi %73, %70 : i1
    %75 = arith.addi %69, %68 : i32
    %76 = arith.select %74, %75, %69 : i32
    %c0_i32_37 = arith.constant 0 : i32
    %77 = arith.cmpi eq, %76, %c0_i32_37 : i32
    %78 = arith.extui %77 : i1 to i32
    %c0_i32_38 = arith.constant 0 : i32
    %79 = arith.cmpi ne, %78, %c0_i32_38 : i32
    scf.if %79 {
      %c0_50 = arith.constant 0 : index
      %98 = arith.index_cast %66 : i32 to index
      %99 = vector.load %arg12[%c0_50, %98] : memref<8x2048xf32, #tpu.memory_space<vmem>>, vector<8x1024xf32>
      tpu.vector_store %arg12[%c0_50, %98], %64 {strides = array<i32>} : memref<8x2048xf32, #tpu.memory_space<vmem>>, vector<8x1024xf32>,
    } else {
    }
    %c2_i32_39 = arith.constant 2 : i32
    %c0_i32_40 = arith.constant 0 : i32
    %80 = arith.cmpi eq, %c2_i32_39, %c0_i32_40 : i32
    %c1_i32_41 = arith.constant 1 : i32
    %81 = arith.select %80, %c1_i32_41, %c2_i32_39 : i32
    %82 = arith.remsi %arg0, %81 : i32
    %c0_i32_42 = arith.constant 0 : i32
    %83 = arith.cmpi ne, %82, %c0_i32_42 : i32
    %c0_i32_43 = arith.constant 0 : i32
    %84 = arith.cmpi slt, %82, %c0_i32_43 : i32
    %c0_i32_44 = arith.constant 0 : i32
    %85 = arith.cmpi slt, %81, %c0_i32_44 : i32
    %86 = arith.xori %84, %85 : i1
    %87 = arith.andi %86, %83 : i1
    %88 = arith.addi %82, %81 : i32
    %89 = arith.select %87, %88, %82 : i32
    %c1_i32_45 = arith.constant 1 : i32
    %90 = arith.cmpi eq, %89, %c1_i32_45 : i32
    %91 = arith.extui %90 : i1 to i32
    %c0_i32_46 = arith.constant 0 : i32
    %92 = arith.cmpi ne, %91, %c0_i32_46 : i32
    scf.if %92 {
      %c0_50 = arith.constant 0 : index
      %98 = arith.index_cast %66 : i32 to index
      %99 = vector.load %arg13[%c0_50, %98] : memref<8x2048xf32, #tpu.memory_space<vmem>>, vector<8x1024xf32>
      tpu.vector_store %arg13[%c0_50, %98], %64 {strides = array<i32>} : memref<8x2048xf32, #tpu.memory_space<vmem>>, vector<8x1024xf32>,
    } else {
    }
    %c2_i32_47 = arith.constant 2 : i32
    %93 = arith.cmpi eq, %arg0, %c2_i32_47 : i32
    %c1_i32_48 = arith.constant 1 : i32
    %94 = arith.cmpi eq, %arg1, %c1_i32_48 : i32
    %95 = arith.andi %93, %94 : i1
    %96 = arith.extui %95 : i1 to i32
    %c0_i32_49 = arith.constant 0 : i32
    %97 = arith.cmpi ne, %96, %c0_i32_49 : i32
    scf.if %97 {
      %c0_50 = arith.constant 0 : index
      %c0_51 = arith.constant 0 : index
      %98 = vector.load %arg12[%c0_50, %c0_51] : memref<8x2048xf32, #tpu.memory_space<vmem>>, vector<8x2048xf32>
      %99 = arith.truncf %98 : vector<8x2048xf32> to vector<8x2048xbf16>
      %c0_52 = arith.constant 0 : index
      %c0_53 = arith.constant 0 : index
      %100 = vector.load %arg9[%c0_52, %c0_53] : memref<2048x128xbf16, #tpu.memory_space<vmem>>, vector<2048x128xbf16>
      %cst_54 = arith.constant dense<0.000000e+00> : vector<8x128xf32>
      %101 = tpu.matmul %99, %100, %cst_54 {dimension_numbers = #tpu.dot_dimension_numbers<[1], [0], [0], [1], [0, 0, 1, 1], [], []>} : vector<8x2048xbf16>, vector<2048x128xbf16>, vector<8x128xf32> -> vector<8x128xf32>
      %c0_55 = arith.constant 0 : index
      %c0_56 = arith.constant 0 : index
      %102 = vector.load %arg10[%c0_55, %c0_56] : memref<1x128xf32, #tpu.memory_space<vmem>>, vector<1x128xf32>
      %103 = vector.broadcast %102 : vector<1x128xf32> to vector<8x128xf32>
      %104 = arith.addf %101, %103 : vector<8x128xf32>
      %c0_57 = arith.constant 0 : index
      %c0_58 = arith.constant 0 : index
      %105 = vector.load %arg11[%c0_57, %c0_58] : memref<8x128xf32, #tpu.memory_space<vmem>>, vector<8x128xf32>
      tpu.vector_store %arg11[%c0_57, %c0_58], %104 {strides = array<i32>} : memref<8x128xf32, #tpu.memory_space<vmem>>, vector<8x128xf32>,
    } else {
    }
    return
  }
  func.func @transform_0(%arg0: i32, %arg1: i32) -> (i32, i32) {
    %c0_i32 = arith.constant 0 : i32
    %c0_i32_0 = arith.constant 0 : i32
    %c0_i32_1 = arith.constant 0 : i32
    return %c0_i32, %c0_i32_0 : i32, i32
  }
  func.func @transform_1(%arg0: i32, %arg1: i32) -> (i32, i32) {
    %c0_i32 = arith.constant 0 : i32
    %c0_i32_0 = arith.constant 0 : i32
    %c0_i32_1 = arith.constant 0 : i32
    return %c0_i32, %c0_i32_0 : i32, i32
  }
  func.func @transform_2(%arg0: i32, %arg1: i32) -> (i32, i32) {
    %c0_i32 = arith.constant 0 : i32
    %c0_i32_0 = arith.constant 0 : i32
    %c0_i32_1 = arith.constant 0 : i32
    return %c0_i32, %c0_i32_0 : i32, i32
  }
  func.func @transform_3(%arg0: i32, %arg1: i32) -> (i32, i32, i32, i32) {
    %c0_i32 = arith.constant 0 : i32
    %c0_i32_0 = arith.constant 0 : i32
    %c0_i32_1 = arith.constant 0 : i32
    return %arg0, %arg1, %c0_i32, %c0_i32_0 : i32, i32, i32, i32
  }
  func.func @transform_4(%arg0: i32, %arg1: i32) -> (i32, i32, i32) {
    %c0_i32 = arith.constant 0 : i32
    %c0_i32_0 = arith.constant 0 : i32
    return %arg0, %c0_i32, %arg1 : i32, i32, i32
  }
  func.func @transform_5(%arg0: i32, %arg1: i32) -> (i32, i32, i32) {
    %c0_i32 = arith.constant 0 : i32
    %c0_i32_0 = arith.constant 0 : i32
    return %arg0, %c0_i32, %arg1 : i32, i32, i32
  }
  func.func @transform_6(%arg0: i32, %arg1: i32) -> (i32, i32, i32) {
    %c0_i32 = arith.constant 0 : i32
    %c0_i32_0 = arith.constant 0 : i32
    return %arg0, %c0_i32, %arg1 : i32, i32, i32
  }
  func.func @transform_7(%arg0: i32, %arg1: i32) -> (i32, i32) {
    %c0_i32 = arith.constant 0 : i32
    %c0_i32_0 = arith.constant 0 : i32
    %c0_i32_1 = arith.constant 0 : i32
    return %c0_i32, %c0_i32_0 : i32, i32
  }
  func.func @transform_8(%arg0: i32, %arg1: i32) -> (i32, i32) {
    %c0_i32 = arith.constant 0 : i32
    %c0_i32_0 = arith.constant 0 : i32
    %c0_i32_1 = arith.constant 0 : i32
    return %c0_i32, %c0_i32_0 : i32, i32
  }
  func.func @transform_9(%arg0: i32, %arg1: i32) -> (i32, i32) {
    %c0_i32 = arith.constant 0 : i32
    %c0_i32_0 = arith.constant 0 : i32
    %c0_i32_1 = arith.constant 0 : i32
    return %c0_i32, %c0_i32_0 : i32, i32
  }
}

</mosaic_0001>

<llo_original>
// kernel: cond_flow_forward.1
$region0: #{cond_flow_forward.1}
  #allocation0 [shape = 'u32[]', space=smem, size = 0x4, offset = 0x4, fixed_abs, tag = 'smem constant byte address 0x4 - core index']
  #allocation1 [shape = 'u32[144,128]{1,0:T(1,128)}', space=vmem, size = 0x12000, scoped, tag = 'internal scratch']
  #allocation2 [shape = 'f32[8,2048]{1,0:T(8,128)}', space=vmem, size = 0x10000, scoped, tag = 'scratch operand']
  #allocation3 [shape = 'f32[8,2048]{1,0:T(8,128)}', space=vmem, size = 0x10000, scoped, tag = 'scratch operand']
  %s0 = inlined_call_operand.vmem [shape: f32[8,128], index: 0, kind: input, shape index: {}]
  %s1 = inlined_call_operand.hbm [shape: bf16[128,2048], index: 1, kind: input, shape index: {}]
  %s2 = inlined_call_operand.hbm [shape: f32[1,2048], index: 2, kind: input, shape index: {}]
  %s3 = inlined_call_operand.hbm [shape: bf16[3,2,2048,1024], index: 3, kind: input, shape index: {}]
  %s4 = inlined_call_operand.hbm [shape: f32[3,1,2048], index: 4, kind: input, shape index: {}]
  %s5 = inlined_call_operand.hbm [shape: f32[3,1,2048], index: 5, kind: input, shape index: {}]
  %s6 = inlined_call_operand.hbm [shape: f32[3,1,2048], index: 6, kind: input, shape index: {}]
  %s7 = inlined_call_operand.hbm [shape: bf16[2048,128], index: 7, kind: input, shape index: {}]
  %s8 = inlined_call_operand.hbm [shape: f32[1,128], index: 8, kind: input, shape index: {}]
  %s9 = inlined_call_operand.vmem [shape: f32[8,128], index: 9, kind: output, shape index: {}]
  %s10 = sld [smem:[#allocation0]]
  $region117: #{cond_flow_forward.1} parent=0
    _
  %s12 = ssub.s32 1, %s10
  %s13 = scalar_select 0, %s12, %s10
  $region1: #{cond_flow_forward.1} parent=0
    #allocation4 [shape = 'u8[524288]{0}', space=vmem, size = 0x80000, scoped, tag = 'input window, operand 1, single buffered']
    #allocation5 [shape = 's32[2]{0}', space=sflag, size = 0x8, scoped, tag = 'scoped memory for cond_flow_forward.1']
    #allocation6 [shape = 'u8[8192]{0}', space=vmem, size = 0x2000, scoped, tag = 'input window, operand 2, single buffered']
    #allocation7 [shape = 's32[1]{0}', space=sflag, size = 0x4, scoped, tag = 'scoped memory for cond_flow_forward.1']
    #allocation8 [shape = 'u8[8388608]{0}', space=vmem, size = 0x800000, scoped, tag = 'input window, operand 3']
    #allocation9 [shape = 'u8[8192]{0}', space=vmem, size = 0x2000, scoped, tag = 'input window, operand 4']
    #allocation10 [shape = 'u8[8192]{0}', space=vmem, size = 0x2000, scoped, tag = 'input window, operand 5']
    #allocation11 [shape = 'u8[8192]{0}', space=vmem, size = 0x2000, scoped, tag = 'input window, operand 6']
    #allocation12 [shape = 'u8[524288]{0}', space=vmem, size = 0x80000, scoped, tag = 'input window, operand 7, single buffered']
    #allocation13 [shape = 'u8[512]{0}', space=vmem, size = 0x400, scoped, tag = 'input window, operand 8, single buffered']
    #allocation14 [shape = 's32[1]{0}', space=sflag, size = 0x4, scoped, tag = 'scoped memory for cond_flow_forward.1']
    %14 = vsyncpa [#allocation5], 0
    %15 = vsyncpa [#allocation7], 0
    %16 = vsyncpa [#allocation14], 0
    loop: start=0, step=1, limit=8
    $region2: #{cond_flow_forward.1} parent=1 // loop_pre_header
      _
    $region3: #{cond_flow_forward.1} parent=1 // loop_header
      %s18 = sphi 0, %s22
      %p19 = scmp.ge.s32.totalorder %s18, 8
      %s25 = sphi 0, %s37
      %s26 = sphi 0, %s33
      %s27 = sphi 0, %s25
      %s28 = sphi 0, %s26
      %s29 = sphi 0, %s27
      %s30 = sphi 0, %s28
      %s38 = sphi 0, %s38
      %s40 = sphi 0, %s38
      %s41 = sphi 0, %s40
      %s55 = sphi 0, %s41
      %s59 = sphi 0, %s59
      %s61 = sphi 0, %s59
      %s62 = sphi 0, %s61
      %s76 = sphi 0, %s62
      %s80 = sphi 0, %s80
      %s82 = sphi 0, %s80
      %s83 = sphi 0, %s82
      %s97 = sphi 0, %s83
      %s105 = sphi 0, %s107
      %s108 = sphi 0, %s105
      %s109 = sphi 0, %s108
      %s125 = sphi 0, %s109
      %s133 = sphi 0, %s135
      %s136 = sphi 0, %s133
      %s137 = sphi 0, %s136
      %s153 = sphi 0, %s137
      %s161 = sphi 0, %s163
      %s164 = sphi 0, %s161
      %s165 = sphi 0, %s164
      %s181 = sphi 0, %s165
      %s189 = sphi 0, %s191
      %s192 = sphi 0, %s189
      %s193 = sphi 0, %s192
      %s209 = sphi 0, %s193
      %s213 = sphi 0, %s213
      %s215 = sphi 0, %s213
      %s216 = sphi 0, %s215
      %s230 = sphi 0, %s216
      %s234 = sphi 0, %s234
      %s236 = sphi 0, %s234
      %s237 = sphi 0, %s236
      %s251 = sphi 0, %s237
      %s255 = sphi 0, %s255
      %s257 = sphi 0, %s255
      %s258 = sphi 0, %s257
      %s272 = sphi 0, %s258
    $region4: #{cond_flow_forward.1} parent=1 // loop_header_branch
      %21 = sbr.rel (%p19) target = $region8
    $region5: #{cond_flow_forward.1} parent=1 // loop_body
      %s23 = ssub.s32 %s18, 1
      %s24 = ssub.s32 %s18, 2
      %s31 = sadd.s32 1, %s26
      %p32 = scmp.ge.s32.totalorder %s31, 2
      %s33 = scalar_select %p32, 0, %s31
      %s34 = sadd.s32 1, %s25
      %s35 = scalar_select %p32, %s34, %s25
      %p36 = scmp.ge.s32.totalorder %s35, 3
      %s37 = scalar_select %p36, 0, %s35
      %s39 = sadd.s32 %s38, 1
      %p42 = scmp.eq.s32.totalorder %s18, 5
      %p43 = scmp.ne.s32.totalorder %s38, %s40
      %p44 = scmp.eq.s32.totalorder %s18, 0
      %p45 = por %p43, %p44
      %p46 = scmp.ne.s32.totalorder %s38, %s40
      %p47 = scmp.eq.s32.totalorder %s23, 5
      %p48 = por %p46, %p47
      %p49 = scmp.ne.s32.totalorder %s40, %s41
      %p50 = scmp.eq.s32.totalorder %s23, 0
      %p51 = por %p49, %p50
      %p52 = scmp.ne.s32.totalorder %s40, %s41
      %p53 = scmp.eq.s32.totalorder %s24, 5
      %p54 = por %p52, %p53
      %p56 = scmp.ne.s32.totalorder %s41, %s55
      %p57 = scmp.eq.s32.totalorder %s24, 0
      %p58 = por %p56, %p57
      %s60 = sadd.s32 %s59, 1
      %p63 = scmp.eq.s32.totalorder %s18, 5
      %p64 = scmp.ne.s32.totalorder %s59, %s61
      %p65 = scmp.eq.s32.totalorder %s18, 0
      %p66 = por %p64, %p65
      %p67 = scmp.ne.s32.totalorder %s59, %s61
      %p68 = scmp.eq.s32.totalorder %s23, 5
      %p69 = por %p67, %p68
      %p70 = scmp.ne.s32.totalorder %s61, %s62
      %p71 = scmp.eq.s32.totalorder %s23, 0
      %p72 = por %p70, %p71
      %p73 = scmp.ne.s32.totalorder %s61, %s62
      %p74 = scmp.eq.s32.totalorder %s24, 5
      %p75 = por %p73, %p74
      %p77 = scmp.ne.s32.totalorder %s62, %s76
      %p78 = scmp.eq.s32.totalorder %s24, 0
      %p79 = por %p77, %p78
      %s81 = sadd.s32 %s80, 1
      %p84 = scmp.eq.s32.totalorder %s18, 5
      %p85 = scmp.ne.s32.totalorder %s80, %s82
      %p86 = scmp.eq.s32.totalorder %s18, 0
      %p87 = por %p85, %p86
      %p88 = scmp.ne.s32.totalorder %s80, %s82
      %p89 = scmp.eq.s32.totalorder %s23, 5
      %p90 = por %p88, %p89
      %p91 = scmp.ne.s32.totalorder %s82, %s83
      %p92 = scmp.eq.s32.totalorder %s23, 0
      %p93 = por %p91, %p92
      %p94 = scmp.ne.s32.totalorder %s82, %s83
      %p95 = scmp.eq.s32.totalorder %s24, 5
      %p96 = por %p94, %p95
      %p98 = scmp.ne.s32.totalorder %s83, %s97
      %p99 = scmp.eq.s32.totalorder %s24, 0
      %p100 = por %p98, %p99
      %s101 = ssub.s32 %s25, %s37
      %s102 = ssub.s32 %s26, %s33
      %s103 = sor.u32 %s101, %s102
      %p104 = scmp.eq.s32.totalorder %s103, 0
      %s106 = sadd.s32 %s105, 1
      %s107 = scalar_select %p104, %s105, %s106
      %p110 = pneg %p104
      %p111 = scmp.eq.s32.totalorder %s18, 5
      %p112 = por %p110, %p111
      %p113 = scmp.ne.s32.totalorder %s105, %s108
      %p114 = scmp.eq.s32.totalorder %s18, 0
      %p115 = por %p113, %p114
      %p116 = scmp.ne.s32.totalorder %s105, %s108
      %p117 = scmp.eq.s32.totalorder %s23, 5
      %p118 = por %p116, %p117
      %p119 = scmp.ne.s32.totalorder %s108, %s109
      %p120 = scmp.eq.s32.totalorder %s23, 0
      %p121 = por %p119, %p120
      %p122 = scmp.ne.s32.totalorder %s108, %s109
      %p123 = scmp.eq.s32.totalorder %s24, 5
      %p124 = por %p122, %p123
      %p126 = scmp.ne.s32.totalorder %s109, %s125
      %p127 = scmp.eq.s32.totalorder %s24, 0
      %p128 = por %p126, %p127
      %s129 = ssub.s32 %s25, %s37
      %s130 = ssub.s32 %s26, %s33
      %s131 = sor.u32 %s129, %s130
      %p132 = scmp.eq.s32.totalorder %s131, 0
      %s134 = sadd.s32 %s133, 1
      %s135 = scalar_select %p132, %s133, %s134
      %p138 = pneg %p132
      %p139 = scmp.eq.s32.totalorder %s18, 5
      %p140 = por %p138, %p139
      %p141 = scmp.ne.s32.totalorder %s133, %s136
      %p142 = scmp.eq.s32.totalorder %s18, 0
      %p143 = por %p141, %p142
      %p144 = scmp.ne.s32.totalorder %s133, %s136
      %p145 = scmp.eq.s32.totalorder %s23, 5
      %p146 = por %p144, %p145
      %p147 = scmp.ne.s32.totalorder %s136, %s137
      %p148 = scmp.eq.s32.totalorder %s23, 0
      %p149 = por %p147, %p148
      %p150 = scmp.ne.s32.totalorder %s136, %s137
      %p151 = scmp.eq.s32.totalorder %s24, 5
      %p152 = por %p150, %p151
      %p154 = scmp.ne.s32.totalorder %s137, %s153
      %p155 = scmp.eq.s32.totalorder %s24, 0
      %p156 = por %p154, %p155
      %s157 = ssub.s32 %s25, %s37
      %s158 = ssub.s32 %s26, %s33
      %s159 = sor.u32 %s157, %s158
      %p160 = scmp.eq.s32.totalorder %s159, 0
      %s162 = sadd.s32 %s161, 1
      %s163 = scalar_select %p160, %s161, %s162
      %p166 = pneg %p160
      %p167 = scmp.eq.s32.totalorder %s18, 5
      %p168 = por %p166, %p167
      %p169 = scmp.ne.s32.totalorder %s161, %s164
      %p170 = scmp.eq.s32.totalorder %s18, 0
      %p171 = por %p169, %p170
      %p172 = scmp.ne.s32.totalorder %s161, %s164
      %p173 = scmp.eq.s32.totalorder %s23, 5
      %p174 = por %p172, %p173
      %p175 = scmp.ne.s32.totalorder %s164, %s165
      %p176 = scmp.eq.s32.totalorder %s23, 0
      %p177 = por %p175, %p176
      %p178 = scmp.ne.s32.totalorder %s164, %s165
      %p179 = scmp.eq.s32.totalorder %s24, 5
      %p180 = por %p178, %p179
      %p182 = scmp.ne.s32.totalorder %s165, %s181
      %p183 = scmp.eq.s32.totalorder %s24, 0
      %p184 = por %p182, %p183
      %s185 = ssub.s32 %s25, %s37
      %s186 = ssub.s32 %s26, %s33
      %s187 = sor.u32 %s185, %s186
      %p188 = scmp.eq.s32.totalorder %s187, 0
      %s190 = sadd.s32 %s189, 1
      %s191 = scalar_select %p188, %s189, %s190
      %p194 = pneg %p188
      %p195 = scmp.eq.s32.totalorder %s18, 5
      %p196 = por %p194, %p195
      %p197 = scmp.ne.s32.totalorder %s189, %s192
      %p198 = scmp.eq.s32.totalorder %s18, 0
      %p199 = por %p197, %p198
      %p200 = scmp.ne.s32.totalorder %s189, %s192
      %p201 = scmp.eq.s32.totalorder %s23, 5
      %p202 = por %p200, %p201
      %p203 = scmp.ne.s32.totalorder %s192, %s193
      %p204 = scmp.eq.s32.totalorder %s23, 0
      %p205 = por %p203, %p204
      %p206 = scmp.ne.s32.totalorder %s192, %s193
      %p207 = scmp.eq.s32.totalorder %s24, 5
      %p208 = por %p206, %p207
      %p210 = scmp.ne.s32.totalorder %s193, %s209
      %p211 = scmp.eq.s32.totalorder %s24, 0
      %p212 = por %p210, %p211
      %s214 = sadd.s32 %s213, 1
      %p217 = scmp.eq.s32.totalorder %s18, 5
      %p218 = scmp.ne.s32.totalorder %s213, %s215
      %p219 = scmp.eq.s32.totalorder %s18, 0
      %p220 = por %p218, %p219
      %p221 = scmp.ne.s32.totalorder %s213, %s215
      %p222 = scmp.eq.s32.totalorder %s23, 5
      %p223 = por %p221, %p222
      %p224 = scmp.ne.s32.totalorder %s215, %s216
      %p225 = scmp.eq.s32.totalorder %s23, 0
      %p226 = por %p224, %p225
      %p227 = scmp.ne.s32.totalorder %s215, %s216
      %p228 = scmp.eq.s32.totalorder %s24, 5
      %p229 = por %p227, %p228
      %p231 = scmp.ne.s32.totalorder %s216, %s230
      %p232 = scmp.eq.s32.totalorder %s24, 0
      %p233 = por %p231, %p232
      %s235 = sadd.s32 %s234, 1
      %p238 = scmp.eq.s32.totalorder %s18, 5
      %p239 = scmp.ne.s32.totalorder %s234, %s236
      %p240 = scmp.eq.s32.totalorder %s18, 0
      %p241 = por %p239, %p240
      %p242 = scmp.ne.s32.totalorder %s234, %s236
      %p243 = scmp.eq.s32.totalorder %s23, 5
      %p244 = por %p242, %p243
      %p245 = scmp.ne.s32.totalorder %s236, %s237
      %p246 = scmp.eq.s32.totalorder %s23, 0
      %p247 = por %p245, %p246
      %p248 = scmp.ne.s32.totalorder %s236, %s237
      %p249 = scmp.eq.s32.totalorder %s24, 5
      %p250 = por %p248, %p249
      %p252 = scmp.ne.s32.totalorder %s237, %s251
      %p253 = scmp.eq.s32.totalorder %s24, 0
      %p254 = por %p252, %p253
      %s256 = sadd.s32 %s255, 1
      %p259 = scmp.eq.s32.totalorder %s18, 5
      %p260 = scmp.ne.s32.totalorder %s255, %s257
      %p261 = scmp.eq.s32.totalorder %s18, 0
      %p262 = por %p260, %p261
      %p263 = scmp.ne.s32.totalorder %s255, %s257
      %p264 = scmp.eq.s32.totalorder %s23, 5
      %p265 = por %p263, %p264
      %p266 = scmp.ne.s32.totalorder %s257, %s258
      %p267 = scmp.eq.s32.totalorder %s23, 0
      %p268 = por %p266, %p267
      %p269 = scmp.ne.s32.totalorder %s257, %s258
      %p270 = scmp.eq.s32.totalorder %s24, 5
      %p271 = por %p269, %p270
      %p273 = scmp.ne.s32.totalorder %s258, %s272
      %p274 = scmp.eq.s32.totalorder %s24, 0
      %p275 = por %p273, %p274
      %p276 = scmp.le.s32.totalorder 1, %s18
      %p277 = scmp.lt.s32.totalorder %s18, 7
      %p278 = pnand %p276, %p277
      %p279 = pneg %p278
      // Predicated region
      $region9: #{cond_flow_forward.1} parent=5 // pred_check
        _
      $region10: #{cond_flow_forward.1} parent=5 // pred_check_branch
        %281 = sbr.rel (%p278) target = $region12
      $region11: #{cond_flow_forward.1} parent=5 // pred_region
        %s282 = ssub.s32 %s18, 1
        // Predicated region
        $region13: #{cond_flow_forward.1} parent=11 // pred_check
          %p283 = pneg %p51
        $region14: #{cond_flow_forward.1} parent=11 // pred_check_branch
          %285 = sbr.rel (%p283) target = $region16
        $region15: #{cond_flow_forward.1} parent=11 // pred_region
          _
        $region16: #{cond_flow_forward.1} parent=11 // pred_fallthru
          _
        // Predicated region
        $region17: #{cond_flow_forward.1} parent=11 // pred_check
          %p286 = pneg %p72
        $region18: #{cond_flow_forward.1} parent=11 // pred_check_branch
          %288 = sbr.rel (%p286) target = $region20
        $region19: #{cond_flow_forward.1} parent=11 // pred_region
          %s290 = ssub.s32 16384, 16384
          %291 = vsyncadd [#allocation5], %s290
          %s292 = sshll.u32 [#allocation4], 4
          %s293 = int_to_ptr.vmem [resolvable:$true] %s292
          %298 = dma.hbm_to_vmem [thread:$0]  %s1, 16384, %s293, [#allocation5], 1024, 1024, 64
        $region20: #{cond_flow_forward.1} parent=11 // pred_fallthru
          _
        // Predicated region
        $region21: #{cond_flow_forward.1} parent=11 // pred_check
          %p299 = pneg %p93
        $region22: #{cond_flow_forward.1} parent=11 // pred_check_branch
          %301 = sbr.rel (%p299) target = $region24
        $region23: #{cond_flow_forward.1} parent=11 // pred_region
          %s303 = ssub.s32 256, 256
          %304 = vsyncadd [#allocation7], %s303
          %s306 = sshll.u32 [#allocation6], 4
          %s307 = int_to_ptr.vmem [resolvable:$true] %s306
          %309 = dma.hbm_to_vmem [thread:$0]  %s2, 256, %s307, [#allocation7]
        $region24: #{cond_flow_forward.1} parent=11 // pred_fallthru
          _
        // Predicated region
        $region25: #{cond_flow_forward.1} parent=11 // pred_check
          %p310 = pneg %p226
        $region26: #{cond_flow_forward.1} parent=11 // pred_check_branch
          %312 = sbr.rel (%p310) target = $region28
        $region27: #{cond_flow_forward.1} parent=11 // pred_region
          %s314 = ssub.s32 16384, 16384
          %315 = vsyncadd [#allocation7], %s314
          %s316 = sshll.u32 [#allocation12], 4
          %s317 = int_to_ptr.vmem [resolvable:$true] %s316
          %322 = dma.hbm_to_vmem [thread:$0]  %s7, 16384, %s317, [#allocation7], 64, 64, 4
        $region28: #{cond_flow_forward.1} parent=11 // pred_fallthru
          _
        // Predicated region
        $region29: #{cond_flow_forward.1} parent=11 // pred_check
          %p323 = pneg %p247
        $region30: #{cond_flow_forward.1} parent=11 // pred_check_branch
          %325 = sbr.rel (%p323) target = $region32
        $region31: #{cond_flow_forward.1} parent=11 // pred_region
          %s327 = ssub.s32 16, 16
          %328 = vsyncadd [#allocation14], %s327
          %s330 = sshll.u32 [#allocation13], 4
          %s331 = int_to_ptr.vmem [resolvable:$true] %s330
          %333 = dma.hbm_to_vmem [thread:$0]  %s8, 16, %s331, [#allocation14]
        $region32: #{cond_flow_forward.1} parent=11 // pred_fallthru
          _
      $region12: #{cond_flow_forward.1} parent=5 // pred_fallthru
        _
      %p334 = scmp.lt.s32.totalorder %s18, 6
      // Predicated region
      $region33: #{cond_flow_forward.1} parent=5 // pred_check
        %p335 = pneg %p334
      $region34: #{cond_flow_forward.1} parent=5 // pred_check_branch
        %337 = sbr.rel (%p335) target = $region36
      $region35: #{cond_flow_forward.1} parent=5 // pred_region
        // Predicated region
        $region37: #{cond_flow_forward.1} parent=35 // pred_check
          %p338 = pneg %p115
        $region38: #{cond_flow_forward.1} parent=35 // pred_check_branch
          %340 = sbr.rel (%p338) target = $region40
        $region39: #{cond_flow_forward.1} parent=35 // pred_region
          %s341 = sand.u32 %s18, 1
          %s342 = scalar_lea.sflag [#allocation5], %s341
          %s343 = sand.u32 %s105, 1
          %s344 = smul.addr %s343, 8192
          %s345 = scalar_lea.vmem [#allocation8], %s344
          %s347 = ssub.s32 131072, 131072
          %348 = vsyncadd %s342, %s347
          %s349 = smul.addr %s26, 2048
          %s350 = smul.addr %s25, 4096
          %s351 = sadd.s32 %s349, %s350
          %s352 = smul.addr %s351, 64
          %s353 = scalar_lea.hbm %s3, %s352
          %s354 = sshll.u32 %s345, 4
          %s355 = int_to_ptr.vmem [resolvable:$true] %s354
          %360 = dma.hbm_to_vmem [thread:$0]  %s353, 131072, %s355, %s342, 512, 512, 32
        $region40: #{cond_flow_forward.1} parent=35 // pred_fallthru
          _
        // Predicated region
        $region41: #{cond_flow_forward.1} parent=35 // pred_check
          %p361 = pneg %p143
        $region42: #{cond_flow_forward.1} parent=35 // pred_check_branch
          %363 = sbr.rel (%p361) target = $region44
        $region43: #{cond_flow_forward.1} parent=35 // pred_region
          %s364 = sand.u32 %s18, 1
          %s365 = scalar_lea.sflag [#allocation5], %s364
          %s366 = sand.u32 %s133, 1
          %s367 = smul.addr %s366, 8
          %s368 = scalar_lea.vmem [#allocation9], %s367
          %s369 = smul.u32 8, %s26
          %s371 = ssub.s32 128, 128
          %372 = vsyncadd %s365, %s371
          %s373 = smul.addr %s25, 16
          %s374 = sadd.s32 %s369, %s373
          %s375 = smul.addr %s374, 16
          %s376 = scalar_lea.hbm %s4, %s375
          %s378 = sshll.u32 %s368, 4
          %s379 = int_to_ptr.vmem [resolvable:$true] %s378
          %381 = dma.hbm_to_vmem [thread:$0]  %s376, 128, %s379, %s365
        $region44: #{cond_flow_forward.1} parent=35 // pred_fallthru
          _
        // Predicated region
        $region45: #{cond_flow_forward.1} parent=35 // pred_check
          %p382 = pneg %p171
        $region46: #{cond_flow_forward.1} parent=35 // pred_check_branch
          %384 = sbr.rel (%p382) target = $region48
        $region47: #{cond_flow_forward.1} parent=35 // pred_region
          %s385 = sand.u32 %s18, 1
          %s386 = scalar_lea.sflag [#allocation5], %s385
          %s387 = sand.u32 %s161, 1
          %s388 = smul.addr %s387, 8
          %s389 = scalar_lea.vmem [#allocation10], %s388
          %s390 = smul.u32 8, %s26
          %s392 = ssub.s32 128, 128
          %393 = vsyncadd %s386, %s392
          %s394 = smul.addr %s25, 16
          %s395 = sadd.s32 %s390, %s394
          %s396 = smul.addr %s395, 16
          %s397 = scalar_lea.hbm %s5, %s396
          %s399 = sshll.u32 %s389, 4
          %s400 = int_to_ptr.vmem [resolvable:$true] %s399
          %402 = dma.hbm_to_vmem [thread:$0]  %s397, 128, %s400, %s386
        $region48: #{cond_flow_forward.1} parent=35 // pred_fallthru
          _
        // Predicated region
        $region49: #{cond_flow_forward.1} parent=35 // pred_check
          %p403 = pneg %p199
        $region50: #{cond_flow_forward.1} parent=35 // pred_check_branch
          %405 = sbr.rel (%p403) target = $region52
        $region51: #{cond_flow_forward.1} parent=35 // pred_region
          %s406 = sand.u32 %s18, 1
          %s407 = scalar_lea.sflag [#allocation5], %s406
          %s408 = sand.u32 %s189, 1
          %s409 = smul.addr %s408, 8
          %s410 = scalar_lea.vmem [#allocation11], %s409
          %s411 = smul.u32 8, %s26
          %s413 = ssub.s32 128, 128
          %414 = vsyncadd %s407, %s413
          %s415 = smul.addr %s25, 16
          %s416 = sadd.s32 %s411, %s415
          %s417 = smul.addr %s416, 16
          %s418 = scalar_lea.hbm %s6, %s417
          %s420 = sshll.u32 %s410, 4
          %s421 = int_to_ptr.vmem [resolvable:$true] %s420
          %423 = dma.hbm_to_vmem [thread:$0]  %s418, 128, %s421, %s407
        $region52: #{cond_flow_forward.1} parent=35 // pred_fallthru
          _
      $region36: #{cond_flow_forward.1} parent=5 // pred_fallthru
        _
      %p424 = scmp.le.s32.totalorder 1, %s18
      %p425 = scmp.lt.s32.totalorder %s18, 7
      %p426 = pnand %p424, %p425
      %p427 = pneg %p426
      // Predicated region
      $region53: #{cond_flow_forward.1} parent=5 // pred_check
        _
      $region54: #{cond_flow_forward.1} parent=5 // pred_check_branch
        %429 = sbr.rel (%p426) target = $region56
      $region55: #{cond_flow_forward.1} parent=5 // pred_region
        %s430 = ssub.s32 %s18, 1
        // Predicated region
        $region57: #{cond_flow_forward.1} parent=55 // pred_check
          %p431 = pneg %p72
        $region58: #{cond_flow_forward.1} parent=55 // pred_check_branch
          %433 = sbr.rel (%p431) target = $region60
        $region59: #{cond_flow_forward.1} parent=55 // pred_region
          %434 = dma.done [#allocation5], 16384
        $region60: #{cond_flow_forward.1} parent=55 // pred_fallthru
          _
        // Predicated region
        $region61: #{cond_flow_forward.1} parent=55 // pred_check
          %p435 = pneg %p93
        $region62: #{cond_flow_forward.1} parent=55 // pred_check_branch
          %437 = sbr.rel (%p435) target = $region64
        $region63: #{cond_flow_forward.1} parent=55 // pred_region
          %438 = dma.done [#allocation7], 256
        $region64: #{cond_flow_forward.1} parent=55 // pred_fallthru
          _
        %s439 = sand.u32 %s23, 1
        %s440 = scalar_lea.sflag [#allocation5], %s439
        %s441 = sand.u32 %s108, 1
        %s442 = smul.addr %s441, 8192
        %s443 = scalar_lea.vmem [#allocation8], %s442
        // Predicated region
        $region65: #{cond_flow_forward.1} parent=55 // pred_check
          %p444 = pneg %p121
        $region66: #{cond_flow_forward.1} parent=55 // pred_check_branch
          %446 = sbr.rel (%p444) target = $region68
        $region67: #{cond_flow_forward.1} parent=55 // pred_region
          %447 = dma.done %s440, 131072
        $region68: #{cond_flow_forward.1} parent=55 // pred_fallthru
          _
        %s448 = sand.u32 %s23, 1
        %s449 = scalar_lea.sflag [#allocation5], %s448
        %s450 = sand.u32 %s136, 1
        %s451 = smul.addr %s450, 8
        %s452 = scalar_lea.vmem [#allocation9], %s451
        // Predicated region
        $region69: #{cond_flow_forward.1} parent=55 // pred_check
          %p453 = pneg %p149
        $region70: #{cond_flow_forward.1} parent=55 // pred_check_branch
          %455 = sbr.rel (%p453) target = $region72
        $region71: #{cond_flow_forward.1} parent=55 // pred_region
          %456 = dma.done %s449, 128
        $region72: #{cond_flow_forward.1} parent=55 // pred_fallthru
          _
        %s457 = sand.u32 %s23, 1
        %s458 = scalar_lea.sflag [#allocation5], %s457
        %s459 = sand.u32 %s164, 1
        %s460 = smul.addr %s459, 8
        %s461 = scalar_lea.vmem [#allocation10], %s460
        // Predicated region
        $region73: #{cond_flow_forward.1} parent=55 // pred_check
          %p462 = pneg %p177
        $region74: #{cond_flow_forward.1} parent=55 // pred_check_branch
          %464 = sbr.rel (%p462) target = $region76
        $region75: #{cond_flow_forward.1} parent=55 // pred_region
          %465 = dma.done %s458, 128
        $region76: #{cond_flow_forward.1} parent=55 // pred_fallthru
          _
        %s466 = sand.u32 %s23, 1
        %s467 = scalar_lea.sflag [#allocation5], %s466
        %s468 = sand.u32 %s192, 1
        %s469 = smul.addr %s468, 8
        %s470 = scalar_lea.vmem [#allocation11], %s469
        // Predicated region
        $region77: #{cond_flow_forward.1} parent=55 // pred_check
          %p471 = pneg %p205
        $region78: #{cond_flow_forward.1} parent=55 // pred_check_branch
          %473 = sbr.rel (%p471) target = $region80
        $region79: #{cond_flow_forward.1} parent=55 // pred_region
          %474 = dma.done %s467, 128
        $region80: #{cond_flow_forward.1} parent=55 // pred_fallthru
          _
        // Predicated region
        $region81: #{cond_flow_forward.1} parent=55 // pred_check
          %p475 = pneg %p226
        $region82: #{cond_flow_forward.1} parent=55 // pred_check_branch
          %477 = sbr.rel (%p475) target = $region84
        $region83: #{cond_flow_forward.1} parent=55 // pred_region
          %478 = dma.done [#allocation7], 16384
        $region84: #{cond_flow_forward.1} parent=55 // pred_fallthru
          _
        // Predicated region
        $region85: #{cond_flow_forward.1} parent=55 // pred_check
          %p479 = pneg %p247
        $region86: #{cond_flow_forward.1} parent=55 // pred_check_branch
          %481 = sbr.rel (%p479) target = $region88
        $region87: #{cond_flow_forward.1} parent=55 // pred_region
          %482 = dma.done [#allocation14], 16
        $region88: #{cond_flow_forward.1} parent=55 // pred_fallthru
          _
        %p483 = pneg %p51
        %p484 = pneg %p48
        %p485 = pneg %p72
        %p486 = pneg %p69
        %p487 = pneg %p93
        %p488 = pneg %p90
        %s489 = sand.u32 %s23, 1
        %s490 = scalar_lea.sflag [#allocation5], %s489
        %s491 = sand.u32 %s108, 1
        %s492 = smul.addr %s491, 8192
        %s493 = scalar_lea.vmem [#allocation8], %s492
        %p494 = pneg %p121
        %p495 = pneg %p118
        %s496 = sand.u32 %s23, 1
        %s497 = scalar_lea.sflag [#allocation5], %s496
        %s498 = sand.u32 %s136, 1
        %s499 = smul.addr %s498, 8
        %s500 = scalar_lea.vmem [#allocation9], %s499
        %p501 = pneg %p149
        %p502 = pneg %p146
        %s503 = sand.u32 %s23, 1
        %s504 = scalar_lea.sflag [#allocation5], %s503
        %s505 = sand.u32 %s164, 1
        %s506 = smul.addr %s505, 8
        %s507 = scalar_lea.vmem [#allocation10], %s506
        %p508 = pneg %p177
        %p509 = pneg %p174
        %s510 = sand.u32 %s23, 1
        %s511 = scalar_lea.sflag [#allocation5], %s510
        %s512 = sand.u32 %s192, 1
        %s513 = smul.addr %s512, 8
        %s514 = scalar_lea.vmem [#allocation11], %s513
        %p515 = pneg %p205
        %p516 = pneg %p202
        %p517 = pneg %p226
        %p518 = pneg %p223
        %p519 = pneg %p247
        %p520 = pneg %p244
        %p521 = pneg %p268
        %p522 = pneg %p265
        %s523 = smul.u32 8, %s28
        %s524 = smul.u32 8, %s28
        %s525 = smul.u32 8, %s28
        %p527 = scmp.eq.s32.totalorder %s27, 0
        %p528 = scmp.eq.s32.totalorder %s28, 0
        %p529 = pnand %p527, %p528
        %p530 = pneg %p529
        // Predicated region
        $region89: #{cond_flow_forward.1} parent=55 // pred_check
          _
        $region90: #{cond_flow_forward.1} parent=55 // pred_check_branch
          %532 = sbr.rel (%p529) target = $region92
        $region91: #{cond_flow_forward.1} parent=55 // pred_region
          %v533 = vld [vmem:[%s0] sm:$0xff]
          %v534 = vpack.c.bf16 %v533, %v533
          %v535 = vld [vmem:[#allocation4] sm:$0xff]
          %v536 = vld [vmem:[#allocation4 + $0x8] sm:$0xff]
          %v537 = vld [vmem:[#allocation4 + $0x10] sm:$0xff]
          %v538 = vld [vmem:[#allocation4 + $0x18] sm:$0xff]
          %v539 = vld [vmem:[#allocation4 + $0x20] sm:$0xff]
          %v540 = vld [vmem:[#allocation4 + $0x28] sm:$0xff]
          %v541 = vld [vmem:[#allocation4 + $0x30] sm:$0xff]
          %v542 = vld [vmem:[#allocation4 + $0x38] sm:$0xff]
          %v543 = vld [vmem:[#allocation4 + $0x40] sm:$0xff]
          %v544 = vld [vmem:[#allocation4 + $0x48] sm:$0xff]
          %v545 = vld [vmem:[#allocation4 + $0x50] sm:$0xff]
          %v546 = vld [vmem:[#allocation4 + $0x58] sm:$0xff]
          %v547 = vld [vmem:[#allocation4 + $0x60] sm:$0xff]
          %v548 = vld [vmem:[#allocation4 + $0x68] sm:$0xff]
          %v549 = vld [vmem:[#allocation4 + $0x70] sm:$0xff]
          %v550 = vld [vmem:[#allocation4 + $0x78] sm:$0xff]
          %v551 = vld [vmem:[#allocation4 + $0x80] sm:$0xff]
          %v552 = vld [vmem:[#allocation4 + $0x88] sm:$0xff]
          %v553 = vld [vmem:[#allocation4 + $0x90] sm:$0xff]
          %v554 = vld [vmem:[#allocation4 + $0x98] sm:$0xff]
          %v555 = vld [vmem:[#allocation4 + $0xa0] sm:$0xff]
          %v556 = vld [vmem:[#allocation4 + $0xa8] sm:$0xff]
          %v557 = vld [vmem:[#allocation4 + $0xb0] sm:$0xff]
          %v558 = vld [vmem:[#allocation4 + $0xb8] sm:$0xff]
          %v559 = vld [vmem:[#allocation4 + $0xc0] sm:$0xff]
          %v560 = vld [vmem:[#allocation4 + $0xc8] sm:$0xff]
          %v561 = vld [vmem:[#allocation4 + $0xd0] sm:$0xff]
          %v562 = vld [vmem:[#allocation4 + $0xd8] sm:$0xff]
          %v563 = vld [vmem:[#allocation4 + $0xe0] sm:$0xff]
          %v564 = vld [vmem:[#allocation4 + $0xe8] sm:$0xff]
          %v565 = vld [vmem:[#allocation4 + $0xf0] sm:$0xff]
          %v566 = vld [vmem:[#allocation4 + $0xf8] sm:$0xff]
          %v567 = vld [vmem:[#allocation4 + $0x100] sm:$0xff]
          %v568 = vld [vmem:[#allocation4 + $0x108] sm:$0xff]
          %v569 = vld [vmem:[#allocation4 + $0x110] sm:$0xff]
          %v570 = vld [vmem:[#allocation4 + $0x118] sm:$0xff]
          %v571 = vld [vmem:[#allocation4 + $0x120] sm:$0xff]
          %v572 = vld [vmem:[#allocation4 + $0x128] sm:$0xff]
          %v573 = vld [vmem:[#allocation4 + $0x130] sm:$0xff]
          %v574 = vld [vmem:[#allocation4 + $0x138] sm:$0xff]
          %v575 = vld [vmem:[#allocation4 + $0x140] sm:$0xff]
          %v576 = vld [vmem:[#allocation4 + $0x148] sm:$0xff]
          %v577 = vld [vmem:[#allocation4 + $0x150] sm:$0xff]
          %v578 = vld [vmem:[#allocation4 + $0x158] sm:$0xff]
          %v579 = vld [vmem:[#allocation4 + $0x160] sm:$0xff]
          %v580 = vld [vmem:[#allocation4 + $0x168] sm:$0xff]
          %v581 = vld [vmem:[#allocation4 + $0x170] sm:$0xff]
          %v582 = vld [vmem:[#allocation4 + $0x178] sm:$0xff]
          %v583 = vld [vmem:[#allocation4 + $0x180] sm:$0xff]
          %v584 = vld [vmem:[#allocation4 + $0x188] sm:$0xff]
          %v585 = vld [vmem:[#allocation4 + $0x190] sm:$0xff]
          %v586 = vld [vmem:[#allocation4 + $0x198] sm:$0xff]
          %v587 = vld [vmem:[#allocation4 + $0x1a0] sm:$0xff]
          %v588 = vld [vmem:[#allocation4 + $0x1a8] sm:$0xff]
          %v589 = vld [vmem:[#allocation4 + $0x1b0] sm:$0xff]
          %v590 = vld [vmem:[#allocation4 + $0x1b8] sm:$0xff]
          %v591 = vld [vmem:[#allocation4 + $0x1c0] sm:$0xff]
          %v592 = vld [vmem:[#allocation4 + $0x1c8] sm:$0xff]
          %v593 = vld [vmem:[#allocation4 + $0x1d0] sm:$0xff]
          %v594 = vld [vmem:[#allocation4 + $0x1d8] sm:$0xff]
          %v595 = vld [vmem:[#allocation4 + $0x1e0] sm:$0xff]
          %v596 = vld [vmem:[#allocation4 + $0x1e8] sm:$0xff]
          %v597 = vld [vmem:[#allocation4 + $0x1f0] sm:$0xff]
          %v598 = vld [vmem:[#allocation4 + $0x1f8] sm:$0xff]
          %v599 = vld [vmem:[#allocation4 + $0x200] sm:$0xff]
          %v600 = vld [vmem:[#allocation4 + $0x208] sm:$0xff]
          %v601 = vld [vmem:[#allocation4 + $0x210] sm:$0xff]
          %v602 = vld [vmem:[#allocation4 + $0x218] sm:$0xff]
          %v603 = vld [vmem:[#allocation4 + $0x220] sm:$0xff]
          %v604 = vld [vmem:[#allocation4 + $0x228] sm:$0xff]
          %v605 = vld [vmem:[#allocation4 + $0x230] sm:$0xff]
          %v606 = vld [vmem:[#allocation4 + $0x238] sm:$0xff]
          %v607 = vld [vmem:[#allocation4 + $0x240] sm:$0xff]
          %v608 = vld [vmem:[#allocation4 + $0x248] sm:$0xff]
          %v609 = vld [vmem:[#allocation4 + $0x250] sm:$0xff]
          %v610 = vld [vmem:[#allocation4 + $0x258] sm:$0xff]
          %v611 = vld [vmem:[#allocation4 + $0x260] sm:$0xff]
          %v612 = vld [vmem:[#allocation4 + $0x268] sm:$0xff]
          %v613 = vld [vmem:[#allocation4 + $0x270] sm:$0xff]
          %v614 = vld [vmem:[#allocation4 + $0x278] sm:$0xff]
          %v615 = vld [vmem:[#allocation4 + $0x280] sm:$0xff]
          %v616 = vld [vmem:[#allocation4 + $0x288] sm:$0xff]
          %v617 = vld [vmem:[#allocation4 + $0x290] sm:$0xff]
          %v618 = vld [vmem:[#allocation4 + $0x298] sm:$0xff]
          %v619 = vld [vmem:[#allocation4 + $0x2a0] sm:$0xff]
          %v620 = vld [vmem:[#allocation4 + $0x2a8] sm:$0xff]
          %v621 = vld [vmem:[#allocation4 + $0x2b0] sm:$0xff]
          %v622 = vld [vmem:[#allocation4 + $0x2b8] sm:$0xff]
          %v623 = vld [vmem:[#allocation4 + $0x2c0] sm:$0xff]
          %v624 = vld [vmem:[#allocation4 + $0x2c8] sm:$0xff]
          %v625 = vld [vmem:[#allocation4 + $0x2d0] sm:$0xff]
          %v626 = vld [vmem:[#allocation4 + $0x2d8] sm:$0xff]
          %v627 = vld [vmem:[#allocation4 + $0x2e0] sm:$0xff]
          %v628 = vld [vmem:[#allocation4 + $0x2e8] sm:$0xff]
          %v629 = vld [vmem:[#allocation4 + $0x2f0] sm:$0xff]
          %v630 = vld [vmem:[#allocation4 + $0x2f8] sm:$0xff]
          %v631 = vld [vmem:[#allocation4 + $0x300] sm:$0xff]
          %v632 = vld [vmem:[#allocation4 + $0x308] sm:$0xff]
          %v633 = vld [vmem:[#allocation4 + $0x310] sm:$0xff]
          %v634 = vld [vmem:[#allocation4 + $0x318] sm:$0xff]
          %v635 = vld [vmem:[#allocation4 + $0x320] sm:$0xff]
          %v636 = vld [vmem:[#allocation4 + $0x328] sm:$0xff]
          %v637 = vld [vmem:[#allocation4 + $0x330] sm:$0xff]
          %v638 = vld [vmem:[#allocation4 + $0x338] sm:$0xff]
          %v639 = vld [vmem:[#allocation4 + $0x340] sm:$0xff]
          %v640 = vld [vmem:[#allocation4 + $0x348] sm:$0xff]
          %v641 = vld [vmem:[#allocation4 + $0x350] sm:$0xff]
          %v642 = vld [vmem:[#allocation4 + $0x358] sm:$0xff]
          %v643 = vld [vmem:[#allocation4 + $0x360] sm:$0xff]
          %v644 = vld [vmem:[#allocation4 + $0x368] sm:$0xff]
          %v645 = vld [vmem:[#allocation4 + $0x370] sm:$0xff]
          %v646 = vld [vmem:[#allocation4 + $0x378] sm:$0xff]
          %v647 = vld [vmem:[#allocation4 + $0x380] sm:$0xff]
          %v648 = vld [vmem:[#allocation4 + $0x388] sm:$0xff]
          %v649 = vld [vmem:[#allocation4 + $0x390] sm:$0xff]
          %v650 = vld [vmem:[#allocation4 + $0x398] sm:$0xff]
          %v651 = vld [vmem:[#allocation4 + $0x3a0] sm:$0xff]
          %v652 = vld [vmem:[#allocation4 + $0x3a8] sm:$0xff]
          %v653 = vld [vmem:[#allocation4 + $0x3b0] sm:$0xff]
          %v654 = vld [vmem:[#allocation4 + $0x3b8] sm:$0xff]
          %v655 = vld [vmem:[#allocation4 + $0x3c0] sm:$0xff]
          %v656 = vld [vmem:[#allocation4 + $0x3c8] sm:$0xff]
          %v657 = vld [vmem:[#allocation4 + $0x3d0] sm:$0xff]
          %v658 = vld [vmem:[#allocation4 + $0x3d8] sm:$0xff]
          %v659 = vld [vmem:[#allocation4 + $0x3e0] sm:$0xff]
          %v660 = vld [vmem:[#allocation4 + $0x3e8] sm:$0xff]
          %v661 = vld [vmem:[#allocation4 + $0x3f0] sm:$0xff]
          %v662 = vld [vmem:[#allocation4 + $0x3f8] sm:$0xff]
          %v663 = vld [vmem:[#allocation6] sm:$0xff]
          %v664 = vld [vmem:[#allocation6 + $0x8] sm:$0xff]
          %v667 = vlaneseq
          %v668 = vshrl.u32 %v667, 7
          %v669 = vsub.s32 0, %v668
          %v670 = vrot.slane %v663, %v669
          %v671 = vlaneseq
          %v672 = vshrl.u32 %v671, 7
          %v673 = vsub.s32 1, %v672
          %v674 = vrot.slane %v663, %v673
          %v675 = vlaneseq
          %v676 = vshrl.u32 %v675, 7
          %v677 = vsub.s32 2, %v676
          %v678 = vrot.slane %v663, %v677
          %v679 = vlaneseq
          %v680 = vshrl.u32 %v679, 7
          %v681 = vsub.s32 3, %v680
          %v682 = vrot.slane %v663, %v681
          %v683 = vlaneseq
          %v684 = vshrl.u32 %v683, 7
          %v685 = vsub.s32 4, %v684
          %v686 = vrot.slane %v663, %v685
          %v687 = vlaneseq
          %v688 = vshrl.u32 %v687, 7
          %v689 = vsub.s32 5, %v688
          %v690 = vrot.slane %v663, %v689
          %v691 = vlaneseq
          %v692 = vshrl.u32 %v691, 7
          %v693 = vsub.s32 6, %v692
          %v694 = vrot.slane %v663, %v693
          %v695 = vlaneseq
          %v696 = vshrl.u32 %v695, 7
          %v697 = vsub.s32 7, %v696
          %v698 = vrot.slane %v663, %v697
          %v699 = vlaneseq
          %v700 = vshrl.u32 %v699, 7
          %v701 = vsub.s32 0, %v700
          %v702 = vrot.slane %v664, %v701
          %v703 = vlaneseq
          %v704 = vshrl.u32 %v703, 7
          %v705 = vsub.s32 1, %v704
          %v706 = vrot.slane %v664, %v705
          %v707 = vlaneseq
          %v708 = vshrl.u32 %v707, 7
          %v709 = vsub.s32 2, %v708
          %v710 = vrot.slane %v664, %v709
          %v711 = vlaneseq
          %v712 = vshrl.u32 %v711, 7
          %v713 = vsub.s32 3, %v712
          %v714 = vrot.slane %v664, %v713
          %v715 = vlaneseq
          %v716 = vshrl.u32 %v715, 7
          %v717 = vsub.s32 4, %v716
          %v718 = vrot.slane %v664, %v717
          %v719 = vlaneseq
          %v720 = vshrl.u32 %v719, 7
          %v721 = vsub.s32 5, %v720
          %v722 = vrot.slane %v664, %v721
          %v723 = vlaneseq
          %v724 = vshrl.u32 %v723, 7
          %v725 = vsub.s32 6, %v724
          %v726 = vrot.slane %v664, %v725
          %v727 = vlaneseq
          %v728 = vshrl.u32 %v727, 7
          %v729 = vsub.s32 7, %v728
          %v730 = vrot.slane %v664, %v729
          %v875 = vunpack.c.l.b16 %v535
          %v876 = vunpack.c.h.b16 %v535
          %v877 = vunpack.c.l.b16 %v536
          %v878 = vunpack.c.h.b16 %v536
          %v879 = vunpack.c.l.b16 %v537
          %v880 = vunpack.c.h.b16 %v537
          %v881 = vunpack.c.l.b16 %v538
          %v882 = vunpack.c.h.b16 %v538
          %v883 = vunpack.c.l.b16 %v539
          %v884 = vunpack.c.h.b16 %v539
          %v885 = vunpack.c.l.b16 %v540
          %v886 = vunpack.c.h.b16 %v540
          %v887 = vunpack.c.l.b16 %v541
          %v888 = vunpack.c.h.b16 %v541
          %v889 = vunpack.c.l.b16 %v542
          %v890 = vunpack.c.h.b16 %v542
          %v891 = vunpack.c.l.b16 %v543
          %v892 = vunpack.c.h.b16 %v543
          %v893 = vunpack.c.l.b16 %v544
          %v894 = vunpack.c.h.b16 %v544
          %v895 = vunpack.c.l.b16 %v545
          %v896 = vunpack.c.h.b16 %v545
          %v897 = vunpack.c.l.b16 %v546
          %v898 = vunpack.c.h.b16 %v546
          %v899 = vunpack.c.l.b16 %v547
          %v900 = vunpack.c.h.b16 %v547
          %v901 = vunpack.c.l.b16 %v548
          %v902 = vunpack.c.h.b16 %v548
          %v903 = vunpack.c.l.b16 %v549
          %v904 = vunpack.c.h.b16 %v549
          %v905 = vunpack.c.l.b16 %v550
          %v906 = vunpack.c.h.b16 %v550
          %v907 = vunpack.c.l.b16 %v551
          %v908 = vunpack.c.h.b16 %v551
          %v909 = vunpack.c.l.b16 %v552
          %v910 = vunpack.c.h.b16 %v552
          %v911 = vunpack.c.l.b16 %v553
          %v912 = vunpack.c.h.b16 %v553
          %v913 = vunpack.c.l.b16 %v554
          %v914 = vunpack.c.h.b16 %v554
          %v915 = vunpack.c.l.b16 %v555
          %v916 = vunpack.c.h.b16 %v555
          %v917 = vunpack.c.l.b16 %v556
          %v918 = vunpack.c.h.b16 %v556
          %v919 = vunpack.c.l.b16 %v557
          %v920 = vunpack.c.h.b16 %v557
          %v921 = vunpack.c.l.b16 %v558
          %v922 = vunpack.c.h.b16 %v558
          %v923 = vunpack.c.l.b16 %v559
          %v924 = vunpack.c.h.b16 %v559
          %v925 = vunpack.c.l.b16 %v560
          %v926 = vunpack.c.h.b16 %v560
          %v927 = vunpack.c.l.b16 %v561
          %v928 = vunpack.c.h.b16 %v561
          %v929 = vunpack.c.l.b16 %v562
          %v930 = vunpack.c.h.b16 %v562
          %v931 = vunpack.c.l.b16 %v563
          %v932 = vunpack.c.h.b16 %v563
          %v933 = vunpack.c.l.b16 %v564
          %v934 = vunpack.c.h.b16 %v564
          %v935 = vunpack.c.l.b16 %v565
          %v936 = vunpack.c.h.b16 %v565
          %v937 = vunpack.c.l.b16 %v566
          %v938 = vunpack.c.h.b16 %v566
          %v939 = vunpack.c.l.b16 %v567
          %v940 = vunpack.c.h.b16 %v567
          %v941 = vunpack.c.l.b16 %v568
          %v942 = vunpack.c.h.b16 %v568
          %v943 = vunpack.c.l.b16 %v569
          %v944 = vunpack.c.h.b16 %v569
          %v945 = vunpack.c.l.b16 %v570
          %v946 = vunpack.c.h.b16 %v570
          %v947 = vunpack.c.l.b16 %v571
          %v948 = vunpack.c.h.b16 %v571
          %v949 = vunpack.c.l.b16 %v572
          %v950 = vunpack.c.h.b16 %v572
          %v951 = vunpack.c.l.b16 %v573
          %v952 = vunpack.c.h.b16 %v573
          %v953 = vunpack.c.l.b16 %v574
          %v954 = vunpack.c.h.b16 %v574
          %v955 = vunpack.c.l.b16 %v575
          %v956 = vunpack.c.h.b16 %v575
          %v957 = vunpack.c.l.b16 %v576
          %v958 = vunpack.c.h.b16 %v576
          %v959 = vunpack.c.l.b16 %v577
          %v960 = vunpack.c.h.b16 %v577
          %v961 = vunpack.c.l.b16 %v578
          %v962 = vunpack.c.h.b16 %v578
          %v963 = vunpack.c.l.b16 %v579
          %v964 = vunpack.c.h.b16 %v579
          %v965 = vunpack.c.l.b16 %v580
          %v966 = vunpack.c.h.b16 %v580
          %v967 = vunpack.c.l.b16 %v581
          %v968 = vunpack.c.h.b16 %v581
          %v969 = vunpack.c.l.b16 %v582
          %v970 = vunpack.c.h.b16 %v582
          %v971 = vunpack.c.l.b16 %v583
          %v972 = vunpack.c.h.b16 %v583
          %v973 = vunpack.c.l.b16 %v584
          %v974 = vunpack.c.h.b16 %v584
          %v975 = vunpack.c.l.b16 %v585
          %v976 = vunpack.c.h.b16 %v585
          %v977 = vunpack.c.l.b16 %v586
          %v978 = vunpack.c.h.b16 %v586
          %v979 = vunpack.c.l.b16 %v587
          %v980 = vunpack.c.h.b16 %v587
          %v981 = vunpack.c.l.b16 %v588
          %v982 = vunpack.c.h.b16 %v588
          %v983 = vunpack.c.l.b16 %v589
          %v984 = vunpack.c.h.b16 %v589
          %v985 = vunpack.c.l.b16 %v590
          %v986 = vunpack.c.h.b16 %v590
          %v987 = vunpack.c.l.b16 %v591
          %v988 = vunpack.c.h.b16 %v591
          %v989 = vunpack.c.l.b16 %v592
          %v990 = vunpack.c.h.b16 %v592
          %v991 = vunpack.c.l.b16 %v593
          %v992 = vunpack.c.h.b16 %v593
          %v993 = vunpack.c.l.b16 %v594
          %v994 = vunpack.c.h.b16 %v594
          %v995 = vunpack.c.l.b16 %v595
          %v996 = vunpack.c.h.b16 %v595
          %v997 = vunpack.c.l.b16 %v596
          %v998 = vunpack.c.h.b16 %v596
          %v999 = vunpack.c.l.b16 %v597
          %v1000 = vunpack.c.h.b16 %v597
          %v1001 = vunpack.c.l.b16 %v598
          %v1002 = vunpack.c.h.b16 %v598
          %v1003 = vunpack.c.l.b16 %v599
          %v1004 = vunpack.c.h.b16 %v599
          %v1005 = vunpack.c.l.b16 %v600
          %v1006 = vunpack.c.h.b16 %v600
          %v1007 = vunpack.c.l.b16 %v601
          %v1008 = vunpack.c.h.b16 %v601
          %v1009 = vunpack.c.l.b16 %v602
          %v1010 = vunpack.c.h.b16 %v602
          %v1011 = vunpack.c.l.b16 %v603
          %v1012 = vunpack.c.h.b16 %v603
          %v1013 = vunpack.c.l.b16 %v604
          %v1014 = vunpack.c.h.b16 %v604
          %v1015 = vunpack.c.l.b16 %v605
          %v1016 = vunpack.c.h.b16 %v605
          %v1017 = vunpack.c.l.b16 %v606
          %v1018 = vunpack.c.h.b16 %v606
          %v1019 = vunpack.c.l.b16 %v607
          %v1020 = vunpack.c.h.b16 %v607
          %v1021 = vunpack.c.l.b16 %v608
          %v1022 = vunpack.c.h.b16 %v608
          %v1023 = vunpack.c.l.b16 %v609
          %v1024 = vunpack.c.h.b16 %v609
          %v1025 = vunpack.c.l.b16 %v610
          %v1026 = vunpack.c.h.b16 %v610
          %v1027 = vunpack.c.l.b16 %v611
          %v1028 = vunpack.c.h.b16 %v611
          %v1029 = vunpack.c.l.b16 %v612
          %v1030 = vunpack.c.h.b16 %v612
          %v1031 = vunpack.c.l.b16 %v613
          %v1032 = vunpack.c.h.b16 %v613
          %v1033 = vunpack.c.l.b16 %v614
          %v1034 = vunpack.c.h.b16 %v614
          %v1035 = vunpack.c.l.b16 %v615
          %v1036 = vunpack.c.h.b16 %v615
          %v1037 = vunpack.c.l.b16 %v616
          %v1038 = vunpack.c.h.b16 %v616
          %v1039 = vunpack.c.l.b16 %v617
          %v1040 = vunpack.c.h.b16 %v617
          %v1041 = vunpack.c.l.b16 %v618
          %v1042 = vunpack.c.h.b16 %v618
          %v1043 = vunpack.c.l.b16 %v619
          %v1044 = vunpack.c.h.b16 %v619
          %v1045 = vunpack.c.l.b16 %v620
          %v1046 = vunpack.c.h.b16 %v620
          %v1047 = vunpack.c.l.b16 %v621
          %v1048 = vunpack.c.h.b16 %v621
          %v1049 = vunpack.c.l.b16 %v622
          %v1050 = vunpack.c.h.b16 %v622
          %v1051 = vunpack.c.l.b16 %v623
          %v1052 = vunpack.c.h.b16 %v623
          %v1053 = vunpack.c.l.b16 %v624
          %v1054 = vunpack.c.h.b16 %v624
          %v1055 = vunpack.c.l.b16 %v625
          %v1056 = vunpack.c.h.b16 %v625
          %v1057 = vunpack.c.l.b16 %v626
          %v1058 = vunpack.c.h.b16 %v626
          %v1059 = vunpack.c.l.b16 %v627
          %v1060 = vunpack.c.h.b16 %v627
          %v1061 = vunpack.c.l.b16 %v628
          %v1062 = vunpack.c.h.b16 %v628
          %v1063 = vunpack.c.l.b16 %v629
          %v1064 = vunpack.c.h.b16 %v629
          %v1065 = vunpack.c.l.b16 %v630
          %v1066 = vunpack.c.h.b16 %v630
          %v1067 = vunpack.c.l.b16 %v631
          %v1068 = vunpack.c.h.b16 %v631
          %v1069 = vunpack.c.l.b16 %v632
          %v1070 = vunpack.c.h.b16 %v632
          %v1071 = vunpack.c.l.b16 %v633
          %v1072 = vunpack.c.h.b16 %v633
          %v1073 = vunpack.c.l.b16 %v634
          %v1074 = vunpack.c.h.b16 %v634
          %v1075 = vunpack.c.l.b16 %v635
          %v1076 = vunpack.c.h.b16 %v635
          %v1077 = vunpack.c.l.b16 %v636
          %v1078 = vunpack.c.h.b16 %v636
          %v1079 = vunpack.c.l.b16 %v637
          %v1080 = vunpack.c.h.b16 %v637
          %v1081 = vunpack.c.l.b16 %v638
          %v1082 = vunpack.c.h.b16 %v638
          %v1083 = vunpack.c.l.b16 %v639
          %v1084 = vunpack.c.h.b16 %v639
          %v1085 = vunpack.c.l.b16 %v640
          %v1086 = vunpack.c.h.b16 %v640
          %v1087 = vunpack.c.l.b16 %v641
          %v1088 = vunpack.c.h.b16 %v641
          %v1089 = vunpack.c.l.b16 %v642
          %v1090 = vunpack.c.h.b16 %v642
          %v1091 = vunpack.c.l.b16 %v643
          %v1092 = vunpack.c.h.b16 %v643
          %v1093 = vunpack.c.l.b16 %v644
          %v1094 = vunpack.c.h.b16 %v644
          %v1095 = vunpack.c.l.b16 %v645
          %v1096 = vunpack.c.h.b16 %v645
          %v1097 = vunpack.c.l.b16 %v646
          %v1098 = vunpack.c.h.b16 %v646
          %v1099 = vunpack.c.l.b16 %v647
          %v1100 = vunpack.c.h.b16 %v647
          %v1101 = vunpack.c.l.b16 %v648
          %v1102 = vunpack.c.h.b16 %v648
          %v1103 = vunpack.c.l.b16 %v649
          %v1104 = vunpack.c.h.b16 %v649
          %v1105 = vunpack.c.l.b16 %v650
          %v1106 = vunpack.c.h.b16 %v650
          %v1107 = vunpack.c.l.b16 %v651
          %v1108 = vunpack.c.h.b16 %v651
          %v1109 = vunpack.c.l.b16 %v652
          %v1110 = vunpack.c.h.b16 %v652
          %v1111 = vunpack.c.l.b16 %v653
          %v1112 = vunpack.c.h.b16 %v653
          %v1113 = vunpack.c.l.b16 %v654
          %v1114 = vunpack.c.h.b16 %v654
          %v1115 = vunpack.c.l.b16 %v655
          %v1116 = vunpack.c.h.b16 %v655
          %v1117 = vunpack.c.l.b16 %v656
          %v1118 = vunpack.c.h.b16 %v656
          %v1119 = vunpack.c.l.b16 %v657
          %v1120 = vunpack.c.h.b16 %v657
          %v1121 = vunpack.c.l.b16 %v658
          %v1122 = vunpack.c.h.b16 %v658
          %v1123 = vunpack.c.l.b16 %v659
          %v1124 = vunpack.c.h.b16 %v659
          %v1125 = vunpack.c.l.b16 %v660
          %v1126 = vunpack.c.h.b16 %v660
          %v1127 = vunpack.c.l.b16 %v661
          %v1128 = vunpack.c.h.b16 %v661
          %v1129 = vunpack.c.l.b16 %v662
          %v1130 = vunpack.c.h.b16 %v662
          %v1131 = vpack.c.b16 %v891, %v875
          %v1132 = vpack.c.b16 %v892, %v876
          %v1133 = vpack.c.b16 %v893, %v877
          %v1134 = vpack.c.b16 %v894, %v878
          %v1135 = vpack.c.b16 %v895, %v879
          %v1136 = vpack.c.b16 %v896, %v880
          %v1137 = vpack.c.b16 %v897, %v881
          %v1138 = vpack.c.b16 %v898, %v882
          %v1139 = vpack.c.b16 %v899, %v883
          %v1140 = vpack.c.b16 %v900, %v884
          %v1141 = vpack.c.b16 %v901, %v885
          %v1142 = vpack.c.b16 %v902, %v886
          %v1143 = vpack.c.b16 %v903, %v887
          %v1144 = vpack.c.b16 %v904, %v888
          %v1145 = vpack.c.b16 %v905, %v889
          %v1146 = vpack.c.b16 %v906, %v890
          %v1147 = vpack.c.b16 %v923, %v907
          %v1148 = vpack.c.b16 %v924, %v908
          %v1149 = vpack.c.b16 %v925, %v909
          %v1150 = vpack.c.b16 %v926, %v910
          %v1151 = vpack.c.b16 %v927, %v911
          %v1152 = vpack.c.b16 %v928, %v912
          %v1153 = vpack.c.b16 %v929, %v913
          %v1154 = vpack.c.b16 %v930, %v914
          %v1155 = vpack.c.b16 %v931, %v915
          %v1156 = vpack.c.b16 %v932, %v916
          %v1157 = vpack.c.b16 %v933, %v917
          %v1158 = vpack.c.b16 %v934, %v918
          %v1159 = vpack.c.b16 %v935, %v919
          %v1160 = vpack.c.b16 %v936, %v920
          %v1161 = vpack.c.b16 %v937, %v921
          %v1162 = vpack.c.b16 %v938, %v922
          %v1163 = vpack.c.b16 %v955, %v939
          %v1164 = vpack.c.b16 %v956, %v940
          %v1165 = vpack.c.b16 %v957, %v941
          %v1166 = vpack.c.b16 %v958, %v942
          %v1167 = vpack.c.b16 %v959, %v943
          %v1168 = vpack.c.b16 %v960, %v944
          %v1169 = vpack.c.b16 %v961, %v945
          %v1170 = vpack.c.b16 %v962, %v946
          %v1171 = vpack.c.b16 %v963, %v947
          %v1172 = vpack.c.b16 %v964, %v948
          %v1173 = vpack.c.b16 %v965, %v949
          %v1174 = vpack.c.b16 %v966, %v950
          %v1175 = vpack.c.b16 %v967, %v951
          %v1176 = vpack.c.b16 %v968, %v952
          %v1177 = vpack.c.b16 %v969, %v953
          %v1178 = vpack.c.b16 %v970, %v954
          %v1179 = vpack.c.b16 %v987, %v971
          %v1180 = vpack.c.b16 %v988, %v972
          %v1181 = vpack.c.b16 %v989, %v973
          %v1182 = vpack.c.b16 %v990, %v974
          %v1183 = vpack.c.b16 %v991, %v975
          %v1184 = vpack.c.b16 %v992, %v976
          %v1185 = vpack.c.b16 %v993, %v977
          %v1186 = vpack.c.b16 %v994, %v978
          %v1187 = vpack.c.b16 %v995, %v979
          %v1188 = vpack.c.b16 %v996, %v980
          %v1189 = vpack.c.b16 %v997, %v981
          %v1190 = vpack.c.b16 %v998, %v982
          %v1191 = vpack.c.b16 %v999, %v983
          %v1192 = vpack.c.b16 %v1000, %v984
          %v1193 = vpack.c.b16 %v1001, %v985
          %v1194 = vpack.c.b16 %v1002, %v986
          %v1195 = vpack.c.b16 %v1019, %v1003
          %v1196 = vpack.c.b16 %v1020, %v1004
          %v1197 = vpack.c.b16 %v1021, %v1005
          %v1198 = vpack.c.b16 %v1022, %v1006
          %v1199 = vpack.c.b16 %v1023, %v1007
          %v1200 = vpack.c.b16 %v1024, %v1008
          %v1201 = vpack.c.b16 %v1025, %v1009
          %v1202 = vpack.c.b16 %v1026, %v1010
          %v1203 = vpack.c.b16 %v1027, %v1011
          %v1204 = vpack.c.b16 %v1028, %v1012
          %v1205 = vpack.c.b16 %v1029, %v1013
          %v1206 = vpack.c.b16 %v1030, %v1014
          %v1207 = vpack.c.b16 %v1031, %v1015
          %v1208 = vpack.c.b16 %v1032, %v1016
          %v1209 = vpack.c.b16 %v1033, %v1017
          %v1210 = vpack.c.b16 %v1034, %v1018
          %v1211 = vpack.c.b16 %v1051, %v1035
          %v1212 = vpack.c.b16 %v1052, %v1036
          %v1213 = vpack.c.b16 %v1053, %v1037
          %v1214 = vpack.c.b16 %v1054, %v1038
          %v1215 = vpack.c.b16 %v1055, %v1039
          %v1216 = vpack.c.b16 %v1056, %v1040
          %v1217 = vpack.c.b16 %v1057, %v1041
          %v1218 = vpack.c.b16 %v1058, %v1042
          %v1219 = vpack.c.b16 %v1059, %v1043
          %v1220 = vpack.c.b16 %v1060, %v1044
          %v1221 = vpack.c.b16 %v1061, %v1045
          %v1222 = vpack.c.b16 %v1062, %v1046
          %v1223 = vpack.c.b16 %v1063, %v1047
          %v1224 = vpack.c.b16 %v1064, %v1048
          %v1225 = vpack.c.b16 %v1065, %v1049
          %v1226 = vpack.c.b16 %v1066, %v1050
          %v1227 = vpack.c.b16 %v1083, %v1067
          %v1228 = vpack.c.b16 %v1084, %v1068
          %v1229 = vpack.c.b16 %v1085, %v1069
          %v1230 = vpack.c.b16 %v1086, %v1070
          %v1231 = vpack.c.b16 %v1087, %v1071
          %v1232 = vpack.c.b16 %v1088, %v1072
          %v1233 = vpack.c.b16 %v1089, %v1073
          %v1234 = vpack.c.b16 %v1090, %v1074
          %v1235 = vpack.c.b16 %v1091, %v1075
          %v1236 = vpack.c.b16 %v1092, %v1076
          %v1237 = vpack.c.b16 %v1093, %v1077
          %v1238 = vpack.c.b16 %v1094, %v1078
          %v1239 = vpack.c.b16 %v1095, %v1079
          %v1240 = vpack.c.b16 %v1096, %v1080
          %v1241 = vpack.c.b16 %v1097, %v1081
          %v1242 = vpack.c.b16 %v1098, %v1082
          %v1243 = vpack.c.b16 %v1115, %v1099
          %v1244 = vpack.c.b16 %v1116, %v1100
          %v1245 = vpack.c.b16 %v1117, %v1101
          %v1246 = vpack.c.b16 %v1118, %v1102
          %v1247 = vpack.c.b16 %v1119, %v1103
          %v1248 = vpack.c.b16 %v1120, %v1104
          %v1249 = vpack.c.b16 %v1121, %v1105
          %v1250 = vpack.c.b16 %v1122, %v1106
          %v1251 = vpack.c.b16 %v1123, %v1107
          %v1252 = vpack.c.b16 %v1124, %v1108
          %v1253 = vpack.c.b16 %v1125, %v1109
          %v1254 = vpack.c.b16 %v1126, %v1110
          %v1255 = vpack.c.b16 %v1127, %v1111
          %v1256 = vpack.c.b16 %v1128, %v1112
          %v1257 = vpack.c.b16 %v1129, %v1113
          %v1258 = vpack.c.b16 %v1130, %v1114
          %1387 = vmatprep.subr.bf16.mxu0 %v1244
          %1388 = vmatpush1.bf16.msra.mxu0 %v1243
          %1389 = vmatprep.subr.bf16.mxu0 %v1228
          %1390 = vmatpush1.bf16.msra.mxu0 %v1227
          %1391 = vmatprep.subr.bf16.mxu0 %v1212
          %1392 = vmatpush1.bf16.msra.mxu0 %v1211
          %1393 = vmatprep.subr.bf16.mxu0 %v1196
          %1394 = vmatpush1.bf16.msra.mxu0 %v1195
          %1395 = vmatprep.subr.bf16.mxu0 %v1180
          %1396 = vmatpush1.bf16.msra.mxu0 %v1179
          %1397 = vmatprep.subr.bf16.mxu0 %v1164
          %1398 = vmatpush1.bf16.msra.mxu0 %v1163
          %1399 = vmatprep.subr.bf16.mxu0 %v1148
          %1400 = vmatpush1.bf16.msra.mxu0 %v1147
          %1401 = vmatprep.subr.bf16.mxu0 %v1132
          %1402 = vmatpush1.bf16.msra.mxu0 %v1131
          %1403 = vmatprep.subr.bf16.mxu0 0
          %1404 = vmatpush2.bf16.msra.mxu0 0
          %1405 = vmatprep.subr.bf16.mxu0 0
          %1406 = vmatpush2.bf16.msra.mxu0 0
          %1407 = vmatprep.subr.bf16.mxu0 0
          %1408 = vmatpush2.bf16.msra.mxu0 0
          %1409 = vmatprep.subr.bf16.mxu0 0
          %1410 = vmatpush2.bf16.msra.mxu0 0
          %1411 = vmatprep.subr.bf16.mxu0 0
          %1412 = vmatpush2.bf16.msra.mxu0 0
          %1413 = vmatprep.subr.bf16.mxu0 0
          %1414 = vmatpush2.bf16.msra.mxu0 0
          %1415 = vmatprep.subr.bf16.mxu0 0
          %1416 = vmatpush2.bf16.msra.mxu0 0
          %1417 = vmatprep.subr.bf16.mxu0 0
          %1418 = vmatpush2.bf16.msra.mxu0 0
          %1419 = vmatprep.mubr.bf16.mxu0 0
          %1420 = vmatmul.mubr.bf16.gmra.mxu0 %v534
          %v1421 = vpop.f32.mrf.mxu0
          %v1422 = vadd.f32 %v670, %v1421
          %v1423 = vpop.f32.mrf.mxu0
          %v1424 = vadd.f32 %v674, %v1423
          %v1425 = vpop.f32.mrf.mxu0
          %v1426 = vpop.f32.mrf.mxu0
          %1427 = vdwg.mxu0
          %1428 = vmatprep.subr.bf16.mxu0 %v1246
          %1429 = vmatpush1.bf16.msra.mxu0 %v1245
          %1430 = vmatprep.subr.bf16.mxu0 %v1230
          %1431 = vmatpush1.bf16.msra.mxu0 %v1229
          %1432 = vmatprep.subr.bf16.mxu0 %v1214
          %1433 = vmatpush1.bf16.msra.mxu0 %v1213
          %1434 = vmatprep.subr.bf16.mxu0 %v1198
          %1435 = vmatpush1.bf16.msra.mxu0 %v1197
          %1436 = vmatprep.subr.bf16.mxu0 %v1182
          %1437 = vmatpush1.bf16.msra.mxu0 %v1181
          %1438 = vmatprep.subr.bf16.mxu0 %v1166
          %1439 = vmatpush1.bf16.msra.mxu0 %v1165
          %1440 = vmatprep.subr.bf16.mxu0 %v1150
          %1441 = vmatpush1.bf16.msra.mxu0 %v1149
          %1442 = vmatprep.subr.bf16.mxu0 %v1134
          %1443 = vmatpush1.bf16.msra.mxu0 %v1133
          %1444 = vmatprep.subr.bf16.mxu0 0
          %1445 = vmatpush2.bf16.msra.mxu0 0
          %1446 = vmatprep.subr.bf16.mxu0 0
          %1447 = vmatpush2.bf16.msra.mxu0 0
          %1448 = vmatprep.subr.bf16.mxu0 0
          %1449 = vmatpush2.bf16.msra.mxu0 0
          %1450 = vmatprep.subr.bf16.mxu0 0
          %1451 = vmatpush2.bf16.msra.mxu0 0
          %1452 = vmatprep.subr.bf16.mxu0 0
          %1453 = vmatpush2.bf16.msra.mxu0 0
          %1454 = vmatprep.subr.bf16.mxu0 0
          %1455 = vmatpush2.bf16.msra.mxu0 0
          %1456 = vmatprep.subr.bf16.mxu0 0
          %1457 = vmatpush2.bf16.msra.mxu0 0
          %1458 = vmatprep.subr.bf16.mxu0 0
          %1459 = vmatpush2.bf16.msra.mxu0 0
          %1460 = vmatprep.mubr.bf16.mxu0 0
          %1461 = vmatmul.mubr.bf16.gmra.mxu0 %v534
          %v1462 = vpop.f32.mrf.mxu0
          %v1463 = vadd.f32 %v678, %v1462
          %v1464 = vpop.f32.mrf.mxu0
          %v1465 = vadd.f32 %v682, %v1464
          %v1466 = vpop.f32.mrf.mxu0
          %v1467 = vpop.f32.mrf.mxu0
          %1468 = vdwg.mxu0
          %1469 = vmatprep.subr.bf16.mxu0 %v1248
          %1470 = vmatpush1.bf16.msra.mxu0 %v1247
          %1471 = vmatprep.subr.bf16.mxu0 %v1232
          %1472 = vmatpush1.bf16.msra.mxu0 %v1231
          %1473 = vmatprep.subr.bf16.mxu0 %v1216
          %1474 = vmatpush1.bf16.msra.mxu0 %v1215
          %1475 = vmatprep.subr.bf16.mxu0 %v1200
          %1476 = vmatpush1.bf16.msra.mxu0 %v1199
          %1477 = vmatprep.subr.bf16.mxu0 %v1184
          %1478 = vmatpush1.bf16.msra.mxu0 %v1183
          %1479 = vmatprep.subr.bf16.mxu0 %v1168
          %1480 = vmatpush1.bf16.msra.mxu0 %v1167
          %1481 = vmatprep.subr.bf16.mxu0 %v1152
          %1482 = vmatpush1.bf16.msra.mxu0 %v1151
          %1483 = vmatprep.subr.bf16.mxu0 %v1136
          %1484 = vmatpush1.bf16.msra.mxu0 %v1135
          %1485 = vmatprep.subr.bf16.mxu0 0
          %1486 = vmatpush2.bf16.msra.mxu0 0
          %1487 = vmatprep.subr.bf16.mxu0 0
          %1488 = vmatpush2.bf16.msra.mxu0 0
          %1489 = vmatprep.subr.bf16.mxu0 0
          %1490 = vmatpush2.bf16.msra.mxu0 0
          %1491 = vmatprep.subr.bf16.mxu0 0
          %1492 = vmatpush2.bf16.msra.mxu0 0
          %1493 = vmatprep.subr.bf16.mxu0 0
          %1494 = vmatpush2.bf16.msra.mxu0 0
          %1495 = vmatprep.subr.bf16.mxu0 0
          %1496 = vmatpush2.bf16.msra.mxu0 0
          %1497 = vmatprep.subr.bf16.mxu0 0
          %1498 = vmatpush2.bf16.msra.mxu0 0
          %1499 = vmatprep.subr.bf16.mxu0 0
          %1500 = vmatpush2.bf16.msra.mxu0 0
          %1501 = vmatprep.mubr.bf16.mxu0 0
          %1502 = vmatmul.mubr.bf16.gmra.mxu0 %v534
          %v1503 = vpop.f32.mrf.mxu0
          %v1504 = vadd.f32 %v686, %v1503
          %v1505 = vpop.f32.mrf.mxu0
          %v1506 = vadd.f32 %v690, %v1505
          %v1507 = vpop.f32.mrf.mxu0
          %v1508 = vpop.f32.mrf.mxu0
          %1509 = vdwg.mxu0
          %1510 = vmatprep.subr.bf16.mxu0 %v1250
          %1511 = vmatpush1.bf16.msra.mxu0 %v1249
          %1512 = vmatprep.subr.bf16.mxu0 %v1234
          %1513 = vmatpush1.bf16.msra.mxu0 %v1233
          %1514 = vmatprep.subr.bf16.mxu0 %v1218
          %1515 = vmatpush1.bf16.msra.mxu0 %v1217
          %1516 = vmatprep.subr.bf16.mxu0 %v1202
          %1517 = vmatpush1.bf16.msra.mxu0 %v1201
          %1518 = vmatprep.subr.bf16.mxu0 %v1186
          %1519 = vmatpush1.bf16.msra.mxu0 %v1185
          %1520 = vmatprep.subr.bf16.mxu0 %v1170
          %1521 = vmatpush1.bf16.msra.mxu0 %v1169
          %1522 = vmatprep.subr.bf16.mxu0 %v1154
          %1523 = vmatpush1.bf16.msra.mxu0 %v1153
          %1524 = vmatprep.subr.bf16.mxu0 %v1138
          %1525 = vmatpush1.bf16.msra.mxu0 %v1137
          %1526 = vmatprep.subr.bf16.mxu0 0
          %1527 = vmatpush2.bf16.msra.mxu0 0
          %1528 = vmatprep.subr.bf16.mxu0 0
          %1529 = vmatpush2.bf16.msra.mxu0 0
          %1530 = vmatprep.subr.bf16.mxu0 0
          %1531 = vmatpush2.bf16.msra.mxu0 0
          %1532 = vmatprep.subr.bf16.mxu0 0
          %1533 = vmatpush2.bf16.msra.mxu0 0
          %1534 = vmatprep.subr.bf16.mxu0 0
          %1535 = vmatpush2.bf16.msra.mxu0 0
          %1536 = vmatprep.subr.bf16.mxu0 0
          %1537 = vmatpush2.bf16.msra.mxu0 0
          %1538 = vmatprep.subr.bf16.mxu0 0
          %1539 = vmatpush2.bf16.msra.mxu0 0
          %1540 = vmatprep.subr.bf16.mxu0 0
          %1541 = vmatpush2.bf16.msra.mxu0 0
          %1542 = vmatprep.mubr.bf16.mxu0 0
          %1543 = vmatmul.mubr.bf16.gmra.mxu0 %v534
          %v1544 = vpop.f32.mrf.mxu0
          %v1545 = vadd.f32 %v694, %v1544
          %v1546 = vpop.f32.mrf.mxu0
          %v1547 = vadd.f32 %v698, %v1546
          %v1548 = vpop.f32.mrf.mxu0
          %v1549 = vpop.f32.mrf.mxu0
          %1550 = vdwg.mxu0
          %1551 = vmatprep.subr.bf16.mxu0 %v1252
          %1552 = vmatpush1.bf16.msra.mxu0 %v1251
          %1553 = vmatprep.subr.bf16.mxu0 %v1236
          %1554 = vmatpush1.bf16.msra.mxu0 %v1235
          %1555 = vmatprep.subr.bf16.mxu0 %v1220
          %1556 = vmatpush1.bf16.msra.mxu0 %v1219
          %1557 = vmatprep.subr.bf16.mxu0 %v1204
          %1558 = vmatpush1.bf16.msra.mxu0 %v1203
          %1559 = vmatprep.subr.bf16.mxu0 %v1188
          %1560 = vmatpush1.bf16.msra.mxu0 %v1187
          %1561 = vmatprep.subr.bf16.mxu0 %v1172
          %1562 = vmatpush1.bf16.msra.mxu0 %v1171
          %1563 = vmatprep.subr.bf16.mxu0 %v1156
          %1564 = vmatpush1.bf16.msra.mxu0 %v1155
          %1565 = vmatprep.subr.bf16.mxu0 %v1140
          %1566 = vmatpush1.bf16.msra.mxu0 %v1139
          %1567 = vmatprep.subr.bf16.mxu0 0
          %1568 = vmatpush2.bf16.msra.mxu0 0
          %1569 = vmatprep.subr.bf16.mxu0 0
          %1570 = vmatpush2.bf16.msra.mxu0 0
          %1571 = vmatprep.subr.bf16.mxu0 0
          %1572 = vmatpush2.bf16.msra.mxu0 0
          %1573 = vmatprep.subr.bf16.mxu0 0
          %1574 = vmatpush2.bf16.msra.mxu0 0
          %1575 = vmatprep.subr.bf16.mxu0 0
          %1576 = vmatpush2.bf16.msra.mxu0 0
          %1577 = vmatprep.subr.bf16.mxu0 0
          %1578 = vmatpush2.bf16.msra.mxu0 0
          %1579 = vmatprep.subr.bf16.mxu0 0
          %1580 = vmatpush2.bf16.msra.mxu0 0
          %1581 = vmatprep.subr.bf16.mxu0 0
          %1582 = vmatpush2.bf16.msra.mxu0 0
          %1583 = vmatprep.mubr.bf16.mxu0 0
          %1584 = vmatmul.mubr.bf16.gmra.mxu0 %v534
          %v1585 = vpop.f32.mrf.mxu0
          %v1586 = vadd.f32 %v702, %v1585
          %v1587 = vpop.f32.mrf.mxu0
          %v1588 = vadd.f32 %v706, %v1587
          %v1589 = vpop.f32.mrf.mxu0
          %v1590 = vpop.f32.mrf.mxu0
          %1591 = vdwg.mxu0
          %1592 = vmatprep.subr.bf16.mxu0 %v1254
          %1593 = vmatpush1.bf16.msra.mxu0 %v1253
          %1594 = vmatprep.subr.bf16.mxu0 %v1238
          %1595 = vmatpush1.bf16.msra.mxu0 %v1237
          %1596 = vmatprep.subr.bf16.mxu0 %v1222
          %1597 = vmatpush1.bf16.msra.mxu0 %v1221
          %1598 = vmatprep.subr.bf16.mxu0 %v1206
          %1599 = vmatpush1.bf16.msra.mxu0 %v1205
          %1600 = vmatprep.subr.bf16.mxu0 %v1190
          %1601 = vmatpush1.bf16.msra.mxu0 %v1189
          %1602 = vmatprep.subr.bf16.mxu0 %v1174
          %1603 = vmatpush1.bf16.msra.mxu0 %v1173
          %1604 = vmatprep.subr.bf16.mxu0 %v1158
          %1605 = vmatpush1.bf16.msra.mxu0 %v1157
          %1606 = vmatprep.subr.bf16.mxu0 %v1142
          %1607 = vmatpush1.bf16.msra.mxu0 %v1141
          %1608 = vmatprep.subr.bf16.mxu0 0
          %1609 = vmatpush2.bf16.msra.mxu0 0
          %1610 = vmatprep.subr.bf16.mxu0 0
          %1611 = vmatpush2.bf16.msra.mxu0 0
          %1612 = vmatprep.subr.bf16.mxu0 0
          %1613 = vmatpush2.bf16.msra.mxu0 0
          %1614 = vmatprep.subr.bf16.mxu0 0
          %1615 = vmatpush2.bf16.msra.mxu0 0
          %1616 = vmatprep.subr.bf16.mxu0 0
          %1617 = vmatpush2.bf16.msra.mxu0 0
          %1618 = vmatprep.subr.bf16.mxu0 0
          %1619 = vmatpush2.bf16.msra.mxu0 0
          %1620 = vmatprep.subr.bf16.mxu0 0
          %1621 = vmatpush2.bf16.msra.mxu0 0
          %1622 = vmatprep.subr.bf16.mxu0 0
          %1623 = vmatpush2.bf16.msra.mxu0 0
          %1624 = vmatprep.mubr.bf16.mxu0 0
          %1625 = vmatmul.mubr.bf16.gmra.mxu0 %v534
          %v1626 = vpop.f32.mrf.mxu0
          %v1627 = vadd.f32 %v710, %v1626
          %v1628 = vpop.f32.mrf.mxu0
          %v1629 = vadd.f32 %v714, %v1628
          %v1630 = vpop.f32.mrf.mxu0
          %v1631 = vpop.f32.mrf.mxu0
          %1632 = vdwg.mxu0
          %1633 = vmatprep.subr.bf16.mxu0 %v1256
          %1634 = vmatpush1.bf16.msra.mxu0 %v1255
          %1635 = vmatprep.subr.bf16.mxu0 %v1240
          %1636 = vmatpush1.bf16.msra.mxu0 %v1239
          %1637 = vmatprep.subr.bf16.mxu0 %v1224
          %1638 = vmatpush1.bf16.msra.mxu0 %v1223
          %1639 = vmatprep.subr.bf16.mxu0 %v1208
          %1640 = vmatpush1.bf16.msra.mxu0 %v1207
          %1641 = vmatprep.subr.bf16.mxu0 %v1192
          %1642 = vmatpush1.bf16.msra.mxu0 %v1191
          %1643 = vmatprep.subr.bf16.mxu0 %v1176
          %1644 = vmatpush1.bf16.msra.mxu0 %v1175
          %1645 = vmatprep.subr.bf16.mxu0 %v1160
          %1646 = vmatpush1.bf16.msra.mxu0 %v1159
          %1647 = vmatprep.subr.bf16.mxu0 %v1144
          %1648 = vmatpush1.bf16.msra.mxu0 %v1143
          %1649 = vmatprep.subr.bf16.mxu0 0
          %1650 = vmatpush2.bf16.msra.mxu0 0
          %1651 = vmatprep.subr.bf16.mxu0 0
          %1652 = vmatpush2.bf16.msra.mxu0 0
          %1653 = vmatprep.subr.bf16.mxu0 0
          %1654 = vmatpush2.bf16.msra.mxu0 0
          %1655 = vmatprep.subr.bf16.mxu0 0
          %1656 = vmatpush2.bf16.msra.mxu0 0
          %1657 = vmatprep.subr.bf16.mxu0 0
          %1658 = vmatpush2.bf16.msra.mxu0 0
          %1659 = vmatprep.subr.bf16.mxu0 0
          %1660 = vmatpush2.bf16.msra.mxu0 0
          %1661 = vmatprep.subr.bf16.mxu0 0
          %1662 = vmatpush2.bf16.msra.mxu0 0
          %1663 = vmatprep.subr.bf16.mxu0 0
          %1664 = vmatpush2.bf16.msra.mxu0 0
          %1665 = vmatprep.mubr.bf16.mxu0 0
          %1666 = vmatmul.mubr.bf16.gmra.mxu0 %v534
          %v1667 = vpop.f32.mrf.mxu0
          %v1668 = vadd.f32 %v718, %v1667
          %v1669 = vpop.f32.mrf.mxu0
          %v1670 = vadd.f32 %v722, %v1669
          %v1671 = vpop.f32.mrf.mxu0
          %v1672 = vpop.f32.mrf.mxu0
          %1673 = vdwg.mxu0
          %1674 = vmatprep.subr.bf16.mxu0 %v1258
          %1675 = vmatpush1.bf16.msra.mxu0 %v1257
          %1676 = vmatprep.subr.bf16.mxu0 %v1242
          %1677 = vmatpush1.bf16.msra.mxu0 %v1241
          %1678 = vmatprep.subr.bf16.mxu0 %v1226
          %1679 = vmatpush1.bf16.msra.mxu0 %v1225
          %1680 = vmatprep.subr.bf16.mxu0 %v1210
          %1681 = vmatpush1.bf16.msra.mxu0 %v1209
          %1682 = vmatprep.subr.bf16.mxu0 %v1194
          %1683 = vmatpush1.bf16.msra.mxu0 %v1193
          %1684 = vmatprep.subr.bf16.mxu0 %v1178
          %1685 = vmatpush1.bf16.msra.mxu0 %v1177
          %1686 = vmatprep.subr.bf16.mxu0 %v1162
          %1687 = vmatpush1.bf16.msra.mxu0 %v1161
          %1688 = vmatprep.subr.bf16.mxu0 %v1146
          %1689 = vmatpush1.bf16.msra.mxu0 %v1145
          %1690 = vmatprep.subr.bf16.mxu0 0
          %1691 = vmatpush2.bf16.msra.mxu0 0
          %1692 = vmatprep.subr.bf16.mxu0 0
          %1693 = vmatpush2.bf16.msra.mxu0 0
          %1694 = vmatprep.subr.bf16.mxu0 0
          %1695 = vmatpush2.bf16.msra.mxu0 0
          %1696 = vmatprep.subr.bf16.mxu0 0
          %1697 = vmatpush2.bf16.msra.mxu0 0
          %1698 = vmatprep.subr.bf16.mxu0 0
          %1699 = vmatpush2.bf16.msra.mxu0 0
          %1700 = vmatprep.subr.bf16.mxu0 0
          %1701 = vmatpush2.bf16.msra.mxu0 0
          %1702 = vmatprep.subr.bf16.mxu0 0
          %1703 = vmatpush2.bf16.msra.mxu0 0
          %1704 = vmatprep.subr.bf16.mxu0 0
          %1705 = vmatpush2.bf16.msra.mxu0 0
          %1706 = vmatprep.mubr.bf16.mxu0 0
          %1707 = vmatmul.mubr.bf16.gmra.mxu0 %v534
          %v1708 = vpop.f32.mrf.mxu0
          %v1709 = vadd.f32 %v726, %v1708
          %v1710 = vpop.f32.mrf.mxu0
          %v1711 = vadd.f32 %v730, %v1710
          %v1712 = vpop.f32.mrf.mxu0
          %v1713 = vpop.f32.mrf.mxu0
          %1714 = vdwg.mxu0
          %vm1715 = vcmp.gt.f32.partialorder %v1422, 0.0
          %vm1716 = vcmp.gt.f32.partialorder %v1424, 0.0
          %vm1717 = vcmp.gt.f32.partialorder %v1463, 0.0
          %vm1718 = vcmp.gt.f32.partialorder %v1465, 0.0
          %vm1719 = vcmp.gt.f32.partialorder %v1504, 0.0
          %vm1720 = vcmp.gt.f32.partialorder %v1506, 0.0
          %vm1721 = vcmp.gt.f32.partialorder %v1545, 0.0
          %vm1722 = vcmp.gt.f32.partialorder %v1547, 0.0
          %vm1723 = vcmp.gt.f32.partialorder %v1586, 0.0
          %vm1724 = vcmp.gt.f32.partialorder %v1588, 0.0
          %vm1725 = vcmp.gt.f32.partialorder %v1627, 0.0
          %vm1726 = vcmp.gt.f32.partialorder %v1629, 0.0
          %vm1727 = vcmp.gt.f32.partialorder %v1668, 0.0
          %vm1728 = vcmp.gt.f32.partialorder %v1670, 0.0
          %vm1729 = vcmp.gt.f32.partialorder %v1709, 0.0
          %vm1730 = vcmp.gt.f32.partialorder %v1711, 0.0
          %v1731 = vmul.f32 %v1422, 0.2
          %v1732 = vmul.f32 %v1424, 0.2
          %v1733 = vmul.f32 %v1463, 0.2
          %v1734 = vmul.f32 %v1465, 0.2
          %v1735 = vmul.f32 %v1504, 0.2
          %v1736 = vmul.f32 %v1506, 0.2
          %v1737 = vmul.f32 %v1545, 0.2
          %v1738 = vmul.f32 %v1547, 0.2
          %v1739 = vmul.f32 %v1586, 0.2
          %v1740 = vmul.f32 %v1588, 0.2
          %v1741 = vmul.f32 %v1627, 0.2
          %v1742 = vmul.f32 %v1629, 0.2
          %v1743 = vmul.f32 %v1668, 0.2
          %v1744 = vmul.f32 %v1670, 0.2
          %v1745 = vmul.f32 %v1709, 0.2
          %v1746 = vmul.f32 %v1711, 0.2
          %v1747 = vsel %vm1715, %v1422, %v1731
          %v1748 = vsel %vm1716, %v1424, %v1732
          %v1749 = vsel %vm1717, %v1463, %v1733
          %v1750 = vsel %vm1718, %v1465, %v1734
          %v1751 = vsel %vm1719, %v1504, %v1735
          %v1752 = vsel %vm1720, %v1506, %v1736
          %v1753 = vsel %vm1721, %v1545, %v1737
          %v1754 = vsel %vm1722, %v1547, %v1738
          %v1755 = vsel %vm1723, %v1586, %v1739
          %v1756 = vsel %vm1724, %v1588, %v1740
          %v1757 = vsel %vm1725, %v1627, %v1741
          %v1758 = vsel %vm1726, %v1629, %v1742
          %v1759 = vsel %vm1727, %v1668, %v1743
          %v1760 = vsel %vm1728, %v1670, %v1744
          %v1761 = vsel %vm1729, %v1709, %v1745
          %v1762 = vsel %vm1730, %v1711, %v1746
          %1763 = vst [vmem:[#allocation3] sm:$0xff] %v1747
          %1764 = vst [vmem:[#allocation3 + $0x8] sm:$0xff] %v1748
          %1765 = vst [vmem:[#allocation3 + $0x10] sm:$0xff] %v1749
          %1766 = vst [vmem:[#allocation3 + $0x18] sm:$0xff] %v1750
          %1767 = vst [vmem:[#allocation3 + $0x20] sm:$0xff] %v1751
          %1768 = vst [vmem:[#allocation3 + $0x28] sm:$0xff] %v1752
          %1769 = vst [vmem:[#allocation3 + $0x30] sm:$0xff] %v1753
          %1770 = vst [vmem:[#allocation3 + $0x38] sm:$0xff] %v1754
          %1771 = vst [vmem:[#allocation3 + $0x40] sm:$0xff] %v1755
          %1772 = vst [vmem:[#allocation3 + $0x48] sm:$0xff] %v1756
          %1773 = vst [vmem:[#allocation3 + $0x50] sm:$0xff] %v1757
          %1774 = vst [vmem:[#allocation3 + $0x58] sm:$0xff] %v1758
          %1775 = vst [vmem:[#allocation3 + $0x60] sm:$0xff] %v1759
          %1776 = vst [vmem:[#allocation3 + $0x68] sm:$0xff] %v1760
          %1777 = vst [vmem:[#allocation3 + $0x70] sm:$0xff] %v1761
          %1778 = vst [vmem:[#allocation3 + $0x78] sm:$0xff] %v1762
          %1779 = vst [vmem:[#allocation2] sm:$0xff] 0.0
          %1780 = vst [vmem:[#allocation2 + $0x8] sm:$0xff] 0.0
          %1781 = vst [vmem:[#allocation2 + $0x10] sm:$0xff] 0.0
          %1782 = vst [vmem:[#allocation2 + $0x18] sm:$0xff] 0.0
          %1783 = vst [vmem:[#allocation2 + $0x20] sm:$0xff] 0.0
          %1784 = vst [vmem:[#allocation2 + $0x28] sm:$0xff] 0.0
          %1785 = vst [vmem:[#allocation2 + $0x30] sm:$0xff] 0.0
          %1786 = vst [vmem:[#allocation2 + $0x38] sm:$0xff] 0.0
          %1787 = vst [vmem:[#allocation2 + $0x40] sm:$0xff] 0.0
          %1788 = vst [vmem:[#allocation2 + $0x48] sm:$0xff] 0.0
          %1789 = vst [vmem:[#allocation2 + $0x50] sm:$0xff] 0.0
          %1790 = vst [vmem:[#allocation2 + $0x58] sm:$0xff] 0.0
          %1791 = vst [vmem:[#allocation2 + $0x60] sm:$0xff] 0.0
          %1792 = vst [vmem:[#allocation2 + $0x68] sm:$0xff] 0.0
          %1793 = vst [vmem:[#allocation2 + $0x70] sm:$0xff] 0.0
          %1794 = vst [vmem:[#allocation2 + $0x78] sm:$0xff] 0.0
        $region92: #{cond_flow_forward.1} parent=55 // pred_fallthru
          _
        %p1795 = scmp.lt.s32.totalorder %s27, 0
        %s1796 = ssub.s32 0, %s27
        %s1797 = scalar_select %p1795, %s1796, %s27
        %s1798 = sand.u32 %s1797, 1
        %s1799 = ssub.s32 0, %s1798
        %s1800 = scalar_select %p1795, %s1799, %s1798
        %p1801 = scmp.ne.s32.totalorder %s1800, 0
        %p1802 = scmp.lt.s32.totalorder %s1800, 0
        %p1803 = pnand %p1802, %p1801
        %p1804 = pneg %p1803
        %s1805 = sadd.s32 %s1800, 2
        %s1806 = scalar_select %p1804, %s1805, %s1800
        %p1807 = scmp.eq.s32.totalorder %s1806, 0
        %v1808 = vld [vmem:[#allocation3] sm:$0xff]
        %v1809 = vld [vmem:[#allocation3 + $0x8] sm:$0xff]
        %v1810 = vld [vmem:[#allocation3 + $0x10] sm:$0xff]
        %v1811 = vld [vmem:[#allocation3 + $0x18] sm:$0xff]
        %v1812 = vld [vmem:[#allocation3 + $0x20] sm:$0xff]
        %v1813 = vld [vmem:[#allocation3 + $0x28] sm:$0xff]
        %v1814 = vld [vmem:[#allocation3 + $0x30] sm:$0xff]
        %v1815 = vld [vmem:[#allocation3 + $0x38] sm:$0xff]
        %v1816 = vld [vmem:[#allocation3 + $0x40] sm:$0xff]
        %v1817 = vld [vmem:[#allocation3 + $0x48] sm:$0xff]
        %v1818 = vld [vmem:[#allocation3 + $0x50] sm:$0xff]
        %v1819 = vld [vmem:[#allocation3 + $0x58] sm:$0xff]
        %v1820 = vld [vmem:[#allocation3 + $0x60] sm:$0xff]
        %v1821 = vld [vmem:[#allocation3 + $0x68] sm:$0xff]
        %v1822 = vld [vmem:[#allocation3 + $0x70] sm:$0xff]
        %v1823 = vld [vmem:[#allocation3 + $0x78] sm:$0xff]
        %v1824 = vld [vmem:[#allocation2] sm:$0xff]
        %v1825 = vld [vmem:[#allocation2 + $0x8] sm:$0xff]
        %v1826 = vld [vmem:[#allocation2 + $0x10] sm:$0xff]
        %v1827 = vld [vmem:[#allocation2 + $0x18] sm:$0xff]
        %v1828 = vld [vmem:[#allocation2 + $0x20] sm:$0xff]
        %v1829 = vld [vmem:[#allocation2 + $0x28] sm:$0xff]
        %v1830 = vld [vmem:[#allocation2 + $0x30] sm:$0xff]
        %v1831 = vld [vmem:[#allocation2 + $0x38] sm:$0xff]
        %v1832 = vld [vmem:[#allocation2 + $0x40] sm:$0xff]
        %v1833 = vld [vmem:[#allocation2 + $0x48] sm:$0xff]
        %v1834 = vld [vmem:[#allocation2 + $0x50] sm:$0xff]
        %v1835 = vld [vmem:[#allocation2 + $0x58] sm:$0xff]
        %v1836 = vld [vmem:[#allocation2 + $0x60] sm:$0xff]
        %v1837 = vld [vmem:[#allocation2 + $0x68] sm:$0xff]
        %v1838 = vld [vmem:[#allocation2 + $0x70] sm:$0xff]
        %v1839 = vld [vmem:[#allocation2 + $0x78] sm:$0xff]
        %s1840 = scalar_select %p1807, 1, 0
        %v1841 = vstv %s1840
        %vm1842 = vcmp.eq.s32.totalorder %v1841, 1
        %v1843 = vsel %vm1842, %v1808, %v1824
        %v1844 = vsel %vm1842, %v1809, %v1825
        %v1845 = vsel %vm1842, %v1810, %v1826
        %v1846 = vsel %vm1842, %v1811, %v1827
        %v1847 = vsel %vm1842, %v1812, %v1828
        %v1848 = vsel %vm1842, %v1813, %v1829
        %v1849 = vsel %vm1842, %v1814, %v1830
        %v1850 = vsel %vm1842, %v1815, %v1831
        %v1851 = vsel %vm1842, %v1816, %v1832
        %v1852 = vsel %vm1842, %v1817, %v1833
        %v1853 = vsel %vm1842, %v1818, %v1834
        %v1854 = vsel %vm1842, %v1819, %v1835
        %v1855 = vsel %vm1842, %v1820, %v1836
        %v1856 = vsel %vm1842, %v1821, %v1837
        %v1857 = vsel %vm1842, %v1822, %v1838
        %v1858 = vsel %vm1842, %v1823, %v1839
        %v1859 = vpack.c.bf16 %v1843, %v1843
        %v1860 = vpack.c.bf16 %v1844, %v1844
        %v1861 = vpack.c.bf16 %v1845, %v1845
        %v1862 = vpack.c.bf16 %v1846, %v1846
        %v1863 = vpack.c.bf16 %v1847, %v1847
        %v1864 = vpack.c.bf16 %v1848, %v1848
        %v1865 = vpack.c.bf16 %v1849, %v1849
        %v1866 = vpack.c.bf16 %v1850, %v1850
        %v1867 = vpack.c.bf16 %v1851, %v1851
        %v1868 = vpack.c.bf16 %v1852, %v1852
        %v1869 = vpack.c.bf16 %v1853, %v1853
        %v1870 = vpack.c.bf16 %v1854, %v1854
        %v1871 = vpack.c.bf16 %v1855, %v1855
        %v1872 = vpack.c.bf16 %v1856, %v1856
        %v1873 = vpack.c.bf16 %v1857, %v1857
        %v1874 = vpack.c.bf16 %v1858, %v1858
        %v1875 = vld [vmem:[%s443] sm:$0xff]
        %v1876 = vld [vmem:[%s443 + $0x8] sm:$0xff]
        %v1877 = vld [vmem:[%s443 + $0x10] sm:$0xff]
        %v1878 = vld [vmem:[%s443 + $0x18] sm:$0xff]
        %v1879 = vld [vmem:[%s443 + $0x20] sm:$0xff]
        %v1880 = vld [vmem:[%s443 + $0x28] sm:$0xff]
        %v1881 = vld [vmem:[%s443 + $0x30] sm:$0xff]
        %v1882 = vld [vmem:[%s443 + $0x38] sm:$0xff]
        %v1883 = vld [vmem:[%s443 + $0x40] sm:$0xff]
        %v1884 = vld [vmem:[%s443 + $0x48] sm:$0xff]
        %v1885 = vld [vmem:[%s443 + $0x50] sm:$0xff]
        %v1886 = vld [vmem:[%s443 + $0x58] sm:$0xff]
        %v1887 = vld [vmem:[%s443 + $0x60] sm:$0xff]
        %v1888 = vld [vmem:[%s443 + $0x68] sm:$0xff]
        %v1889 = vld [vmem:[%s443 + $0x70] sm:$0xff]
        %v1890 = vld [vmem:[%s443 + $0x78] sm:$0xff]
        %v1891 = vld [vmem:[%s443 + $0x80] sm:$0xff]
        %v1892 = vld [vmem:[%s443 + $0x88] sm:$0xff]
        %v1893 = vld [vmem:[%s443 + $0x90] sm:$0xff]
        %v1894 = vld [vmem:[%s443 + $0x98] sm:$0xff]
        %v1895 = vld [vmem:[%s443 + $0xa0] sm:$0xff]
        %v1896 = vld [vmem:[%s443 + $0xa8] sm:$0xff]
        %v1897 = vld [vmem:[%s443 + $0xb0] sm:$0xff]
        %v1898 = vld [vmem:[%s443 + $0xb8] sm:$0xff]
        %v1899 = vld [vmem:[%s443 + $0xc0] sm:$0xff]
        %v1900 = vld [vmem:[%s443 + $0xc8] sm:$0xff]
        %v1901 = vld [vmem:[%s443 + $0xd0] sm:$0xff]
        %v1902 = vld [vmem:[%s443 + $0xd8] sm:$0xff]
        %v1903 = vld [vmem:[%s443 + $0xe0] sm:$0xff]
        %v1904 = vld [vmem:[%s443 + $0xe8] sm:$0xff]
        %v1905 = vld [vmem:[%s443 + $0xf0] sm:$0xff]
        %v1906 = vld [vmem:[%s443 + $0xf8] sm:$0xff]
        %v1907 = vld [vmem:[%s443 + $0x100] sm:$0xff]
        %v1908 = vld [vmem:[%s443 + $0x108] sm:$0xff]
        %v1909 = vld [vmem:[%s443 + $0x110] sm:$0xff]
        %v1910 = vld [vmem:[%s443 + $0x118] sm:$0xff]
        %v1911 = vld [vmem:[%s443 + $0x120] sm:$0xff]
        %v1912 = vld [vmem:[%s443 + $0x128] sm:$0xff]
        %v1913 = vld [vmem:[%s443 + $0x130] sm:$0xff]
        %v1914 = vld [vmem:[%s443 + $0x138] sm:$0xff]
        %v1915 = vld [vmem:[%s443 + $0x140] sm:$0xff]
        %v1916 = vld [vmem:[%s443 + $0x148] sm:$0xff]
        %v1917 = vld [vmem:[%s443 + $0x150] sm:$0xff]
        %v1918 = vld [vmem:[%s443 + $0x158] sm:$0xff]
        %v1919 = vld [vmem:[%s443 + $0x160] sm:$0xff]
        %v1920 = vld [vmem:[%s443 + $0x168] sm:$0xff]
        %v1921 = vld [vmem:[%s443 + $0x170] sm:$0xff]
        %v1922 = vld [vmem:[%s443 + $0x178] sm:$0xff]
        %v1923 = vld [vmem:[%s443 + $0x180] sm:$0xff]
        %v1924 = vld [vmem:[%s443 + $0x188] sm:$0xff]
        %v1925 = vld [vmem:[%s443 + $0x190] sm:$0xff]
        %v1926 = vld [vmem:[%s443 + $0x198] sm:$0xff]
        %v1927 = vld [vmem:[%s443 + $0x1a0] sm:$0xff]
        %v1928 = vld [vmem:[%s443 + $0x1a8] sm:$0xff]
        %v1929 = vld [vmem:[%s443 + $0x1b0] sm:$0xff]
        %v1930 = vld [vmem:[%s443 + $0x1b8] sm:$0xff]
        %v1931 = vld [vmem:[%s443 + $0x1c0] sm:$0xff]
        %v1932 = vld [vmem:[%s443 + $0x1c8] sm:$0xff]
        %v1933 = vld [vmem:[%s443 + $0x1d0] sm:$0xff]
        %v1934 = vld [vmem:[%s443 + $0x1d8] sm:$0xff]
        %v1935 = vld [vmem:[%s443 + $0x1e0] sm:$0xff]
        %v1936 = vld [vmem:[%s443 + $0x1e8] sm:$0xff]
        %v1937 = vld [vmem:[%s443 + $0x1f0] sm:$0xff]
        %v1938 = vld [vmem:[%s443 + $0x1f8] sm:$0xff]
        %v1939 = vld [vmem:[%s443 + $0x200] sm:$0xff]
        %v1940 = vld [vmem:[%s443 + $0x208] sm:$0xff]
        %v1941 = vld [vmem:[%s443 + $0x210] sm:$0xff]
        %v1942 = vld [vmem:[%s443 + $0x218] sm:$0xff]
        %v1943 = vld [vmem:[%s443 + $0x220] sm:$0xff]
        %v1944 = vld [vmem:[%s443 + $0x228] sm:$0xff]
        %v1945 = vld [vmem:[%s443 + $0x230] sm:$0xff]
        %v1946 = vld [vmem:[%s443 + $0x238] sm:$0xff]
        %v1947 = vld [vmem:[%s443 + $0x240] sm:$0xff]
        %v1948 = vld [vmem:[%s443 + $0x248] sm:$0xff]
        %v1949 = vld [vmem:[%s443 + $0x250] sm:$0xff]
        %v1950 = vld [vmem:[%s443 + $0x258] sm:$0xff]
        %v1951 = vld [vmem:[%s443 + $0x260] sm:$0xff]
        %v1952 = vld [vmem:[%s443 + $0x268] sm:$0xff]
        %v1953 = vld [vmem:[%s443 + $0x270] sm:$0xff]
        %v1954 = vld [vmem:[%s443 + $0x278] sm:$0xff]
        %v1955 = vld [vmem:[%s443 + $0x280] sm:$0xff]
        %v1956 = vld [vmem:[%s443 + $0x288] sm:$0xff]
        %v1957 = vld [vmem:[%s443 + $0x290] sm:$0xff]
        %v1958 = vld [vmem:[%s443 + $0x298] sm:$0xff]
        %v1959 = vld [vmem:[%s443 + $0x2a0] sm:$0xff]
        %v1960 = vld [vmem:[%s443 + $0x2a8] sm:$0xff]
        %v1961 = vld [vmem:[%s443 + $0x2b0] sm:$0xff]
        %v1962 = vld [vmem:[%s443 + $0x2b8] sm:$0xff]
        %v1963 = vld [vmem:[%s443 + $0x2c0] sm:$0xff]
        %v1964 = vld [vmem:[%s443 + $0x2c8] sm:$0xff]
        %v1965 = vld [vmem:[%s443 + $0x2d0] sm:$0xff]
        %v1966 = vld [vmem:[%s443 + $0x2d8] sm:$0xff]
        %v1967 = vld [vmem:[%s443 + $0x2e0] sm:$0xff]
        %v1968 = vld [vmem:[%s443 + $0x2e8] sm:$0xff]
        %v1969 = vld [vmem:[%s443 + $0x2f0] sm:$0xff]
        %v1970 = vld [vmem:[%s443 + $0x2f8] sm:$0xff]
        %v1971 = vld [vmem:[%s443 + $0x300] sm:$0xff]
        %v1972 = vld [vmem:[%s443 + $0x308] sm:$0xff]
        %v1973 = vld [vmem:[%s443 + $0x310] sm:$0xff]
        %v1974 = vld [vmem:[%s443 + $0x318] sm:$0xff]
        %v1975 = vld [vmem:[%s443 + $0x320] sm:$0xff]
        %v1976 = vld [vmem:[%s443 + $0x328] sm:$0xff]
        %v1977 = vld [vmem:[%s443 + $0x330] sm:$0xff]
        %v1978 = vld [vmem:[%s443 + $0x338] sm:$0xff]
        %v1979 = vld [vmem:[%s443 + $0x340] sm:$0xff]
        %v1980 = vld [vmem:[%s443 + $0x348] sm:$0xff]
        %v1981 = vld [vmem:[%s443 + $0x350] sm:$0xff]
        %v1982 = vld [vmem:[%s443 + $0x358] sm:$0xff]
        %v1983 = vld [vmem:[%s443 + $0x360] sm:$0xff]
        %v1984 = vld [vmem:[%s443 + $0x368] sm:$0xff]
        %v1985 = vld [vmem:[%s443 + $0x370] sm:$0xff]
        %v1986 = vld [vmem:[%s443 + $0x378] sm:$0xff]
        %v1987 = vld [vmem:[%s443 + $0x380] sm:$0xff]
        %v1988 = vld [vmem:[%s443 + $0x388] sm:$0xff]
        %v1989 = vld [vmem:[%s443 + $0x390] sm:$0xff]
        %v1990 = vld [vmem:[%s443 + $0x398] sm:$0xff]
        %v1991 = vld [vmem:[%s443 + $0x3a0] sm:$0xff]
        %v1992 = vld [vmem:[%s443 + $0x3a8] sm:$0xff]
        %v1993 = vld [vmem:[%s443 + $0x3b0] sm:$0xff]
        %v1994 = vld [vmem:[%s443 + $0x3b8] sm:$0xff]
        %v1995 = vld [vmem:[%s443 + $0x3c0] sm:$0xff]
        %v1996 = vld [vmem:[%s443 + $0x3c8] sm:$0xff]
        %v1997 = vld [vmem:[%s443 + $0x3d0] sm:$0xff]
        %v1998 = vld [vmem:[%s443 + $0x3d8] sm:$0xff]
        %v1999 = vld [vmem:[%s443 + $0x3e0] sm:$0xff]
        %v2000 = vld [vmem:[%s443 + $0x3e8] sm:$0xff]
        %v2001 = vld [vmem:[%s443 + $0x3f0] sm:$0xff]
        %v2002 = vld [vmem:[%s443 + $0x3f8] sm:$0xff]
        %v2003 = vld [vmem:[%s443 + $0x400] sm:$0xff]
        %v2004 = vld [vmem:[%s443 + $0x408] sm:$0xff]
        %v2005 = vld [vmem:[%s443 + $0x410] sm:$0xff]
        %v2006 = vld [vmem:[%s443 + $0x418] sm:$0xff]
        %v2007 = vld [vmem:[%s443 + $0x420] sm:$0xff]
        %v2008 = vld [vmem:[%s443 + $0x428] sm:$0xff]
        %v2009 = vld [vmem:[%s443 + $0x430] sm:$0xff]
        %v2010 = vld [vmem:[%s443 + $0x438] sm:$0xff]
        %v2011 = vld [vmem:[%s443 + $0x440] sm:$0xff]
        %v2012 = vld [vmem:[%s443 + $0x448] sm:$0xff]
        %v2013 = vld [vmem:[%s443 + $0x450] sm:$0xff]
        %v2014 = vld [vmem:[%s443 + $0x458] sm:$0xff]
        %v2015 = vld [vmem:[%s443 + $0x460] sm:$0xff]
        %v2016 = vld [vmem:[%s443 + $0x468] sm:$0xff]
        %v2017 = vld [vmem:[%s443 + $0x470] sm:$0xff]
        %v2018 = vld [vmem:[%s443 + $0x478] sm:$0xff]
        %v2019 = vld [vmem:[%s443 + $0x480] sm:$0xff]
        %v2020 = vld [vmem:[%s443 + $0x488] sm:$0xff]
        %v2021 = vld [vmem:[%s443 + $0x490] sm:$0xff]
        %v2022 = vld [vmem:[%s443 + $0x498] sm:$0xff]
        %v2023 = vld [vmem:[%s443 + $0x4a0] sm:$0xff]
        %v2024 = vld [vmem:[%s443 + $0x4a8] sm:$0xff]
        %v2025 = vld [vmem:[%s443 + $0x4b0] sm:$0xff]
        %v2026 = vld [vmem:[%s443 + $0x4b8] sm:$0xff]
        %v2027 = vld [vmem:[%s443 + $0x4c0] sm:$0xff]
        %v2028 = vld [vmem:[%s443 + $0x4c8] sm:$0xff]
        %v2029 = vld [vmem:[%s443 + $0x4d0] sm:$0xff]
        %v2030 = vld [vmem:[%s443 + $0x4d8] sm:$0xff]
        %v2031 = vld [vmem:[%s443 + $0x4e0] sm:$0xff]
        %v2032 = vld [vmem:[%s443 + $0x4e8] sm:$0xff]
        %v2033 = vld [vmem:[%s443 + $0x4f0] sm:$0xff]
        %v2034 = vld [vmem:[%s443 + $0x4f8] sm:$0xff]
        %v2035 = vld [vmem:[%s443 + $0x500] sm:$0xff]
        %v2036 = vld [vmem:[%s443 + $0x508] sm:$0xff]
        %v2037 = vld [vmem:[%s443 + $0x510] sm:$0xff]
        %v2038 = vld [vmem:[%s443 + $0x518] sm:$0xff]
        %v2039 = vld [vmem:[%s443 + $0x520] sm:$0xff]
        %v2040 = vld [vmem:[%s443 + $0x528] sm:$0xff]
        %v2041 = vld [vmem:[%s443 + $0x530] sm:$0xff]
        %v2042 = vld [vmem:[%s443 + $0x538] sm:$0xff]
        %v2043 = vld [vmem:[%s443 + $0x540] sm:$0xff]
        %v2044 = vld [vmem:[%s443 + $0x548] sm:$0xff]
        %v2045 = vld [vmem:[%s443 + $0x550] sm:$0xff]
        %v2046 = vld [vmem:[%s443 + $0x558] sm:$0xff]
        %v2047 = vld [vmem:[%s443 + $0x560] sm:$0xff]
        %v2048 = vld [vmem:[%s443 + $0x568] sm:$0xff]
        %v2049 = vld [vmem:[%s443 + $0x570] sm:$0xff]
        %v2050 = vld [vmem:[%s443 + $0x578] sm:$0xff]
        %v2051 = vld [vmem:[%s443 + $0x580] sm:$0xff]
        %v2052 = vld [vmem:[%s443 + $0x588] sm:$0xff]
        %v2053 = vld [vmem:[%s443 + $0x590] sm:$0xff]
        %v2054 = vld [vmem:[%s443 + $0x598] sm:$0xff]
        %v2055 = vld [vmem:[%s443 + $0x5a0] sm:$0xff]
        %v2056 = vld [vmem:[%s443 + $0x5a8] sm:$0xff]
        %v2057 = vld [vmem:[%s443 + $0x5b0] sm:$0xff]
        %v2058 = vld [vmem:[%s443 + $0x5b8] sm:$0xff]
        %v2059 = vld [vmem:[%s443 + $0x5c0] sm:$0xff]
        %v2060 = vld [vmem:[%s443 + $0x5c8] sm:$0xff]
        %v2061 = vld [vmem:[%s443 + $0x5d0] sm:$0xff]
        %v2062 = vld [vmem:[%s443 + $0x5d8] sm:$0xff]
        %v2063 = vld [vmem:[%s443 + $0x5e0] sm:$0xff]
        %v2064 = vld [vmem:[%s443 + $0x5e8] sm:$0xff]
        %v2065 = vld [vmem:[%s443 + $0x5f0] sm:$0xff]
        %v2066 = vld [vmem:[%s443 + $0x5f8] sm:$0xff]
        %v2067 = vld [vmem:[%s443 + $0x600] sm:$0xff]
        %v2068 = vld [vmem:[%s443 + $0x608] sm:$0xff]
        %v2069 = vld [vmem:[%s443 + $0x610] sm:$0xff]
        %v2070 = vld [vmem:[%s443 + $0x618] sm:$0xff]
        %v2071 = vld [vmem:[%s443 + $0x620] sm:$0xff]
        %v2072 = vld [vmem:[%s443 + $0x628] sm:$0xff]
        %v2073 = vld [vmem:[%s443 + $0x630] sm:$0xff]
        %v2074 = vld [vmem:[%s443 + $0x638] sm:$0xff]
        %v2075 = vld [vmem:[%s443 + $0x640] sm:$0xff]
        %v2076 = vld [vmem:[%s443 + $0x648] sm:$0xff]
        %v2077 = vld [vmem:[%s443 + $0x650] sm:$0xff]
        %v2078 = vld [vmem:[%s443 + $0x658] sm:$0xff]
        %v2079 = vld [vmem:[%s443 + $0x660] sm:$0xff]
        %v2080 = vld [vmem:[%s443 + $0x668] sm:$0xff]
        %v2081 = vld [vmem:[%s443 + $0x670] sm:$0xff]
        %v2082 = vld [vmem:[%s443 + $0x678] sm:$0xff]
        %v2083 = vld [vmem:[%s443 + $0x680] sm:$0xff]
        %v2084 = vld [vmem:[%s443 + $0x688] sm:$0xff]
        %v2085 = vld [vmem:[%s443 + $0x690] sm:$0xff]
        %v2086 = vld [vmem:[%s443 + $0x698] sm:$0xff]
        %v2087 = vld [vmem:[%s443 + $0x6a0] sm:$0xff]
        %v2088 = vld [vmem:[%s443 + $0x6a8] sm:$0xff]
        %v2089 = vld [vmem:[%s443 + $0x6b0] sm:$0xff]
        %v2090 = vld [vmem:[%s443 + $0x6b8] sm:$0xff]
        %v2091 = vld [vmem:[%s443 + $0x6c0] sm:$0xff]
        %v2092 = vld [vmem:[%s443 + $0x6c8] sm:$0xff]
        %v2093 = vld [vmem:[%s443 + $0x6d0] sm:$0xff]
        %v2094 = vld [vmem:[%s443 + $0x6d8] sm:$0xff]
        %v2095 = vld [vmem:[%s443 + $0x6e0] sm:$0xff]
        %v2096 = vld [vmem:[%s443 + $0x6e8] sm:$0xff]
        %v2097 = vld [vmem:[%s443 + $0x6f0] sm:$0xff]
        %v2098 = vld [vmem:[%s443 + $0x6f8] sm:$0xff]
        %v2099 = vld [vmem:[%s443 + $0x700] sm:$0xff]
        %v2100 = vld [vmem:[%s443 + $0x708] sm:$0xff]
        %v2101 = vld [vmem:[%s443 + $0x710] sm:$0xff]
        %v2102 = vld [vmem:[%s443 + $0x718] sm:$0xff]
        %v2103 = vld [vmem:[%s443 + $0x720] sm:$0xff]
        %v2104 = vld [vmem:[%s443 + $0x728] sm:$0xff]
        %v2105 = vld [vmem:[%s443 + $0x730] sm:$0xff]
        %v2106 = vld [vmem:[%s443 + $0x738] sm:$0xff]
        %v2107 = vld [vmem:[%s443 + $0x740] sm:$0xff]
        %v2108 = vld [vmem:[%s443 + $0x748] sm:$0xff]
        %v2109 = vld [vmem:[%s443 + $0x750] sm:$0xff]
        %v2110 = vld [vmem:[%s443 + $0x758] sm:$0xff]
        %v2111 = vld [vmem:[%s443 + $0x760] sm:$0xff]
        %v2112 = vld [vmem:[%s443 + $0x768] sm:$0xff]
        %v2113 = vld [vmem:[%s443 + $0x770] sm:$0xff]
        %v2114 = vld [vmem:[%s443 + $0x778] sm:$0xff]
        %v2115 = vld [vmem:[%s443 + $0x780] sm:$0xff]
        %v2116 = vld [vmem:[%s443 + $0x788] sm:$0xff]
        %v2117 = vld [vmem:[%s443 + $0x790] sm:$0xff]
        %v2118 = vld [vmem:[%s443 + $0x798] sm:$0xff]
        %v2119 = vld [vmem:[%s443 + $0x7a0] sm:$0xff]
        %v2120 = vld [vmem:[%s443 + $0x7a8] sm:$0xff]
        %v2121 = vld [vmem:[%s443 + $0x7b0] sm:$0xff]
        %v2122 = vld [vmem:[%s443 + $0x7b8] sm:$0xff]
        %v2123 = vld [vmem:[%s443 + $0x7c0] sm:$0xff]
        %v2124 = vld [vmem:[%s443 + $0x7c8] sm:$0xff]
        %v2125 = vld [vmem:[%s443 + $0x7d0] sm:$0xff]
        %v2126 = vld [vmem:[%s443 + $0x7d8] sm:$0xff]
        %v2127 = vld [vmem:[%s443 + $0x7e0] sm:$0xff]
        %v2128 = vld [vmem:[%s443 + $0x7e8] sm:$0xff]
        %v2129 = vld [vmem:[%s443 + $0x7f0] sm:$0xff]
        %v2130 = vld [vmem:[%s443 + $0x7f8] sm:$0xff]
        %v2131 = vld [vmem:[%s443 + $0x800] sm:$0xff]
        %v2132 = vld [vmem:[%s443 + $0x808] sm:$0xff]
        %v2133 = vld [vmem:[%s443 + $0x810] sm:$0xff]
        %v2134 = vld [vmem:[%s443 + $0x818] sm:$0xff]
        %v2135 = vld [vmem:[%s443 + $0x820] sm:$0xff]
        %v2136 = vld [vmem:[%s443 + $0x828] sm:$0xff]
        %v2137 = vld [vmem:[%s443 + $0x830] sm:$0xff]
        %v2138 = vld [vmem:[%s443 + $0x838] sm:$0xff]
        %v2139 = vld [vmem:[%s443 + $0x840] sm:$0xff]
        %v2140 = vld [vmem:[%s443 + $0x848] sm:$0xff]
        %v2141 = vld [vmem:[%s443 + $0x850] sm:$0xff]
        %v2142 = vld [vmem:[%s443 + $0x858] sm:$0xff]
        %v2143 = vld [vmem:[%s443 + $0x860] sm:$0xff]
        %v2144 = vld [vmem:[%s443 + $0x868] sm:$0xff]
        %v2145 = vld [vmem:[%s443 + $0x870] sm:$0xff]
        %v2146 = vld [vmem:[%s443 + $0x878] sm:$0xff]
        %v2147 = vld [vmem:[%s443 + $0x880] sm:$0xff]
        %v2148 = vld [vmem:[%s443 + $0x888] sm:$0xff]
        %v2149 = vld [vmem:[%s443 + $0x890] sm:$0xff]
        %v2150 = vld [vmem:[%s443 + $0x898] sm:$0xff]
        %v2151 = vld [vmem:[%s443 + $0x8a0] sm:$0xff]
        %v2152 = vld [vmem:[%s443 + $0x8a8] sm:$0xff]
        %v2153 = vld [vmem:[%s443 + $0x8b0] sm:$0xff]
        %v2154 = vld [vmem:[%s443 + $0x8b8] sm:$0xff]
        %v2155 = vld [vmem:[%s443 + $0x8c0] sm:$0xff]
        %v2156 = vld [vmem:[%s443 + $0x8c8] sm:$0xff]
        %v2157 = vld [vmem:[%s443 + $0x8d0] sm:$0xff]
        %v2158 = vld [vmem:[%s443 + $0x8d8] sm:$0xff]
        %v2159 = vld [vmem:[%s443 + $0x8e0] sm:$0xff]
        %v2160 = vld [vmem:[%s443 + $0x8e8] sm:$0xff]
        %v2161 = vld [vmem:[%s443 + $0x8f0] sm:$0xff]
        %v2162 = vld [vmem:[%s443 + $0x8f8] sm:$0xff]
        %v2163 = vld [vmem:[%s443 + $0x900] sm:$0xff]
        %v2164 = vld [vmem:[%s443 + $0x908] sm:$0xff]
        %v2165 = vld [vmem:[%s443 + $0x910] sm:$0xff]
        %v2166 = vld [vmem:[%s443 + $0x918] sm:$0xff]
        %v2167 = vld [vmem:[%s443 + $0x920] sm:$0xff]
        %v2168 = vld [vmem:[%s443 + $0x928] sm:$0xff]
        %v2169 = vld [vmem:[%s443 + $0x930] sm:$0xff]
        %v2170 = vld [vmem:[%s443 + $0x938] sm:$0xff]
        %v2171 = vld [vmem:[%s443 + $0x940] sm:$0xff]
        %v2172 = vld [vmem:[%s443 + $0x948] sm:$0xff]
        %v2173 = vld [vmem:[%s443 + $0x950] sm:$0xff]
        %v2174 = vld [vmem:[%s443 + $0x958] sm:$0xff]
        %v2175 = vld [vmem:[%s443 + $0x960] sm:$0xff]
        %v2176 = vld [vmem:[%s443 + $0x968] sm:$0xff]
        %v2177 = vld [vmem:[%s443 + $0x970] sm:$0xff]
        %v2178 = vld [vmem:[%s443 + $0x978] sm:$0xff]
        %v2179 = vld [vmem:[%s443 + $0x980] sm:$0xff]
        %v2180 = vld [vmem:[%s443 + $0x988] sm:$0xff]
        %v2181 = vld [vmem:[%s443 + $0x990] sm:$0xff]
        %v2182 = vld [vmem:[%s443 + $0x998] sm:$0xff]
        %v2183 = vld [vmem:[%s443 + $0x9a0] sm:$0xff]
        %v2184 = vld [vmem:[%s443 + $0x9a8] sm:$0xff]
        %v2185 = vld [vmem:[%s443 + $0x9b0] sm:$0xff]
        %v2186 = vld [vmem:[%s443 + $0x9b8] sm:$0xff]
        %v2187 = vld [vmem:[%s443 + $0x9c0] sm:$0xff]
        %v2188 = vld [vmem:[%s443 + $0x9c8] sm:$0xff]
        %v2189 = vld [vmem:[%s443 + $0x9d0] sm:$0xff]
        %v2190 = vld [vmem:[%s443 + $0x9d8] sm:$0xff]
        %v2191 = vld [vmem:[%s443 + $0x9e0] sm:$0xff]
        %v2192 = vld [vmem:[%s443 + $0x9e8] sm:$0xff]
        %v2193 = vld [vmem:[%s443 + $0x9f0] sm:$0xff]
        %v2194 = vld [vmem:[%s443 + $0x9f8] sm:$0xff]
        %v2195 = vld [vmem:[%s443 + $0xa00] sm:$0xff]
        %v2196 = vld [vmem:[%s443 + $0xa08] sm:$0xff]
        %v2197 = vld [vmem:[%s443 + $0xa10] sm:$0xff]
        %v2198 = vld [vmem:[%s443 + $0xa18] sm:$0xff]
        %v2199 = vld [vmem:[%s443 + $0xa20] sm:$0xff]
        %v2200 = vld [vmem:[%s443 + $0xa28] sm:$0xff]
        %v2201 = vld [vmem:[%s443 + $0xa30] sm:$0xff]
        %v2202 = vld [vmem:[%s443 + $0xa38] sm:$0xff]
        %v2203 = vld [vmem:[%s443 + $0xa40] sm:$0xff]
        %v2204 = vld [vmem:[%s443 + $0xa48] sm:$0xff]
        %v2205 = vld [vmem:[%s443 + $0xa50] sm:$0xff]
        %v2206 = vld [vmem:[%s443 + $0xa58] sm:$0xff]
        %v2207 = vld [vmem:[%s443 + $0xa60] sm:$0xff]
        %v2208 = vld [vmem:[%s443 + $0xa68] sm:$0xff]
        %v2209 = vld [vmem:[%s443 + $0xa70] sm:$0xff]
        %v2210 = vld [vmem:[%s443 + $0xa78] sm:$0xff]
        %v2211 = vld [vmem:[%s443 + $0xa80] sm:$0xff]
        %v2212 = vld [vmem:[%s443 + $0xa88] sm:$0xff]
        %v2213 = vld [vmem:[%s443 + $0xa90] sm:$0xff]
        %v2214 = vld [vmem:[%s443 + $0xa98] sm:$0xff]
        %v2215 = vld [vmem:[%s443 + $0xaa0] sm:$0xff]
        %v2216 = vld [vmem:[%s443 + $0xaa8] sm:$0xff]
        %v2217 = vld [vmem:[%s443 + $0xab0] sm:$0xff]
        %v2218 = vld [vmem:[%s443 + $0xab8] sm:$0xff]
        %v2219 = vld [vmem:[%s443 + $0xac0] sm:$0xff]
        %v2220 = vld [vmem:[%s443 + $0xac8] sm:$0xff]
        %v2221 = vld [vmem:[%s443 + $0xad0] sm:$0xff]
        %v2222 = vld [vmem:[%s443 + $0xad8] sm:$0xff]
        %v2223 = vld [vmem:[%s443 + $0xae0] sm:$0xff]
        %v2224 = vld [vmem:[%s443 + $0xae8] sm:$0xff]
        %v2225 = vld [vmem:[%s443 + $0xaf0] sm:$0xff]
        %v2226 = vld [vmem:[%s443 + $0xaf8] sm:$0xff]
        %v2227 = vld [vmem:[%s443 + $0xb00] sm:$0xff]
        %v2228 = vld [vmem:[%s443 + $0xb08] sm:$0xff]
        %v2229 = vld [vmem:[%s443 + $0xb10] sm:$0xff]
        %v2230 = vld [vmem:[%s443 + $0xb18] sm:$0xff]
        %v2231 = vld [vmem:[%s443 + $0xb20] sm:$0xff]
        %v2232 = vld [vmem:[%s443 + $0xb28] sm:$0xff]
        %v2233 = vld [vmem:[%s443 + $0xb30] sm:$0xff]
        %v2234 = vld [vmem:[%s443 + $0xb38] sm:$0xff]
        %v2235 = vld [vmem:[%s443 + $0xb40] sm:$0xff]
        %v2236 = vld [vmem:[%s443 + $0xb48] sm:$0xff]
        %v2237 = vld [vmem:[%s443 + $0xb50] sm:$0xff]
        %v2238 = vld [vmem:[%s443 + $0xb58] sm:$0xff]
        %v2239 = vld [vmem:[%s443 + $0xb60] sm:$0xff]
        %v2240 = vld [vmem:[%s443 + $0xb68] sm:$0xff]
        %v2241 = vld [vmem:[%s443 + $0xb70] sm:$0xff]
        %v2242 = vld [vmem:[%s443 + $0xb78] sm:$0xff]
        %v2243 = vld [vmem:[%s443 + $0xb80] sm:$0xff]
        %v2244 = vld [vmem:[%s443 + $0xb88] sm:$0xff]
        %v2245 = vld [vmem:[%s443 + $0xb90] sm:$0xff]
        %v2246 = vld [vmem:[%s443 + $0xb98] sm:$0xff]
        %v2247 = vld [vmem:[%s443 + $0xba0] sm:$0xff]
        %v2248 = vld [vmem:[%s443 + $0xba8] sm:$0xff]
        %v2249 = vld [vmem:[%s443 + $0xbb0] sm:$0xff]
        %v2250 = vld [vmem:[%s443 + $0xbb8] sm:$0xff]
        %v2251 = vld [vmem:[%s443 + $0xbc0] sm:$0xff]
        %v2252 = vld [vmem:[%s443 + $0xbc8] sm:$0xff]
        %v2253 = vld [vmem:[%s443 + $0xbd0] sm:$0xff]
        %v2254 = vld [vmem:[%s443 + $0xbd8] sm:$0xff]
        %v2255 = vld [vmem:[%s443 + $0xbe0] sm:$0xff]
        %v2256 = vld [vmem:[%s443 + $0xbe8] sm:$0xff]
        %v2257 = vld [vmem:[%s443 + $0xbf0] sm:$0xff]
        %v2258 = vld [vmem:[%s443 + $0xbf8] sm:$0xff]
        %v2259 = vld [vmem:[%s443 + $0xc00] sm:$0xff]
        %v2260 = vld [vmem:[%s443 + $0xc08] sm:$0xff]
        %v2261 = vld [vmem:[%s443 + $0xc10] sm:$0xff]
        %v2262 = vld [vmem:[%s443 + $0xc18] sm:$0xff]
        %v2263 = vld [vmem:[%s443 + $0xc20] sm:$0xff]
        %v2264 = vld [vmem:[%s443 + $0xc28] sm:$0xff]
        %v2265 = vld [vmem:[%s443 + $0xc30] sm:$0xff]
        %v2266 = vld [vmem:[%s443 + $0xc38] sm:$0xff]
        %v2267 = vld [vmem:[%s443 + $0xc40] sm:$0xff]
        %v2268 = vld [vmem:[%s443 + $0xc48] sm:$0xff]
        %v2269 = vld [vmem:[%s443 + $0xc50] sm:$0xff]
        %v2270 = vld [vmem:[%s443 + $0xc58] sm:$0xff]
        %v2271 = vld [vmem:[%s443 + $0xc60] sm:$0xff]
        %v2272 = vld [vmem:[%s443 + $0xc68] sm:$0xff]
        %v2273 = vld [vmem:[%s443 + $0xc70] sm:$0xff]
        %v2274 = vld [vmem:[%s443 + $0xc78] sm:$0xff]
        %v2275 = vld [vmem:[%s443 + $0xc80] sm:$0xff]
        %v2276 = vld [vmem:[%s443 + $0xc88] sm:$0xff]
        %v2277 = vld [vmem:[%s443 + $0xc90] sm:$0xff]
        %v2278 = vld [vmem:[%s443 + $0xc98] sm:$0xff]
        %v2279 = vld [vmem:[%s443 + $0xca0] sm:$0xff]
        %v2280 = vld [vmem:[%s443 + $0xca8] sm:$0xff]
        %v2281 = vld [vmem:[%s443 + $0xcb0] sm:$0xff]
        %v2282 = vld [vmem:[%s443 + $0xcb8] sm:$0xff]
        %v2283 = vld [vmem:[%s443 + $0xcc0] sm:$0xff]
        %v2284 = vld [vmem:[%s443 + $0xcc8] sm:$0xff]
        %v2285 = vld [vmem:[%s443 + $0xcd0] sm:$0xff]
        %v2286 = vld [vmem:[%s443 + $0xcd8] sm:$0xff]
        %v2287 = vld [vmem:[%s443 + $0xce0] sm:$0xff]
        %v2288 = vld [vmem:[%s443 + $0xce8] sm:$0xff]
        %v2289 = vld [vmem:[%s443 + $0xcf0] sm:$0xff]
        %v2290 = vld [vmem:[%s443 + $0xcf8] sm:$0xff]
        %v2291 = vld [vmem:[%s443 + $0xd00] sm:$0xff]
        %v2292 = vld [vmem:[%s443 + $0xd08] sm:$0xff]
        %v2293 = vld [vmem:[%s443 + $0xd10] sm:$0xff]
        %v2294 = vld [vmem:[%s443 + $0xd18] sm:$0xff]
        %v2295 = vld [vmem:[%s443 + $0xd20] sm:$0xff]
        %v2296 = vld [vmem:[%s443 + $0xd28] sm:$0xff]
        %v2297 = vld [vmem:[%s443 + $0xd30] sm:$0xff]
        %v2298 = vld [vmem:[%s443 + $0xd38] sm:$0xff]
        %v2299 = vld [vmem:[%s443 + $0xd40] sm:$0xff]
        %v2300 = vld [vmem:[%s443 + $0xd48] sm:$0xff]
        %v2301 = vld [vmem:[%s443 + $0xd50] sm:$0xff]
        %v2302 = vld [vmem:[%s443 + $0xd58] sm:$0xff]
        %v2303 = vld [vmem:[%s443 + $0xd60] sm:$0xff]
        %v2304 = vld [vmem:[%s443 + $0xd68] sm:$0xff]
        %v2305 = vld [vmem:[%s443 + $0xd70] sm:$0xff]
        %v2306 = vld [vmem:[%s443 + $0xd78] sm:$0xff]
        %v2307 = vld [vmem:[%s443 + $0xd80] sm:$0xff]
        %v2308 = vld [vmem:[%s443 + $0xd88] sm:$0xff]
        %v2309 = vld [vmem:[%s443 + $0xd90] sm:$0xff]
        %v2310 = vld [vmem:[%s443 + $0xd98] sm:$0xff]
        %v2311 = vld [vmem:[%s443 + $0xda0] sm:$0xff]
        %v2312 = vld [vmem:[%s443 + $0xda8] sm:$0xff]
        %v2313 = vld [vmem:[%s443 + $0xdb0] sm:$0xff]
        %v2314 = vld [vmem:[%s443 + $0xdb8] sm:$0xff]
        %v2315 = vld [vmem:[%s443 + $0xdc0] sm:$0xff]
        %v2316 = vld [vmem:[%s443 + $0xdc8] sm:$0xff]
        %v2317 = vld [vmem:[%s443 + $0xdd0] sm:$0xff]
        %v2318 = vld [vmem:[%s443 + $0xdd8] sm:$0xff]
        %v2319 = vld [vmem:[%s443 + $0xde0] sm:$0xff]
        %v2320 = vld [vmem:[%s443 + $0xde8] sm:$0xff]
        %v2321 = vld [vmem:[%s443 + $0xdf0] sm:$0xff]
        %v2322 = vld [vmem:[%s443 + $0xdf8] sm:$0xff]
        %v2323 = vld [vmem:[%s443 + $0xe00] sm:$0xff]
        %v2324 = vld [vmem:[%s443 + $0xe08] sm:$0xff]
        %v2325 = vld [vmem:[%s443 + $0xe10] sm:$0xff]
        %v2326 = vld [vmem:[%s443 + $0xe18] sm:$0xff]
        %v2327 = vld [vmem:[%s443 + $0xe20] sm:$0xff]
        %v2328 = vld [vmem:[%s443 + $0xe28] sm:$0xff]
        %v2329 = vld [vmem:[%s443 + $0xe30] sm:$0xff]
        %v2330 = vld [vmem:[%s443 + $0xe38] sm:$0xff]
        %v2331 = vld [vmem:[%s443 + $0xe40] sm:$0xff]
        %v2332 = vld [vmem:[%s443 + $0xe48] sm:$0xff]
        %v2333 = vld [vmem:[%s443 + $0xe50] sm:$0xff]
        %v2334 = vld [vmem:[%s443 + $0xe58] sm:$0xff]
        %v2335 = vld [vmem:[%s443 + $0xe60] sm:$0xff]
        %v2336 = vld [vmem:[%s443 + $0xe68] sm:$0xff]
        %v2337 = vld [vmem:[%s443 + $0xe70] sm:$0xff]
        %v2338 = vld [vmem:[%s443 + $0xe78] sm:$0xff]
        %v2339 = vld [vmem:[%s443 + $0xe80] sm:$0xff]
        %v2340 = vld [vmem:[%s443 + $0xe88] sm:$0xff]
        %v2341 = vld [vmem:[%s443 + $0xe90] sm:$0xff]
        %v2342 = vld [vmem:[%s443 + $0xe98] sm:$0xff]
        %v2343 = vld [vmem:[%s443 + $0xea0] sm:$0xff]
        %v2344 = vld [vmem:[%s443 + $0xea8] sm:$0xff]
        %v2345 = vld [vmem:[%s443 + $0xeb0] sm:$0xff]
        %v2346 = vld [vmem:[%s443 + $0xeb8] sm:$0xff]
        %v2347 = vld [vmem:[%s443 + $0xec0] sm:$0xff]
        %v2348 = vld [vmem:[%s443 + $0xec8] sm:$0xff]
        %v2349 = vld [vmem:[%s443 + $0xed0] sm:$0xff]
        %v2350 = vld [vmem:[%s443 + $0xed8] sm:$0xff]
        %v2351 = vld [vmem:[%s443 + $0xee0] sm:$0xff]
        %v2352 = vld [vmem:[%s443 + $0xee8] sm:$0xff]
        %v2353 = vld [vmem:[%s443 + $0xef0] sm:$0xff]
        %v2354 = vld [vmem:[%s443 + $0xef8] sm:$0xff]
        %v2355 = vld [vmem:[%s443 + $0xf00] sm:$0xff]
        %v2356 = vld [vmem:[%s443 + $0xf08] sm:$0xff]
        %v2357 = vld [vmem:[%s443 + $0xf10] sm:$0xff]
        %v2358 = vld [vmem:[%s443 + $0xf18] sm:$0xff]
        %v2359 = vld [vmem:[%s443 + $0xf20] sm:$0xff]
        %v2360 = vld [vmem:[%s443 + $0xf28] sm:$0xff]
        %v2361 = vld [vmem:[%s443 + $0xf30] sm:$0xff]
        %v2362 = vld [vmem:[%s443 + $0xf38] sm:$0xff]
        %v2363 = vld [vmem:[%s443 + $0xf40] sm:$0xff]
        %v2364 = vld [vmem:[%s443 + $0xf48] sm:$0xff]
        %v2365 = vld [vmem:[%s443 + $0xf50] sm:$0xff]
        %v2366 = vld [vmem:[%s443 + $0xf58] sm:$0xff]
        %v2367 = vld [vmem:[%s443 + $0xf60] sm:$0xff]
        %v2368 = vld [vmem:[%s443 + $0xf68] sm:$0xff]
        %v2369 = vld [vmem:[%s443 + $0xf70] sm:$0xff]
        %v2370 = vld [vmem:[%s443 + $0xf78] sm:$0xff]
        %v2371 = vld [vmem:[%s443 + $0xf80] sm:$0xff]
        %v2372 = vld [vmem:[%s443 + $0xf88] sm:$0xff]
        %v2373 = vld [vmem:[%s443 + $0xf90] sm:$0xff]
        %v2374 = vld [vmem:[%s443 + $0xf98] sm:$0xff]
        %v2375 = vld [vmem:[%s443 + $0xfa0] sm:$0xff]
        %v2376 = vld [vmem:[%s443 + $0xfa8] sm:$0xff]
        %v2377 = vld [vmem:[%s443 + $0xfb0] sm:$0xff]
        %v2378 = vld [vmem:[%s443 + $0xfb8] sm:$0xff]
        %v2379 = vld [vmem:[%s443 + $0xfc0] sm:$0xff]
        %v2380 = vld [vmem:[%s443 + $0xfc8] sm:$0xff]
        %v2381 = vld [vmem:[%s443 + $0xfd0] sm:$0xff]
        %v2382 = vld [vmem:[%s443 + $0xfd8] sm:$0xff]
        %v2383 = vld [vmem:[%s443 + $0xfe0] sm:$0xff]
        %v2384 = vld [vmem:[%s443 + $0xfe8] sm:$0xff]
        %v2385 = vld [vmem:[%s443 + $0xff0] sm:$0xff]
        %v2386 = vld [vmem:[%s443 + $0xff8] sm:$0xff]
        %v2387 = vld [vmem:[%s443 + $0x1000] sm:$0xff]
        %v2388 = vld [vmem:[%s443 + $0x1008] sm:$0xff]
        %v2389 = vld [vmem:[%s443 + $0x1010] sm:$0xff]
        %v2390 = vld [vmem:[%s443 + $0x1018] sm:$0xff]
        %v2391 = vld [vmem:[%s443 + $0x1020] sm:$0xff]
        %v2392 = vld [vmem:[%s443 + $0x1028] sm:$0xff]
        %v2393 = vld [vmem:[%s443 + $0x1030] sm:$0xff]
        %v2394 = vld [vmem:[%s443 + $0x1038] sm:$0xff]
        %v2395 = vld [vmem:[%s443 + $0x1040] sm:$0xff]
        %v2396 = vld [vmem:[%s443 + $0x1048] sm:$0xff]
        %v2397 = vld [vmem:[%s443 + $0x1050] sm:$0xff]
        %v2398 = vld [vmem:[%s443 + $0x1058] sm:$0xff]
        %v2399 = vld [vmem:[%s443 + $0x1060] sm:$0xff]
        %v2400 = vld [vmem:[%s443 + $0x1068] sm:$0xff]
        %v2401 = vld [vmem:[%s443 + $0x1070] sm:$0xff]
        %v2402 = vld [vmem:[%s443 + $0x1078] sm:$0xff]
        %v2403 = vld [vmem:[%s443 + $0x1080] sm:$0xff]
        %v2404 = vld [vmem:[%s443 + $0x1088] sm:$0xff]
        %v2405 = vld [vmem:[%s443 + $0x1090] sm:$0xff]
        %v2406 = vld [vmem:[%s443 + $0x1098] sm:$0xff]
        %v2407 = vld [vmem:[%s443 + $0x10a0] sm:$0xff]
        %v2408 = vld [vmem:[%s443 + $0x10a8] sm:$0xff]
        %v2409 = vld [vmem:[%s443 + $0x10b0] sm:$0xff]
        %v2410 = vld [vmem:[%s443 + $0x10b8] sm:$0xff]
        %v2411 = vld [vmem:[%s443 + $0x10c0] sm:$0xff]
        %v2412 = vld [vmem:[%s443 + $0x10c8] sm:$0xff]
        %v2413 = vld [vmem:[%s443 + $0x10d0] sm:$0xff]
        %v2414 = vld [vmem:[%s443 + $0x10d8] sm:$0xff]
        %v2415 = vld [vmem:[%s443 + $0x10e0] sm:$0xff]
        %v2416 = vld [vmem:[%s443 + $0x10e8] sm:$0xff]
        %v2417 = vld [vmem:[%s443 + $0x10f0] sm:$0xff]
        %v2418 = vld [vmem:[%s443 + $0x10f8] sm:$0xff]
        %v2419 = vld [vmem:[%s443 + $0x1100] sm:$0xff]
        %v2420 = vld [vmem:[%s443 + $0x1108] sm:$0xff]
        %v2421 = vld [vmem:[%s443 + $0x1110] sm:$0xff]
        %v2422 = vld [vmem:[%s443 + $0x1118] sm:$0xff]
        %v2423 = vld [vmem:[%s443 + $0x1120] sm:$0xff]
        %v2424 = vld [vmem:[%s443 + $0x1128] sm:$0xff]
        %v2425 = vld [vmem:[%s443 + $0x1130] sm:$0xff]
        %v2426 = vld [vmem:[%s443 + $0x1138] sm:$0xff]
        %v2427 = vld [vmem:[%s443 + $0x1140] sm:$0xff]
        %v2428 = vld [vmem:[%s443 + $0x1148] sm:$0xff]
        %v2429 = vld [vmem:[%s443 + $0x1150] sm:$0xff]
        %v2430 = vld [vmem:[%s443 + $0x1158] sm:$0xff]
        %v2431 = vld [vmem:[%s443 + $0x1160] sm:$0xff]
        %v2432 = vld [vmem:[%s443 + $0x1168] sm:$0xff]
        %v2433 = vld [vmem:[%s443 + $0x1170] sm:$0xff]
        %v2434 = vld [vmem:[%s443 + $0x1178] sm:$0xff]
        %v2435 = vld [vmem:[%s443 + $0x1180] sm:$0xff]
        %v2436 = vld [vmem:[%s443 + $0x1188] sm:$0xff]
        %v2437 = vld [vmem:[%s443 + $0x1190] sm:$0xff]
        %v2438 = vld [vmem:[%s443 + $0x1198] sm:$0xff]
        %v2439 = vld [vmem:[%s443 + $0x11a0] sm:$0xff]
        %v2440 = vld [vmem:[%s443 + $0x11a8] sm:$0xff]
        %v2441 = vld [vmem:[%s443 + $0x11b0] sm:$0xff]
        %v2442 = vld [vmem:[%s443 + $0x11b8] sm:$0xff]
        %v2443 = vld [vmem:[%s443 + $0x11c0] sm:$0xff]
        %v2444 = vld [vmem:[%s443 + $0x11c8] sm:$0xff]
        %v2445 = vld [vmem:[%s443 + $0x11d0] sm:$0xff]
        %v2446 = vld [vmem:[%s443 + $0x11d8] sm:$0xff]
        %v2447 = vld [vmem:[%s443 + $0x11e0] sm:$0xff]
        %v2448 = vld [vmem:[%s443 + $0x11e8] sm:$0xff]
        %v2449 = vld [vmem:[%s443 + $0x11f0] sm:$0xff]
        %v2450 = vld [vmem:[%s443 + $0x11f8] sm:$0xff]
        %v2451 = vld [vmem:[%s443 + $0x1200] sm:$0xff]
        %v2452 = vld [vmem:[%s443 + $0x1208] sm:$0xff]
        %v2453 = vld [vmem:[%s443 + $0x1210] sm:$0xff]
        %v2454 = vld [vmem:[%s443 + $0x1218] sm:$0xff]
        %v2455 = vld [vmem:[%s443 + $0x1220] sm:$0xff]
        %v2456 = vld [vmem:[%s443 + $0x1228] sm:$0xff]
        %v2457 = vld [vmem:[%s443 + $0x1230] sm:$0xff]
        %v2458 = vld [vmem:[%s443 + $0x1238] sm:$0xff]
        %v2459 = vld [vmem:[%s443 + $0x1240] sm:$0xff]
        %v2460 = vld [vmem:[%s443 + $0x1248] sm:$0xff]
        %v2461 = vld [vmem:[%s443 + $0x1250] sm:$0xff]
        %v2462 = vld [vmem:[%s443 + $0x1258] sm:$0xff]
        %v2463 = vld [vmem:[%s443 + $0x1260] sm:$0xff]
        %v2464 = vld [vmem:[%s443 + $0x1268] sm:$0xff]
        %v2465 = vld [vmem:[%s443 + $0x1270] sm:$0xff]
        %v2466 = vld [vmem:[%s443 + $0x1278] sm:$0xff]
        %v2467 = vld [vmem:[%s443 + $0x1280] sm:$0xff]
        %v2468 = vld [vmem:[%s443 + $0x1288] sm:$0xff]
        %v2469 = vld [vmem:[%s443 + $0x1290] sm:$0xff]
        %v2470 = vld [vmem:[%s443 + $0x1298] sm:$0xff]
        %v2471 = vld [vmem:[%s443 + $0x12a0] sm:$0xff]
        %v2472 = vld [vmem:[%s443 + $0x12a8] sm:$0xff]
        %v2473 = vld [vmem:[%s443 + $0x12b0] sm:$0xff]
        %v2474 = vld [vmem:[%s443 + $0x12b8] sm:$0xff]
        %v2475 = vld [vmem:[%s443 + $0x12c0] sm:$0xff]
        %v2476 = vld [vmem:[%s443 + $0x12c8] sm:$0xff]
        %v2477 = vld [vmem:[%s443 + $0x12d0] sm:$0xff]
        %v2478 = vld [vmem:[%s443 + $0x12d8] sm:$0xff]
        %v2479 = vld [vmem:[%s443 + $0x12e0] sm:$0xff]
        %v2480 = vld [vmem:[%s443 + $0x12e8] sm:$0xff]
        %v2481 = vld [vmem:[%s443 + $0x12f0] sm:$0xff]
        %v2482 = vld [vmem:[%s443 + $0x12f8] sm:$0xff]
        %v2483 = vld [vmem:[%s443 + $0x1300] sm:$0xff]
        %v2484 = vld [vmem:[%s443 + $0x1308] sm:$0xff]
        %v2485 = vld [vmem:[%s443 + $0x1310] sm:$0xff]
        %v2486 = vld [vmem:[%s443 + $0x1318] sm:$0xff]
        %v2487 = vld [vmem:[%s443 + $0x1320] sm:$0xff]
        %v2488 = vld [vmem:[%s443 + $0x1328] sm:$0xff]
        %v2489 = vld [vmem:[%s443 + $0x1330] sm:$0xff]
        %v2490 = vld [vmem:[%s443 + $0x1338] sm:$0xff]
        %v2491 = vld [vmem:[%s443 + $0x1340] sm:$0xff]
        %v2492 = vld [vmem:[%s443 + $0x1348] sm:$0xff]
        %v2493 = vld [vmem:[%s443 + $0x1350] sm:$0xff]
        %v2494 = vld [vmem:[%s443 + $0x1358] sm:$0xff]
        %v2495 = vld [vmem:[%s443 + $0x1360] sm:$0xff]
        %v2496 = vld [vmem:[%s443 + $0x1368] sm:$0xff]
        %v2497 = vld [vmem:[%s443 + $0x1370] sm:$0xff]
        %v2498 = vld [vmem:[%s443 + $0x1378] sm:$0xff]
        %v2499 = vld [vmem:[%s443 + $0x1380] sm:$0xff]
        %v2500 = vld [vmem:[%s443 + $0x1388] sm:$0xff]
        %v2501 = vld [vmem:[%s443 + $0x1390] sm:$0xff]
        %v2502 = vld [vmem:[%s443 + $0x1398] sm:$0xff]
        %v2503 = vld [vmem:[%s443 + $0x13a0] sm:$0xff]
        %v2504 = vld [vmem:[%s443 + $0x13a8] sm:$0xff]
        %v2505 = vld [vmem:[%s443 + $0x13b0] sm:$0xff]
        %v2506 = vld [vmem:[%s443 + $0x13b8] sm:$0xff]
        %v2507 = vld [vmem:[%s443 + $0x13c0] sm:$0xff]
        %v2508 = vld [vmem:[%s443 + $0x13c8] sm:$0xff]
        %v2509 = vld [vmem:[%s443 + $0x13d0] sm:$0xff]
        %v2510 = vld [vmem:[%s443 + $0x13d8] sm:$0xff]
        %v2511 = vld [vmem:[%s443 + $0x13e0] sm:$0xff]
        %v2512 = vld [vmem:[%s443 + $0x13e8] sm:$0xff]
        %v2513 = vld [vmem:[%s443 + $0x13f0] sm:$0xff]
        %v2514 = vld [vmem:[%s443 + $0x13f8] sm:$0xff]
        %v2515 = vld [vmem:[%s443 + $0x1400] sm:$0xff]
        %v2516 = vld [vmem:[%s443 + $0x1408] sm:$0xff]
        %v2517 = vld [vmem:[%s443 + $0x1410] sm:$0xff]
        %v2518 = vld [vmem:[%s443 + $0x1418] sm:$0xff]
        %v2519 = vld [vmem:[%s443 + $0x1420] sm:$0xff]
        %v2520 = vld [vmem:[%s443 + $0x1428] sm:$0xff]
        %v2521 = vld [vmem:[%s443 + $0x1430] sm:$0xff]
        %v2522 = vld [vmem:[%s443 + $0x1438] sm:$0xff]
        %v2523 = vld [vmem:[%s443 + $0x1440] sm:$0xff]
        %v2524 = vld [vmem:[%s443 + $0x1448] sm:$0xff]
        %v2525 = vld [vmem:[%s443 + $0x1450] sm:$0xff]
        %v2526 = vld [vmem:[%s443 + $0x1458] sm:$0xff]
        %v2527 = vld [vmem:[%s443 + $0x1460] sm:$0xff]
        %v2528 = vld [vmem:[%s443 + $0x1468] sm:$0xff]
        %v2529 = vld [vmem:[%s443 + $0x1470] sm:$0xff]
        %v2530 = vld [vmem:[%s443 + $0x1478] sm:$0xff]
        %v2531 = vld [vmem:[%s443 + $0x1480] sm:$0xff]
        %v2532 = vld [vmem:[%s443 + $0x1488] sm:$0xff]
        %v2533 = vld [vmem:[%s443 + $0x1490] sm:$0xff]
        %v2534 = vld [vmem:[%s443 + $0x1498] sm:$0xff]
        %v2535 = vld [vmem:[%s443 + $0x14a0] sm:$0xff]
        %v2536 = vld [vmem:[%s443 + $0x14a8] sm:$0xff]
        %v2537 = vld [vmem:[%s443 + $0x14b0] sm:$0xff]
        %v2538 = vld [vmem:[%s443 + $0x14b8] sm:$0xff]
        %v2539 = vld [vmem:[%s443 + $0x14c0] sm:$0xff]
        %v2540 = vld [vmem:[%s443 + $0x14c8] sm:$0xff]
        %v2541 = vld [vmem:[%s443 + $0x14d0] sm:$0xff]
        %v2542 = vld [vmem:[%s443 + $0x14d8] sm:$0xff]
        %v2543 = vld [vmem:[%s443 + $0x14e0] sm:$0xff]
        %v2544 = vld [vmem:[%s443 + $0x14e8] sm:$0xff]
        %v2545 = vld [vmem:[%s443 + $0x14f0] sm:$0xff]
        %v2546 = vld [vmem:[%s443 + $0x14f8] sm:$0xff]
        %v2547 = vld [vmem:[%s443 + $0x1500] sm:$0xff]
        %v2548 = vld [vmem:[%s443 + $0x1508] sm:$0xff]
        %v2549 = vld [vmem:[%s443 + $0x1510] sm:$0xff]
        %v2550 = vld [vmem:[%s443 + $0x1518] sm:$0xff]
        %v2551 = vld [vmem:[%s443 + $0x1520] sm:$0xff]
        %v2552 = vld [vmem:[%s443 + $0x1528] sm:$0xff]
        %v2553 = vld [vmem:[%s443 + $0x1530] sm:$0xff]
        %v2554 = vld [vmem:[%s443 + $0x1538] sm:$0xff]
        %v2555 = vld [vmem:[%s443 + $0x1540] sm:$0xff]
        %v2556 = vld [vmem:[%s443 + $0x1548] sm:$0xff]
        %v2557 = vld [vmem:[%s443 + $0x1550] sm:$0xff]
        %v2558 = vld [vmem:[%s443 + $0x1558] sm:$0xff]
        %v2559 = vld [vmem:[%s443 + $0x1560] sm:$0xff]
        %v2560 = vld [vmem:[%s443 + $0x1568] sm:$0xff]
        %v2561 = vld [vmem:[%s443 + $0x1570] sm:$0xff]
        %v2562 = vld [vmem:[%s443 + $0x1578] sm:$0xff]
        %v2563 = vld [vmem:[%s443 + $0x1580] sm:$0xff]
        %v2564 = vld [vmem:[%s443 + $0x1588] sm:$0xff]
        %v2565 = vld [vmem:[%s443 + $0x1590] sm:$0xff]
        %v2566 = vld [vmem:[%s443 + $0x1598] sm:$0xff]
        %v2567 = vld [vmem:[%s443 + $0x15a0] sm:$0xff]
        %v2568 = vld [vmem:[%s443 + $0x15a8] sm:$0xff]
        %v2569 = vld [vmem:[%s443 + $0x15b0] sm:$0xff]
        %v2570 = vld [vmem:[%s443 + $0x15b8] sm:$0xff]
        %v2571 = vld [vmem:[%s443 + $0x15c0] sm:$0xff]
        %v2572 = vld [vmem:[%s443 + $0x15c8] sm:$0xff]
        %v2573 = vld [vmem:[%s443 + $0x15d0] sm:$0xff]
        %v2574 = vld [vmem:[%s443 + $0x15d8] sm:$0xff]
        %v2575 = vld [vmem:[%s443 + $0x15e0] sm:$0xff]
        %v2576 = vld [vmem:[%s443 + $0x15e8] sm:$0xff]
        %v2577 = vld [vmem:[%s443 + $0x15f0] sm:$0xff]
        %v2578 = vld [vmem:[%s443 + $0x15f8] sm:$0xff]
        %v2579 = vld [vmem:[%s443 + $0x1600] sm:$0xff]
        %v2580 = vld [vmem:[%s443 + $0x1608] sm:$0xff]
        %v2581 = vld [vmem:[%s443 + $0x1610] sm:$0xff]
        %v2582 = vld [vmem:[%s443 + $0x1618] sm:$0xff]
        %v2583 = vld [vmem:[%s443 + $0x1620] sm:$0xff]
        %v2584 = vld [vmem:[%s443 + $0x1628] sm:$0xff]
        %v2585 = vld [vmem:[%s443 + $0x1630] sm:$0xff]
        %v2586 = vld [vmem:[%s443 + $0x1638] sm:$0xff]
        %v2587 = vld [vmem:[%s443 + $0x1640] sm:$0xff]
        %v2588 = vld [vmem:[%s443 + $0x1648] sm:$0xff]
        %v2589 = vld [vmem:[%s443 + $0x1650] sm:$0xff]
        %v2590 = vld [vmem:[%s443 + $0x1658] sm:$0xff]
        %v2591 = vld [vmem:[%s443 + $0x1660] sm:$0xff]
        %v2592 = vld [vmem:[%s443 + $0x1668] sm:$0xff]
        %v2593 = vld [vmem:[%s443 + $0x1670] sm:$0xff]
        %v2594 = vld [vmem:[%s443 + $0x1678] sm:$0xff]
        %v2595 = vld [vmem:[%s443 + $0x1680] sm:$0xff]
        %v2596 = vld [vmem:[%s443 + $0x1688] sm:$0xff]
        %v2597 = vld [vmem:[%s443 + $0x1690] sm:$0xff]
        %v2598 = vld [vmem:[%s443 + $0x1698] sm:$0xff]
        %v2599 = vld [vmem:[%s443 + $0x16a0] sm:$0xff]
        %v2600 = vld [vmem:[%s443 + $0x16a8] sm:$0xff]
        %v2601 = vld [vmem:[%s443 + $0x16b0] sm:$0xff]
        %v2602 = vld [vmem:[%s443 + $0x16b8] sm:$0xff]
        %v2603 = vld [vmem:[%s443 + $0x16c0] sm:$0xff]
        %v2604 = vld [vmem:[%s443 + $0x16c8] sm:$0xff]
        %v2605 = vld [vmem:[%s443 + $0x16d0] sm:$0xff]
        %v2606 = vld [vmem:[%s443 + $0x16d8] sm:$0xff]
        %v2607 = vld [vmem:[%s443 + $0x16e0] sm:$0xff]
        %v2608 = vld [vmem:[%s443 + $0x16e8] sm:$0xff]
        %v2609 = vld [vmem:[%s443 + $0x16f0] sm:$0xff]
        %v2610 = vld [vmem:[%s443 + $0x16f8] sm:$0xff]
        %v2611 = vld [vmem:[%s443 + $0x1700] sm:$0xff]
        %v2612 = vld [vmem:[%s443 + $0x1708] sm:$0xff]
        %v2613 = vld [vmem:[%s443 + $0x1710] sm:$0xff]
        %v2614 = vld [vmem:[%s443 + $0x1718] sm:$0xff]
        %v2615 = vld [vmem:[%s443 + $0x1720] sm:$0xff]
        %v2616 = vld [vmem:[%s443 + $0x1728] sm:$0xff]
        %v2617 = vld [vmem:[%s443 + $0x1730] sm:$0xff]
        %v2618 = vld [vmem:[%s443 + $0x1738] sm:$0xff]
        %v2619 = vld [vmem:[%s443 + $0x1740] sm:$0xff]
        %v2620 = vld [vmem:[%s443 + $0x1748] sm:$0xff]
        %v2621 = vld [vmem:[%s443 + $0x1750] sm:$0xff]
        %v2622 = vld [vmem:[%s443 + $0x1758] sm:$0xff]
        %v2623 = vld [vmem:[%s443 + $0x1760] sm:$0xff]
        %v2624 = vld [vmem:[%s443 + $0x1768] sm:$0xff]
        %v2625 = vld [vmem:[%s443 + $0x1770] sm:$0xff]
        %v2626 = vld [vmem:[%s443 + $0x1778] sm:$0xff]
        %v2627 = vld [vmem:[%s443 + $0x1780] sm:$0xff]
        %v2628 = vld [vmem:[%s443 + $0x1788] sm:$0xff]
        %v2629 = vld [vmem:[%s443 + $0x1790] sm:$0xff]
        %v2630 = vld [vmem:[%s443 + $0x1798] sm:$0xff]
        %v2631 = vld [vmem:[%s443 + $0x17a0] sm:$0xff]
        %v2632 = vld [vmem:[%s443 + $0x17a8] sm:$0xff]
        %v2633 = vld [vmem:[%s443 + $0x17b0] sm:$0xff]
        %v2634 = vld [vmem:[%s443 + $0x17b8] sm:$0xff]
        %v2635 = vld [vmem:[%s443 + $0x17c0] sm:$0xff]
        %v2636 = vld [vmem:[%s443 + $0x17c8] sm:$0xff]
        %v2637 = vld [vmem:[%s443 + $0x17d0] sm:$0xff]
        %v2638 = vld [vmem:[%s443 + $0x17d8] sm:$0xff]
        %v2639 = vld [vmem:[%s443 + $0x17e0] sm:$0xff]
        %v2640 = vld [vmem:[%s443 + $0x17e8] sm:$0xff]
        %v2641 = vld [vmem:[%s443 + $0x17f0] sm:$0xff]
        %v2642 = vld [vmem:[%s443 + $0x17f8] sm:$0xff]
        %v2643 = vld [vmem:[%s443 + $0x1800] sm:$0xff]
        %v2644 = vld [vmem:[%s443 + $0x1808] sm:$0xff]
        %v2645 = vld [vmem:[%s443 + $0x1810] sm:$0xff]
        %v2646 = vld [vmem:[%s443 + $0x1818] sm:$0xff]
        %v2647 = vld [vmem:[%s443 + $0x1820] sm:$0xff]
        %v2648 = vld [vmem:[%s443 + $0x1828] sm:$0xff]
        %v2649 = vld [vmem:[%s443 + $0x1830] sm:$0xff]
        %v2650 = vld [vmem:[%s443 + $0x1838] sm:$0xff]
        %v2651 = vld [vmem:[%s443 + $0x1840] sm:$0xff]
        %v2652 = vld [vmem:[%s443 + $0x1848] sm:$0xff]
        %v2653 = vld [vmem:[%s443 + $0x1850] sm:$0xff]
        %v2654 = vld [vmem:[%s443 + $0x1858] sm:$0xff]
        %v2655 = vld [vmem:[%s443 + $0x1860] sm:$0xff]
        %v2656 = vld [vmem:[%s443 + $0x1868] sm:$0xff]
        %v2657 = vld [vmem:[%s443 + $0x1870] sm:$0xff]
        %v2658 = vld [vmem:[%s443 + $0x1878] sm:$0xff]
        %v2659 = vld [vmem:[%s443 + $0x1880] sm:$0xff]
        %v2660 = vld [vmem:[%s443 + $0x1888] sm:$0xff]
        %v2661 = vld [vmem:[%s443 + $0x1890] sm:$0xff]
        %v2662 = vld [vmem:[%s443 + $0x1898] sm:$0xff]
        %v2663 = vld [vmem:[%s443 + $0x18a0] sm:$0xff]
        %v2664 = vld [vmem:[%s443 + $0x18a8] sm:$0xff]
        %v2665 = vld [vmem:[%s443 + $0x18b0] sm:$0xff]
        %v2666 = vld [vmem:[%s443 + $0x18b8] sm:$0xff]
        %v2667 = vld [vmem:[%s443 + $0x18c0] sm:$0xff]
        %v2668 = vld [vmem:[%s443 + $0x18c8] sm:$0xff]
        %v2669 = vld [vmem:[%s443 + $0x18d0] sm:$0xff]
        %v2670 = vld [vmem:[%s443 + $0x18d8] sm:$0xff]
        %v2671 = vld [vmem:[%s443 + $0x18e0] sm:$0xff]
        %v2672 = vld [vmem:[%s443 + $0x18e8] sm:$0xff]
        %v2673 = vld [vmem:[%s443 + $0x18f0] sm:$0xff]
        %v2674 = vld [vmem:[%s443 + $0x18f8] sm:$0xff]
        %v2675 = vld [vmem:[%s443 + $0x1900] sm:$0xff]
        %v2676 = vld [vmem:[%s443 + $0x1908] sm:$0xff]
        %v2677 = vld [vmem:[%s443 + $0x1910] sm:$0xff]
        %v2678 = vld [vmem:[%s443 + $0x1918] sm:$0xff]
        %v2679 = vld [vmem:[%s443 + $0x1920] sm:$0xff]
        %v2680 = vld [vmem:[%s443 + $0x1928] sm:$0xff]
        %v2681 = vld [vmem:[%s443 + $0x1930] sm:$0xff]
        %v2682 = vld [vmem:[%s443 + $0x1938] sm:$0xff]
        %v2683 = vld [vmem:[%s443 + $0x1940] sm:$0xff]
        %v2684 = vld [vmem:[%s443 + $0x1948] sm:$0xff]
        %v2685 = vld [vmem:[%s443 + $0x1950] sm:$0xff]
        %v2686 = vld [vmem:[%s443 + $0x1958] sm:$0xff]
        %v2687 = vld [vmem:[%s443 + $0x1960] sm:$0xff]
        %v2688 = vld [vmem:[%s443 + $0x1968] sm:$0xff]
        %v2689 = vld [vmem:[%s443 + $0x1970] sm:$0xff]
        %v2690 = vld [vmem:[%s443 + $0x1978] sm:$0xff]
        %v2691 = vld [vmem:[%s443 + $0x1980] sm:$0xff]
        %v2692 = vld [vmem:[%s443 + $0x1988] sm:$0xff]
        %v2693 = vld [vmem:[%s443 + $0x1990] sm:$0xff]
        %v2694 = vld [vmem:[%s443 + $0x1998] sm:$0xff]
        %v2695 = vld [vmem:[%s443 + $0x19a0] sm:$0xff]
        %v2696 = vld [vmem:[%s443 + $0x19a8] sm:$0xff]
        %v2697 = vld [vmem:[%s443 + $0x19b0] sm:$0xff]
        %v2698 = vld [vmem:[%s443 + $0x19b8] sm:$0xff]
        %v2699 = vld [vmem:[%s443 + $0x19c0] sm:$0xff]
        %v2700 = vld [vmem:[%s443 + $0x19c8] sm:$0xff]
        %v2701 = vld [vmem:[%s443 + $0x19d0] sm:$0xff]
        %v2702 = vld [vmem:[%s443 + $0x19d8] sm:$0xff]
        %v2703 = vld [vmem:[%s443 + $0x19e0] sm:$0xff]
        %v2704 = vld [vmem:[%s443 + $0x19e8] sm:$0xff]
        %v2705 = vld [vmem:[%s443 + $0x19f0] sm:$0xff]
        %v2706 = vld [vmem:[%s443 + $0x19f8] sm:$0xff]
        %v2707 = vld [vmem:[%s443 + $0x1a00] sm:$0xff]
        %v2708 = vld [vmem:[%s443 + $0x1a08] sm:$0xff]
        %v2709 = vld [vmem:[%s443 + $0x1a10] sm:$0xff]
        %v2710 = vld [vmem:[%s443 + $0x1a18] sm:$0xff]
        %v2711 = vld [vmem:[%s443 + $0x1a20] sm:$0xff]
        %v2712 = vld [vmem:[%s443 + $0x1a28] sm:$0xff]
        %v2713 = vld [vmem:[%s443 + $0x1a30] sm:$0xff]
        %v2714 = vld [vmem:[%s443 + $0x1a38] sm:$0xff]
        %v2715 = vld [vmem:[%s443 + $0x1a40] sm:$0xff]
        %v2716 = vld [vmem:[%s443 + $0x1a48] sm:$0xff]
        %v2717 = vld [vmem:[%s443 + $0x1a50] sm:$0xff]
        %v2718 = vld [vmem:[%s443 + $0x1a58] sm:$0xff]
        %v2719 = vld [vmem:[%s443 + $0x1a60] sm:$0xff]
        %v2720 = vld [vmem:[%s443 + $0x1a68] sm:$0xff]
        %v2721 = vld [vmem:[%s443 + $0x1a70] sm:$0xff]
        %v2722 = vld [vmem:[%s443 + $0x1a78] sm:$0xff]
        %v2723 = vld [vmem:[%s443 + $0x1a80] sm:$0xff]
        %v2724 = vld [vmem:[%s443 + $0x1a88] sm:$0xff]
        %v2725 = vld [vmem:[%s443 + $0x1a90] sm:$0xff]
        %v2726 = vld [vmem:[%s443 + $0x1a98] sm:$0xff]
        %v2727 = vld [vmem:[%s443 + $0x1aa0] sm:$0xff]
        %v2728 = vld [vmem:[%s443 + $0x1aa8] sm:$0xff]
        %v2729 = vld [vmem:[%s443 + $0x1ab0] sm:$0xff]
        %v2730 = vld [vmem:[%s443 + $0x1ab8] sm:$0xff]
        %v2731 = vld [vmem:[%s443 + $0x1ac0] sm:$0xff]
        %v2732 = vld [vmem:[%s443 + $0x1ac8] sm:$0xff]
        %v2733 = vld [vmem:[%s443 + $0x1ad0] sm:$0xff]
        %v2734 = vld [vmem:[%s443 + $0x1ad8] sm:$0xff]
        %v2735 = vld [vmem:[%s443 + $0x1ae0] sm:$0xff]
        %v2736 = vld [vmem:[%s443 + $0x1ae8] sm:$0xff]
        %v2737 = vld [vmem:[%s443 + $0x1af0] sm:$0xff]
        %v2738 = vld [vmem:[%s443 + $0x1af8] sm:$0xff]
        %v2739 = vld [vmem:[%s443 + $0x1b00] sm:$0xff]
        %v2740 = vld [vmem:[%s443 + $0x1b08] sm:$0xff]
        %v2741 = vld [vmem:[%s443 + $0x1b10] sm:$0xff]
        %v2742 = vld [vmem:[%s443 + $0x1b18] sm:$0xff]
        %v2743 = vld [vmem:[%s443 + $0x1b20] sm:$0xff]
        %v2744 = vld [vmem:[%s443 + $0x1b28] sm:$0xff]
        %v2745 = vld [vmem:[%s443 + $0x1b30] sm:$0xff]
        %v2746 = vld [vmem:[%s443 + $0x1b38] sm:$0xff]
        %v2747 = vld [vmem:[%s443 + $0x1b40] sm:$0xff]
        %v2748 = vld [vmem:[%s443 + $0x1b48] sm:$0xff]
        %v2749 = vld [vmem:[%s443 + $0x1b50] sm:$0xff]
        %v2750 = vld [vmem:[%s443 + $0x1b58] sm:$0xff]
        %v2751 = vld [vmem:[%s443 + $0x1b60] sm:$0xff]
        %v2752 = vld [vmem:[%s443 + $0x1b68] sm:$0xff]
        %v2753 = vld [vmem:[%s443 + $0x1b70] sm:$0xff]
        %v2754 = vld [vmem:[%s443 + $0x1b78] sm:$0xff]
        %v2755 = vld [vmem:[%s443 + $0x1b80] sm:$0xff]
        %v2756 = vld [vmem:[%s443 + $0x1b88] sm:$0xff]
        %v2757 = vld [vmem:[%s443 + $0x1b90] sm:$0xff]
        %v2758 = vld [vmem:[%s443 + $0x1b98] sm:$0xff]
        %v2759 = vld [vmem:[%s443 + $0x1ba0] sm:$0xff]
        %v2760 = vld [vmem:[%s443 + $0x1ba8] sm:$0xff]
        %v2761 = vld [vmem:[%s443 + $0x1bb0] sm:$0xff]
        %v2762 = vld [vmem:[%s443 + $0x1bb8] sm:$0xff]
        %v2763 = vld [vmem:[%s443 + $0x1bc0] sm:$0xff]
        %v2764 = vld [vmem:[%s443 + $0x1bc8] sm:$0xff]
        %v2765 = vld [vmem:[%s443 + $0x1bd0] sm:$0xff]
        %v2766 = vld [vmem:[%s443 + $0x1bd8] sm:$0xff]
        %v2767 = vld [vmem:[%s443 + $0x1be0] sm:$0xff]
        %v2768 = vld [vmem:[%s443 + $0x1be8] sm:$0xff]
        %v2769 = vld [vmem:[%s443 + $0x1bf0] sm:$0xff]
        %v2770 = vld [vmem:[%s443 + $0x1bf8] sm:$0xff]
        %v2771 = vld [vmem:[%s443 + $0x1c00] sm:$0xff]
        %v2772 = vld [vmem:[%s443 + $0x1c08] sm:$0xff]
        %v2773 = vld [vmem:[%s443 + $0x1c10] sm:$0xff]
        %v2774 = vld [vmem:[%s443 + $0x1c18] sm:$0xff]
        %v2775 = vld [vmem:[%s443 + $0x1c20] sm:$0xff]
        %v2776 = vld [vmem:[%s443 + $0x1c28] sm:$0xff]
        %v2777 = vld [vmem:[%s443 + $0x1c30] sm:$0xff]
        %v2778 = vld [vmem:[%s443 + $0x1c38] sm:$0xff]
        %v2779 = vld [vmem:[%s443 + $0x1c40] sm:$0xff]
        %v2780 = vld [vmem:[%s443 + $0x1c48] sm:$0xff]
        %v2781 = vld [vmem:[%s443 + $0x1c50] sm:$0xff]
        %v2782 = vld [vmem:[%s443 + $0x1c58] sm:$0xff]
        %v2783 = vld [vmem:[%s443 + $0x1c60] sm:$0xff]
        %v2784 = vld [vmem:[%s443 + $0x1c68] sm:$0xff]
        %v2785 = vld [vmem:[%s443 + $0x1c70] sm:$0xff]
        %v2786 = vld [vmem:[%s443 + $0x1c78] sm:$0xff]
        %v2787 = vld [vmem:[%s443 + $0x1c80] sm:$0xff]
        %v2788 = vld [vmem:[%s443 + $0x1c88] sm:$0xff]
        %v2789 = vld [vmem:[%s443 + $0x1c90] sm:$0xff]
        %v2790 = vld [vmem:[%s443 + $0x1c98] sm:$0xff]
        %v2791 = vld [vmem:[%s443 + $0x1ca0] sm:$0xff]
        %v2792 = vld [vmem:[%s443 + $0x1ca8] sm:$0xff]
        %v2793 = vld [vmem:[%s443 + $0x1cb0] sm:$0xff]
        %v2794 = vld [vmem:[%s443 + $0x1cb8] sm:$0xff]
        %v2795 = vld [vmem:[%s443 + $0x1cc0] sm:$0xff]
        %v2796 = vld [vmem:[%s443 + $0x1cc8] sm:$0xff]
        %v2797 = vld [vmem:[%s443 + $0x1cd0] sm:$0xff]
        %v2798 = vld [vmem:[%s443 + $0x1cd8] sm:$0xff]
        %v2799 = vld [vmem:[%s443 + $0x1ce0] sm:$0xff]
        %v2800 = vld [vmem:[%s443 + $0x1ce8] sm:$0xff]
        %v2801 = vld [vmem:[%s443 + $0x1cf0] sm:$0xff]
        %v2802 = vld [vmem:[%s443 + $0x1cf8] sm:$0xff]
        %v2803 = vld [vmem:[%s443 + $0x1d00] sm:$0xff]
        %v2804 = vld [vmem:[%s443 + $0x1d08] sm:$0xff]
        %v2805 = vld [vmem:[%s443 + $0x1d10] sm:$0xff]
        %v2806 = vld [vmem:[%s443 + $0x1d18] sm:$0xff]
        %v2807 = vld [vmem:[%s443 + $0x1d20] sm:$0xff]
        %v2808 = vld [vmem:[%s443 + $0x1d28] sm:$0xff]
        %v2809 = vld [vmem:[%s443 + $0x1d30] sm:$0xff]
        %v2810 = vld [vmem:[%s443 + $0x1d38] sm:$0xff]
        %v2811 = vld [vmem:[%s443 + $0x1d40] sm:$0xff]
        %v2812 = vld [vmem:[%s443 + $0x1d48] sm:$0xff]
        %v2813 = vld [vmem:[%s443 + $0x1d50] sm:$0xff]
        %v2814 = vld [vmem:[%s443 + $0x1d58] sm:$0xff]
        %v2815 = vld [vmem:[%s443 + $0x1d60] sm:$0xff]
        %v2816 = vld [vmem:[%s443 + $0x1d68] sm:$0xff]
        %v2817 = vld [vmem:[%s443 + $0x1d70] sm:$0xff]
        %v2818 = vld [vmem:[%s443 + $0x1d78] sm:$0xff]
        %v2819 = vld [vmem:[%s443 + $0x1d80] sm:$0xff]
        %v2820 = vld [vmem:[%s443 + $0x1d88] sm:$0xff]
        %v2821 = vld [vmem:[%s443 + $0x1d90] sm:$0xff]
        %v2822 = vld [vmem:[%s443 + $0x1d98] sm:$0xff]
        %v2823 = vld [vmem:[%s443 + $0x1da0] sm:$0xff]
        %v2824 = vld [vmem:[%s443 + $0x1da8] sm:$0xff]
        %v2825 = vld [vmem:[%s443 + $0x1db0] sm:$0xff]
        %v2826 = vld [vmem:[%s443 + $0x1db8] sm:$0xff]
        %v2827 = vld [vmem:[%s443 + $0x1dc0] sm:$0xff]
        %v2828 = vld [vmem:[%s443 + $0x1dc8] sm:$0xff]
        %v2829 = vld [vmem:[%s443 + $0x1dd0] sm:$0xff]
        %v2830 = vld [vmem:[%s443 + $0x1dd8] sm:$0xff]
        %v2831 = vld [vmem:[%s443 + $0x1de0] sm:$0xff]
        %v2832 = vld [vmem:[%s443 + $0x1de8] sm:$0xff]
        %v2833 = vld [vmem:[%s443 + $0x1df0] sm:$0xff]
        %v2834 = vld [vmem:[%s443 + $0x1df8] sm:$0xff]
        %v2835 = vld [vmem:[%s443 + $0x1e00] sm:$0xff]
        %v2836 = vld [vmem:[%s443 + $0x1e08] sm:$0xff]
        %v2837 = vld [vmem:[%s443 + $0x1e10] sm:$0xff]
        %v2838 = vld [vmem:[%s443 + $0x1e18] sm:$0xff]
        %v2839 = vld [vmem:[%s443 + $0x1e20] sm:$0xff]
        %v2840 = vld [vmem:[%s443 + $0x1e28] sm:$0xff]
        %v2841 = vld [vmem:[%s443 + $0x1e30] sm:$0xff]
        %v2842 = vld [vmem:[%s443 + $0x1e38] sm:$0xff]
        %v2843 = vld [vmem:[%s443 + $0x1e40] sm:$0xff]
        %v2844 = vld [vmem:[%s443 + $0x1e48] sm:$0xff]
        %v2845 = vld [vmem:[%s443 + $0x1e50] sm:$0xff]
        %v2846 = vld [vmem:[%s443 + $0x1e58] sm:$0xff]
        %v2847 = vld [vmem:[%s443 + $0x1e60] sm:$0xff]
        %v2848 = vld [vmem:[%s443 + $0x1e68] sm:$0xff]
        %v2849 = vld [vmem:[%s443 + $0x1e70] sm:$0xff]
        %v2850 = vld [vmem:[%s443 + $0x1e78] sm:$0xff]
        %v2851 = vld [vmem:[%s443 + $0x1e80] sm:$0xff]
        %v2852 = vld [vmem:[%s443 + $0x1e88] sm:$0xff]
        %v2853 = vld [vmem:[%s443 + $0x1e90] sm:$0xff]
        %v2854 = vld [vmem:[%s443 + $0x1e98] sm:$0xff]
        %v2855 = vld [vmem:[%s443 + $0x1ea0] sm:$0xff]
        %v2856 = vld [vmem:[%s443 + $0x1ea8] sm:$0xff]
        %v2857 = vld [vmem:[%s443 + $0x1eb0] sm:$0xff]
        %v2858 = vld [vmem:[%s443 + $0x1eb8] sm:$0xff]
        %v2859 = vld [vmem:[%s443 + $0x1ec0] sm:$0xff]
        %v2860 = vld [vmem:[%s443 + $0x1ec8] sm:$0xff]
        %v2861 = vld [vmem:[%s443 + $0x1ed0] sm:$0xff]
        %v2862 = vld [vmem:[%s443 + $0x1ed8] sm:$0xff]
        %v2863 = vld [vmem:[%s443 + $0x1ee0] sm:$0xff]
        %v2864 = vld [vmem:[%s443 + $0x1ee8] sm:$0xff]
        %v2865 = vld [vmem:[%s443 + $0x1ef0] sm:$0xff]
        %v2866 = vld [vmem:[%s443 + $0x1ef8] sm:$0xff]
        %v2867 = vld [vmem:[%s443 + $0x1f00] sm:$0xff]
        %v2868 = vld [vmem:[%s443 + $0x1f08] sm:$0xff]
        %v2869 = vld [vmem:[%s443 + $0x1f10] sm:$0xff]
        %v2870 = vld [vmem:[%s443 + $0x1f18] sm:$0xff]
        %v2871 = vld [vmem:[%s443 + $0x1f20] sm:$0xff]
        %v2872 = vld [vmem:[%s443 + $0x1f28] sm:$0xff]
        %v2873 = vld [vmem:[%s443 + $0x1f30] sm:$0xff]
        %v2874 = vld [vmem:[%s443 + $0x1f38] sm:$0xff]
        %v2875 = vld [vmem:[%s443 + $0x1f40] sm:$0xff]
        %v2876 = vld [vmem:[%s443 + $0x1f48] sm:$0xff]
        %v2877 = vld [vmem:[%s443 + $0x1f50] sm:$0xff]
        %v2878 = vld [vmem:[%s443 + $0x1f58] sm:$0xff]
        %v2879 = vld [vmem:[%s443 + $0x1f60] sm:$0xff]
        %v2880 = vld [vmem:[%s443 + $0x1f68] sm:$0xff]
        %v2881 = vld [vmem:[%s443 + $0x1f70] sm:$0xff]
        %v2882 = vld [vmem:[%s443 + $0x1f78] sm:$0xff]
        %v2883 = vld [vmem:[%s443 + $0x1f80] sm:$0xff]
        %v2884 = vld [vmem:[%s443 + $0x1f88] sm:$0xff]
        %v2885 = vld [vmem:[%s443 + $0x1f90] sm:$0xff]
        %v2886 = vld [vmem:[%s443 + $0x1f98] sm:$0xff]
        %v2887 = vld [vmem:[%s443 + $0x1fa0] sm:$0xff]
        %v2888 = vld [vmem:[%s443 + $0x1fa8] sm:$0xff]
        %v2889 = vld [vmem:[%s443 + $0x1fb0] sm:$0xff]
        %v2890 = vld [vmem:[%s443 + $0x1fb8] sm:$0xff]
        %v2891 = vld [vmem:[%s443 + $0x1fc0] sm:$0xff]
        %v2892 = vld [vmem:[%s443 + $0x1fc8] sm:$0xff]
        %v2893 = vld [vmem:[%s443 + $0x1fd0] sm:$0xff]
        %v2894 = vld [vmem:[%s443 + $0x1fd8] sm:$0xff]
        %v2895 = vld [vmem:[%s443 + $0x1fe0] sm:$0xff]
        %v2896 = vld [vmem:[%s443 + $0x1fe8] sm:$0xff]
        %v2897 = vld [vmem:[%s443 + $0x1ff0] sm:$0xff]
        %v2898 = vld [vmem:[%s443 + $0x1ff8] sm:$0xff]
        %v2899 = vld [vmem:[%s452] sm:$0xff]
        %v2901 = vlaneseq
        %v2902 = vshrl.u32 %v2901, 7
        %v2903 = vsub.s32 0, %v2902
        %v2904 = vrot.slane %v2899, %v2903
        %v2905 = vlaneseq
        %v2906 = vshrl.u32 %v2905, 7
        %v2907 = vsub.s32 1, %v2906
        %v2908 = vrot.slane %v2899, %v2907
        %v2909 = vlaneseq
        %v2910 = vshrl.u32 %v2909, 7
        %v2911 = vsub.s32 2, %v2910
        %v2912 = vrot.slane %v2899, %v2911
        %v2913 = vlaneseq
        %v2914 = vshrl.u32 %v2913, 7
        %v2915 = vsub.s32 3, %v2914
        %v2916 = vrot.slane %v2899, %v2915
        %v2917 = vlaneseq
        %v2918 = vshrl.u32 %v2917, 7
        %v2919 = vsub.s32 4, %v2918
        %v2920 = vrot.slane %v2899, %v2919
        %v2921 = vlaneseq
        %v2922 = vshrl.u32 %v2921, 7
        %v2923 = vsub.s32 5, %v2922
        %v2924 = vrot.slane %v2899, %v2923
        %v2925 = vlaneseq
        %v2926 = vshrl.u32 %v2925, 7
        %v2927 = vsub.s32 6, %v2926
        %v2928 = vrot.slane %v2899, %v2927
        %v2929 = vlaneseq
        %v2930 = vshrl.u32 %v2929, 7
        %v2931 = vsub.s32 7, %v2930
        %v2932 = vrot.slane %v2899, %v2931
        %v3965 = vunpack.c.l.b16 %v1875
        %v3966 = vunpack.c.h.b16 %v1875
        %v3967 = vunpack.c.l.b16 %v1876
        %v3968 = vunpack.c.h.b16 %v1876
        %v3969 = vunpack.c.l.b16 %v1877
        %v3970 = vunpack.c.h.b16 %v1877
        %v3971 = vunpack.c.l.b16 %v1878
        %v3972 = vunpack.c.h.b16 %v1878
        %v3973 = vunpack.c.l.b16 %v1879
        %v3974 = vunpack.c.h.b16 %v1879
        %v3975 = vunpack.c.l.b16 %v1880
        %v3976 = vunpack.c.h.b16 %v1880
        %v3977 = vunpack.c.l.b16 %v1881
        %v3978 = vunpack.c.h.b16 %v1881
        %v3979 = vunpack.c.l.b16 %v1882
        %v3980 = vunpack.c.h.b16 %v1882
        %v3981 = vunpack.c.l.b16 %v1883
        %v3982 = vunpack.c.h.b16 %v1883
        %v3983 = vunpack.c.l.b16 %v1884
        %v3984 = vunpack.c.h.b16 %v1884
        %v3985 = vunpack.c.l.b16 %v1885
        %v3986 = vunpack.c.h.b16 %v1885
        %v3987 = vunpack.c.l.b16 %v1886
        %v3988 = vunpack.c.h.b16 %v1886
        %v3989 = vunpack.c.l.b16 %v1887
        %v3990 = vunpack.c.h.b16 %v1887
        %v3991 = vunpack.c.l.b16 %v1888
        %v3992 = vunpack.c.h.b16 %v1888
        %v3993 = vunpack.c.l.b16 %v1889
        %v3994 = vunpack.c.h.b16 %v1889
        %v3995 = vunpack.c.l.b16 %v1890
        %v3996 = vunpack.c.h.b16 %v1890
        %v3997 = vunpack.c.l.b16 %v1891
        %v3998 = vunpack.c.h.b16 %v1891
        %v3999 = vunpack.c.l.b16 %v1892
        %v4000 = vunpack.c.h.b16 %v1892
        %v4001 = vunpack.c.l.b16 %v1893
        %v4002 = vunpack.c.h.b16 %v1893
        %v4003 = vunpack.c.l.b16 %v1894
        %v4004 = vunpack.c.h.b16 %v1894
        %v4005 = vunpack.c.l.b16 %v1895
        %v4006 = vunpack.c.h.b16 %v1895
        %v4007 = vunpack.c.l.b16 %v1896
        %v4008 = vunpack.c.h.b16 %v1896
        %v4009 = vunpack.c.l.b16 %v1897
        %v4010 = vunpack.c.h.b16 %v1897
        %v4011 = vunpack.c.l.b16 %v1898
        %v4012 = vunpack.c.h.b16 %v1898
        %v4013 = vunpack.c.l.b16 %v1899
        %v4014 = vunpack.c.h.b16 %v1899
        %v4015 = vunpack.c.l.b16 %v1900
        %v4016 = vunpack.c.h.b16 %v1900
        %v4017 = vunpack.c.l.b16 %v1901
        %v4018 = vunpack.c.h.b16 %v1901
        %v4019 = vunpack.c.l.b16 %v1902
        %v4020 = vunpack.c.h.b16 %v1902
        %v4021 = vunpack.c.l.b16 %v1903
        %v4022 = vunpack.c.h.b16 %v1903
        %v4023 = vunpack.c.l.b16 %v1904
        %v4024 = vunpack.c.h.b16 %v1904
        %v4025 = vunpack.c.l.b16 %v1905
        %v4026 = vunpack.c.h.b16 %v1905
        %v4027 = vunpack.c.l.b16 %v1906
        %v4028 = vunpack.c.h.b16 %v1906
        %v4029 = vunpack.c.l.b16 %v1907
        %v4030 = vunpack.c.h.b16 %v1907
        %v4031 = vunpack.c.l.b16 %v1908
        %v4032 = vunpack.c.h.b16 %v1908
        %v4033 = vunpack.c.l.b16 %v1909
        %v4034 = vunpack.c.h.b16 %v1909
        %v4035 = vunpack.c.l.b16 %v1910
        %v4036 = vunpack.c.h.b16 %v1910
        %v4037 = vunpack.c.l.b16 %v1911
        %v4038 = vunpack.c.h.b16 %v1911
        %v4039 = vunpack.c.l.b16 %v1912
        %v4040 = vunpack.c.h.b16 %v1912
        %v4041 = vunpack.c.l.b16 %v1913
        %v4042 = vunpack.c.h.b16 %v1913
        %v4043 = vunpack.c.l.b16 %v1914
        %v4044 = vunpack.c.h.b16 %v1914
        %v4045 = vunpack.c.l.b16 %v1915
        %v4046 = vunpack.c.h.b16 %v1915
        %v4047 = vunpack.c.l.b16 %v1916
        %v4048 = vunpack.c.h.b16 %v1916
        %v4049 = vunpack.c.l.b16 %v1917
        %v4050 = vunpack.c.h.b16 %v1917
        %v4051 = vunpack.c.l.b16 %v1918
        %v4052 = vunpack.c.h.b16 %v1918
        %v4053 = vunpack.c.l.b16 %v1919
        %v4054 = vunpack.c.h.b16 %v1919
        %v4055 = vunpack.c.l.b16 %v1920
        %v4056 = vunpack.c.h.b16 %v1920
        %v4057 = vunpack.c.l.b16 %v1921
        %v4058 = vunpack.c.h.b16 %v1921
        %v4059 = vunpack.c.l.b16 %v1922
        %v4060 = vunpack.c.h.b16 %v1922
        %v4061 = vunpack.c.l.b16 %v1923
        %v4062 = vunpack.c.h.b16 %v1923
        %v4063 = vunpack.c.l.b16 %v1924
        %v4064 = vunpack.c.h.b16 %v1924
        %v4065 = vunpack.c.l.b16 %v1925
        %v4066 = vunpack.c.h.b16 %v1925
        %v4067 = vunpack.c.l.b16 %v1926
        %v4068 = vunpack.c.h.b16 %v1926
        %v4069 = vunpack.c.l.b16 %v1927
        %v4070 = vunpack.c.h.b16 %v1927
        %v4071 = vunpack.c.l.b16 %v1928
        %v4072 = vunpack.c.h.b16 %v1928
        %v4073 = vunpack.c.l.b16 %v1929
        %v4074 = vunpack.c.h.b16 %v1929
        %v4075 = vunpack.c.l.b16 %v1930
        %v4076 = vunpack.c.h.b16 %v1930
        %v4077 = vunpack.c.l.b16 %v1931
        %v4078 = vunpack.c.h.b16 %v1931
        %v4079 = vunpack.c.l.b16 %v1932
        %v4080 = vunpack.c.h.b16 %v1932
        %v4081 = vunpack.c.l.b16 %v1933
        %v4082 = vunpack.c.h.b16 %v1933
        %v4083 = vunpack.c.l.b16 %v1934
        %v4084 = vunpack.c.h.b16 %v1934
        %v4085 = vunpack.c.l.b16 %v1935
        %v4086 = vunpack.c.h.b16 %v1935
        %v4087 = vunpack.c.l.b16 %v1936
        %v4088 = vunpack.c.h.b16 %v1936
        %v4089 = vunpack.c.l.b16 %v1937
        %v4090 = vunpack.c.h.b16 %v1937
        %v4091 = vunpack.c.l.b16 %v1938
        %v4092 = vunpack.c.h.b16 %v1938
        %v4093 = vunpack.c.l.b16 %v1939
        %v4094 = vunpack.c.h.b16 %v1939
        %v4095 = vunpack.c.l.b16 %v1940
        %v4096 = vunpack.c.h.b16 %v1940
        %v4097 = vunpack.c.l.b16 %v1941
        %v4098 = vunpack.c.h.b16 %v1941
        %v4099 = vunpack.c.l.b16 %v1942
        %v4100 = vunpack.c.h.b16 %v1942
        %v4101 = vunpack.c.l.b16 %v1943
        %v4102 = vunpack.c.h.b16 %v1943
        %v4103 = vunpack.c.l.b16 %v1944
        %v4104 = vunpack.c.h.b16 %v1944
        %v4105 = vunpack.c.l.b16 %v1945
        %v4106 = vunpack.c.h.b16 %v1945
        %v4107 = vunpack.c.l.b16 %v1946
        %v4108 = vunpack.c.h.b16 %v1946
        %v4109 = vunpack.c.l.b16 %v1947
        %v4110 = vunpack.c.h.b16 %v1947
        %v4111 = vunpack.c.l.b16 %v1948
        %v4112 = vunpack.c.h.b16 %v1948
        %v4113 = vunpack.c.l.b16 %v1949
        %v4114 = vunpack.c.h.b16 %v1949
        %v4115 = vunpack.c.l.b16 %v1950
        %v4116 = vunpack.c.h.b16 %v1950
        %v4117 = vunpack.c.l.b16 %v1951
        %v4118 = vunpack.c.h.b16 %v1951
        %v4119 = vunpack.c.l.b16 %v1952
        %v4120 = vunpack.c.h.b16 %v1952
        %v4121 = vunpack.c.l.b16 %v1953
        %v4122 = vunpack.c.h.b16 %v1953
        %v4123 = vunpack.c.l.b16 %v1954
        %v4124 = vunpack.c.h.b16 %v1954
        %v4125 = vunpack.c.l.b16 %v1955
        %v4126 = vunpack.c.h.b16 %v1955
        %v4127 = vunpack.c.l.b16 %v1956
        %v4128 = vunpack.c.h.b16 %v1956
        %v4129 = vunpack.c.l.b16 %v1957
        %v4130 = vunpack.c.h.b16 %v1957
        %v4131 = vunpack.c.l.b16 %v1958
        %v4132 = vunpack.c.h.b16 %v1958
        %v4133 = vunpack.c.l.b16 %v1959
        %v4134 = vunpack.c.h.b16 %v1959
        %v4135 = vunpack.c.l.b16 %v1960
        %v4136 = vunpack.c.h.b16 %v1960
        %v4137 = vunpack.c.l.b16 %v1961
        %v4138 = vunpack.c.h.b16 %v1961
        %v4139 = vunpack.c.l.b16 %v1962
        %v4140 = vunpack.c.h.b16 %v1962
        %v4141 = vunpack.c.l.b16 %v1963
        %v4142 = vunpack.c.h.b16 %v1963
        %v4143 = vunpack.c.l.b16 %v1964
        %v4144 = vunpack.c.h.b16 %v1964
        %v4145 = vunpack.c.l.b16 %v1965
        %v4146 = vunpack.c.h.b16 %v1965
        %v4147 = vunpack.c.l.b16 %v1966
        %v4148 = vunpack.c.h.b16 %v1966
        %v4149 = vunpack.c.l.b16 %v1967
        %v4150 = vunpack.c.h.b16 %v1967
        %v4151 = vunpack.c.l.b16 %v1968
        %v4152 = vunpack.c.h.b16 %v1968
        %v4153 = vunpack.c.l.b16 %v1969
        %v4154 = vunpack.c.h.b16 %v1969
        %v4155 = vunpack.c.l.b16 %v1970
        %v4156 = vunpack.c.h.b16 %v1970
        %v4157 = vunpack.c.l.b16 %v1971
        %v4158 = vunpack.c.h.b16 %v1971
        %v4159 = vunpack.c.l.b16 %v1972
        %v4160 = vunpack.c.h.b16 %v1972
        %v4161 = vunpack.c.l.b16 %v1973
        %v4162 = vunpack.c.h.b16 %v1973
        %v4163 = vunpack.c.l.b16 %v1974
        %v4164 = vunpack.c.h.b16 %v1974
        %v4165 = vunpack.c.l.b16 %v1975
        %v4166 = vunpack.c.h.b16 %v1975
        %v4167 = vunpack.c.l.b16 %v1976
        %v4168 = vunpack.c.h.b16 %v1976
        %v4169 = vunpack.c.l.b16 %v1977
        %v4170 = vunpack.c.h.b16 %v1977
        %v4171 = vunpack.c.l.b16 %v1978
        %v4172 = vunpack.c.h.b16 %v1978
        %v4173 = vunpack.c.l.b16 %v1979
        %v4174 = vunpack.c.h.b16 %v1979
        %v4175 = vunpack.c.l.b16 %v1980
        %v4176 = vunpack.c.h.b16 %v1980
        %v4177 = vunpack.c.l.b16 %v1981
        %v4178 = vunpack.c.h.b16 %v1981
        %v4179 = vunpack.c.l.b16 %v1982
        %v4180 = vunpack.c.h.b16 %v1982
        %v4181 = vunpack.c.l.b16 %v1983
        %v4182 = vunpack.c.h.b16 %v1983
        %v4183 = vunpack.c.l.b16 %v1984
        %v4184 = vunpack.c.h.b16 %v1984
        %v4185 = vunpack.c.l.b16 %v1985
        %v4186 = vunpack.c.h.b16 %v1985
        %v4187 = vunpack.c.l.b16 %v1986
        %v4188 = vunpack.c.h.b16 %v1986
        %v4189 = vunpack.c.l.b16 %v1987
        %v4190 = vunpack.c.h.b16 %v1987
        %v4191 = vunpack.c.l.b16 %v1988
        %v4192 = vunpack.c.h.b16 %v1988
        %v4193 = vunpack.c.l.b16 %v1989
        %v4194 = vunpack.c.h.b16 %v1989
        %v4195 = vunpack.c.l.b16 %v1990
        %v4196 = vunpack.c.h.b16 %v1990
        %v4197 = vunpack.c.l.b16 %v1991
        %v4198 = vunpack.c.h.b16 %v1991
        %v4199 = vunpack.c.l.b16 %v1992
        %v4200 = vunpack.c.h.b16 %v1992
        %v4201 = vunpack.c.l.b16 %v1993
        %v4202 = vunpack.c.h.b16 %v1993
        %v4203 = vunpack.c.l.b16 %v1994
        %v4204 = vunpack.c.h.b16 %v1994
        %v4205 = vunpack.c.l.b16 %v1995
        %v4206 = vunpack.c.h.b16 %v1995
        %v4207 = vunpack.c.l.b16 %v1996
        %v4208 = vunpack.c.h.b16 %v1996
        %v4209 = vunpack.c.l.b16 %v1997
        %v4210 = vunpack.c.h.b16 %v1997
        %v4211 = vunpack.c.l.b16 %v1998
        %v4212 = vunpack.c.h.b16 %v1998
        %v4213 = vunpack.c.l.b16 %v1999
        %v4214 = vunpack.c.h.b16 %v1999
        %v4215 = vunpack.c.l.b16 %v2000
        %v4216 = vunpack.c.h.b16 %v2000
        %v4217 = vunpack.c.l.b16 %v2001
        %v4218 = vunpack.c.h.b16 %v2001
        %v4219 = vunpack.c.l.b16 %v2002
        %v4220 = vunpack.c.h.b16 %v2002
        %v4221 = vunpack.c.l.b16 %v2003
        %v4222 = vunpack.c.h.b16 %v2003
        %v4223 = vunpack.c.l.b16 %v2004
        %v4224 = vunpack.c.h.b16 %v2004
        %v4225 = vunpack.c.l.b16 %v2005
        %v4226 = vunpack.c.h.b16 %v2005
        %v4227 = vunpack.c.l.b16 %v2006
        %v4228 = vunpack.c.h.b16 %v2006
        %v4229 = vunpack.c.l.b16 %v2007
        %v4230 = vunpack.c.h.b16 %v2007
        %v4231 = vunpack.c.l.b16 %v2008
        %v4232 = vunpack.c.h.b16 %v2008
        %v4233 = vunpack.c.l.b16 %v2009
        %v4234 = vunpack.c.h.b16 %v2009
        %v4235 = vunpack.c.l.b16 %v2010
        %v4236 = vunpack.c.h.b16 %v2010
        %v4237 = vunpack.c.l.b16 %v2011
        %v4238 = vunpack.c.h.b16 %v2011
        %v4239 = vunpack.c.l.b16 %v2012
        %v4240 = vunpack.c.h.b16 %v2012
        %v4241 = vunpack.c.l.b16 %v2013
        %v4242 = vunpack.c.h.b16 %v2013
        %v4243 = vunpack.c.l.b16 %v2014
        %v4244 = vunpack.c.h.b16 %v2014
        %v4245 = vunpack.c.l.b16 %v2015
        %v4246 = vunpack.c.h.b16 %v2015
        %v4247 = vunpack.c.l.b16 %v2016
        %v4248 = vunpack.c.h.b16 %v2016
        %v4249 = vunpack.c.l.b16 %v2017
        %v4250 = vunpack.c.h.b16 %v2017
        %v4251 = vunpack.c.l.b16 %v2018
        %v4252 = vunpack.c.h.b16 %v2018
        %v4253 = vunpack.c.l.b16 %v2019
        %v4254 = vunpack.c.h.b16 %v2019
        %v4255 = vunpack.c.l.b16 %v2020
        %v4256 = vunpack.c.h.b16 %v2020
        %v4257 = vunpack.c.l.b16 %v2021
        %v4258 = vunpack.c.h.b16 %v2021
        %v4259 = vunpack.c.l.b16 %v2022
        %v4260 = vunpack.c.h.b16 %v2022
        %v4261 = vunpack.c.l.b16 %v2023
        %v4262 = vunpack.c.h.b16 %v2023
        %v4263 = vunpack.c.l.b16 %v2024
        %v4264 = vunpack.c.h.b16 %v2024
        %v4265 = vunpack.c.l.b16 %v2025
        %v4266 = vunpack.c.h.b16 %v2025
        %v4267 = vunpack.c.l.b16 %v2026
        %v4268 = vunpack.c.h.b16 %v2026
        %v4269 = vunpack.c.l.b16 %v2027
        %v4270 = vunpack.c.h.b16 %v2027
        %v4271 = vunpack.c.l.b16 %v2028
        %v4272 = vunpack.c.h.b16 %v2028
        %v4273 = vunpack.c.l.b16 %v2029
        %v4274 = vunpack.c.h.b16 %v2029
        %v4275 = vunpack.c.l.b16 %v2030
        %v4276 = vunpack.c.h.b16 %v2030
        %v4277 = vunpack.c.l.b16 %v2031
        %v4278 = vunpack.c.h.b16 %v2031
        %v4279 = vunpack.c.l.b16 %v2032
        %v4280 = vunpack.c.h.b16 %v2032
        %v4281 = vunpack.c.l.b16 %v2033
        %v4282 = vunpack.c.h.b16 %v2033
        %v4283 = vunpack.c.l.b16 %v2034
        %v4284 = vunpack.c.h.b16 %v2034
        %v4285 = vunpack.c.l.b16 %v2035
        %v4286 = vunpack.c.h.b16 %v2035
        %v4287 = vunpack.c.l.b16 %v2036
        %v4288 = vunpack.c.h.b16 %v2036
        %v4289 = vunpack.c.l.b16 %v2037
        %v4290 = vunpack.c.h.b16 %v2037
        %v4291 = vunpack.c.l.b16 %v2038
        %v4292 = vunpack.c.h.b16 %v2038
        %v4293 = vunpack.c.l.b16 %v2039
        %v4294 = vunpack.c.h.b16 %v2039
        %v4295 = vunpack.c.l.b16 %v2040
        %v4296 = vunpack.c.h.b16 %v2040
        %v4297 = vunpack.c.l.b16 %v2041
        %v4298 = vunpack.c.h.b16 %v2041
        %v4299 = vunpack.c.l.b16 %v2042
        %v4300 = vunpack.c.h.b16 %v2042
        %v4301 = vunpack.c.l.b16 %v2043
        %v4302 = vunpack.c.h.b16 %v2043
        %v4303 = vunpack.c.l.b16 %v2044
        %v4304 = vunpack.c.h.b16 %v2044
        %v4305 = vunpack.c.l.b16 %v2045
        %v4306 = vunpack.c.h.b16 %v2045
        %v4307 = vunpack.c.l.b16 %v2046
        %v4308 = vunpack.c.h.b16 %v2046
        %v4309 = vunpack.c.l.b16 %v2047
        %v4310 = vunpack.c.h.b16 %v2047
        %v4311 = vunpack.c.l.b16 %v2048
        %v4312 = vunpack.c.h.b16 %v2048
        %v4313 = vunpack.c.l.b16 %v2049
        %v4314 = vunpack.c.h.b16 %v2049
        %v4315 = vunpack.c.l.b16 %v2050
        %v4316 = vunpack.c.h.b16 %v2050
        %v4317 = vunpack.c.l.b16 %v2051
        %v4318 = vunpack.c.h.b16 %v2051
        %v4319 = vunpack.c.l.b16 %v2052
        %v4320 = vunpack.c.h.b16 %v2052
        %v4321 = vunpack.c.l.b16 %v2053
        %v4322 = vunpack.c.h.b16 %v2053
        %v4323 = vunpack.c.l.b16 %v2054
        %v4324 = vunpack.c.h.b16 %v2054
        %v4325 = vunpack.c.l.b16 %v2055
        %v4326 = vunpack.c.h.b16 %v2055
        %v4327 = vunpack.c.l.b16 %v2056
        %v4328 = vunpack.c.h.b16 %v2056
        %v4329 = vunpack.c.l.b16 %v2057
        %v4330 = vunpack.c.h.b16 %v2057
        %v4331 = vunpack.c.l.b16 %v2058
        %v4332 = vunpack.c.h.b16 %v2058
        %v4333 = vunpack.c.l.b16 %v2059
        %v4334 = vunpack.c.h.b16 %v2059
        %v4335 = vunpack.c.l.b16 %v2060
        %v4336 = vunpack.c.h.b16 %v2060
        %v4337 = vunpack.c.l.b16 %v2061
        %v4338 = vunpack.c.h.b16 %v2061
        %v4339 = vunpack.c.l.b16 %v2062
        %v4340 = vunpack.c.h.b16 %v2062
        %v4341 = vunpack.c.l.b16 %v2063
        %v4342 = vunpack.c.h.b16 %v2063
        %v4343 = vunpack.c.l.b16 %v2064
        %v4344 = vunpack.c.h.b16 %v2064
        %v4345 = vunpack.c.l.b16 %v2065
        %v4346 = vunpack.c.h.b16 %v2065
        %v4347 = vunpack.c.l.b16 %v2066
        %v4348 = vunpack.c.h.b16 %v2066
        %v4349 = vunpack.c.l.b16 %v2067
        %v4350 = vunpack.c.h.b16 %v2067
        %v4351 = vunpack.c.l.b16 %v2068
        %v4352 = vunpack.c.h.b16 %v2068
        %v4353 = vunpack.c.l.b16 %v2069
        %v4354 = vunpack.c.h.b16 %v2069
        %v4355 = vunpack.c.l.b16 %v2070
        %v4356 = vunpack.c.h.b16 %v2070
        %v4357 = vunpack.c.l.b16 %v2071
        %v4358 = vunpack.c.h.b16 %v2071
        %v4359 = vunpack.c.l.b16 %v2072
        %v4360 = vunpack.c.h.b16 %v2072
        %v4361 = vunpack.c.l.b16 %v2073
        %v4362 = vunpack.c.h.b16 %v2073
        %v4363 = vunpack.c.l.b16 %v2074
        %v4364 = vunpack.c.h.b16 %v2074
        %v4365 = vunpack.c.l.b16 %v2075
        %v4366 = vunpack.c.h.b16 %v2075
        %v4367 = vunpack.c.l.b16 %v2076
        %v4368 = vunpack.c.h.b16 %v2076
        %v4369 = vunpack.c.l.b16 %v2077
        %v4370 = vunpack.c.h.b16 %v2077
        %v4371 = vunpack.c.l.b16 %v2078
        %v4372 = vunpack.c.h.b16 %v2078
        %v4373 = vunpack.c.l.b16 %v2079
        %v4374 = vunpack.c.h.b16 %v2079
        %v4375 = vunpack.c.l.b16 %v2080
        %v4376 = vunpack.c.h.b16 %v2080
        %v4377 = vunpack.c.l.b16 %v2081
        %v4378 = vunpack.c.h.b16 %v2081
        %v4379 = vunpack.c.l.b16 %v2082
        %v4380 = vunpack.c.h.b16 %v2082
        %v4381 = vunpack.c.l.b16 %v2083
        %v4382 = vunpack.c.h.b16 %v2083
        %v4383 = vunpack.c.l.b16 %v2084
        %v4384 = vunpack.c.h.b16 %v2084
        %v4385 = vunpack.c.l.b16 %v2085
        %v4386 = vunpack.c.h.b16 %v2085
        %v4387 = vunpack.c.l.b16 %v2086
        %v4388 = vunpack.c.h.b16 %v2086
        %v4389 = vunpack.c.l.b16 %v2087
        %v4390 = vunpack.c.h.b16 %v2087
        %v4391 = vunpack.c.l.b16 %v2088
        %v4392 = vunpack.c.h.b16 %v2088
        %v4393 = vunpack.c.l.b16 %v2089
        %v4394 = vunpack.c.h.b16 %v2089
        %v4395 = vunpack.c.l.b16 %v2090
        %v4396 = vunpack.c.h.b16 %v2090
        %v4397 = vunpack.c.l.b16 %v2091
        %v4398 = vunpack.c.h.b16 %v2091
        %v4399 = vunpack.c.l.b16 %v2092
        %v4400 = vunpack.c.h.b16 %v2092
        %v4401 = vunpack.c.l.b16 %v2093
        %v4402 = vunpack.c.h.b16 %v2093
        %v4403 = vunpack.c.l.b16 %v2094
        %v4404 = vunpack.c.h.b16 %v2094
        %v4405 = vunpack.c.l.b16 %v2095
        %v4406 = vunpack.c.h.b16 %v2095
        %v4407 = vunpack.c.l.b16 %v2096
        %v4408 = vunpack.c.h.b16 %v2096
        %v4409 = vunpack.c.l.b16 %v2097
        %v4410 = vunpack.c.h.b16 %v2097
        %v4411 = vunpack.c.l.b16 %v2098
        %v4412 = vunpack.c.h.b16 %v2098
        %v4413 = vunpack.c.l.b16 %v2099
        %v4414 = vunpack.c.h.b16 %v2099
        %v4415 = vunpack.c.l.b16 %v2100
        %v4416 = vunpack.c.h.b16 %v2100
        %v4417 = vunpack.c.l.b16 %v2101
        %v4418 = vunpack.c.h.b16 %v2101
        %v4419 = vunpack.c.l.b16 %v2102
        %v4420 = vunpack.c.h.b16 %v2102
        %v4421 = vunpack.c.l.b16 %v2103
        %v4422 = vunpack.c.h.b16 %v2103
        %v4423 = vunpack.c.l.b16 %v2104
        %v4424 = vunpack.c.h.b16 %v2104
        %v4425 = vunpack.c.l.b16 %v2105
        %v4426 = vunpack.c.h.b16 %v2105
        %v4427 = vunpack.c.l.b16 %v2106
        %v4428 = vunpack.c.h.b16 %v2106
        %v4429 = vunpack.c.l.b16 %v2107
        %v4430 = vunpack.c.h.b16 %v2107
        %v4431 = vunpack.c.l.b16 %v2108
        %v4432 = vunpack.c.h.b16 %v2108
        %v4433 = vunpack.c.l.b16 %v2109
        %v4434 = vunpack.c.h.b16 %v2109
        %v4435 = vunpack.c.l.b16 %v2110
        %v4436 = vunpack.c.h.b16 %v2110
        %v4437 = vunpack.c.l.b16 %v2111
        %v4438 = vunpack.c.h.b16 %v2111
        %v4439 = vunpack.c.l.b16 %v2112
        %v4440 = vunpack.c.h.b16 %v2112
        %v4441 = vunpack.c.l.b16 %v2113
        %v4442 = vunpack.c.h.b16 %v2113
        %v4443 = vunpack.c.l.b16 %v2114
        %v4444 = vunpack.c.h.b16 %v2114
        %v4445 = vunpack.c.l.b16 %v2115
        %v4446 = vunpack.c.h.b16 %v2115
        %v4447 = vunpack.c.l.b16 %v2116
        %v4448 = vunpack.c.h.b16 %v2116
        %v4449 = vunpack.c.l.b16 %v2117
        %v4450 = vunpack.c.h.b16 %v2117
        %v4451 = vunpack.c.l.b16 %v2118
        %v4452 = vunpack.c.h.b16 %v2118
        %v4453 = vunpack.c.l.b16 %v2119
        %v4454 = vunpack.c.h.b16 %v2119
        %v4455 = vunpack.c.l.b16 %v2120
        %v4456 = vunpack.c.h.b16 %v2120
        %v4457 = vunpack.c.l.b16 %v2121
        %v4458 = vunpack.c.h.b16 %v2121
        %v4459 = vunpack.c.l.b16 %v2122
        %v4460 = vunpack.c.h.b16 %v2122
        %v4461 = vunpack.c.l.b16 %v2123
        %v4462 = vunpack.c.h.b16 %v2123
        %v4463 = vunpack.c.l.b16 %v2124
        %v4464 = vunpack.c.h.b16 %v2124
        %v4465 = vunpack.c.l.b16 %v2125
        %v4466 = vunpack.c.h.b16 %v2125
        %v4467 = vunpack.c.l.b16 %v2126
        %v4468 = vunpack.c.h.b16 %v2126
        %v4469 = vunpack.c.l.b16 %v2127
        %v4470 = vunpack.c.h.b16 %v2127
        %v4471 = vunpack.c.l.b16 %v2128
        %v4472 = vunpack.c.h.b16 %v2128
        %v4473 = vunpack.c.l.b16 %v2129
        %v4474 = vunpack.c.h.b16 %v2129
        %v4475 = vunpack.c.l.b16 %v2130
        %v4476 = vunpack.c.h.b16 %v2130
        %v4477 = vunpack.c.l.b16 %v2131
        %v4478 = vunpack.c.h.b16 %v2131
        %v4479 = vunpack.c.l.b16 %v2132
        %v4480 = vunpack.c.h.b16 %v2132
        %v4481 = vunpack.c.l.b16 %v2133
        %v4482 = vunpack.c.h.b16 %v2133
        %v4483 = vunpack.c.l.b16 %v2134
        %v4484 = vunpack.c.h.b16 %v2134
        %v4485 = vunpack.c.l.b16 %v2135
        %v4486 = vunpack.c.h.b16 %v2135
        %v4487 = vunpack.c.l.b16 %v2136
        %v4488 = vunpack.c.h.b16 %v2136
        %v4489 = vunpack.c.l.b16 %v2137
        %v4490 = vunpack.c.h.b16 %v2137
        %v4491 = vunpack.c.l.b16 %v2138
        %v4492 = vunpack.c.h.b16 %v2138
        %v4493 = vunpack.c.l.b16 %v2139
        %v4494 = vunpack.c.h.b16 %v2139
        %v4495 = vunpack.c.l.b16 %v2140
        %v4496 = vunpack.c.h.b16 %v2140
        %v4497 = vunpack.c.l.b16 %v2141
        %v4498 = vunpack.c.h.b16 %v2141
        %v4499 = vunpack.c.l.b16 %v2142
        %v4500 = vunpack.c.h.b16 %v2142
        %v4501 = vunpack.c.l.b16 %v2143
        %v4502 = vunpack.c.h.b16 %v2143
        %v4503 = vunpack.c.l.b16 %v2144
        %v4504 = vunpack.c.h.b16 %v2144
        %v4505 = vunpack.c.l.b16 %v2145
        %v4506 = vunpack.c.h.b16 %v2145
        %v4507 = vunpack.c.l.b16 %v2146
        %v4508 = vunpack.c.h.b16 %v2146
        %v4509 = vunpack.c.l.b16 %v2147
        %v4510 = vunpack.c.h.b16 %v2147
        %v4511 = vunpack.c.l.b16 %v2148
        %v4512 = vunpack.c.h.b16 %v2148
        %v4513 = vunpack.c.l.b16 %v2149
        %v4514 = vunpack.c.h.b16 %v2149
        %v4515 = vunpack.c.l.b16 %v2150
        %v4516 = vunpack.c.h.b16 %v2150
        %v4517 = vunpack.c.l.b16 %v2151
        %v4518 = vunpack.c.h.b16 %v2151
        %v4519 = vunpack.c.l.b16 %v2152
        %v4520 = vunpack.c.h.b16 %v2152
        %v4521 = vunpack.c.l.b16 %v2153
        %v4522 = vunpack.c.h.b16 %v2153
        %v4523 = vunpack.c.l.b16 %v2154
        %v4524 = vunpack.c.h.b16 %v2154
        %v4525 = vunpack.c.l.b16 %v2155
        %v4526 = vunpack.c.h.b16 %v2155
        %v4527 = vunpack.c.l.b16 %v2156
        %v4528 = vunpack.c.h.b16 %v2156
        %v4529 = vunpack.c.l.b16 %v2157
        %v4530 = vunpack.c.h.b16 %v2157
        %v4531 = vunpack.c.l.b16 %v2158
        %v4532 = vunpack.c.h.b16 %v2158
        %v4533 = vunpack.c.l.b16 %v2159
        %v4534 = vunpack.c.h.b16 %v2159
        %v4535 = vunpack.c.l.b16 %v2160
        %v4536 = vunpack.c.h.b16 %v2160
        %v4537 = vunpack.c.l.b16 %v2161
        %v4538 = vunpack.c.h.b16 %v2161
        %v4539 = vunpack.c.l.b16 %v2162
        %v4540 = vunpack.c.h.b16 %v2162
        %v4541 = vunpack.c.l.b16 %v2163
        %v4542 = vunpack.c.h.b16 %v2163
        %v4543 = vunpack.c.l.b16 %v2164
        %v4544 = vunpack.c.h.b16 %v2164
        %v4545 = vunpack.c.l.b16 %v2165
        %v4546 = vunpack.c.h.b16 %v2165
        %v4547 = vunpack.c.l.b16 %v2166
        %v4548 = vunpack.c.h.b16 %v2166
        %v4549 = vunpack.c.l.b16 %v2167
        %v4550 = vunpack.c.h.b16 %v2167
        %v4551 = vunpack.c.l.b16 %v2168
        %v4552 = vunpack.c.h.b16 %v2168
        %v4553 = vunpack.c.l.b16 %v2169
        %v4554 = vunpack.c.h.b16 %v2169
        %v4555 = vunpack.c.l.b16 %v2170
        %v4556 = vunpack.c.h.b16 %v2170
        %v4557 = vunpack.c.l.b16 %v2171
        %v4558 = vunpack.c.h.b16 %v2171
        %v4559 = vunpack.c.l.b16 %v2172
        %v4560 = vunpack.c.h.b16 %v2172
        %v4561 = vunpack.c.l.b16 %v2173
        %v4562 = vunpack.c.h.b16 %v2173
        %v4563 = vunpack.c.l.b16 %v2174
        %v4564 = vunpack.c.h.b16 %v2174
        %v4565 = vunpack.c.l.b16 %v2175
        %v4566 = vunpack.c.h.b16 %v2175
        %v4567 = vunpack.c.l.b16 %v2176
        %v4568 = vunpack.c.h.b16 %v2176
        %v4569 = vunpack.c.l.b16 %v2177
        %v4570 = vunpack.c.h.b16 %v2177
        %v4571 = vunpack.c.l.b16 %v2178
        %v4572 = vunpack.c.h.b16 %v2178
        %v4573 = vunpack.c.l.b16 %v2179
        %v4574 = vunpack.c.h.b16 %v2179
        %v4575 = vunpack.c.l.b16 %v2180
        %v4576 = vunpack.c.h.b16 %v2180
        %v4577 = vunpack.c.l.b16 %v2181
        %v4578 = vunpack.c.h.b16 %v2181
        %v4579 = vunpack.c.l.b16 %v2182
        %v4580 = vunpack.c.h.b16 %v2182
        %v4581 = vunpack.c.l.b16 %v2183
        %v4582 = vunpack.c.h.b16 %v2183
        %v4583 = vunpack.c.l.b16 %v2184
        %v4584 = vunpack.c.h.b16 %v2184
        %v4585 = vunpack.c.l.b16 %v2185
        %v4586 = vunpack.c.h.b16 %v2185
        %v4587 = vunpack.c.l.b16 %v2186
        %v4588 = vunpack.c.h.b16 %v2186
        %v4589 = vunpack.c.l.b16 %v2187
        %v4590 = vunpack.c.h.b16 %v2187
        %v4591 = vunpack.c.l.b16 %v2188
        %v4592 = vunpack.c.h.b16 %v2188
        %v4593 = vunpack.c.l.b16 %v2189
        %v4594 = vunpack.c.h.b16 %v2189
        %v4595 = vunpack.c.l.b16 %v2190
        %v4596 = vunpack.c.h.b16 %v2190
        %v4597 = vunpack.c.l.b16 %v2191
        %v4598 = vunpack.c.h.b16 %v2191
        %v4599 = vunpack.c.l.b16 %v2192
        %v4600 = vunpack.c.h.b16 %v2192
        %v4601 = vunpack.c.l.b16 %v2193
        %v4602 = vunpack.c.h.b16 %v2193
        %v4603 = vunpack.c.l.b16 %v2194
        %v4604 = vunpack.c.h.b16 %v2194
        %v4605 = vunpack.c.l.b16 %v2195
        %v4606 = vunpack.c.h.b16 %v2195
        %v4607 = vunpack.c.l.b16 %v2196
        %v4608 = vunpack.c.h.b16 %v2196
        %v4609 = vunpack.c.l.b16 %v2197
        %v4610 = vunpack.c.h.b16 %v2197
        %v4611 = vunpack.c.l.b16 %v2198
        %v4612 = vunpack.c.h.b16 %v2198
        %v4613 = vunpack.c.l.b16 %v2199
        %v4614 = vunpack.c.h.b16 %v2199
        %v4615 = vunpack.c.l.b16 %v2200
        %v4616 = vunpack.c.h.b16 %v2200
        %v4617 = vunpack.c.l.b16 %v2201
        %v4618 = vunpack.c.h.b16 %v2201
        %v4619 = vunpack.c.l.b16 %v2202
        %v4620 = vunpack.c.h.b16 %v2202
        %v4621 = vunpack.c.l.b16 %v2203
        %v4622 = vunpack.c.h.b16 %v2203
        %v4623 = vunpack.c.l.b16 %v2204
        %v4624 = vunpack.c.h.b16 %v2204
        %v4625 = vunpack.c.l.b16 %v2205
        %v4626 = vunpack.c.h.b16 %v2205
        %v4627 = vunpack.c.l.b16 %v2206
        %v4628 = vunpack.c.h.b16 %v2206
        %v4629 = vunpack.c.l.b16 %v2207
        %v4630 = vunpack.c.h.b16 %v2207
        %v4631 = vunpack.c.l.b16 %v2208
        %v4632 = vunpack.c.h.b16 %v2208
        %v4633 = vunpack.c.l.b16 %v2209
        %v4634 = vunpack.c.h.b16 %v2209
        %v4635 = vunpack.c.l.b16 %v2210
        %v4636 = vunpack.c.h.b16 %v2210
        %v4637 = vunpack.c.l.b16 %v2211
        %v4638 = vunpack.c.h.b16 %v2211
        %v4639 = vunpack.c.l.b16 %v2212
        %v4640 = vunpack.c.h.b16 %v2212
        %v4641 = vunpack.c.l.b16 %v2213
        %v4642 = vunpack.c.h.b16 %v2213
        %v4643 = vunpack.c.l.b16 %v2214
        %v4644 = vunpack.c.h.b16 %v2214
        %v4645 = vunpack.c.l.b16 %v2215
        %v4646 = vunpack.c.h.b16 %v2215
        %v4647 = vunpack.c.l.b16 %v2216
        %v4648 = vunpack.c.h.b16 %v2216
        %v4649 = vunpack.c.l.b16 %v2217
        %v4650 = vunpack.c.h.b16 %v2217
        %v4651 = vunpack.c.l.b16 %v2218
        %v4652 = vunpack.c.h.b16 %v2218
        %v4653 = vunpack.c.l.b16 %v2219
        %v4654 = vunpack.c.h.b16 %v2219
        %v4655 = vunpack.c.l.b16 %v2220
        %v4656 = vunpack.c.h.b16 %v2220
        %v4657 = vunpack.c.l.b16 %v2221
        %v4658 = vunpack.c.h.b16 %v2221
        %v4659 = vunpack.c.l.b16 %v2222
        %v4660 = vunpack.c.h.b16 %v2222
        %v4661 = vunpack.c.l.b16 %v2223
        %v4662 = vunpack.c.h.b16 %v2223
        %v4663 = vunpack.c.l.b16 %v2224
        %v4664 = vunpack.c.h.b16 %v2224
        %v4665 = vunpack.c.l.b16 %v2225
        %v4666 = vunpack.c.h.b16 %v2225
        %v4667 = vunpack.c.l.b16 %v2226
        %v4668 = vunpack.c.h.b16 %v2226
        %v4669 = vunpack.c.l.b16 %v2227
        %v4670 = vunpack.c.h.b16 %v2227
        %v4671 = vunpack.c.l.b16 %v2228
        %v4672 = vunpack.c.h.b16 %v2228
        %v4673 = vunpack.c.l.b16 %v2229
        %v4674 = vunpack.c.h.b16 %v2229
        %v4675 = vunpack.c.l.b16 %v2230
        %v4676 = vunpack.c.h.b16 %v2230
        %v4677 = vunpack.c.l.b16 %v2231
        %v4678 = vunpack.c.h.b16 %v2231
        %v4679 = vunpack.c.l.b16 %v2232
        %v4680 = vunpack.c.h.b16 %v2232
        %v4681 = vunpack.c.l.b16 %v2233
        %v4682 = vunpack.c.h.b16 %v2233
        %v4683 = vunpack.c.l.b16 %v2234
        %v4684 = vunpack.c.h.b16 %v2234
        %v4685 = vunpack.c.l.b16 %v2235
        %v4686 = vunpack.c.h.b16 %v2235
        %v4687 = vunpack.c.l.b16 %v2236
        %v4688 = vunpack.c.h.b16 %v2236
        %v4689 = vunpack.c.l.b16 %v2237
        %v4690 = vunpack.c.h.b16 %v2237
        %v4691 = vunpack.c.l.b16 %v2238
        %v4692 = vunpack.c.h.b16 %v2238
        %v4693 = vunpack.c.l.b16 %v2239
        %v4694 = vunpack.c.h.b16 %v2239
        %v4695 = vunpack.c.l.b16 %v2240
        %v4696 = vunpack.c.h.b16 %v2240
        %v4697 = vunpack.c.l.b16 %v2241
        %v4698 = vunpack.c.h.b16 %v2241
        %v4699 = vunpack.c.l.b16 %v2242
        %v4700 = vunpack.c.h.b16 %v2242
        %v4701 = vunpack.c.l.b16 %v2243
        %v4702 = vunpack.c.h.b16 %v2243
        %v4703 = vunpack.c.l.b16 %v2244
        %v4704 = vunpack.c.h.b16 %v2244
        %v4705 = vunpack.c.l.b16 %v2245
        %v4706 = vunpack.c.h.b16 %v2245
        %v4707 = vunpack.c.l.b16 %v2246
        %v4708 = vunpack.c.h.b16 %v2246
        %v4709 = vunpack.c.l.b16 %v2247
        %v4710 = vunpack.c.h.b16 %v2247
        %v4711 = vunpack.c.l.b16 %v2248
        %v4712 = vunpack.c.h.b16 %v2248
        %v4713 = vunpack.c.l.b16 %v2249
        %v4714 = vunpack.c.h.b16 %v2249
        %v4715 = vunpack.c.l.b16 %v2250
        %v4716 = vunpack.c.h.b16 %v2250
        %v4717 = vunpack.c.l.b16 %v2251
        %v4718 = vunpack.c.h.b16 %v2251
        %v4719 = vunpack.c.l.b16 %v2252
        %v4720 = vunpack.c.h.b16 %v2252
        %v4721 = vunpack.c.l.b16 %v2253
        %v4722 = vunpack.c.h.b16 %v2253
        %v4723 = vunpack.c.l.b16 %v2254
        %v4724 = vunpack.c.h.b16 %v2254
        %v4725 = vunpack.c.l.b16 %v2255
        %v4726 = vunpack.c.h.b16 %v2255
        %v4727 = vunpack.c.l.b16 %v2256
        %v4728 = vunpack.c.h.b16 %v2256
        %v4729 = vunpack.c.l.b16 %v2257
        %v4730 = vunpack.c.h.b16 %v2257
        %v4731 = vunpack.c.l.b16 %v2258
        %v4732 = vunpack.c.h.b16 %v2258
        %v4733 = vunpack.c.l.b16 %v2259
        %v4734 = vunpack.c.h.b16 %v2259
        %v4735 = vunpack.c.l.b16 %v2260
        %v4736 = vunpack.c.h.b16 %v2260
        %v4737 = vunpack.c.l.b16 %v2261
        %v4738 = vunpack.c.h.b16 %v2261
        %v4739 = vunpack.c.l.b16 %v2262
        %v4740 = vunpack.c.h.b16 %v2262
        %v4741 = vunpack.c.l.b16 %v2263
        %v4742 = vunpack.c.h.b16 %v2263
        %v4743 = vunpack.c.l.b16 %v2264
        %v4744 = vunpack.c.h.b16 %v2264
        %v4745 = vunpack.c.l.b16 %v2265
        %v4746 = vunpack.c.h.b16 %v2265
        %v4747 = vunpack.c.l.b16 %v2266
        %v4748 = vunpack.c.h.b16 %v2266
        %v4749 = vunpack.c.l.b16 %v2267
        %v4750 = vunpack.c.h.b16 %v2267
        %v4751 = vunpack.c.l.b16 %v2268
        %v4752 = vunpack.c.h.b16 %v2268
        %v4753 = vunpack.c.l.b16 %v2269
        %v4754 = vunpack.c.h.b16 %v2269
        %v4755 = vunpack.c.l.b16 %v2270
        %v4756 = vunpack.c.h.b16 %v2270
        %v4757 = vunpack.c.l.b16 %v2271
        %v4758 = vunpack.c.h.b16 %v2271
        %v4759 = vunpack.c.l.b16 %v2272
        %v4760 = vunpack.c.h.b16 %v2272
        %v4761 = vunpack.c.l.b16 %v2273
        %v4762 = vunpack.c.h.b16 %v2273
        %v4763 = vunpack.c.l.b16 %v2274
        %v4764 = vunpack.c.h.b16 %v2274
        %v4765 = vunpack.c.l.b16 %v2275
        %v4766 = vunpack.c.h.b16 %v2275
        %v4767 = vunpack.c.l.b16 %v2276
        %v4768 = vunpack.c.h.b16 %v2276
        %v4769 = vunpack.c.l.b16 %v2277
        %v4770 = vunpack.c.h.b16 %v2277
        %v4771 = vunpack.c.l.b16 %v2278
        %v4772 = vunpack.c.h.b16 %v2278
        %v4773 = vunpack.c.l.b16 %v2279
        %v4774 = vunpack.c.h.b16 %v2279
        %v4775 = vunpack.c.l.b16 %v2280
        %v4776 = vunpack.c.h.b16 %v2280
        %v4777 = vunpack.c.l.b16 %v2281
        %v4778 = vunpack.c.h.b16 %v2281
        %v4779 = vunpack.c.l.b16 %v2282
        %v4780 = vunpack.c.h.b16 %v2282
        %v4781 = vunpack.c.l.b16 %v2283
        %v4782 = vunpack.c.h.b16 %v2283
        %v4783 = vunpack.c.l.b16 %v2284
        %v4784 = vunpack.c.h.b16 %v2284
        %v4785 = vunpack.c.l.b16 %v2285
        %v4786 = vunpack.c.h.b16 %v2285
        %v4787 = vunpack.c.l.b16 %v2286
        %v4788 = vunpack.c.h.b16 %v2286
        %v4789 = vunpack.c.l.b16 %v2287
        %v4790 = vunpack.c.h.b16 %v2287
        %v4791 = vunpack.c.l.b16 %v2288
        %v4792 = vunpack.c.h.b16 %v2288
        %v4793 = vunpack.c.l.b16 %v2289
        %v4794 = vunpack.c.h.b16 %v2289
        %v4795 = vunpack.c.l.b16 %v2290
        %v4796 = vunpack.c.h.b16 %v2290
        %v4797 = vunpack.c.l.b16 %v2291
        %v4798 = vunpack.c.h.b16 %v2291
        %v4799 = vunpack.c.l.b16 %v2292
        %v4800 = vunpack.c.h.b16 %v2292
        %v4801 = vunpack.c.l.b16 %v2293
        %v4802 = vunpack.c.h.b16 %v2293
        %v4803 = vunpack.c.l.b16 %v2294
        %v4804 = vunpack.c.h.b16 %v2294
        %v4805 = vunpack.c.l.b16 %v2295
        %v4806 = vunpack.c.h.b16 %v2295
        %v4807 = vunpack.c.l.b16 %v2296
        %v4808 = vunpack.c.h.b16 %v2296
        %v4809 = vunpack.c.l.b16 %v2297
        %v4810 = vunpack.c.h.b16 %v2297
        %v4811 = vunpack.c.l.b16 %v2298
        %v4812 = vunpack.c.h.b16 %v2298
        %v4813 = vunpack.c.l.b16 %v2299
        %v4814 = vunpack.c.h.b16 %v2299
        %v4815 = vunpack.c.l.b16 %v2300
        %v4816 = vunpack.c.h.b16 %v2300
        %v4817 = vunpack.c.l.b16 %v2301
        %v4818 = vunpack.c.h.b16 %v2301
        %v4819 = vunpack.c.l.b16 %v2302
        %v4820 = vunpack.c.h.b16 %v2302
        %v4821 = vunpack.c.l.b16 %v2303
        %v4822 = vunpack.c.h.b16 %v2303
        %v4823 = vunpack.c.l.b16 %v2304
        %v4824 = vunpack.c.h.b16 %v2304
        %v4825 = vunpack.c.l.b16 %v2305
        %v4826 = vunpack.c.h.b16 %v2305
        %v4827 = vunpack.c.l.b16 %v2306
        %v4828 = vunpack.c.h.b16 %v2306
        %v4829 = vunpack.c.l.b16 %v2307
        %v4830 = vunpack.c.h.b16 %v2307
        %v4831 = vunpack.c.l.b16 %v2308
        %v4832 = vunpack.c.h.b16 %v2308
        %v4833 = vunpack.c.l.b16 %v2309
        %v4834 = vunpack.c.h.b16 %v2309
        %v4835 = vunpack.c.l.b16 %v2310
        %v4836 = vunpack.c.h.b16 %v2310
        %v4837 = vunpack.c.l.b16 %v2311
        %v4838 = vunpack.c.h.b16 %v2311
        %v4839 = vunpack.c.l.b16 %v2312
        %v4840 = vunpack.c.h.b16 %v2312
        %v4841 = vunpack.c.l.b16 %v2313
        %v4842 = vunpack.c.h.b16 %v2313
        %v4843 = vunpack.c.l.b16 %v2314
        %v4844 = vunpack.c.h.b16 %v2314
        %v4845 = vunpack.c.l.b16 %v2315
        %v4846 = vunpack.c.h.b16 %v2315
        %v4847 = vunpack.c.l.b16 %v2316
        %v4848 = vunpack.c.h.b16 %v2316
        %v4849 = vunpack.c.l.b16 %v2317
        %v4850 = vunpack.c.h.b16 %v2317
        %v4851 = vunpack.c.l.b16 %v2318
        %v4852 = vunpack.c.h.b16 %v2318
        %v4853 = vunpack.c.l.b16 %v2319
        %v4854 = vunpack.c.h.b16 %v2319
        %v4855 = vunpack.c.l.b16 %v2320
        %v4856 = vunpack.c.h.b16 %v2320
        %v4857 = vunpack.c.l.b16 %v2321
        %v4858 = vunpack.c.h.b16 %v2321
        %v4859 = vunpack.c.l.b16 %v2322
        %v4860 = vunpack.c.h.b16 %v2322
        %v4861 = vunpack.c.l.b16 %v2323
        %v4862 = vunpack.c.h.b16 %v2323
        %v4863 = vunpack.c.l.b16 %v2324
        %v4864 = vunpack.c.h.b16 %v2324
        %v4865 = vunpack.c.l.b16 %v2325
        %v4866 = vunpack.c.h.b16 %v2325
        %v4867 = vunpack.c.l.b16 %v2326
        %v4868 = vunpack.c.h.b16 %v2326
        %v4869 = vunpack.c.l.b16 %v2327
        %v4870 = vunpack.c.h.b16 %v2327
        %v4871 = vunpack.c.l.b16 %v2328
        %v4872 = vunpack.c.h.b16 %v2328
        %v4873 = vunpack.c.l.b16 %v2329
        %v4874 = vunpack.c.h.b16 %v2329
        %v4875 = vunpack.c.l.b16 %v2330
        %v4876 = vunpack.c.h.b16 %v2330
        %v4877 = vunpack.c.l.b16 %v2331
        %v4878 = vunpack.c.h.b16 %v2331
        %v4879 = vunpack.c.l.b16 %v2332
        %v4880 = vunpack.c.h.b16 %v2332
        %v4881 = vunpack.c.l.b16 %v2333
        %v4882 = vunpack.c.h.b16 %v2333
        %v4883 = vunpack.c.l.b16 %v2334
        %v4884 = vunpack.c.h.b16 %v2334
        %v4885 = vunpack.c.l.b16 %v2335
        %v4886 = vunpack.c.h.b16 %v2335
        %v4887 = vunpack.c.l.b16 %v2336
        %v4888 = vunpack.c.h.b16 %v2336
        %v4889 = vunpack.c.l.b16 %v2337
        %v4890 = vunpack.c.h.b16 %v2337
        %v4891 = vunpack.c.l.b16 %v2338
        %v4892 = vunpack.c.h.b16 %v2338
        %v4893 = vunpack.c.l.b16 %v2339
        %v4894 = vunpack.c.h.b16 %v2339
        %v4895 = vunpack.c.l.b16 %v2340
        %v4896 = vunpack.c.h.b16 %v2340
        %v4897 = vunpack.c.l.b16 %v2341
        %v4898 = vunpack.c.h.b16 %v2341
        %v4899 = vunpack.c.l.b16 %v2342
        %v4900 = vunpack.c.h.b16 %v2342
        %v4901 = vunpack.c.l.b16 %v2343
        %v4902 = vunpack.c.h.b16 %v2343
        %v4903 = vunpack.c.l.b16 %v2344
        %v4904 = vunpack.c.h.b16 %v2344
        %v4905 = vunpack.c.l.b16 %v2345
        %v4906 = vunpack.c.h.b16 %v2345
        %v4907 = vunpack.c.l.b16 %v2346
        %v4908 = vunpack.c.h.b16 %v2346
        %v4909 = vunpack.c.l.b16 %v2347
        %v4910 = vunpack.c.h.b16 %v2347
        %v4911 = vunpack.c.l.b16 %v2348
        %v4912 = vunpack.c.h.b16 %v2348
        %v4913 = vunpack.c.l.b16 %v2349
        %v4914 = vunpack.c.h.b16 %v2349
        %v4915 = vunpack.c.l.b16 %v2350
        %v4916 = vunpack.c.h.b16 %v2350
        %v4917 = vunpack.c.l.b16 %v2351
        %v4918 = vunpack.c.h.b16 %v2351
        %v4919 = vunpack.c.l.b16 %v2352
        %v4920 = vunpack.c.h.b16 %v2352
        %v4921 = vunpack.c.l.b16 %v2353
        %v4922 = vunpack.c.h.b16 %v2353
        %v4923 = vunpack.c.l.b16 %v2354
        %v4924 = vunpack.c.h.b16 %v2354
        %v4925 = vunpack.c.l.b16 %v2355
        %v4926 = vunpack.c.h.b16 %v2355
        %v4927 = vunpack.c.l.b16 %v2356
        %v4928 = vunpack.c.h.b16 %v2356
        %v4929 = vunpack.c.l.b16 %v2357
        %v4930 = vunpack.c.h.b16 %v2357
        %v4931 = vunpack.c.l.b16 %v2358
        %v4932 = vunpack.c.h.b16 %v2358
        %v4933 = vunpack.c.l.b16 %v2359
        %v4934 = vunpack.c.h.b16 %v2359
        %v4935 = vunpack.c.l.b16 %v2360
        %v4936 = vunpack.c.h.b16 %v2360
        %v4937 = vunpack.c.l.b16 %v2361
        %v4938 = vunpack.c.h.b16 %v2361
        %v4939 = vunpack.c.l.b16 %v2362
        %v4940 = vunpack.c.h.b16 %v2362
        %v4941 = vunpack.c.l.b16 %v2363
        %v4942 = vunpack.c.h.b16 %v2363
        %v4943 = vunpack.c.l.b16 %v2364
        %v4944 = vunpack.c.h.b16 %v2364
        %v4945 = vunpack.c.l.b16 %v2365
        %v4946 = vunpack.c.h.b16 %v2365
        %v4947 = vunpack.c.l.b16 %v2366
        %v4948 = vunpack.c.h.b16 %v2366
        %v4949 = vunpack.c.l.b16 %v2367
        %v4950 = vunpack.c.h.b16 %v2367
        %v4951 = vunpack.c.l.b16 %v2368
        %v4952 = vunpack.c.h.b16 %v2368
        %v4953 = vunpack.c.l.b16 %v2369
        %v4954 = vunpack.c.h.b16 %v2369
        %v4955 = vunpack.c.l.b16 %v2370
        %v4956 = vunpack.c.h.b16 %v2370
        %v4957 = vunpack.c.l.b16 %v2371
        %v4958 = vunpack.c.h.b16 %v2371
        %v4959 = vunpack.c.l.b16 %v2372
        %v4960 = vunpack.c.h.b16 %v2372
        %v4961 = vunpack.c.l.b16 %v2373
        %v4962 = vunpack.c.h.b16 %v2373
        %v4963 = vunpack.c.l.b16 %v2374
        %v4964 = vunpack.c.h.b16 %v2374
        %v4965 = vunpack.c.l.b16 %v2375
        %v4966 = vunpack.c.h.b16 %v2375
        %v4967 = vunpack.c.l.b16 %v2376
        %v4968 = vunpack.c.h.b16 %v2376
        %v4969 = vunpack.c.l.b16 %v2377
        %v4970 = vunpack.c.h.b16 %v2377
        %v4971 = vunpack.c.l.b16 %v2378
        %v4972 = vunpack.c.h.b16 %v2378
        %v4973 = vunpack.c.l.b16 %v2379
        %v4974 = vunpack.c.h.b16 %v2379
        %v4975 = vunpack.c.l.b16 %v2380
        %v4976 = vunpack.c.h.b16 %v2380
        %v4977 = vunpack.c.l.b16 %v2381
        %v4978 = vunpack.c.h.b16 %v2381
        %v4979 = vunpack.c.l.b16 %v2382
        %v4980 = vunpack.c.h.b16 %v2382
        %v4981 = vunpack.c.l.b16 %v2383
        %v4982 = vunpack.c.h.b16 %v2383
        %v4983 = vunpack.c.l.b16 %v2384
        %v4984 = vunpack.c.h.b16 %v2384
        %v4985 = vunpack.c.l.b16 %v2385
        %v4986 = vunpack.c.h.b16 %v2385
        %v4987 = vunpack.c.l.b16 %v2386
        %v4988 = vunpack.c.h.b16 %v2386
        %v4989 = vunpack.c.l.b16 %v2387
        %v4990 = vunpack.c.h.b16 %v2387
        %v4991 = vunpack.c.l.b16 %v2388
        %v4992 = vunpack.c.h.b16 %v2388
        %v4993 = vunpack.c.l.b16 %v2389
        %v4994 = vunpack.c.h.b16 %v2389
        %v4995 = vunpack.c.l.b16 %v2390
        %v4996 = vunpack.c.h.b16 %v2390
        %v4997 = vunpack.c.l.b16 %v2391
        %v4998 = vunpack.c.h.b16 %v2391
        %v4999 = vunpack.c.l.b16 %v2392
        %v5000 = vunpack.c.h.b16 %v2392
        %v5001 = vunpack.c.l.b16 %v2393
        %v5002 = vunpack.c.h.b16 %v2393
        %v5003 = vunpack.c.l.b16 %v2394
        %v5004 = vunpack.c.h.b16 %v2394
        %v5005 = vunpack.c.l.b16 %v2395
        %v5006 = vunpack.c.h.b16 %v2395
        %v5007 = vunpack.c.l.b16 %v2396
        %v5008 = vunpack.c.h.b16 %v2396
        %v5009 = vunpack.c.l.b16 %v2397
        %v5010 = vunpack.c.h.b16 %v2397
        %v5011 = vunpack.c.l.b16 %v2398
        %v5012 = vunpack.c.h.b16 %v2398
        %v5013 = vunpack.c.l.b16 %v2399
        %v5014 = vunpack.c.h.b16 %v2399
        %v5015 = vunpack.c.l.b16 %v2400
        %v5016 = vunpack.c.h.b16 %v2400
        %v5017 = vunpack.c.l.b16 %v2401
        %v5018 = vunpack.c.h.b16 %v2401
        %v5019 = vunpack.c.l.b16 %v2402
        %v5020 = vunpack.c.h.b16 %v2402
        %v5021 = vunpack.c.l.b16 %v2403
        %v5022 = vunpack.c.h.b16 %v2403
        %v5023 = vunpack.c.l.b16 %v2404
        %v5024 = vunpack.c.h.b16 %v2404
        %v5025 = vunpack.c.l.b16 %v2405
        %v5026 = vunpack.c.h.b16 %v2405
        %v5027 = vunpack.c.l.b16 %v2406
        %v5028 = vunpack.c.h.b16 %v2406
        %v5029 = vunpack.c.l.b16 %v2407
        %v5030 = vunpack.c.h.b16 %v2407
        %v5031 = vunpack.c.l.b16 %v2408
        %v5032 = vunpack.c.h.b16 %v2408
        %v5033 = vunpack.c.l.b16 %v2409
        %v5034 = vunpack.c.h.b16 %v2409
        %v5035 = vunpack.c.l.b16 %v2410
        %v5036 = vunpack.c.h.b16 %v2410
        %v5037 = vunpack.c.l.b16 %v2411
        %v5038 = vunpack.c.h.b16 %v2411
        %v5039 = vunpack.c.l.b16 %v2412
        %v5040 = vunpack.c.h.b16 %v2412
        %v5041 = vunpack.c.l.b16 %v2413
        %v5042 = vunpack.c.h.b16 %v2413
        %v5043 = vunpack.c.l.b16 %v2414
        %v5044 = vunpack.c.h.b16 %v2414
        %v5045 = vunpack.c.l.b16 %v2415
        %v5046 = vunpack.c.h.b16 %v2415
        %v5047 = vunpack.c.l.b16 %v2416
        %v5048 = vunpack.c.h.b16 %v2416
        %v5049 = vunpack.c.l.b16 %v2417
        %v5050 = vunpack.c.h.b16 %v2417
        %v5051 = vunpack.c.l.b16 %v2418
        %v5052 = vunpack.c.h.b16 %v2418
        %v5053 = vunpack.c.l.b16 %v2419
        %v5054 = vunpack.c.h.b16 %v2419
        %v5055 = vunpack.c.l.b16 %v2420
        %v5056 = vunpack.c.h.b16 %v2420
        %v5057 = vunpack.c.l.b16 %v2421
        %v5058 = vunpack.c.h.b16 %v2421
        %v5059 = vunpack.c.l.b16 %v2422
        %v5060 = vunpack.c.h.b16 %v2422
        %v5061 = vunpack.c.l.b16 %v2423
        %v5062 = vunpack.c.h.b16 %v2423
        %v5063 = vunpack.c.l.b16 %v2424
        %v5064 = vunpack.c.h.b16 %v2424
        %v5065 = vunpack.c.l.b16 %v2425
        %v5066 = vunpack.c.h.b16 %v2425
        %v5067 = vunpack.c.l.b16 %v2426
        %v5068 = vunpack.c.h.b16 %v2426
        %v5069 = vunpack.c.l.b16 %v2427
        %v5070 = vunpack.c.h.b16 %v2427
        %v5071 = vunpack.c.l.b16 %v2428
        %v5072 = vunpack.c.h.b16 %v2428
        %v5073 = vunpack.c.l.b16 %v2429
        %v5074 = vunpack.c.h.b16 %v2429
        %v5075 = vunpack.c.l.b16 %v2430
        %v5076 = vunpack.c.h.b16 %v2430
        %v5077 = vunpack.c.l.b16 %v2431
        %v5078 = vunpack.c.h.b16 %v2431
        %v5079 = vunpack.c.l.b16 %v2432
        %v5080 = vunpack.c.h.b16 %v2432
        %v5081 = vunpack.c.l.b16 %v2433
        %v5082 = vunpack.c.h.b16 %v2433
        %v5083 = vunpack.c.l.b16 %v2434
        %v5084 = vunpack.c.h.b16 %v2434
        %v5085 = vunpack.c.l.b16 %v2435
        %v5086 = vunpack.c.h.b16 %v2435
        %v5087 = vunpack.c.l.b16 %v2436
        %v5088 = vunpack.c.h.b16 %v2436
        %v5089 = vunpack.c.l.b16 %v2437
        %v5090 = vunpack.c.h.b16 %v2437
        %v5091 = vunpack.c.l.b16 %v2438
        %v5092 = vunpack.c.h.b16 %v2438
        %v5093 = vunpack.c.l.b16 %v2439
        %v5094 = vunpack.c.h.b16 %v2439
        %v5095 = vunpack.c.l.b16 %v2440
        %v5096 = vunpack.c.h.b16 %v2440
        %v5097 = vunpack.c.l.b16 %v2441
        %v5098 = vunpack.c.h.b16 %v2441
        %v5099 = vunpack.c.l.b16 %v2442
        %v5100 = vunpack.c.h.b16 %v2442
        %v5101 = vunpack.c.l.b16 %v2443
        %v5102 = vunpack.c.h.b16 %v2443
        %v5103 = vunpack.c.l.b16 %v2444
        %v5104 = vunpack.c.h.b16 %v2444
        %v5105 = vunpack.c.l.b16 %v2445
        %v5106 = vunpack.c.h.b16 %v2445
        %v5107 = vunpack.c.l.b16 %v2446
        %v5108 = vunpack.c.h.b16 %v2446
        %v5109 = vunpack.c.l.b16 %v2447
        %v5110 = vunpack.c.h.b16 %v2447
        %v5111 = vunpack.c.l.b16 %v2448
        %v5112 = vunpack.c.h.b16 %v2448
        %v5113 = vunpack.c.l.b16 %v2449
        %v5114 = vunpack.c.h.b16 %v2449
        %v5115 = vunpack.c.l.b16 %v2450
        %v5116 = vunpack.c.h.b16 %v2450
        %v5117 = vunpack.c.l.b16 %v2451
        %v5118 = vunpack.c.h.b16 %v2451
        %v5119 = vunpack.c.l.b16 %v2452
        %v5120 = vunpack.c.h.b16 %v2452
        %v5121 = vunpack.c.l.b16 %v2453
        %v5122 = vunpack.c.h.b16 %v2453
        %v5123 = vunpack.c.l.b16 %v2454
        %v5124 = vunpack.c.h.b16 %v2454
        %v5125 = vunpack.c.l.b16 %v2455
        %v5126 = vunpack.c.h.b16 %v2455
        %v5127 = vunpack.c.l.b16 %v2456
        %v5128 = vunpack.c.h.b16 %v2456
        %v5129 = vunpack.c.l.b16 %v2457
        %v5130 = vunpack.c.h.b16 %v2457
        %v5131 = vunpack.c.l.b16 %v2458
        %v5132 = vunpack.c.h.b16 %v2458
        %v5133 = vunpack.c.l.b16 %v2459
        %v5134 = vunpack.c.h.b16 %v2459
        %v5135 = vunpack.c.l.b16 %v2460
        %v5136 = vunpack.c.h.b16 %v2460
        %v5137 = vunpack.c.l.b16 %v2461
        %v5138 = vunpack.c.h.b16 %v2461
        %v5139 = vunpack.c.l.b16 %v2462
        %v5140 = vunpack.c.h.b16 %v2462
        %v5141 = vunpack.c.l.b16 %v2463
        %v5142 = vunpack.c.h.b16 %v2463
        %v5143 = vunpack.c.l.b16 %v2464
        %v5144 = vunpack.c.h.b16 %v2464
        %v5145 = vunpack.c.l.b16 %v2465
        %v5146 = vunpack.c.h.b16 %v2465
        %v5147 = vunpack.c.l.b16 %v2466
        %v5148 = vunpack.c.h.b16 %v2466
        %v5149 = vunpack.c.l.b16 %v2467
        %v5150 = vunpack.c.h.b16 %v2467
        %v5151 = vunpack.c.l.b16 %v2468
        %v5152 = vunpack.c.h.b16 %v2468
        %v5153 = vunpack.c.l.b16 %v2469
        %v5154 = vunpack.c.h.b16 %v2469
        %v5155 = vunpack.c.l.b16 %v2470
        %v5156 = vunpack.c.h.b16 %v2470
        %v5157 = vunpack.c.l.b16 %v2471
        %v5158 = vunpack.c.h.b16 %v2471
        %v5159 = vunpack.c.l.b16 %v2472
        %v5160 = vunpack.c.h.b16 %v2472
        %v5161 = vunpack.c.l.b16 %v2473
        %v5162 = vunpack.c.h.b16 %v2473
        %v5163 = vunpack.c.l.b16 %v2474
        %v5164 = vunpack.c.h.b16 %v2474
        %v5165 = vunpack.c.l.b16 %v2475
        %v5166 = vunpack.c.h.b16 %v2475
        %v5167 = vunpack.c.l.b16 %v2476
        %v5168 = vunpack.c.h.b16 %v2476
        %v5169 = vunpack.c.l.b16 %v2477
        %v5170 = vunpack.c.h.b16 %v2477
        %v5171 = vunpack.c.l.b16 %v2478
        %v5172 = vunpack.c.h.b16 %v2478
        %v5173 = vunpack.c.l.b16 %v2479
        %v5174 = vunpack.c.h.b16 %v2479
        %v5175 = vunpack.c.l.b16 %v2480
        %v5176 = vunpack.c.h.b16 %v2480
        %v5177 = vunpack.c.l.b16 %v2481
        %v5178 = vunpack.c.h.b16 %v2481
        %v5179 = vunpack.c.l.b16 %v2482
        %v5180 = vunpack.c.h.b16 %v2482
        %v5181 = vunpack.c.l.b16 %v2483
        %v5182 = vunpack.c.h.b16 %v2483
        %v5183 = vunpack.c.l.b16 %v2484
        %v5184 = vunpack.c.h.b16 %v2484
        %v5185 = vunpack.c.l.b16 %v2485
        %v5186 = vunpack.c.h.b16 %v2485
        %v5187 = vunpack.c.l.b16 %v2486
        %v5188 = vunpack.c.h.b16 %v2486
        %v5189 = vunpack.c.l.b16 %v2487
        %v5190 = vunpack.c.h.b16 %v2487
        %v5191 = vunpack.c.l.b16 %v2488
        %v5192 = vunpack.c.h.b16 %v2488
        %v5193 = vunpack.c.l.b16 %v2489
        %v5194 = vunpack.c.h.b16 %v2489
        %v5195 = vunpack.c.l.b16 %v2490
        %v5196 = vunpack.c.h.b16 %v2490
        %v5197 = vunpack.c.l.b16 %v2491
        %v5198 = vunpack.c.h.b16 %v2491
        %v5199 = vunpack.c.l.b16 %v2492
        %v5200 = vunpack.c.h.b16 %v2492
        %v5201 = vunpack.c.l.b16 %v2493
        %v5202 = vunpack.c.h.b16 %v2493
        %v5203 = vunpack.c.l.b16 %v2494
        %v5204 = vunpack.c.h.b16 %v2494
        %v5205 = vunpack.c.l.b16 %v2495
        %v5206 = vunpack.c.h.b16 %v2495
        %v5207 = vunpack.c.l.b16 %v2496
        %v5208 = vunpack.c.h.b16 %v2496
        %v5209 = vunpack.c.l.b16 %v2497
        %v5210 = vunpack.c.h.b16 %v2497
        %v5211 = vunpack.c.l.b16 %v2498
        %v5212 = vunpack.c.h.b16 %v2498
        %v5213 = vunpack.c.l.b16 %v2499
        %v5214 = vunpack.c.h.b16 %v2499
        %v5215 = vunpack.c.l.b16 %v2500
        %v5216 = vunpack.c.h.b16 %v2500
        %v5217 = vunpack.c.l.b16 %v2501
        %v5218 = vunpack.c.h.b16 %v2501
        %v5219 = vunpack.c.l.b16 %v2502
        %v5220 = vunpack.c.h.b16 %v2502
        %v5221 = vunpack.c.l.b16 %v2503
        %v5222 = vunpack.c.h.b16 %v2503
        %v5223 = vunpack.c.l.b16 %v2504
        %v5224 = vunpack.c.h.b16 %v2504
        %v5225 = vunpack.c.l.b16 %v2505
        %v5226 = vunpack.c.h.b16 %v2505
        %v5227 = vunpack.c.l.b16 %v2506
        %v5228 = vunpack.c.h.b16 %v2506
        %v5229 = vunpack.c.l.b16 %v2507
        %v5230 = vunpack.c.h.b16 %v2507
        %v5231 = vunpack.c.l.b16 %v2508
        %v5232 = vunpack.c.h.b16 %v2508
        %v5233 = vunpack.c.l.b16 %v2509
        %v5234 = vunpack.c.h.b16 %v2509
        %v5235 = vunpack.c.l.b16 %v2510
        %v5236 = vunpack.c.h.b16 %v2510
        %v5237 = vunpack.c.l.b16 %v2511
        %v5238 = vunpack.c.h.b16 %v2511
        %v5239 = vunpack.c.l.b16 %v2512
        %v5240 = vunpack.c.h.b16 %v2512
        %v5241 = vunpack.c.l.b16 %v2513
        %v5242 = vunpack.c.h.b16 %v2513
        %v5243 = vunpack.c.l.b16 %v2514
        %v5244 = vunpack.c.h.b16 %v2514
        %v5245 = vunpack.c.l.b16 %v2515
        %v5246 = vunpack.c.h.b16 %v2515
        %v5247 = vunpack.c.l.b16 %v2516
        %v5248 = vunpack.c.h.b16 %v2516
        %v5249 = vunpack.c.l.b16 %v2517
        %v5250 = vunpack.c.h.b16 %v2517
        %v5251 = vunpack.c.l.b16 %v2518
        %v5252 = vunpack.c.h.b16 %v2518
        %v5253 = vunpack.c.l.b16 %v2519
        %v5254 = vunpack.c.h.b16 %v2519
        %v5255 = vunpack.c.l.b16 %v2520
        %v5256 = vunpack.c.h.b16 %v2520
        %v5257 = vunpack.c.l.b16 %v2521
        %v5258 = vunpack.c.h.b16 %v2521
        %v5259 = vunpack.c.l.b16 %v2522
        %v5260 = vunpack.c.h.b16 %v2522
        %v5261 = vunpack.c.l.b16 %v2523
        %v5262 = vunpack.c.h.b16 %v2523
        %v5263 = vunpack.c.l.b16 %v2524
        %v5264 = vunpack.c.h.b16 %v2524
        %v5265 = vunpack.c.l.b16 %v2525
        %v5266 = vunpack.c.h.b16 %v2525
        %v5267 = vunpack.c.l.b16 %v2526
        %v5268 = vunpack.c.h.b16 %v2526
        %v5269 = vunpack.c.l.b16 %v2527
        %v5270 = vunpack.c.h.b16 %v2527
        %v5271 = vunpack.c.l.b16 %v2528
        %v5272 = vunpack.c.h.b16 %v2528
        %v5273 = vunpack.c.l.b16 %v2529
        %v5274 = vunpack.c.h.b16 %v2529
        %v5275 = vunpack.c.l.b16 %v2530
        %v5276 = vunpack.c.h.b16 %v2530
        %v5277 = vunpack.c.l.b16 %v2531
        %v5278 = vunpack.c.h.b16 %v2531
        %v5279 = vunpack.c.l.b16 %v2532
        %v5280 = vunpack.c.h.b16 %v2532
        %v5281 = vunpack.c.l.b16 %v2533
        %v5282 = vunpack.c.h.b16 %v2533
        %v5283 = vunpack.c.l.b16 %v2534
        %v5284 = vunpack.c.h.b16 %v2534
        %v5285 = vunpack.c.l.b16 %v2535
        %v5286 = vunpack.c.h.b16 %v2535
        %v5287 = vunpack.c.l.b16 %v2536
        %v5288 = vunpack.c.h.b16 %v2536
        %v5289 = vunpack.c.l.b16 %v2537
        %v5290 = vunpack.c.h.b16 %v2537
        %v5291 = vunpack.c.l.b16 %v2538
        %v5292 = vunpack.c.h.b16 %v2538
        %v5293 = vunpack.c.l.b16 %v2539
        %v5294 = vunpack.c.h.b16 %v2539
        %v5295 = vunpack.c.l.b16 %v2540
        %v5296 = vunpack.c.h.b16 %v2540
        %v5297 = vunpack.c.l.b16 %v2541
        %v5298 = vunpack.c.h.b16 %v2541
        %v5299 = vunpack.c.l.b16 %v2542
        %v5300 = vunpack.c.h.b16 %v2542
        %v5301 = vunpack.c.l.b16 %v2543
        %v5302 = vunpack.c.h.b16 %v2543
        %v5303 = vunpack.c.l.b16 %v2544
        %v5304 = vunpack.c.h.b16 %v2544
        %v5305 = vunpack.c.l.b16 %v2545
        %v5306 = vunpack.c.h.b16 %v2545
        %v5307 = vunpack.c.l.b16 %v2546
        %v5308 = vunpack.c.h.b16 %v2546
        %v5309 = vunpack.c.l.b16 %v2547
        %v5310 = vunpack.c.h.b16 %v2547
        %v5311 = vunpack.c.l.b16 %v2548
        %v5312 = vunpack.c.h.b16 %v2548
        %v5313 = vunpack.c.l.b16 %v2549
        %v5314 = vunpack.c.h.b16 %v2549
        %v5315 = vunpack.c.l.b16 %v2550
        %v5316 = vunpack.c.h.b16 %v2550
        %v5317 = vunpack.c.l.b16 %v2551
        %v5318 = vunpack.c.h.b16 %v2551
        %v5319 = vunpack.c.l.b16 %v2552
        %v5320 = vunpack.c.h.b16 %v2552
        %v5321 = vunpack.c.l.b16 %v2553
        %v5322 = vunpack.c.h.b16 %v2553
        %v5323 = vunpack.c.l.b16 %v2554
        %v5324 = vunpack.c.h.b16 %v2554
        %v5325 = vunpack.c.l.b16 %v2555
        %v5326 = vunpack.c.h.b16 %v2555
        %v5327 = vunpack.c.l.b16 %v2556
        %v5328 = vunpack.c.h.b16 %v2556
        %v5329 = vunpack.c.l.b16 %v2557
        %v5330 = vunpack.c.h.b16 %v2557
        %v5331 = vunpack.c.l.b16 %v2558
        %v5332 = vunpack.c.h.b16 %v2558
        %v5333 = vunpack.c.l.b16 %v2559
        %v5334 = vunpack.c.h.b16 %v2559
        %v5335 = vunpack.c.l.b16 %v2560
        %v5336 = vunpack.c.h.b16 %v2560
        %v5337 = vunpack.c.l.b16 %v2561
        %v5338 = vunpack.c.h.b16 %v2561
        %v5339 = vunpack.c.l.b16 %v2562
        %v5340 = vunpack.c.h.b16 %v2562
        %v5341 = vunpack.c.l.b16 %v2563
        %v5342 = vunpack.c.h.b16 %v2563
        %v5343 = vunpack.c.l.b16 %v2564
        %v5344 = vunpack.c.h.b16 %v2564
        %v5345 = vunpack.c.l.b16 %v2565
        %v5346 = vunpack.c.h.b16 %v2565
        %v5347 = vunpack.c.l.b16 %v2566
        %v5348 = vunpack.c.h.b16 %v2566
        %v5349 = vunpack.c.l.b16 %v2567
        %v5350 = vunpack.c.h.b16 %v2567
        %v5351 = vunpack.c.l.b16 %v2568
        %v5352 = vunpack.c.h.b16 %v2568
        %v5353 = vunpack.c.l.b16 %v2569
        %v5354 = vunpack.c.h.b16 %v2569
        %v5355 = vunpack.c.l.b16 %v2570
        %v5356 = vunpack.c.h.b16 %v2570
        %v5357 = vunpack.c.l.b16 %v2571
        %v5358 = vunpack.c.h.b16 %v2571
        %v5359 = vunpack.c.l.b16 %v2572
        %v5360 = vunpack.c.h.b16 %v2572
        %v5361 = vunpack.c.l.b16 %v2573
        %v5362 = vunpack.c.h.b16 %v2573
        %v5363 = vunpack.c.l.b16 %v2574
        %v5364 = vunpack.c.h.b16 %v2574
        %v5365 = vunpack.c.l.b16 %v2575
        %v5366 = vunpack.c.h.b16 %v2575
        %v5367 = vunpack.c.l.b16 %v2576
        %v5368 = vunpack.c.h.b16 %v2576
        %v5369 = vunpack.c.l.b16 %v2577
        %v5370 = vunpack.c.h.b16 %v2577
        %v5371 = vunpack.c.l.b16 %v2578
        %v5372 = vunpack.c.h.b16 %v2578
        %v5373 = vunpack.c.l.b16 %v2579
        %v5374 = vunpack.c.h.b16 %v2579
        %v5375 = vunpack.c.l.b16 %v2580
        %v5376 = vunpack.c.h.b16 %v2580
        %v5377 = vunpack.c.l.b16 %v2581
        %v5378 = vunpack.c.h.b16 %v2581
        %v5379 = vunpack.c.l.b16 %v2582
        %v5380 = vunpack.c.h.b16 %v2582
        %v5381 = vunpack.c.l.b16 %v2583
        %v5382 = vunpack.c.h.b16 %v2583
        %v5383 = vunpack.c.l.b16 %v2584
        %v5384 = vunpack.c.h.b16 %v2584
        %v5385 = vunpack.c.l.b16 %v2585
        %v5386 = vunpack.c.h.b16 %v2585
        %v5387 = vunpack.c.l.b16 %v2586
        %v5388 = vunpack.c.h.b16 %v2586
        %v5389 = vunpack.c.l.b16 %v2587
        %v5390 = vunpack.c.h.b16 %v2587
        %v5391 = vunpack.c.l.b16 %v2588
        %v5392 = vunpack.c.h.b16 %v2588
        %v5393 = vunpack.c.l.b16 %v2589
        %v5394 = vunpack.c.h.b16 %v2589
        %v5395 = vunpack.c.l.b16 %v2590
        %v5396 = vunpack.c.h.b16 %v2590
        %v5397 = vunpack.c.l.b16 %v2591
        %v5398 = vunpack.c.h.b16 %v2591
        %v5399 = vunpack.c.l.b16 %v2592
        %v5400 = vunpack.c.h.b16 %v2592
        %v5401 = vunpack.c.l.b16 %v2593
        %v5402 = vunpack.c.h.b16 %v2593
        %v5403 = vunpack.c.l.b16 %v2594
        %v5404 = vunpack.c.h.b16 %v2594
        %v5405 = vunpack.c.l.b16 %v2595
        %v5406 = vunpack.c.h.b16 %v2595
        %v5407 = vunpack.c.l.b16 %v2596
        %v5408 = vunpack.c.h.b16 %v2596
        %v5409 = vunpack.c.l.b16 %v2597
        %v5410 = vunpack.c.h.b16 %v2597
        %v5411 = vunpack.c.l.b16 %v2598
        %v5412 = vunpack.c.h.b16 %v2598
        %v5413 = vunpack.c.l.b16 %v2599
        %v5414 = vunpack.c.h.b16 %v2599
        %v5415 = vunpack.c.l.b16 %v2600
        %v5416 = vunpack.c.h.b16 %v2600
        %v5417 = vunpack.c.l.b16 %v2601
        %v5418 = vunpack.c.h.b16 %v2601
        %v5419 = vunpack.c.l.b16 %v2602
        %v5420 = vunpack.c.h.b16 %v2602
        %v5421 = vunpack.c.l.b16 %v2603
        %v5422 = vunpack.c.h.b16 %v2603
        %v5423 = vunpack.c.l.b16 %v2604
        %v5424 = vunpack.c.h.b16 %v2604
        %v5425 = vunpack.c.l.b16 %v2605
        %v5426 = vunpack.c.h.b16 %v2605
        %v5427 = vunpack.c.l.b16 %v2606
        %v5428 = vunpack.c.h.b16 %v2606
        %v5429 = vunpack.c.l.b16 %v2607
        %v5430 = vunpack.c.h.b16 %v2607
        %v5431 = vunpack.c.l.b16 %v2608
        %v5432 = vunpack.c.h.b16 %v2608
        %v5433 = vunpack.c.l.b16 %v2609
        %v5434 = vunpack.c.h.b16 %v2609
        %v5435 = vunpack.c.l.b16 %v2610
        %v5436 = vunpack.c.h.b16 %v2610
        %v5437 = vunpack.c.l.b16 %v2611
        %v5438 = vunpack.c.h.b16 %v2611
        %v5439 = vunpack.c.l.b16 %v2612
        %v5440 = vunpack.c.h.b16 %v2612
        %v5441 = vunpack.c.l.b16 %v2613
        %v5442 = vunpack.c.h.b16 %v2613
        %v5443 = vunpack.c.l.b16 %v2614
        %v5444 = vunpack.c.h.b16 %v2614
        %v5445 = vunpack.c.l.b16 %v2615
        %v5446 = vunpack.c.h.b16 %v2615
        %v5447 = vunpack.c.l.b16 %v2616
        %v5448 = vunpack.c.h.b16 %v2616
        %v5449 = vunpack.c.l.b16 %v2617
        %v5450 = vunpack.c.h.b16 %v2617
        %v5451 = vunpack.c.l.b16 %v2618
        %v5452 = vunpack.c.h.b16 %v2618
        %v5453 = vunpack.c.l.b16 %v2619
        %v5454 = vunpack.c.h.b16 %v2619
        %v5455 = vunpack.c.l.b16 %v2620
        %v5456 = vunpack.c.h.b16 %v2620
        %v5457 = vunpack.c.l.b16 %v2621
        %v5458 = vunpack.c.h.b16 %v2621
        %v5459 = vunpack.c.l.b16 %v2622
        %v5460 = vunpack.c.h.b16 %v2622
        %v5461 = vunpack.c.l.b16 %v2623
        %v5462 = vunpack.c.h.b16 %v2623
        %v5463 = vunpack.c.l.b16 %v2624
        %v5464 = vunpack.c.h.b16 %v2624
        %v5465 = vunpack.c.l.b16 %v2625
        %v5466 = vunpack.c.h.b16 %v2625
        %v5467 = vunpack.c.l.b16 %v2626
        %v5468 = vunpack.c.h.b16 %v2626
        %v5469 = vunpack.c.l.b16 %v2627
        %v5470 = vunpack.c.h.b16 %v2627
        %v5471 = vunpack.c.l.b16 %v2628
        %v5472 = vunpack.c.h.b16 %v2628
        %v5473 = vunpack.c.l.b16 %v2629
        %v5474 = vunpack.c.h.b16 %v2629
        %v5475 = vunpack.c.l.b16 %v2630
        %v5476 = vunpack.c.h.b16 %v2630
        %v5477 = vunpack.c.l.b16 %v2631
        %v5478 = vunpack.c.h.b16 %v2631
        %v5479 = vunpack.c.l.b16 %v2632
        %v5480 = vunpack.c.h.b16 %v2632
        %v5481 = vunpack.c.l.b16 %v2633
        %v5482 = vunpack.c.h.b16 %v2633
        %v5483 = vunpack.c.l.b16 %v2634
        %v5484 = vunpack.c.h.b16 %v2634
        %v5485 = vunpack.c.l.b16 %v2635
        %v5486 = vunpack.c.h.b16 %v2635
        %v5487 = vunpack.c.l.b16 %v2636
        %v5488 = vunpack.c.h.b16 %v2636
        %v5489 = vunpack.c.l.b16 %v2637
        %v5490 = vunpack.c.h.b16 %v2637
        %v5491 = vunpack.c.l.b16 %v2638
        %v5492 = vunpack.c.h.b16 %v2638
        %v5493 = vunpack.c.l.b16 %v2639
        %v5494 = vunpack.c.h.b16 %v2639
        %v5495 = vunpack.c.l.b16 %v2640
        %v5496 = vunpack.c.h.b16 %v2640
        %v5497 = vunpack.c.l.b16 %v2641
        %v5498 = vunpack.c.h.b16 %v2641
        %v5499 = vunpack.c.l.b16 %v2642
        %v5500 = vunpack.c.h.b16 %v2642
        %v5501 = vunpack.c.l.b16 %v2643
        %v5502 = vunpack.c.h.b16 %v2643
        %v5503 = vunpack.c.l.b16 %v2644
        %v5504 = vunpack.c.h.b16 %v2644
        %v5505 = vunpack.c.l.b16 %v2645
        %v5506 = vunpack.c.h.b16 %v2645
        %v5507 = vunpack.c.l.b16 %v2646
        %v5508 = vunpack.c.h.b16 %v2646
        %v5509 = vunpack.c.l.b16 %v2647
        %v5510 = vunpack.c.h.b16 %v2647
        %v5511 = vunpack.c.l.b16 %v2648
        %v5512 = vunpack.c.h.b16 %v2648
        %v5513 = vunpack.c.l.b16 %v2649
        %v5514 = vunpack.c.h.b16 %v2649
        %v5515 = vunpack.c.l.b16 %v2650
        %v5516 = vunpack.c.h.b16 %v2650
        %v5517 = vunpack.c.l.b16 %v2651
        %v5518 = vunpack.c.h.b16 %v2651
        %v5519 = vunpack.c.l.b16 %v2652
        %v5520 = vunpack.c.h.b16 %v2652
        %v5521 = vunpack.c.l.b16 %v2653
        %v5522 = vunpack.c.h.b16 %v2653
        %v5523 = vunpack.c.l.b16 %v2654
        %v5524 = vunpack.c.h.b16 %v2654
        %v5525 = vunpack.c.l.b16 %v2655
        %v5526 = vunpack.c.h.b16 %v2655
        %v5527 = vunpack.c.l.b16 %v2656
        %v5528 = vunpack.c.h.b16 %v2656
        %v5529 = vunpack.c.l.b16 %v2657
        %v5530 = vunpack.c.h.b16 %v2657
        %v5531 = vunpack.c.l.b16 %v2658
        %v5532 = vunpack.c.h.b16 %v2658
        %v5533 = vunpack.c.l.b16 %v2659
        %v5534 = vunpack.c.h.b16 %v2659
        %v5535 = vunpack.c.l.b16 %v2660
        %v5536 = vunpack.c.h.b16 %v2660
        %v5537 = vunpack.c.l.b16 %v2661
        %v5538 = vunpack.c.h.b16 %v2661
        %v5539 = vunpack.c.l.b16 %v2662
        %v5540 = vunpack.c.h.b16 %v2662
        %v5541 = vunpack.c.l.b16 %v2663
        %v5542 = vunpack.c.h.b16 %v2663
        %v5543 = vunpack.c.l.b16 %v2664
        %v5544 = vunpack.c.h.b16 %v2664
        %v5545 = vunpack.c.l.b16 %v2665
        %v5546 = vunpack.c.h.b16 %v2665
        %v5547 = vunpack.c.l.b16 %v2666
        %v5548 = vunpack.c.h.b16 %v2666
        %v5549 = vunpack.c.l.b16 %v2667
        %v5550 = vunpack.c.h.b16 %v2667
        %v5551 = vunpack.c.l.b16 %v2668
        %v5552 = vunpack.c.h.b16 %v2668
        %v5553 = vunpack.c.l.b16 %v2669
        %v5554 = vunpack.c.h.b16 %v2669
        %v5555 = vunpack.c.l.b16 %v2670
        %v5556 = vunpack.c.h.b16 %v2670
        %v5557 = vunpack.c.l.b16 %v2671
        %v5558 = vunpack.c.h.b16 %v2671
        %v5559 = vunpack.c.l.b16 %v2672
        %v5560 = vunpack.c.h.b16 %v2672
        %v5561 = vunpack.c.l.b16 %v2673
        %v5562 = vunpack.c.h.b16 %v2673
        %v5563 = vunpack.c.l.b16 %v2674
        %v5564 = vunpack.c.h.b16 %v2674
        %v5565 = vunpack.c.l.b16 %v2675
        %v5566 = vunpack.c.h.b16 %v2675
        %v5567 = vunpack.c.l.b16 %v2676
        %v5568 = vunpack.c.h.b16 %v2676
        %v5569 = vunpack.c.l.b16 %v2677
        %v5570 = vunpack.c.h.b16 %v2677
        %v5571 = vunpack.c.l.b16 %v2678
        %v5572 = vunpack.c.h.b16 %v2678
        %v5573 = vunpack.c.l.b16 %v2679
        %v5574 = vunpack.c.h.b16 %v2679
        %v5575 = vunpack.c.l.b16 %v2680
        %v5576 = vunpack.c.h.b16 %v2680
        %v5577 = vunpack.c.l.b16 %v2681
        %v5578 = vunpack.c.h.b16 %v2681
        %v5579 = vunpack.c.l.b16 %v2682
        %v5580 = vunpack.c.h.b16 %v2682
        %v5581 = vunpack.c.l.b16 %v2683
        %v5582 = vunpack.c.h.b16 %v2683
        %v5583 = vunpack.c.l.b16 %v2684
        %v5584 = vunpack.c.h.b16 %v2684
        %v5585 = vunpack.c.l.b16 %v2685
        %v5586 = vunpack.c.h.b16 %v2685
        %v5587 = vunpack.c.l.b16 %v2686
        %v5588 = vunpack.c.h.b16 %v2686
        %v5589 = vunpack.c.l.b16 %v2687
        %v5590 = vunpack.c.h.b16 %v2687
        %v5591 = vunpack.c.l.b16 %v2688
        %v5592 = vunpack.c.h.b16 %v2688
        %v5593 = vunpack.c.l.b16 %v2689
        %v5594 = vunpack.c.h.b16 %v2689
        %v5595 = vunpack.c.l.b16 %v2690
        %v5596 = vunpack.c.h.b16 %v2690
        %v5597 = vunpack.c.l.b16 %v2691
        %v5598 = vunpack.c.h.b16 %v2691
        %v5599 = vunpack.c.l.b16 %v2692
        %v5600 = vunpack.c.h.b16 %v2692
        %v5601 = vunpack.c.l.b16 %v2693
        %v5602 = vunpack.c.h.b16 %v2693
        %v5603 = vunpack.c.l.b16 %v2694
        %v5604 = vunpack.c.h.b16 %v2694
        %v5605 = vunpack.c.l.b16 %v2695
        %v5606 = vunpack.c.h.b16 %v2695
        %v5607 = vunpack.c.l.b16 %v2696
        %v5608 = vunpack.c.h.b16 %v2696
        %v5609 = vunpack.c.l.b16 %v2697
        %v5610 = vunpack.c.h.b16 %v2697
        %v5611 = vunpack.c.l.b16 %v2698
        %v5612 = vunpack.c.h.b16 %v2698
        %v5613 = vunpack.c.l.b16 %v2699
        %v5614 = vunpack.c.h.b16 %v2699
        %v5615 = vunpack.c.l.b16 %v2700
        %v5616 = vunpack.c.h.b16 %v2700
        %v5617 = vunpack.c.l.b16 %v2701
        %v5618 = vunpack.c.h.b16 %v2701
        %v5619 = vunpack.c.l.b16 %v2702
        %v5620 = vunpack.c.h.b16 %v2702
        %v5621 = vunpack.c.l.b16 %v2703
        %v5622 = vunpack.c.h.b16 %v2703
        %v5623 = vunpack.c.l.b16 %v2704
        %v5624 = vunpack.c.h.b16 %v2704
        %v5625 = vunpack.c.l.b16 %v2705
        %v5626 = vunpack.c.h.b16 %v2705
        %v5627 = vunpack.c.l.b16 %v2706
        %v5628 = vunpack.c.h.b16 %v2706
        %v5629 = vunpack.c.l.b16 %v2707
        %v5630 = vunpack.c.h.b16 %v2707
        %v5631 = vunpack.c.l.b16 %v2708
        %v5632 = vunpack.c.h.b16 %v2708
        %v5633 = vunpack.c.l.b16 %v2709
        %v5634 = vunpack.c.h.b16 %v2709
        %v5635 = vunpack.c.l.b16 %v2710
        %v5636 = vunpack.c.h.b16 %v2710
        %v5637 = vunpack.c.l.b16 %v2711
        %v5638 = vunpack.c.h.b16 %v2711
        %v5639 = vunpack.c.l.b16 %v2712
        %v5640 = vunpack.c.h.b16 %v2712
        %v5641 = vunpack.c.l.b16 %v2713
        %v5642 = vunpack.c.h.b16 %v2713
        %v5643 = vunpack.c.l.b16 %v2714
        %v5644 = vunpack.c.h.b16 %v2714
        %v5645 = vunpack.c.l.b16 %v2715
        %v5646 = vunpack.c.h.b16 %v2715
        %v5647 = vunpack.c.l.b16 %v2716
        %v5648 = vunpack.c.h.b16 %v2716
        %v5649 = vunpack.c.l.b16 %v2717
        %v5650 = vunpack.c.h.b16 %v2717
        %v5651 = vunpack.c.l.b16 %v2718
        %v5652 = vunpack.c.h.b16 %v2718
        %v5653 = vunpack.c.l.b16 %v2719
        %v5654 = vunpack.c.h.b16 %v2719
        %v5655 = vunpack.c.l.b16 %v2720
        %v5656 = vunpack.c.h.b16 %v2720
        %v5657 = vunpack.c.l.b16 %v2721
        %v5658 = vunpack.c.h.b16 %v2721
        %v5659 = vunpack.c.l.b16 %v2722
        %v5660 = vunpack.c.h.b16 %v2722
        %v5661 = vunpack.c.l.b16 %v2723
        %v5662 = vunpack.c.h.b16 %v2723
        %v5663 = vunpack.c.l.b16 %v2724
        %v5664 = vunpack.c.h.b16 %v2724
        %v5665 = vunpack.c.l.b16 %v2725
        %v5666 = vunpack.c.h.b16 %v2725
        %v5667 = vunpack.c.l.b16 %v2726
        %v5668 = vunpack.c.h.b16 %v2726
        %v5669 = vunpack.c.l.b16 %v2727
        %v5670 = vunpack.c.h.b16 %v2727
        %v5671 = vunpack.c.l.b16 %v2728
        %v5672 = vunpack.c.h.b16 %v2728
        %v5673 = vunpack.c.l.b16 %v2729
        %v5674 = vunpack.c.h.b16 %v2729
        %v5675 = vunpack.c.l.b16 %v2730
        %v5676 = vunpack.c.h.b16 %v2730
        %v5677 = vunpack.c.l.b16 %v2731
        %v5678 = vunpack.c.h.b16 %v2731
        %v5679 = vunpack.c.l.b16 %v2732
        %v5680 = vunpack.c.h.b16 %v2732
        %v5681 = vunpack.c.l.b16 %v2733
        %v5682 = vunpack.c.h.b16 %v2733
        %v5683 = vunpack.c.l.b16 %v2734
        %v5684 = vunpack.c.h.b16 %v2734
        %v5685 = vunpack.c.l.b16 %v2735
        %v5686 = vunpack.c.h.b16 %v2735
        %v5687 = vunpack.c.l.b16 %v2736
        %v5688 = vunpack.c.h.b16 %v2736
        %v5689 = vunpack.c.l.b16 %v2737
        %v5690 = vunpack.c.h.b16 %v2737
        %v5691 = vunpack.c.l.b16 %v2738
        %v5692 = vunpack.c.h.b16 %v2738
        %v5693 = vunpack.c.l.b16 %v2739
        %v5694 = vunpack.c.h.b16 %v2739
        %v5695 = vunpack.c.l.b16 %v2740
        %v5696 = vunpack.c.h.b16 %v2740
        %v5697 = vunpack.c.l.b16 %v2741
        %v5698 = vunpack.c.h.b16 %v2741
        %v5699 = vunpack.c.l.b16 %v2742
        %v5700 = vunpack.c.h.b16 %v2742
        %v5701 = vunpack.c.l.b16 %v2743
        %v5702 = vunpack.c.h.b16 %v2743
        %v5703 = vunpack.c.l.b16 %v2744
        %v5704 = vunpack.c.h.b16 %v2744
        %v5705 = vunpack.c.l.b16 %v2745
        %v5706 = vunpack.c.h.b16 %v2745
        %v5707 = vunpack.c.l.b16 %v2746
        %v5708 = vunpack.c.h.b16 %v2746
        %v5709 = vunpack.c.l.b16 %v2747
        %v5710 = vunpack.c.h.b16 %v2747
        %v5711 = vunpack.c.l.b16 %v2748
        %v5712 = vunpack.c.h.b16 %v2748
        %v5713 = vunpack.c.l.b16 %v2749
        %v5714 = vunpack.c.h.b16 %v2749
        %v5715 = vunpack.c.l.b16 %v2750
        %v5716 = vunpack.c.h.b16 %v2750
        %v5717 = vunpack.c.l.b16 %v2751
        %v5718 = vunpack.c.h.b16 %v2751
        %v5719 = vunpack.c.l.b16 %v2752
        %v5720 = vunpack.c.h.b16 %v2752
        %v5721 = vunpack.c.l.b16 %v2753
        %v5722 = vunpack.c.h.b16 %v2753
        %v5723 = vunpack.c.l.b16 %v2754
        %v5724 = vunpack.c.h.b16 %v2754
        %v5725 = vunpack.c.l.b16 %v2755
        %v5726 = vunpack.c.h.b16 %v2755
        %v5727 = vunpack.c.l.b16 %v2756
        %v5728 = vunpack.c.h.b16 %v2756
        %v5729 = vunpack.c.l.b16 %v2757
        %v5730 = vunpack.c.h.b16 %v2757
        %v5731 = vunpack.c.l.b16 %v2758
        %v5732 = vunpack.c.h.b16 %v2758
        %v5733 = vunpack.c.l.b16 %v2759
        %v5734 = vunpack.c.h.b16 %v2759
        %v5735 = vunpack.c.l.b16 %v2760
        %v5736 = vunpack.c.h.b16 %v2760
        %v5737 = vunpack.c.l.b16 %v2761
        %v5738 = vunpack.c.h.b16 %v2761
        %v5739 = vunpack.c.l.b16 %v2762
        %v5740 = vunpack.c.h.b16 %v2762
        %v5741 = vunpack.c.l.b16 %v2763
        %v5742 = vunpack.c.h.b16 %v2763
        %v5743 = vunpack.c.l.b16 %v2764
        %v5744 = vunpack.c.h.b16 %v2764
        %v5745 = vunpack.c.l.b16 %v2765
        %v5746 = vunpack.c.h.b16 %v2765
        %v5747 = vunpack.c.l.b16 %v2766
        %v5748 = vunpack.c.h.b16 %v2766
        %v5749 = vunpack.c.l.b16 %v2767
        %v5750 = vunpack.c.h.b16 %v2767
        %v5751 = vunpack.c.l.b16 %v2768
        %v5752 = vunpack.c.h.b16 %v2768
        %v5753 = vunpack.c.l.b16 %v2769
        %v5754 = vunpack.c.h.b16 %v2769
        %v5755 = vunpack.c.l.b16 %v2770
        %v5756 = vunpack.c.h.b16 %v2770
        %v5757 = vunpack.c.l.b16 %v2771
        %v5758 = vunpack.c.h.b16 %v2771
        %v5759 = vunpack.c.l.b16 %v2772
        %v5760 = vunpack.c.h.b16 %v2772
        %v5761 = vunpack.c.l.b16 %v2773
        %v5762 = vunpack.c.h.b16 %v2773
        %v5763 = vunpack.c.l.b16 %v2774
        %v5764 = vunpack.c.h.b16 %v2774
        %v5765 = vunpack.c.l.b16 %v2775
        %v5766 = vunpack.c.h.b16 %v2775
        %v5767 = vunpack.c.l.b16 %v2776
        %v5768 = vunpack.c.h.b16 %v2776
        %v5769 = vunpack.c.l.b16 %v2777
        %v5770 = vunpack.c.h.b16 %v2777
        %v5771 = vunpack.c.l.b16 %v2778
        %v5772 = vunpack.c.h.b16 %v2778
        %v5773 = vunpack.c.l.b16 %v2779
        %v5774 = vunpack.c.h.b16 %v2779
        %v5775 = vunpack.c.l.b16 %v2780
        %v5776 = vunpack.c.h.b16 %v2780
        %v5777 = vunpack.c.l.b16 %v2781
        %v5778 = vunpack.c.h.b16 %v2781
        %v5779 = vunpack.c.l.b16 %v2782
        %v5780 = vunpack.c.h.b16 %v2782
        %v5781 = vunpack.c.l.b16 %v2783
        %v5782 = vunpack.c.h.b16 %v2783
        %v5783 = vunpack.c.l.b16 %v2784
        %v5784 = vunpack.c.h.b16 %v2784
        %v5785 = vunpack.c.l.b16 %v2785
        %v5786 = vunpack.c.h.b16 %v2785
        %v5787 = vunpack.c.l.b16 %v2786
        %v5788 = vunpack.c.h.b16 %v2786
        %v5789 = vunpack.c.l.b16 %v2787
        %v5790 = vunpack.c.h.b16 %v2787
        %v5791 = vunpack.c.l.b16 %v2788
        %v5792 = vunpack.c.h.b16 %v2788
        %v5793 = vunpack.c.l.b16 %v2789
        %v5794 = vunpack.c.h.b16 %v2789
        %v5795 = vunpack.c.l.b16 %v2790
        %v5796 = vunpack.c.h.b16 %v2790
        %v5797 = vunpack.c.l.b16 %v2791
        %v5798 = vunpack.c.h.b16 %v2791
        %v5799 = vunpack.c.l.b16 %v2792
        %v5800 = vunpack.c.h.b16 %v2792
        %v5801 = vunpack.c.l.b16 %v2793
        %v5802 = vunpack.c.h.b16 %v2793
        %v5803 = vunpack.c.l.b16 %v2794
        %v5804 = vunpack.c.h.b16 %v2794
        %v5805 = vunpack.c.l.b16 %v2795
        %v5806 = vunpack.c.h.b16 %v2795
        %v5807 = vunpack.c.l.b16 %v2796
        %v5808 = vunpack.c.h.b16 %v2796
        %v5809 = vunpack.c.l.b16 %v2797
        %v5810 = vunpack.c.h.b16 %v2797
        %v5811 = vunpack.c.l.b16 %v2798
        %v5812 = vunpack.c.h.b16 %v2798
        %v5813 = vunpack.c.l.b16 %v2799
        %v5814 = vunpack.c.h.b16 %v2799
        %v5815 = vunpack.c.l.b16 %v2800
        %v5816 = vunpack.c.h.b16 %v2800
        %v5817 = vunpack.c.l.b16 %v2801
        %v5818 = vunpack.c.h.b16 %v2801
        %v5819 = vunpack.c.l.b16 %v2802
        %v5820 = vunpack.c.h.b16 %v2802
        %v5821 = vunpack.c.l.b16 %v2803
        %v5822 = vunpack.c.h.b16 %v2803
        %v5823 = vunpack.c.l.b16 %v2804
        %v5824 = vunpack.c.h.b16 %v2804
        %v5825 = vunpack.c.l.b16 %v2805
        %v5826 = vunpack.c.h.b16 %v2805
        %v5827 = vunpack.c.l.b16 %v2806
        %v5828 = vunpack.c.h.b16 %v2806
        %v5829 = vunpack.c.l.b16 %v2807
        %v5830 = vunpack.c.h.b16 %v2807
        %v5831 = vunpack.c.l.b16 %v2808
        %v5832 = vunpack.c.h.b16 %v2808
        %v5833 = vunpack.c.l.b16 %v2809
        %v5834 = vunpack.c.h.b16 %v2809
        %v5835 = vunpack.c.l.b16 %v2810
        %v5836 = vunpack.c.h.b16 %v2810
        %v5837 = vunpack.c.l.b16 %v2811
        %v5838 = vunpack.c.h.b16 %v2811
        %v5839 = vunpack.c.l.b16 %v2812
        %v5840 = vunpack.c.h.b16 %v2812
        %v5841 = vunpack.c.l.b16 %v2813
        %v5842 = vunpack.c.h.b16 %v2813
        %v5843 = vunpack.c.l.b16 %v2814
        %v5844 = vunpack.c.h.b16 %v2814
        %v5845 = vunpack.c.l.b16 %v2815
        %v5846 = vunpack.c.h.b16 %v2815
        %v5847 = vunpack.c.l.b16 %v2816
        %v5848 = vunpack.c.h.b16 %v2816
        %v5849 = vunpack.c.l.b16 %v2817
        %v5850 = vunpack.c.h.b16 %v2817
        %v5851 = vunpack.c.l.b16 %v2818
        %v5852 = vunpack.c.h.b16 %v2818
        %v5853 = vunpack.c.l.b16 %v2819
        %v5854 = vunpack.c.h.b16 %v2819
        %v5855 = vunpack.c.l.b16 %v2820
        %v5856 = vunpack.c.h.b16 %v2820
        %v5857 = vunpack.c.l.b16 %v2821
        %v5858 = vunpack.c.h.b16 %v2821
        %v5859 = vunpack.c.l.b16 %v2822
        %v5860 = vunpack.c.h.b16 %v2822
        %v5861 = vunpack.c.l.b16 %v2823
        %v5862 = vunpack.c.h.b16 %v2823
        %v5863 = vunpack.c.l.b16 %v2824
        %v5864 = vunpack.c.h.b16 %v2824
        %v5865 = vunpack.c.l.b16 %v2825
        %v5866 = vunpack.c.h.b16 %v2825
        %v5867 = vunpack.c.l.b16 %v2826
        %v5868 = vunpack.c.h.b16 %v2826
        %v5869 = vunpack.c.l.b16 %v2827
        %v5870 = vunpack.c.h.b16 %v2827
        %v5871 = vunpack.c.l.b16 %v2828
        %v5872 = vunpack.c.h.b16 %v2828
        %v5873 = vunpack.c.l.b16 %v2829
        %v5874 = vunpack.c.h.b16 %v2829
        %v5875 = vunpack.c.l.b16 %v2830
        %v5876 = vunpack.c.h.b16 %v2830
        %v5877 = vunpack.c.l.b16 %v2831
        %v5878 = vunpack.c.h.b16 %v2831
        %v5879 = vunpack.c.l.b16 %v2832
        %v5880 = vunpack.c.h.b16 %v2832
        %v5881 = vunpack.c.l.b16 %v2833
        %v5882 = vunpack.c.h.b16 %v2833
        %v5883 = vunpack.c.l.b16 %v2834
        %v5884 = vunpack.c.h.b16 %v2834
        %v5885 = vunpack.c.l.b16 %v2835
        %v5886 = vunpack.c.h.b16 %v2835
        %v5887 = vunpack.c.l.b16 %v2836
        %v5888 = vunpack.c.h.b16 %v2836
        %v5889 = vunpack.c.l.b16 %v2837
        %v5890 = vunpack.c.h.b16 %v2837
        %v5891 = vunpack.c.l.b16 %v2838
        %v5892 = vunpack.c.h.b16 %v2838
        %v5893 = vunpack.c.l.b16 %v2839
        %v5894 = vunpack.c.h.b16 %v2839
        %v5895 = vunpack.c.l.b16 %v2840
        %v5896 = vunpack.c.h.b16 %v2840
        %v5897 = vunpack.c.l.b16 %v2841
        %v5898 = vunpack.c.h.b16 %v2841
        %v5899 = vunpack.c.l.b16 %v2842
        %v5900 = vunpack.c.h.b16 %v2842
        %v5901 = vunpack.c.l.b16 %v2843
        %v5902 = vunpack.c.h.b16 %v2843
        %v5903 = vunpack.c.l.b16 %v2844
        %v5904 = vunpack.c.h.b16 %v2844
        %v5905 = vunpack.c.l.b16 %v2845
        %v5906 = vunpack.c.h.b16 %v2845
        %v5907 = vunpack.c.l.b16 %v2846
        %v5908 = vunpack.c.h.b16 %v2846
        %v5909 = vunpack.c.l.b16 %v2847
        %v5910 = vunpack.c.h.b16 %v2847
        %v5911 = vunpack.c.l.b16 %v2848
        %v5912 = vunpack.c.h.b16 %v2848
        %v5913 = vunpack.c.l.b16 %v2849
        %v5914 = vunpack.c.h.b16 %v2849
        %v5915 = vunpack.c.l.b16 %v2850
        %v5916 = vunpack.c.h.b16 %v2850
        %v5917 = vunpack.c.l.b16 %v2851
        %v5918 = vunpack.c.h.b16 %v2851
        %v5919 = vunpack.c.l.b16 %v2852
        %v5920 = vunpack.c.h.b16 %v2852
        %v5921 = vunpack.c.l.b16 %v2853
        %v5922 = vunpack.c.h.b16 %v2853
        %v5923 = vunpack.c.l.b16 %v2854
        %v5924 = vunpack.c.h.b16 %v2854
        %v5925 = vunpack.c.l.b16 %v2855
        %v5926 = vunpack.c.h.b16 %v2855
        %v5927 = vunpack.c.l.b16 %v2856
        %v5928 = vunpack.c.h.b16 %v2856
        %v5929 = vunpack.c.l.b16 %v2857
        %v5930 = vunpack.c.h.b16 %v2857
        %v5931 = vunpack.c.l.b16 %v2858
        %v5932 = vunpack.c.h.b16 %v2858
        %v5933 = vunpack.c.l.b16 %v2859
        %v5934 = vunpack.c.h.b16 %v2859
        %v5935 = vunpack.c.l.b16 %v2860
        %v5936 = vunpack.c.h.b16 %v2860
        %v5937 = vunpack.c.l.b16 %v2861
        %v5938 = vunpack.c.h.b16 %v2861
        %v5939 = vunpack.c.l.b16 %v2862
        %v5940 = vunpack.c.h.b16 %v2862
        %v5941 = vunpack.c.l.b16 %v2863
        %v5942 = vunpack.c.h.b16 %v2863
        %v5943 = vunpack.c.l.b16 %v2864
        %v5944 = vunpack.c.h.b16 %v2864
        %v5945 = vunpack.c.l.b16 %v2865
        %v5946 = vunpack.c.h.b16 %v2865
        %v5947 = vunpack.c.l.b16 %v2866
        %v5948 = vunpack.c.h.b16 %v2866
        %v5949 = vunpack.c.l.b16 %v2867
        %v5950 = vunpack.c.h.b16 %v2867
        %v5951 = vunpack.c.l.b16 %v2868
        %v5952 = vunpack.c.h.b16 %v2868
        %v5953 = vunpack.c.l.b16 %v2869
        %v5954 = vunpack.c.h.b16 %v2869
        %v5955 = vunpack.c.l.b16 %v2870
        %v5956 = vunpack.c.h.b16 %v2870
        %v5957 = vunpack.c.l.b16 %v2871
        %v5958 = vunpack.c.h.b16 %v2871
        %v5959 = vunpack.c.l.b16 %v2872
        %v5960 = vunpack.c.h.b16 %v2872
        %v5961 = vunpack.c.l.b16 %v2873
        %v5962 = vunpack.c.h.b16 %v2873
        %v5963 = vunpack.c.l.b16 %v2874
        %v5964 = vunpack.c.h.b16 %v2874
        %v5965 = vunpack.c.l.b16 %v2875
        %v5966 = vunpack.c.h.b16 %v2875
        %v5967 = vunpack.c.l.b16 %v2876
        %v5968 = vunpack.c.h.b16 %v2876
        %v5969 = vunpack.c.l.b16 %v2877
        %v5970 = vunpack.c.h.b16 %v2877
        %v5971 = vunpack.c.l.b16 %v2878
        %v5972 = vunpack.c.h.b16 %v2878
        %v5973 = vunpack.c.l.b16 %v2879
        %v5974 = vunpack.c.h.b16 %v2879
        %v5975 = vunpack.c.l.b16 %v2880
        %v5976 = vunpack.c.h.b16 %v2880
        %v5977 = vunpack.c.l.b16 %v2881
        %v5978 = vunpack.c.h.b16 %v2881
        %v5979 = vunpack.c.l.b16 %v2882
        %v5980 = vunpack.c.h.b16 %v2882
        %v5981 = vunpack.c.l.b16 %v2883
        %v5982 = vunpack.c.h.b16 %v2883
        %v5983 = vunpack.c.l.b16 %v2884
        %v5984 = vunpack.c.h.b16 %v2884
        %v5985 = vunpack.c.l.b16 %v2885
        %v5986 = vunpack.c.h.b16 %v2885
        %v5987 = vunpack.c.l.b16 %v2886
        %v5988 = vunpack.c.h.b16 %v2886
        %v5989 = vunpack.c.l.b16 %v2887
        %v5990 = vunpack.c.h.b16 %v2887
        %v5991 = vunpack.c.l.b16 %v2888
        %v5992 = vunpack.c.h.b16 %v2888
        %v5993 = vunpack.c.l.b16 %v2889
        %v5994 = vunpack.c.h.b16 %v2889
        %v5995 = vunpack.c.l.b16 %v2890
        %v5996 = vunpack.c.h.b16 %v2890
        %v5997 = vunpack.c.l.b16 %v2891
        %v5998 = vunpack.c.h.b16 %v2891
        %v5999 = vunpack.c.l.b16 %v2892
        %v6000 = vunpack.c.h.b16 %v2892
        %v6001 = vunpack.c.l.b16 %v2893
        %v6002 = vunpack.c.h.b16 %v2893
        %v6003 = vunpack.c.l.b16 %v2894
        %v6004 = vunpack.c.h.b16 %v2894
        %v6005 = vunpack.c.l.b16 %v2895
        %v6006 = vunpack.c.h.b16 %v2895
        %v6007 = vunpack.c.l.b16 %v2896
        %v6008 = vunpack.c.h.b16 %v2896
        %v6009 = vunpack.c.l.b16 %v2897
        %v6010 = vunpack.c.h.b16 %v2897
        %v6011 = vunpack.c.l.b16 %v2898
        %v6012 = vunpack.c.h.b16 %v2898
        %v6013 = vpack.c.b16 %v3973, %v3965
        %v6014 = vpack.c.b16 %v3974, %v3966
        %v6015 = vpack.c.b16 %v3975, %v3967
        %v6016 = vpack.c.b16 %v3976, %v3968
        %v6017 = vpack.c.b16 %v3977, %v3969
        %v6018 = vpack.c.b16 %v3978, %v3970
        %v6019 = vpack.c.b16 %v3979, %v3971
        %v6020 = vpack.c.b16 %v3980, %v3972
        %v6021 = vpack.c.b16 %v3989, %v3981
        %v6022 = vpack.c.b16 %v3990, %v3982
        %v6023 = vpack.c.b16 %v3991, %v3983
        %v6024 = vpack.c.b16 %v3992, %v3984
        %v6025 = vpack.c.b16 %v3993, %v3985
        %v6026 = vpack.c.b16 %v3994, %v3986
        %v6027 = vpack.c.b16 %v3995, %v3987
        %v6028 = vpack.c.b16 %v3996, %v3988
        %v6029 = vpack.c.b16 %v4005, %v3997
        %v6030 = vpack.c.b16 %v4006, %v3998
        %v6031 = vpack.c.b16 %v4007, %v3999
        %v6032 = vpack.c.b16 %v4008, %v4000
        %v6033 = vpack.c.b16 %v4009, %v4001
        %v6034 = vpack.c.b16 %v4010, %v4002
        %v6035 = vpack.c.b16 %v4011, %v4003
        %v6036 = vpack.c.b16 %v4012, %v4004
        %v6037 = vpack.c.b16 %v4021, %v4013
        %v6038 = vpack.c.b16 %v4022, %v4014
        %v6039 = vpack.c.b16 %v4023, %v4015
        %v6040 = vpack.c.b16 %v4024, %v4016
        %v6041 = vpack.c.b16 %v4025, %v4017
        %v6042 = vpack.c.b16 %v4026, %v4018
        %v6043 = vpack.c.b16 %v4027, %v4019
        %v6044 = vpack.c.b16 %v4028, %v4020
        %v6045 = vpack.c.b16 %v4037, %v4029
        %v6046 = vpack.c.b16 %v4038, %v4030
        %v6047 = vpack.c.b16 %v4039, %v4031
        %v6048 = vpack.c.b16 %v4040, %v4032
        %v6049 = vpack.c.b16 %v4041, %v4033
        %v6050 = vpack.c.b16 %v4042, %v4034
        %v6051 = vpack.c.b16 %v4043, %v4035
        %v6052 = vpack.c.b16 %v4044, %v4036
        %v6053 = vpack.c.b16 %v4053, %v4045
        %v6054 = vpack.c.b16 %v4054, %v4046
        %v6055 = vpack.c.b16 %v4055, %v4047
        %v6056 = vpack.c.b16 %v4056, %v4048
        %v6057 = vpack.c.b16 %v4057, %v4049
        %v6058 = vpack.c.b16 %v4058, %v4050
        %v6059 = vpack.c.b16 %v4059, %v4051
        %v6060 = vpack.c.b16 %v4060, %v4052
        %v6061 = vpack.c.b16 %v4069, %v4061
        %v6062 = vpack.c.b16 %v4070, %v4062
        %v6063 = vpack.c.b16 %v4071, %v4063
        %v6064 = vpack.c.b16 %v4072, %v4064
        %v6065 = vpack.c.b16 %v4073, %v4065
        %v6066 = vpack.c.b16 %v4074, %v4066
        %v6067 = vpack.c.b16 %v4075, %v4067
        %v6068 = vpack.c.b16 %v4076, %v4068
        %v6069 = vpack.c.b16 %v4085, %v4077
        %v6070 = vpack.c.b16 %v4086, %v4078
        %v6071 = vpack.c.b16 %v4087, %v4079
        %v6072 = vpack.c.b16 %v4088, %v4080
        %v6073 = vpack.c.b16 %v4089, %v4081
        %v6074 = vpack.c.b16 %v4090, %v4082
        %v6075 = vpack.c.b16 %v4091, %v4083
        %v6076 = vpack.c.b16 %v4092, %v4084
        %v6077 = vpack.c.b16 %v4101, %v4093
        %v6078 = vpack.c.b16 %v4102, %v4094
        %v6079 = vpack.c.b16 %v4103, %v4095
        %v6080 = vpack.c.b16 %v4104, %v4096
        %v6081 = vpack.c.b16 %v4105, %v4097
        %v6082 = vpack.c.b16 %v4106, %v4098
        %v6083 = vpack.c.b16 %v4107, %v4099
        %v6084 = vpack.c.b16 %v4108, %v4100
        %v6085 = vpack.c.b16 %v4117, %v4109
        %v6086 = vpack.c.b16 %v4118, %v4110
        %v6087 = vpack.c.b16 %v4119, %v4111
        %v6088 = vpack.c.b16 %v4120, %v4112
        %v6089 = vpack.c.b16 %v4121, %v4113
        %v6090 = vpack.c.b16 %v4122, %v4114
        %v6091 = vpack.c.b16 %v4123, %v4115
        %v6092 = vpack.c.b16 %v4124, %v4116
        %v6093 = vpack.c.b16 %v4133, %v4125
        %v6094 = vpack.c.b16 %v4134, %v4126
        %v6095 = vpack.c.b16 %v4135, %v4127
        %v6096 = vpack.c.b16 %v4136, %v4128
        %v6097 = vpack.c.b16 %v4137, %v4129
        %v6098 = vpack.c.b16 %v4138, %v4130
        %v6099 = vpack.c.b16 %v4139, %v4131
        %v6100 = vpack.c.b16 %v4140, %v4132
        %v6101 = vpack.c.b16 %v4149, %v4141
        %v6102 = vpack.c.b16 %v4150, %v4142
        %v6103 = vpack.c.b16 %v4151, %v4143
        %v6104 = vpack.c.b16 %v4152, %v4144
        %v6105 = vpack.c.b16 %v4153, %v4145
        %v6106 = vpack.c.b16 %v4154, %v4146
        %v6107 = vpack.c.b16 %v4155, %v4147
        %v6108 = vpack.c.b16 %v4156, %v4148
        %v6109 = vpack.c.b16 %v4165, %v4157
        %v6110 = vpack.c.b16 %v4166, %v4158
        %v6111 = vpack.c.b16 %v4167, %v4159
        %v6112 = vpack.c.b16 %v4168, %v4160
        %v6113 = vpack.c.b16 %v4169, %v4161
        %v6114 = vpack.c.b16 %v4170, %v4162
        %v6115 = vpack.c.b16 %v4171, %v4163
        %v6116 = vpack.c.b16 %v4172, %v4164
        %v6117 = vpack.c.b16 %v4181, %v4173
        %v6118 = vpack.c.b16 %v4182, %v4174
        %v6119 = vpack.c.b16 %v4183, %v4175
        %v6120 = vpack.c.b16 %v4184, %v4176
        %v6121 = vpack.c.b16 %v4185, %v4177
        %v6122 = vpack.c.b16 %v4186, %v4178
        %v6123 = vpack.c.b16 %v4187, %v4179
        %v6124 = vpack.c.b16 %v4188, %v4180
        %v6125 = vpack.c.b16 %v4197, %v4189
        %v6126 = vpack.c.b16 %v4198, %v4190
        %v6127 = vpack.c.b16 %v4199, %v4191
        %v6128 = vpack.c.b16 %v4200, %v4192
        %v6129 = vpack.c.b16 %v4201, %v4193
        %v6130 = vpack.c.b16 %v4202, %v4194
        %v6131 = vpack.c.b16 %v4203, %v4195
        %v6132 = vpack.c.b16 %v4204, %v4196
        %v6133 = vpack.c.b16 %v4213, %v4205
        %v6134 = vpack.c.b16 %v4214, %v4206
        %v6135 = vpack.c.b16 %v4215, %v4207
        %v6136 = vpack.c.b16 %v4216, %v4208
        %v6137 = vpack.c.b16 %v4217, %v4209
        %v6138 = vpack.c.b16 %v4218, %v4210
        %v6139 = vpack.c.b16 %v4219, %v4211
        %v6140 = vpack.c.b16 %v4220, %v4212
        %v6141 = vpack.c.b16 %v4229, %v4221
        %v6142 = vpack.c.b16 %v4230, %v4222
        %v6143 = vpack.c.b16 %v4231, %v4223
        %v6144 = vpack.c.b16 %v4232, %v4224
        %v6145 = vpack.c.b16 %v4233, %v4225
        %v6146 = vpack.c.b16 %v4234, %v4226
        %v6147 = vpack.c.b16 %v4235, %v4227
        %v6148 = vpack.c.b16 %v4236, %v4228
        %v6149 = vpack.c.b16 %v4245, %v4237
        %v6150 = vpack.c.b16 %v4246, %v4238
        %v6151 = vpack.c.b16 %v4247, %v4239
        %v6152 = vpack.c.b16 %v4248, %v4240
        %v6153 = vpack.c.b16 %v4249, %v4241
        %v6154 = vpack.c.b16 %v4250, %v4242
        %v6155 = vpack.c.b16 %v4251, %v4243
        %v6156 = vpack.c.b16 %v4252, %v4244
        %v6157 = vpack.c.b16 %v4261, %v4253
        %v6158 = vpack.c.b16 %v4262, %v4254
        %v6159 = vpack.c.b16 %v4263, %v4255
        %v6160 = vpack.c.b16 %v4264, %v4256
        %v6161 = vpack.c.b16 %v4265, %v4257
        %v6162 = vpack.c.b16 %v4266, %v4258
        %v6163 = vpack.c.b16 %v4267, %v4259
        %v6164 = vpack.c.b16 %v4268, %v4260
        %v6165 = vpack.c.b16 %v4277, %v4269
        %v6166 = vpack.c.b16 %v4278, %v4270
        %v6167 = vpack.c.b16 %v4279, %v4271
        %v6168 = vpack.c.b16 %v4280, %v4272
        %v6169 = vpack.c.b16 %v4281, %v4273
        %v6170 = vpack.c.b16 %v4282, %v4274
        %v6171 = vpack.c.b16 %v4283, %v4275
        %v6172 = vpack.c.b16 %v4284, %v4276
        %v6173 = vpack.c.b16 %v4293, %v4285
        %v6174 = vpack.c.b16 %v4294, %v4286
        %v6175 = vpack.c.b16 %v4295, %v4287
        %v6176 = vpack.c.b16 %v4296, %v4288
        %v6177 = vpack.c.b16 %v4297, %v4289
        %v6178 = vpack.c.b16 %v4298, %v4290
        %v6179 = vpack.c.b16 %v4299, %v4291
        %v6180 = vpack.c.b16 %v4300, %v4292
        %v6181 = vpack.c.b16 %v4309, %v4301
        %v6182 = vpack.c.b16 %v4310, %v4302
        %v6183 = vpack.c.b16 %v4311, %v4303
        %v6184 = vpack.c.b16 %v4312, %v4304
        %v6185 = vpack.c.b16 %v4313, %v4305
        %v6186 = vpack.c.b16 %v4314, %v4306
        %v6187 = vpack.c.b16 %v4315, %v4307
        %v6188 = vpack.c.b16 %v4316, %v4308
        %v6189 = vpack.c.b16 %v4325, %v4317
        %v6190 = vpack.c.b16 %v4326, %v4318
        %v6191 = vpack.c.b16 %v4327, %v4319
        %v6192 = vpack.c.b16 %v4328, %v4320
        %v6193 = vpack.c.b16 %v4329, %v4321
        %v6194 = vpack.c.b16 %v4330, %v4322
        %v6195 = vpack.c.b16 %v4331, %v4323
        %v6196 = vpack.c.b16 %v4332, %v4324
        %v6197 = vpack.c.b16 %v4341, %v4333
        %v6198 = vpack.c.b16 %v4342, %v4334
        %v6199 = vpack.c.b16 %v4343, %v4335
        %v6200 = vpack.c.b16 %v4344, %v4336
        %v6201 = vpack.c.b16 %v4345, %v4337
        %v6202 = vpack.c.b16 %v4346, %v4338
        %v6203 = vpack.c.b16 %v4347, %v4339
        %v6204 = vpack.c.b16 %v4348, %v4340
        %v6205 = vpack.c.b16 %v4357, %v4349
        %v6206 = vpack.c.b16 %v4358, %v4350
        %v6207 = vpack.c.b16 %v4359, %v4351
        %v6208 = vpack.c.b16 %v4360, %v4352
        %v6209 = vpack.c.b16 %v4361, %v4353
        %v6210 = vpack.c.b16 %v4362, %v4354
        %v6211 = vpack.c.b16 %v4363, %v4355
        %v6212 = vpack.c.b16 %v4364, %v4356
        %v6213 = vpack.c.b16 %v4373, %v4365
        %v6214 = vpack.c.b16 %v4374, %v4366
        %v6215 = vpack.c.b16 %v4375, %v4367
        %v6216 = vpack.c.b16 %v4376, %v4368
        %v6217 = vpack.c.b16 %v4377, %v4369
        %v6218 = vpack.c.b16 %v4378, %v4370
        %v6219 = vpack.c.b16 %v4379, %v4371
        %v6220 = vpack.c.b16 %v4380, %v4372
        %v6221 = vpack.c.b16 %v4389, %v4381
        %v6222 = vpack.c.b16 %v4390, %v4382
        %v6223 = vpack.c.b16 %v4391, %v4383
        %v6224 = vpack.c.b16 %v4392, %v4384
        %v6225 = vpack.c.b16 %v4393, %v4385
        %v6226 = vpack.c.b16 %v4394, %v4386
        %v6227 = vpack.c.b16 %v4395, %v4387
        %v6228 = vpack.c.b16 %v4396, %v4388
        %v6229 = vpack.c.b16 %v4405, %v4397
        %v6230 = vpack.c.b16 %v4406, %v4398
        %v6231 = vpack.c.b16 %v4407, %v4399
        %v6232 = vpack.c.b16 %v4408, %v4400
        %v6233 = vpack.c.b16 %v4409, %v4401
        %v6234 = vpack.c.b16 %v4410, %v4402
        %v6235 = vpack.c.b16 %v4411, %v4403
        %v6236 = vpack.c.b16 %v4412, %v4404
        %v6237 = vpack.c.b16 %v4421, %v4413
        %v6238 = vpack.c.b16 %v4422, %v4414
        %v6239 = vpack.c.b16 %v4423, %v4415
        %v6240 = vpack.c.b16 %v4424, %v4416
        %v6241 = vpack.c.b16 %v4425, %v4417
        %v6242 = vpack.c.b16 %v4426, %v4418
        %v6243 = vpack.c.b16 %v4427, %v4419
        %v6244 = vpack.c.b16 %v4428, %v4420
        %v6245 = vpack.c.b16 %v4437, %v4429
        %v6246 = vpack.c.b16 %v4438, %v4430
        %v6247 = vpack.c.b16 %v4439, %v4431
        %v6248 = vpack.c.b16 %v4440, %v4432
        %v6249 = vpack.c.b16 %v4441, %v4433
        %v6250 = vpack.c.b16 %v4442, %v4434
        %v6251 = vpack.c.b16 %v4443, %v4435
        %v6252 = vpack.c.b16 %v4444, %v4436
        %v6253 = vpack.c.b16 %v4453, %v4445
        %v6254 = vpack.c.b16 %v4454, %v4446
        %v6255 = vpack.c.b16 %v4455, %v4447
        %v6256 = vpack.c.b16 %v4456, %v4448
        %v6257 = vpack.c.b16 %v4457, %v4449
        %v6258 = vpack.c.b16 %v4458, %v4450
        %v6259 = vpack.c.b16 %v4459, %v4451
        %v6260 = vpack.c.b16 %v4460, %v4452
        %v6261 = vpack.c.b16 %v4469, %v4461
        %v6262 = vpack.c.b16 %v4470, %v4462
        %v6263 = vpack.c.b16 %v4471, %v4463
        %v6264 = vpack.c.b16 %v4472, %v4464
        %v6265 = vpack.c.b16 %v4473, %v4465
        %v6266 = vpack.c.b16 %v4474, %v4466
        %v6267 = vpack.c.b16 %v4475, %v4467
        %v6268 = vpack.c.b16 %v4476, %v4468
        %v6269 = vpack.c.b16 %v4485, %v4477
        %v6270 = vpack.c.b16 %v4486, %v4478
        %v6271 = vpack.c.b16 %v4487, %v4479
        %v6272 = vpack.c.b16 %v4488, %v4480
        %v6273 = vpack.c.b16 %v4489, %v4481
        %v6274 = vpack.c.b16 %v4490, %v4482
        %v6275 = vpack.c.b16 %v4491, %v4483
        %v6276 = vpack.c.b16 %v4492, %v4484
        %v6277 = vpack.c.b16 %v4501, %v4493
        %v6278 = vpack.c.b16 %v4502, %v4494
        %v6279 = vpack.c.b16 %v4503, %v4495
        %v6280 = vpack.c.b16 %v4504, %v4496
        %v6281 = vpack.c.b16 %v4505, %v4497
        %v6282 = vpack.c.b16 %v4506, %v4498
        %v6283 = vpack.c.b16 %v4507, %v4499
        %v6284 = vpack.c.b16 %v4508, %v4500
        %v6285 = vpack.c.b16 %v4517, %v4509
        %v6286 = vpack.c.b16 %v4518, %v4510
        %v6287 = vpack.c.b16 %v4519, %v4511
        %v6288 = vpack.c.b16 %v4520, %v4512
        %v6289 = vpack.c.b16 %v4521, %v4513
        %v6290 = vpack.c.b16 %v4522, %v4514
        %v6291 = vpack.c.b16 %v4523, %v4515
        %v6292 = vpack.c.b16 %v4524, %v4516
        %v6293 = vpack.c.b16 %v4533, %v4525
        %v6294 = vpack.c.b16 %v4534, %v4526
        %v6295 = vpack.c.b16 %v4535, %v4527
        %v6296 = vpack.c.b16 %v4536, %v4528
        %v6297 = vpack.c.b16 %v4537, %v4529
        %v6298 = vpack.c.b16 %v4538, %v4530
        %v6299 = vpack.c.b16 %v4539, %v4531
        %v6300 = vpack.c.b16 %v4540, %v4532
        %v6301 = vpack.c.b16 %v4549, %v4541
        %v6302 = vpack.c.b16 %v4550, %v4542
        %v6303 = vpack.c.b16 %v4551, %v4543
        %v6304 = vpack.c.b16 %v4552, %v4544
        %v6305 = vpack.c.b16 %v4553, %v4545
        %v6306 = vpack.c.b16 %v4554, %v4546
        %v6307 = vpack.c.b16 %v4555, %v4547
        %v6308 = vpack.c.b16 %v4556, %v4548
        %v6309 = vpack.c.b16 %v4565, %v4557
        %v6310 = vpack.c.b16 %v4566, %v4558
        %v6311 = vpack.c.b16 %v4567, %v4559
        %v6312 = vpack.c.b16 %v4568, %v4560
        %v6313 = vpack.c.b16 %v4569, %v4561
        %v6314 = vpack.c.b16 %v4570, %v4562
        %v6315 = vpack.c.b16 %v4571, %v4563
        %v6316 = vpack.c.b16 %v4572, %v4564
        %v6317 = vpack.c.b16 %v4581, %v4573
        %v6318 = vpack.c.b16 %v4582, %v4574
        %v6319 = vpack.c.b16 %v4583, %v4575
        %v6320 = vpack.c.b16 %v4584, %v4576
        %v6321 = vpack.c.b16 %v4585, %v4577
        %v6322 = vpack.c.b16 %v4586, %v4578
        %v6323 = vpack.c.b16 %v4587, %v4579
        %v6324 = vpack.c.b16 %v4588, %v4580
        %v6325 = vpack.c.b16 %v4597, %v4589
        %v6326 = vpack.c.b16 %v4598, %v4590
        %v6327 = vpack.c.b16 %v4599, %v4591
        %v6328 = vpack.c.b16 %v4600, %v4592
        %v6329 = vpack.c.b16 %v4601, %v4593
        %v6330 = vpack.c.b16 %v4602, %v4594
        %v6331 = vpack.c.b16 %v4603, %v4595
        %v6332 = vpack.c.b16 %v4604, %v4596
        %v6333 = vpack.c.b16 %v4613, %v4605
        %v6334 = vpack.c.b16 %v4614, %v4606
        %v6335 = vpack.c.b16 %v4615, %v4607
        %v6336 = vpack.c.b16 %v4616, %v4608
        %v6337 = vpack.c.b16 %v4617, %v4609
        %v6338 = vpack.c.b16 %v4618, %v4610
        %v6339 = vpack.c.b16 %v4619, %v4611
        %v6340 = vpack.c.b16 %v4620, %v4612
        %v6341 = vpack.c.b16 %v4629, %v4621
        %v6342 = vpack.c.b16 %v4630, %v4622
        %v6343 = vpack.c.b16 %v4631, %v4623
        %v6344 = vpack.c.b16 %v4632, %v4624
        %v6345 = vpack.c.b16 %v4633, %v4625
        %v6346 = vpack.c.b16 %v4634, %v4626
        %v6347 = vpack.c.b16 %v4635, %v4627
        %v6348 = vpack.c.b16 %v4636, %v4628
        %v6349 = vpack.c.b16 %v4645, %v4637
        %v6350 = vpack.c.b16 %v4646, %v4638
        %v6351 = vpack.c.b16 %v4647, %v4639
        %v6352 = vpack.c.b16 %v4648, %v4640
        %v6353 = vpack.c.b16 %v4649, %v4641
        %v6354 = vpack.c.b16 %v4650, %v4642
        %v6355 = vpack.c.b16 %v4651, %v4643
        %v6356 = vpack.c.b16 %v4652, %v4644
        %v6357 = vpack.c.b16 %v4661, %v4653
        %v6358 = vpack.c.b16 %v4662, %v4654
        %v6359 = vpack.c.b16 %v4663, %v4655
        %v6360 = vpack.c.b16 %v4664, %v4656
        %v6361 = vpack.c.b16 %v4665, %v4657
        %v6362 = vpack.c.b16 %v4666, %v4658
        %v6363 = vpack.c.b16 %v4667, %v4659
        %v6364 = vpack.c.b16 %v4668, %v4660
        %v6365 = vpack.c.b16 %v4677, %v4669
        %v6366 = vpack.c.b16 %v4678, %v4670
        %v6367 = vpack.c.b16 %v4679, %v4671
        %v6368 = vpack.c.b16 %v4680, %v4672
        %v6369 = vpack.c.b16 %v4681, %v4673
        %v6370 = vpack.c.b16 %v4682, %v4674
        %v6371 = vpack.c.b16 %v4683, %v4675
        %v6372 = vpack.c.b16 %v4684, %v4676
        %v6373 = vpack.c.b16 %v4693, %v4685
        %v6374 = vpack.c.b16 %v4694, %v4686
        %v6375 = vpack.c.b16 %v4695, %v4687
        %v6376 = vpack.c.b16 %v4696, %v4688
        %v6377 = vpack.c.b16 %v4697, %v4689
        %v6378 = vpack.c.b16 %v4698, %v4690
        %v6379 = vpack.c.b16 %v4699, %v4691
        %v6380 = vpack.c.b16 %v4700, %v4692
        %v6381 = vpack.c.b16 %v4709, %v4701
        %v6382 = vpack.c.b16 %v4710, %v4702
        %v6383 = vpack.c.b16 %v4711, %v4703
        %v6384 = vpack.c.b16 %v4712, %v4704
        %v6385 = vpack.c.b16 %v4713, %v4705
        %v6386 = vpack.c.b16 %v4714, %v4706
        %v6387 = vpack.c.b16 %v4715, %v4707
        %v6388 = vpack.c.b16 %v4716, %v4708
        %v6389 = vpack.c.b16 %v4725, %v4717
        %v6390 = vpack.c.b16 %v4726, %v4718
        %v6391 = vpack.c.b16 %v4727, %v4719
        %v6392 = vpack.c.b16 %v4728, %v4720
        %v6393 = vpack.c.b16 %v4729, %v4721
        %v6394 = vpack.c.b16 %v4730, %v4722
        %v6395 = vpack.c.b16 %v4731, %v4723
        %v6396 = vpack.c.b16 %v4732, %v4724
        %v6397 = vpack.c.b16 %v4741, %v4733
        %v6398 = vpack.c.b16 %v4742, %v4734
        %v6399 = vpack.c.b16 %v4743, %v4735
        %v6400 = vpack.c.b16 %v4744, %v4736
        %v6401 = vpack.c.b16 %v4745, %v4737
        %v6402 = vpack.c.b16 %v4746, %v4738
        %v6403 = vpack.c.b16 %v4747, %v4739
        %v6404 = vpack.c.b16 %v4748, %v4740
        %v6405 = vpack.c.b16 %v4757, %v4749
        %v6406 = vpack.c.b16 %v4758, %v4750
        %v6407 = vpack.c.b16 %v4759, %v4751
        %v6408 = vpack.c.b16 %v4760, %v4752
        %v6409 = vpack.c.b16 %v4761, %v4753
        %v6410 = vpack.c.b16 %v4762, %v4754
        %v6411 = vpack.c.b16 %v4763, %v4755
        %v6412 = vpack.c.b16 %v4764, %v4756
        %v6413 = vpack.c.b16 %v4773, %v4765
        %v6414 = vpack.c.b16 %v4774, %v4766
        %v6415 = vpack.c.b16 %v4775, %v4767
        %v6416 = vpack.c.b16 %v4776, %v4768
        %v6417 = vpack.c.b16 %v4777, %v4769
        %v6418 = vpack.c.b16 %v4778, %v4770
        %v6419 = vpack.c.b16 %v4779, %v4771
        %v6420 = vpack.c.b16 %v4780, %v4772
        %v6421 = vpack.c.b16 %v4789, %v4781
        %v6422 = vpack.c.b16 %v4790, %v4782
        %v6423 = vpack.c.b16 %v4791, %v4783
        %v6424 = vpack.c.b16 %v4792, %v4784
        %v6425 = vpack.c.b16 %v4793, %v4785
        %v6426 = vpack.c.b16 %v4794, %v4786
        %v6427 = vpack.c.b16 %v4795, %v4787
        %v6428 = vpack.c.b16 %v4796, %v4788
        %v6429 = vpack.c.b16 %v4805, %v4797
        %v6430 = vpack.c.b16 %v4806, %v4798
        %v6431 = vpack.c.b16 %v4807, %v4799
        %v6432 = vpack.c.b16 %v4808, %v4800
        %v6433 = vpack.c.b16 %v4809, %v4801
        %v6434 = vpack.c.b16 %v4810, %v4802
        %v6435 = vpack.c.b16 %v4811, %v4803
        %v6436 = vpack.c.b16 %v4812, %v4804
        %v6437 = vpack.c.b16 %v4821, %v4813
        %v6438 = vpack.c.b16 %v4822, %v4814
        %v6439 = vpack.c.b16 %v4823, %v4815
        %v6440 = vpack.c.b16 %v4824, %v4816
        %v6441 = vpack.c.b16 %v4825, %v4817
        %v6442 = vpack.c.b16 %v4826, %v4818
        %v6443 = vpack.c.b16 %v4827, %v4819
        %v6444 = vpack.c.b16 %v4828, %v4820
        %v6445 = vpack.c.b16 %v4837, %v4829
        %v6446 = vpack.c.b16 %v4838, %v4830
        %v6447 = vpack.c.b16 %v4839, %v4831
        %v6448 = vpack.c.b16 %v4840, %v4832
        %v6449 = vpack.c.b16 %v4841, %v4833
        %v6450 = vpack.c.b16 %v4842, %v4834
        %v6451 = vpack.c.b16 %v4843, %v4835
        %v6452 = vpack.c.b16 %v4844, %v4836
        %v6453 = vpack.c.b16 %v4853, %v4845
        %v6454 = vpack.c.b16 %v4854, %v4846
        %v6455 = vpack.c.b16 %v4855, %v4847
        %v6456 = vpack.c.b16 %v4856, %v4848
        %v6457 = vpack.c.b16 %v4857, %v4849
        %v6458 = vpack.c.b16 %v4858, %v4850
        %v6459 = vpack.c.b16 %v4859, %v4851
        %v6460 = vpack.c.b16 %v4860, %v4852
        %v6461 = vpack.c.b16 %v4869, %v4861
        %v6462 = vpack.c.b16 %v4870, %v4862
        %v6463 = vpack.c.b16 %v4871, %v4863
        %v6464 = vpack.c.b16 %v4872, %v4864
        %v6465 = vpack.c.b16 %v4873, %v4865
        %v6466 = vpack.c.b16 %v4874, %v4866
        %v6467 = vpack.c.b16 %v4875, %v4867
        %v6468 = vpack.c.b16 %v4876, %v4868
        %v6469 = vpack.c.b16 %v4885, %v4877
        %v6470 = vpack.c.b16 %v4886, %v4878
        %v6471 = vpack.c.b16 %v4887, %v4879
        %v6472 = vpack.c.b16 %v4888, %v4880
        %v6473 = vpack.c.b16 %v4889, %v4881
        %v6474 = vpack.c.b16 %v4890, %v4882
        %v6475 = vpack.c.b16 %v4891, %v4883
        %v6476 = vpack.c.b16 %v4892, %v4884
        %v6477 = vpack.c.b16 %v4901, %v4893
        %v6478 = vpack.c.b16 %v4902, %v4894
        %v6479 = vpack.c.b16 %v4903, %v4895
        %v6480 = vpack.c.b16 %v4904, %v4896
        %v6481 = vpack.c.b16 %v4905, %v4897
        %v6482 = vpack.c.b16 %v4906, %v4898
        %v6483 = vpack.c.b16 %v4907, %v4899
        %v6484 = vpack.c.b16 %v4908, %v4900
        %v6485 = vpack.c.b16 %v4917, %v4909
        %v6486 = vpack.c.b16 %v4918, %v4910
        %v6487 = vpack.c.b16 %v4919, %v4911
        %v6488 = vpack.c.b16 %v4920, %v4912
        %v6489 = vpack.c.b16 %v4921, %v4913
        %v6490 = vpack.c.b16 %v4922, %v4914
        %v6491 = vpack.c.b16 %v4923, %v4915
        %v6492 = vpack.c.b16 %v4924, %v4916
        %v6493 = vpack.c.b16 %v4933, %v4925
        %v6494 = vpack.c.b16 %v4934, %v4926
        %v6495 = vpack.c.b16 %v4935, %v4927
        %v6496 = vpack.c.b16 %v4936, %v4928
        %v6497 = vpack.c.b16 %v4937, %v4929
        %v6498 = vpack.c.b16 %v4938, %v4930
        %v6499 = vpack.c.b16 %v4939, %v4931
        %v6500 = vpack.c.b16 %v4940, %v4932
        %v6501 = vpack.c.b16 %v4949, %v4941
        %v6502 = vpack.c.b16 %v4950, %v4942
        %v6503 = vpack.c.b16 %v4951, %v4943
        %v6504 = vpack.c.b16 %v4952, %v4944
        %v6505 = vpack.c.b16 %v4953, %v4945
        %v6506 = vpack.c.b16 %v4954, %v4946
        %v6507 = vpack.c.b16 %v4955, %v4947
        %v6508 = vpack.c.b16 %v4956, %v4948
        %v6509 = vpack.c.b16 %v4965, %v4957
        %v6510 = vpack.c.b16 %v4966, %v4958
        %v6511 = vpack.c.b16 %v4967, %v4959
        %v6512 = vpack.c.b16 %v4968, %v4960
        %v6513 = vpack.c.b16 %v4969, %v4961
        %v6514 = vpack.c.b16 %v4970, %v4962
        %v6515 = vpack.c.b16 %v4971, %v4963
        %v6516 = vpack.c.b16 %v4972, %v4964
        %v6517 = vpack.c.b16 %v4981, %v4973
        %v6518 = vpack.c.b16 %v4982, %v4974
        %v6519 = vpack.c.b16 %v4983, %v4975
        %v6520 = vpack.c.b16 %v4984, %v4976
        %v6521 = vpack.c.b16 %v4985, %v4977
        %v6522 = vpack.c.b16 %v4986, %v4978
        %v6523 = vpack.c.b16 %v4987, %v4979
        %v6524 = vpack.c.b16 %v4988, %v4980
        %v6525 = vpack.c.b16 %v4997, %v4989
        %v6526 = vpack.c.b16 %v4998, %v4990
        %v6527 = vpack.c.b16 %v4999, %v4991
        %v6528 = vpack.c.b16 %v5000, %v4992
        %v6529 = vpack.c.b16 %v5001, %v4993
        %v6530 = vpack.c.b16 %v5002, %v4994
        %v6531 = vpack.c.b16 %v5003, %v4995
        %v6532 = vpack.c.b16 %v5004, %v4996
        %v6533 = vpack.c.b16 %v5013, %v5005
        %v6534 = vpack.c.b16 %v5014, %v5006
        %v6535 = vpack.c.b16 %v5015, %v5007
        %v6536 = vpack.c.b16 %v5016, %v5008
        %v6537 = vpack.c.b16 %v5017, %v5009
        %v6538 = vpack.c.b16 %v5018, %v5010
        %v6539 = vpack.c.b16 %v5019, %v5011
        %v6540 = vpack.c.b16 %v5020, %v5012
        %v6541 = vpack.c.b16 %v5029, %v5021
        %v6542 = vpack.c.b16 %v5030, %v5022
        %v6543 = vpack.c.b16 %v5031, %v5023
        %v6544 = vpack.c.b16 %v5032, %v5024
        %v6545 = vpack.c.b16 %v5033, %v5025
        %v6546 = vpack.c.b16 %v5034, %v5026
        %v6547 = vpack.c.b16 %v5035, %v5027
        %v6548 = vpack.c.b16 %v5036, %v5028
        %v6549 = vpack.c.b16 %v5045, %v5037
        %v6550 = vpack.c.b16 %v5046, %v5038
        %v6551 = vpack.c.b16 %v5047, %v5039
        %v6552 = vpack.c.b16 %v5048, %v5040
        %v6553 = vpack.c.b16 %v5049, %v5041
        %v6554 = vpack.c.b16 %v5050, %v5042
        %v6555 = vpack.c.b16 %v5051, %v5043
        %v6556 = vpack.c.b16 %v5052, %v5044
        %v6557 = vpack.c.b16 %v5061, %v5053
        %v6558 = vpack.c.b16 %v5062, %v5054
        %v6559 = vpack.c.b16 %v5063, %v5055
        %v6560 = vpack.c.b16 %v5064, %v5056
        %v6561 = vpack.c.b16 %v5065, %v5057
        %v6562 = vpack.c.b16 %v5066, %v5058
        %v6563 = vpack.c.b16 %v5067, %v5059
        %v6564 = vpack.c.b16 %v5068, %v5060
        %v6565 = vpack.c.b16 %v5077, %v5069
        %v6566 = vpack.c.b16 %v5078, %v5070
        %v6567 = vpack.c.b16 %v5079, %v5071
        %v6568 = vpack.c.b16 %v5080, %v5072
        %v6569 = vpack.c.b16 %v5081, %v5073
        %v6570 = vpack.c.b16 %v5082, %v5074
        %v6571 = vpack.c.b16 %v5083, %v5075
        %v6572 = vpack.c.b16 %v5084, %v5076
        %v6573 = vpack.c.b16 %v5093, %v5085
        %v6574 = vpack.c.b16 %v5094, %v5086
        %v6575 = vpack.c.b16 %v5095, %v5087
        %v6576 = vpack.c.b16 %v5096, %v5088
        %v6577 = vpack.c.b16 %v5097, %v5089
        %v6578 = vpack.c.b16 %v5098, %v5090
        %v6579 = vpack.c.b16 %v5099, %v5091
        %v6580 = vpack.c.b16 %v5100, %v5092
        %v6581 = vpack.c.b16 %v5109, %v5101
        %v6582 = vpack.c.b16 %v5110, %v5102
        %v6583 = vpack.c.b16 %v5111, %v5103
        %v6584 = vpack.c.b16 %v5112, %v5104
        %v6585 = vpack.c.b16 %v5113, %v5105
        %v6586 = vpack.c.b16 %v5114, %v5106
        %v6587 = vpack.c.b16 %v5115, %v5107
        %v6588 = vpack.c.b16 %v5116, %v5108
        %v6589 = vpack.c.b16 %v5125, %v5117
        %v6590 = vpack.c.b16 %v5126, %v5118
        %v6591 = vpack.c.b16 %v5127, %v5119
        %v6592 = vpack.c.b16 %v5128, %v5120
        %v6593 = vpack.c.b16 %v5129, %v5121
        %v6594 = vpack.c.b16 %v5130, %v5122
        %v6595 = vpack.c.b16 %v5131, %v5123
        %v6596 = vpack.c.b16 %v5132, %v5124
        %v6597 = vpack.c.b16 %v5141, %v5133
        %v6598 = vpack.c.b16 %v5142, %v5134
        %v6599 = vpack.c.b16 %v5143, %v5135
        %v6600 = vpack.c.b16 %v5144, %v5136
        %v6601 = vpack.c.b16 %v5145, %v5137
        %v6602 = vpack.c.b16 %v5146, %v5138
        %v6603 = vpack.c.b16 %v5147, %v5139
        %v6604 = vpack.c.b16 %v5148, %v5140
        %v6605 = vpack.c.b16 %v5157, %v5149
        %v6606 = vpack.c.b16 %v5158, %v5150
        %v6607 = vpack.c.b16 %v5159, %v5151
        %v6608 = vpack.c.b16 %v5160, %v5152
        %v6609 = vpack.c.b16 %v5161, %v5153
        %v6610 = vpack.c.b16 %v5162, %v5154
        %v6611 = vpack.c.b16 %v5163, %v5155
        %v6612 = vpack.c.b16 %v5164, %v5156
        %v6613 = vpack.c.b16 %v5173, %v5165
        %v6614 = vpack.c.b16 %v5174, %v5166
        %v6615 = vpack.c.b16 %v5175, %v5167
        %v6616 = vpack.c.b16 %v5176, %v5168
        %v6617 = vpack.c.b16 %v5177, %v5169
        %v6618 = vpack.c.b16 %v5178, %v5170
        %v6619 = vpack.c.b16 %v5179, %v5171
        %v6620 = vpack.c.b16 %v5180, %v5172
        %v6621 = vpack.c.b16 %v5189, %v5181
        %v6622 = vpack.c.b16 %v5190, %v5182
        %v6623 = vpack.c.b16 %v5191, %v5183
        %v6624 = vpack.c.b16 %v5192, %v5184
        %v6625 = vpack.c.b16 %v5193, %v5185
        %v6626 = vpack.c.b16 %v5194, %v5186
        %v6627 = vpack.c.b16 %v5195, %v5187
        %v6628 = vpack.c.b16 %v5196, %v5188
        %v6629 = vpack.c.b16 %v5205, %v5197
        %v6630 = vpack.c.b16 %v5206, %v5198
        %v6631 = vpack.c.b16 %v5207, %v5199
        %v6632 = vpack.c.b16 %v5208, %v5200
        %v6633 = vpack.c.b16 %v5209, %v5201
        %v6634 = vpack.c.b16 %v5210, %v5202
        %v6635 = vpack.c.b16 %v5211, %v5203
        %v6636 = vpack.c.b16 %v5212, %v5204
        %v6637 = vpack.c.b16 %v5221, %v5213
        %v6638 = vpack.c.b16 %v5222, %v5214
        %v6639 = vpack.c.b16 %v5223, %v5215
        %v6640 = vpack.c.b16 %v5224, %v5216
        %v6641 = vpack.c.b16 %v5225, %v5217
        %v6642 = vpack.c.b16 %v5226, %v5218
        %v6643 = vpack.c.b16 %v5227, %v5219
        %v6644 = vpack.c.b16 %v5228, %v5220
        %v6645 = vpack.c.b16 %v5237, %v5229
        %v6646 = vpack.c.b16 %v5238, %v5230
        %v6647 = vpack.c.b16 %v5239, %v5231
        %v6648 = vpack.c.b16 %v5240, %v5232
        %v6649 = vpack.c.b16 %v5241, %v5233
        %v6650 = vpack.c.b16 %v5242, %v5234
        %v6651 = vpack.c.b16 %v5243, %v5235
        %v6652 = vpack.c.b16 %v5244, %v5236
        %v6653 = vpack.c.b16 %v5253, %v5245
        %v6654 = vpack.c.b16 %v5254, %v5246
        %v6655 = vpack.c.b16 %v5255, %v5247
        %v6656 = vpack.c.b16 %v5256, %v5248
        %v6657 = vpack.c.b16 %v5257, %v5249
        %v6658 = vpack.c.b16 %v5258, %v5250
        %v6659 = vpack.c.b16 %v5259, %v5251
        %v6660 = vpack.c.b16 %v5260, %v5252
        %v6661 = vpack.c.b16 %v5269, %v5261
        %v6662 = vpack.c.b16 %v5270, %v5262
        %v6663 = vpack.c.b16 %v5271, %v5263
        %v6664 = vpack.c.b16 %v5272, %v5264
        %v6665 = vpack.c.b16 %v5273, %v5265
        %v6666 = vpack.c.b16 %v5274, %v5266
        %v6667 = vpack.c.b16 %v5275, %v5267
        %v6668 = vpack.c.b16 %v5276, %v5268
        %v6669 = vpack.c.b16 %v5285, %v5277
        %v6670 = vpack.c.b16 %v5286, %v5278
        %v6671 = vpack.c.b16 %v5287, %v5279
        %v6672 = vpack.c.b16 %v5288, %v5280
        %v6673 = vpack.c.b16 %v5289, %v5281
        %v6674 = vpack.c.b16 %v5290, %v5282
        %v6675 = vpack.c.b16 %v5291, %v5283
        %v6676 = vpack.c.b16 %v5292, %v5284
        %v6677 = vpack.c.b16 %v5301, %v5293
        %v6678 = vpack.c.b16 %v5302, %v5294
        %v6679 = vpack.c.b16 %v5303, %v5295
        %v6680 = vpack.c.b16 %v5304, %v5296
        %v6681 = vpack.c.b16 %v5305, %v5297
        %v6682 = vpack.c.b16 %v5306, %v5298
        %v6683 = vpack.c.b16 %v5307, %v5299
        %v6684 = vpack.c.b16 %v5308, %v5300
        %v6685 = vpack.c.b16 %v5317, %v5309
        %v6686 = vpack.c.b16 %v5318, %v5310
        %v6687 = vpack.c.b16 %v5319, %v5311
        %v6688 = vpack.c.b16 %v5320, %v5312
        %v6689 = vpack.c.b16 %v5321, %v5313
        %v6690 = vpack.c.b16 %v5322, %v5314
        %v6691 = vpack.c.b16 %v5323, %v5315
        %v6692 = vpack.c.b16 %v5324, %v5316
        %v6693 = vpack.c.b16 %v5333, %v5325
        %v6694 = vpack.c.b16 %v5334, %v5326
        %v6695 = vpack.c.b16 %v5335, %v5327
        %v6696 = vpack.c.b16 %v5336, %v5328
        %v6697 = vpack.c.b16 %v5337, %v5329
        %v6698 = vpack.c.b16 %v5338, %v5330
        %v6699 = vpack.c.b16 %v5339, %v5331
        %v6700 = vpack.c.b16 %v5340, %v5332
        %v6701 = vpack.c.b16 %v5349, %v5341
        %v6702 = vpack.c.b16 %v5350, %v5342
        %v6703 = vpack.c.b16 %v5351, %v5343
        %v6704 = vpack.c.b16 %v5352, %v5344
        %v6705 = vpack.c.b16 %v5353, %v5345
        %v6706 = vpack.c.b16 %v5354, %v5346
        %v6707 = vpack.c.b16 %v5355, %v5347
        %v6708 = vpack.c.b16 %v5356, %v5348
        %v6709 = vpack.c.b16 %v5365, %v5357
        %v6710 = vpack.c.b16 %v5366, %v5358
        %v6711 = vpack.c.b16 %v5367, %v5359
        %v6712 = vpack.c.b16 %v5368, %v5360
        %v6713 = vpack.c.b16 %v5369, %v5361
        %v6714 = vpack.c.b16 %v5370, %v5362
        %v6715 = vpack.c.b16 %v5371, %v5363
        %v6716 = vpack.c.b16 %v5372, %v5364
        %v6717 = vpack.c.b16 %v5381, %v5373
        %v6718 = vpack.c.b16 %v5382, %v5374
        %v6719 = vpack.c.b16 %v5383, %v5375
        %v6720 = vpack.c.b16 %v5384, %v5376
        %v6721 = vpack.c.b16 %v5385, %v5377
        %v6722 = vpack.c.b16 %v5386, %v5378
        %v6723 = vpack.c.b16 %v5387, %v5379
        %v6724 = vpack.c.b16 %v5388, %v5380
        %v6725 = vpack.c.b16 %v5397, %v5389
        %v6726 = vpack.c.b16 %v5398, %v5390
        %v6727 = vpack.c.b16 %v5399, %v5391
        %v6728 = vpack.c.b16 %v5400, %v5392
        %v6729 = vpack.c.b16 %v5401, %v5393
        %v6730 = vpack.c.b16 %v5402, %v5394
        %v6731 = vpack.c.b16 %v5403, %v5395
        %v6732 = vpack.c.b16 %v5404, %v5396
        %v6733 = vpack.c.b16 %v5413, %v5405
        %v6734 = vpack.c.b16 %v5414, %v5406
        %v6735 = vpack.c.b16 %v5415, %v5407
        %v6736 = vpack.c.b16 %v5416, %v5408
        %v6737 = vpack.c.b16 %v5417, %v5409
        %v6738 = vpack.c.b16 %v5418, %v5410
        %v6739 = vpack.c.b16 %v5419, %v5411
        %v6740 = vpack.c.b16 %v5420, %v5412
        %v6741 = vpack.c.b16 %v5429, %v5421
        %v6742 = vpack.c.b16 %v5430, %v5422
        %v6743 = vpack.c.b16 %v5431, %v5423
        %v6744 = vpack.c.b16 %v5432, %v5424
        %v6745 = vpack.c.b16 %v5433, %v5425
        %v6746 = vpack.c.b16 %v5434, %v5426
        %v6747 = vpack.c.b16 %v5435, %v5427
        %v6748 = vpack.c.b16 %v5436, %v5428
        %v6749 = vpack.c.b16 %v5445, %v5437
        %v6750 = vpack.c.b16 %v5446, %v5438
        %v6751 = vpack.c.b16 %v5447, %v5439
        %v6752 = vpack.c.b16 %v5448, %v5440
        %v6753 = vpack.c.b16 %v5449, %v5441
        %v6754 = vpack.c.b16 %v5450, %v5442
        %v6755 = vpack.c.b16 %v5451, %v5443
        %v6756 = vpack.c.b16 %v5452, %v5444
        %v6757 = vpack.c.b16 %v5461, %v5453
        %v6758 = vpack.c.b16 %v5462, %v5454
        %v6759 = vpack.c.b16 %v5463, %v5455
        %v6760 = vpack.c.b16 %v5464, %v5456
        %v6761 = vpack.c.b16 %v5465, %v5457
        %v6762 = vpack.c.b16 %v5466, %v5458
        %v6763 = vpack.c.b16 %v5467, %v5459
        %v6764 = vpack.c.b16 %v5468, %v5460
        %v6765 = vpack.c.b16 %v5477, %v5469
        %v6766 = vpack.c.b16 %v5478, %v5470
        %v6767 = vpack.c.b16 %v5479, %v5471
        %v6768 = vpack.c.b16 %v5480, %v5472
        %v6769 = vpack.c.b16 %v5481, %v5473
        %v6770 = vpack.c.b16 %v5482, %v5474
        %v6771 = vpack.c.b16 %v5483, %v5475
        %v6772 = vpack.c.b16 %v5484, %v5476
        %v6773 = vpack.c.b16 %v5493, %v5485
        %v6774 = vpack.c.b16 %v5494, %v5486
        %v6775 = vpack.c.b16 %v5495, %v5487
        %v6776 = vpack.c.b16 %v5496, %v5488
        %v6777 = vpack.c.b16 %v5497, %v5489
        %v6778 = vpack.c.b16 %v5498, %v5490
        %v6779 = vpack.c.b16 %v5499, %v5491
        %v6780 = vpack.c.b16 %v5500, %v5492
        %v6781 = vpack.c.b16 %v5509, %v5501
        %v6782 = vpack.c.b16 %v5510, %v5502
        %v6783 = vpack.c.b16 %v5511, %v5503
        %v6784 = vpack.c.b16 %v5512, %v5504
        %v6785 = vpack.c.b16 %v5513, %v5505
        %v6786 = vpack.c.b16 %v5514, %v5506
        %v6787 = vpack.c.b16 %v5515, %v5507
        %v6788 = vpack.c.b16 %v5516, %v5508
        %v6789 = vpack.c.b16 %v5525, %v5517
        %v6790 = vpack.c.b16 %v5526, %v5518
        %v6791 = vpack.c.b16 %v5527, %v5519
        %v6792 = vpack.c.b16 %v5528, %v5520
        %v6793 = vpack.c.b16 %v5529, %v5521
        %v6794 = vpack.c.b16 %v5530, %v5522
        %v6795 = vpack.c.b16 %v5531, %v5523
        %v6796 = vpack.c.b16 %v5532, %v5524
        %v6797 = vpack.c.b16 %v5541, %v5533
        %v6798 = vpack.c.b16 %v5542, %v5534
        %v6799 = vpack.c.b16 %v5543, %v5535
        %v6800 = vpack.c.b16 %v5544, %v5536
        %v6801 = vpack.c.b16 %v5545, %v5537
        %v6802 = vpack.c.b16 %v5546, %v5538
        %v6803 = vpack.c.b16 %v5547, %v5539
        %v6804 = vpack.c.b16 %v5548, %v5540
        %v6805 = vpack.c.b16 %v5557, %v5549
        %v6806 = vpack.c.b16 %v5558, %v5550
        %v6807 = vpack.c.b16 %v5559, %v5551
        %v6808 = vpack.c.b16 %v5560, %v5552
        %v6809 = vpack.c.b16 %v5561, %v5553
        %v6810 = vpack.c.b16 %v5562, %v5554
        %v6811 = vpack.c.b16 %v5563, %v5555
        %v6812 = vpack.c.b16 %v5564, %v5556
        %v6813 = vpack.c.b16 %v5573, %v5565
        %v6814 = vpack.c.b16 %v5574, %v5566
        %v6815 = vpack.c.b16 %v5575, %v5567
        %v6816 = vpack.c.b16 %v5576, %v5568
        %v6817 = vpack.c.b16 %v5577, %v5569
        %v6818 = vpack.c.b16 %v5578, %v5570
        %v6819 = vpack.c.b16 %v5579, %v5571
        %v6820 = vpack.c.b16 %v5580, %v5572
        %v6821 = vpack.c.b16 %v5589, %v5581
        %v6822 = vpack.c.b16 %v5590, %v5582
        %v6823 = vpack.c.b16 %v5591, %v5583
        %v6824 = vpack.c.b16 %v5592, %v5584
        %v6825 = vpack.c.b16 %v5593, %v5585
        %v6826 = vpack.c.b16 %v5594, %v5586
        %v6827 = vpack.c.b16 %v5595, %v5587
        %v6828 = vpack.c.b16 %v5596, %v5588
        %v6829 = vpack.c.b16 %v5605, %v5597
        %v6830 = vpack.c.b16 %v5606, %v5598
        %v6831 = vpack.c.b16 %v5607, %v5599
        %v6832 = vpack.c.b16 %v5608, %v5600
        %v6833 = vpack.c.b16 %v5609, %v5601
        %v6834 = vpack.c.b16 %v5610, %v5602
        %v6835 = vpack.c.b16 %v5611, %v5603
        %v6836 = vpack.c.b16 %v5612, %v5604
        %v6837 = vpack.c.b16 %v5621, %v5613
        %v6838 = vpack.c.b16 %v5622, %v5614
        %v6839 = vpack.c.b16 %v5623, %v5615
        %v6840 = vpack.c.b16 %v5624, %v5616
        %v6841 = vpack.c.b16 %v5625, %v5617
        %v6842 = vpack.c.b16 %v5626, %v5618
        %v6843 = vpack.c.b16 %v5627, %v5619
        %v6844 = vpack.c.b16 %v5628, %v5620
        %v6845 = vpack.c.b16 %v5637, %v5629
        %v6846 = vpack.c.b16 %v5638, %v5630
        %v6847 = vpack.c.b16 %v5639, %v5631
        %v6848 = vpack.c.b16 %v5640, %v5632
        %v6849 = vpack.c.b16 %v5641, %v5633
        %v6850 = vpack.c.b16 %v5642, %v5634
        %v6851 = vpack.c.b16 %v5643, %v5635
        %v6852 = vpack.c.b16 %v5644, %v5636
        %v6853 = vpack.c.b16 %v5653, %v5645
        %v6854 = vpack.c.b16 %v5654, %v5646
        %v6855 = vpack.c.b16 %v5655, %v5647
        %v6856 = vpack.c.b16 %v5656, %v5648
        %v6857 = vpack.c.b16 %v5657, %v5649
        %v6858 = vpack.c.b16 %v5658, %v5650
        %v6859 = vpack.c.b16 %v5659, %v5651
        %v6860 = vpack.c.b16 %v5660, %v5652
        %v6861 = vpack.c.b16 %v5669, %v5661
        %v6862 = vpack.c.b16 %v5670, %v5662
        %v6863 = vpack.c.b16 %v5671, %v5663
        %v6864 = vpack.c.b16 %v5672, %v5664
        %v6865 = vpack.c.b16 %v5673, %v5665
        %v6866 = vpack.c.b16 %v5674, %v5666
        %v6867 = vpack.c.b16 %v5675, %v5667
        %v6868 = vpack.c.b16 %v5676, %v5668
        %v6869 = vpack.c.b16 %v5685, %v5677
        %v6870 = vpack.c.b16 %v5686, %v5678
        %v6871 = vpack.c.b16 %v5687, %v5679
        %v6872 = vpack.c.b16 %v5688, %v5680
        %v6873 = vpack.c.b16 %v5689, %v5681
        %v6874 = vpack.c.b16 %v5690, %v5682
        %v6875 = vpack.c.b16 %v5691, %v5683
        %v6876 = vpack.c.b16 %v5692, %v5684
        %v6877 = vpack.c.b16 %v5701, %v5693
        %v6878 = vpack.c.b16 %v5702, %v5694
        %v6879 = vpack.c.b16 %v5703, %v5695
        %v6880 = vpack.c.b16 %v5704, %v5696
        %v6881 = vpack.c.b16 %v5705, %v5697
        %v6882 = vpack.c.b16 %v5706, %v5698
        %v6883 = vpack.c.b16 %v5707, %v5699
        %v6884 = vpack.c.b16 %v5708, %v5700
        %v6885 = vpack.c.b16 %v5717, %v5709
        %v6886 = vpack.c.b16 %v5718, %v5710
        %v6887 = vpack.c.b16 %v5719, %v5711
        %v6888 = vpack.c.b16 %v5720, %v5712
        %v6889 = vpack.c.b16 %v5721, %v5713
        %v6890 = vpack.c.b16 %v5722, %v5714
        %v6891 = vpack.c.b16 %v5723, %v5715
        %v6892 = vpack.c.b16 %v5724, %v5716
        %v6893 = vpack.c.b16 %v5733, %v5725
        %v6894 = vpack.c.b16 %v5734, %v5726
        %v6895 = vpack.c.b16 %v5735, %v5727
        %v6896 = vpack.c.b16 %v5736, %v5728
        %v6897 = vpack.c.b16 %v5737, %v5729
        %v6898 = vpack.c.b16 %v5738, %v5730
        %v6899 = vpack.c.b16 %v5739, %v5731
        %v6900 = vpack.c.b16 %v5740, %v5732
        %v6901 = vpack.c.b16 %v5749, %v5741
        %v6902 = vpack.c.b16 %v5750, %v5742
        %v6903 = vpack.c.b16 %v5751, %v5743
        %v6904 = vpack.c.b16 %v5752, %v5744
        %v6905 = vpack.c.b16 %v5753, %v5745
        %v6906 = vpack.c.b16 %v5754, %v5746
        %v6907 = vpack.c.b16 %v5755, %v5747
        %v6908 = vpack.c.b16 %v5756, %v5748
        %v6909 = vpack.c.b16 %v5765, %v5757
        %v6910 = vpack.c.b16 %v5766, %v5758
        %v6911 = vpack.c.b16 %v5767, %v5759
        %v6912 = vpack.c.b16 %v5768, %v5760
        %v6913 = vpack.c.b16 %v5769, %v5761
        %v6914 = vpack.c.b16 %v5770, %v5762
        %v6915 = vpack.c.b16 %v5771, %v5763
        %v6916 = vpack.c.b16 %v5772, %v5764
        %v6917 = vpack.c.b16 %v5781, %v5773
        %v6918 = vpack.c.b16 %v5782, %v5774
        %v6919 = vpack.c.b16 %v5783, %v5775
        %v6920 = vpack.c.b16 %v5784, %v5776
        %v6921 = vpack.c.b16 %v5785, %v5777
        %v6922 = vpack.c.b16 %v5786, %v5778
        %v6923 = vpack.c.b16 %v5787, %v5779
        %v6924 = vpack.c.b16 %v5788, %v5780
        %v6925 = vpack.c.b16 %v5797, %v5789
        %v6926 = vpack.c.b16 %v5798, %v5790
        %v6927 = vpack.c.b16 %v5799, %v5791
        %v6928 = vpack.c.b16 %v5800, %v5792
        %v6929 = vpack.c.b16 %v5801, %v5793
        %v6930 = vpack.c.b16 %v5802, %v5794
        %v6931 = vpack.c.b16 %v5803, %v5795
        %v6932 = vpack.c.b16 %v5804, %v5796
        %v6933 = vpack.c.b16 %v5813, %v5805
        %v6934 = vpack.c.b16 %v5814, %v5806
        %v6935 = vpack.c.b16 %v5815, %v5807
        %v6936 = vpack.c.b16 %v5816, %v5808
        %v6937 = vpack.c.b16 %v5817, %v5809
        %v6938 = vpack.c.b16 %v5818, %v5810
        %v6939 = vpack.c.b16 %v5819, %v5811
        %v6940 = vpack.c.b16 %v5820, %v5812
        %v6941 = vpack.c.b16 %v5829, %v5821
        %v6942 = vpack.c.b16 %v5830, %v5822
        %v6943 = vpack.c.b16 %v5831, %v5823
        %v6944 = vpack.c.b16 %v5832, %v5824
        %v6945 = vpack.c.b16 %v5833, %v5825
        %v6946 = vpack.c.b16 %v5834, %v5826
        %v6947 = vpack.c.b16 %v5835, %v5827
        %v6948 = vpack.c.b16 %v5836, %v5828
        %v6949 = vpack.c.b16 %v5845, %v5837
        %v6950 = vpack.c.b16 %v5846, %v5838
        %v6951 = vpack.c.b16 %v5847, %v5839
        %v6952 = vpack.c.b16 %v5848, %v5840
        %v6953 = vpack.c.b16 %v5849, %v5841
        %v6954 = vpack.c.b16 %v5850, %v5842
        %v6955 = vpack.c.b16 %v5851, %v5843
        %v6956 = vpack.c.b16 %v5852, %v5844
        %v6957 = vpack.c.b16 %v5861, %v5853
        %v6958 = vpack.c.b16 %v5862, %v5854
        %v6959 = vpack.c.b16 %v5863, %v5855
        %v6960 = vpack.c.b16 %v5864, %v5856
        %v6961 = vpack.c.b16 %v5865, %v5857
        %v6962 = vpack.c.b16 %v5866, %v5858
        %v6963 = vpack.c.b16 %v5867, %v5859
        %v6964 = vpack.c.b16 %v5868, %v5860
        %v6965 = vpack.c.b16 %v5877, %v5869
        %v6966 = vpack.c.b16 %v5878, %v5870
        %v6967 = vpack.c.b16 %v5879, %v5871
        %v6968 = vpack.c.b16 %v5880, %v5872
        %v6969 = vpack.c.b16 %v5881, %v5873
        %v6970 = vpack.c.b16 %v5882, %v5874
        %v6971 = vpack.c.b16 %v5883, %v5875
        %v6972 = vpack.c.b16 %v5884, %v5876
        %v6973 = vpack.c.b16 %v5893, %v5885
        %v6974 = vpack.c.b16 %v5894, %v5886
        %v6975 = vpack.c.b16 %v5895, %v5887
        %v6976 = vpack.c.b16 %v5896, %v5888
        %v6977 = vpack.c.b16 %v5897, %v5889
        %v6978 = vpack.c.b16 %v5898, %v5890
        %v6979 = vpack.c.b16 %v5899, %v5891
        %v6980 = vpack.c.b16 %v5900, %v5892
        %v6981 = vpack.c.b16 %v5909, %v5901
        %v6982 = vpack.c.b16 %v5910, %v5902
        %v6983 = vpack.c.b16 %v5911, %v5903
        %v6984 = vpack.c.b16 %v5912, %v5904
        %v6985 = vpack.c.b16 %v5913, %v5905
        %v6986 = vpack.c.b16 %v5914, %v5906
        %v6987 = vpack.c.b16 %v5915, %v5907
        %v6988 = vpack.c.b16 %v5916, %v5908
        %v6989 = vpack.c.b16 %v5925, %v5917
        %v6990 = vpack.c.b16 %v5926, %v5918
        %v6991 = vpack.c.b16 %v5927, %v5919
        %v6992 = vpack.c.b16 %v5928, %v5920
        %v6993 = vpack.c.b16 %v5929, %v5921
        %v6994 = vpack.c.b16 %v5930, %v5922
        %v6995 = vpack.c.b16 %v5931, %v5923
        %v6996 = vpack.c.b16 %v5932, %v5924
        %v6997 = vpack.c.b16 %v5941, %v5933
        %v6998 = vpack.c.b16 %v5942, %v5934
        %v6999 = vpack.c.b16 %v5943, %v5935
        %v7000 = vpack.c.b16 %v5944, %v5936
        %v7001 = vpack.c.b16 %v5945, %v5937
        %v7002 = vpack.c.b16 %v5946, %v5938
        %v7003 = vpack.c.b16 %v5947, %v5939
        %v7004 = vpack.c.b16 %v5948, %v5940
        %v7005 = vpack.c.b16 %v5957, %v5949
        %v7006 = vpack.c.b16 %v5958, %v5950
        %v7007 = vpack.c.b16 %v5959, %v5951
        %v7008 = vpack.c.b16 %v5960, %v5952
        %v7009 = vpack.c.b16 %v5961, %v5953
        %v7010 = vpack.c.b16 %v5962, %v5954
        %v7011 = vpack.c.b16 %v5963, %v5955
        %v7012 = vpack.c.b16 %v5964, %v5956
        %v7013 = vpack.c.b16 %v5973, %v5965
        %v7014 = vpack.c.b16 %v5974, %v5966
        %v7015 = vpack.c.b16 %v5975, %v5967
        %v7016 = vpack.c.b16 %v5976, %v5968
        %v7017 = vpack.c.b16 %v5977, %v5969
        %v7018 = vpack.c.b16 %v5978, %v5970
        %v7019 = vpack.c.b16 %v5979, %v5971
        %v7020 = vpack.c.b16 %v5980, %v5972
        %v7021 = vpack.c.b16 %v5989, %v5981
        %v7022 = vpack.c.b16 %v5990, %v5982
        %v7023 = vpack.c.b16 %v5991, %v5983
        %v7024 = vpack.c.b16 %v5992, %v5984
        %v7025 = vpack.c.b16 %v5993, %v5985
        %v7026 = vpack.c.b16 %v5994, %v5986
        %v7027 = vpack.c.b16 %v5995, %v5987
        %v7028 = vpack.c.b16 %v5996, %v5988
        %v7029 = vpack.c.b16 %v6005, %v5997
        %v7030 = vpack.c.b16 %v6006, %v5998
        %v7031 = vpack.c.b16 %v6007, %v5999
        %v7032 = vpack.c.b16 %v6008, %v6000
        %v7033 = vpack.c.b16 %v6009, %v6001
        %v7034 = vpack.c.b16 %v6010, %v6002
        %v7035 = vpack.c.b16 %v6011, %v6003
        %v7036 = vpack.c.b16 %v6012, %v6004
        %8061 = vmatprep.subr.bf16.mxu0 %v6070
        %8062 = vmatpush1.bf16.msra.mxu0 %v6069
        %8063 = vmatprep.subr.bf16.mxu0 %v6062
        %8064 = vmatpush1.bf16.msra.mxu0 %v6061
        %8065 = vmatprep.subr.bf16.mxu0 %v6054
        %8066 = vmatpush1.bf16.msra.mxu0 %v6053
        %8067 = vmatprep.subr.bf16.mxu0 %v6046
        %8068 = vmatpush1.bf16.msra.mxu0 %v6045
        %8069 = vmatprep.subr.bf16.mxu0 %v6038
        %8070 = vmatpush1.bf16.msra.mxu0 %v6037
        %8071 = vmatprep.subr.bf16.mxu0 %v6030
        %8072 = vmatpush1.bf16.msra.mxu0 %v6029
        %8073 = vmatprep.subr.bf16.mxu0 %v6022
        %8074 = vmatpush1.bf16.msra.mxu0 %v6021
        %8075 = vmatprep.subr.bf16.mxu0 %v6014
        %8076 = vmatpush1.bf16.msra.mxu0 %v6013
        %8077 = vmatprep.subr.bf16.mxu0 %v6134
        %8078 = vmatpush2.bf16.msra.mxu0 %v6133
        %8079 = vmatprep.subr.bf16.mxu0 %v6126
        %8080 = vmatpush2.bf16.msra.mxu0 %v6125
        %8081 = vmatprep.subr.bf16.mxu0 %v6118
        %8082 = vmatpush2.bf16.msra.mxu0 %v6117
        %8083 = vmatprep.subr.bf16.mxu0 %v6110
        %8084 = vmatpush2.bf16.msra.mxu0 %v6109
        %8085 = vmatprep.subr.bf16.mxu0 %v6102
        %8086 = vmatpush2.bf16.msra.mxu0 %v6101
        %8087 = vmatprep.subr.bf16.mxu0 %v6094
        %8088 = vmatpush2.bf16.msra.mxu0 %v6093
        %8089 = vmatprep.subr.bf16.mxu0 %v6086
        %8090 = vmatpush2.bf16.msra.mxu0 %v6085
        %8091 = vmatprep.subr.bf16.mxu0 %v6078
        %8092 = vmatpush2.bf16.msra.mxu0 %v6077
        %8093 = vmatprep.mubr.bf16.mxu0 %v1860
        %8094 = vmatmul.mubr.bf16.gmra.mxu0 %v1859
        %v8095 = vpop.f32.mrf.mxu0
        %v8096 = vadd.f32 %v2904, %v8095
        %v8097 = vpop.f32.mrf.mxu0
        %v8098 = vadd.f32 %v2908, %v8097
        %v8099 = vpop.f32.mrf.mxu0
        %v8100 = vpop.f32.mrf.mxu0
        %8101 = vdwg.mxu0
        %8102 = vmatprep.subr.bf16.mxu0 %v6198
        %8103 = vmatpush1.bf16.msra.mxu0 %v6197
        %8104 = vmatprep.subr.bf16.mxu0 %v6190
        %8105 = vmatpush1.bf16.msra.mxu0 %v6189
        %8106 = vmatprep.subr.bf16.mxu0 %v6182
        %8107 = vmatpush1.bf16.msra.mxu0 %v6181
        %8108 = vmatprep.subr.bf16.mxu0 %v6174
        %8109 = vmatpush1.bf16.msra.mxu0 %v6173
        %8110 = vmatprep.subr.bf16.mxu0 %v6166
        %8111 = vmatpush1.bf16.msra.mxu0 %v6165
        %8112 = vmatprep.subr.bf16.mxu0 %v6158
        %8113 = vmatpush1.bf16.msra.mxu0 %v6157
        %8114 = vmatprep.subr.bf16.mxu0 %v6150
        %8115 = vmatpush1.bf16.msra.mxu0 %v6149
        %8116 = vmatprep.subr.bf16.mxu0 %v6142
        %8117 = vmatpush1.bf16.msra.mxu0 %v6141
        %8118 = vmatprep.subr.bf16.mxu0 %v6262
        %8119 = vmatpush2.bf16.msra.mxu0 %v6261
        %8120 = vmatprep.subr.bf16.mxu0 %v6254
        %8121 = vmatpush2.bf16.msra.mxu0 %v6253
        %8122 = vmatprep.subr.bf16.mxu0 %v6246
        %8123 = vmatpush2.bf16.msra.mxu0 %v6245
        %8124 = vmatprep.subr.bf16.mxu0 %v6238
        %8125 = vmatpush2.bf16.msra.mxu0 %v6237
        %8126 = vmatprep.subr.bf16.mxu0 %v6230
        %8127 = vmatpush2.bf16.msra.mxu0 %v6229
        %8128 = vmatprep.subr.bf16.mxu0 %v6222
        %8129 = vmatpush2.bf16.msra.mxu0 %v6221
        %8130 = vmatprep.subr.bf16.mxu0 %v6214
        %8131 = vmatpush2.bf16.msra.mxu0 %v6213
        %8132 = vmatprep.subr.bf16.mxu0 %v6206
        %8133 = vmatpush2.bf16.msra.mxu0 %v6205
        %8134 = vmatprep.mubr.bf16.mxu0 %v1862
        %8135 = vmatmul.mubr.bf16.gmra.mxu0 %v1861
        %v8136 = vpop.f32.mrf.mxu0
        %v8137 = vadd.f32 %v8096, %v8136
        %v8138 = vpop.f32.mrf.mxu0
        %v8139 = vadd.f32 %v8098, %v8138
        %v8140 = vpop.f32.mrf.mxu0
        %v8141 = vpop.f32.mrf.mxu0
        %8142 = vdwg.mxu0
        %8143 = vmatprep.subr.bf16.mxu0 %v6326
        %8144 = vmatpush1.bf16.msra.mxu0 %v6325
        %8145 = vmatprep.subr.bf16.mxu0 %v6318
        %8146 = vmatpush1.bf16.msra.mxu0 %v6317
        %8147 = vmatprep.subr.bf16.mxu0 %v6310
        %8148 = vmatpush1.bf16.msra.mxu0 %v6309
        %8149 = vmatprep.subr.bf16.mxu0 %v6302
        %8150 = vmatpush1.bf16.msra.mxu0 %v6301
        %8151 = vmatprep.subr.bf16.mxu0 %v6294
        %8152 = vmatpush1.bf16.msra.mxu0 %v6293
        %8153 = vmatprep.subr.bf16.mxu0 %v6286
        %8154 = vmatpush1.bf16.msra.mxu0 %v6285
        %8155 = vmatprep.subr.bf16.mxu0 %v6278
        %8156 = vmatpush1.bf16.msra.mxu0 %v6277
        %8157 = vmatprep.subr.bf16.mxu0 %v6270
        %8158 = vmatpush1.bf16.msra.mxu0 %v6269
        %8159 = vmatprep.subr.bf16.mxu0 %v6390
        %8160 = vmatpush2.bf16.msra.mxu0 %v6389
        %8161 = vmatprep.subr.bf16.mxu0 %v6382
        %8162 = vmatpush2.bf16.msra.mxu0 %v6381
        %8163 = vmatprep.subr.bf16.mxu0 %v6374
        %8164 = vmatpush2.bf16.msra.mxu0 %v6373
        %8165 = vmatprep.subr.bf16.mxu0 %v6366
        %8166 = vmatpush2.bf16.msra.mxu0 %v6365
        %8167 = vmatprep.subr.bf16.mxu0 %v6358
        %8168 = vmatpush2.bf16.msra.mxu0 %v6357
        %8169 = vmatprep.subr.bf16.mxu0 %v6350
        %8170 = vmatpush2.bf16.msra.mxu0 %v6349
        %8171 = vmatprep.subr.bf16.mxu0 %v6342
        %8172 = vmatpush2.bf16.msra.mxu0 %v6341
        %8173 = vmatprep.subr.bf16.mxu0 %v6334
        %8174 = vmatpush2.bf16.msra.mxu0 %v6333
        %8175 = vmatprep.mubr.bf16.mxu0 %v1864
        %8176 = vmatmul.mubr.bf16.gmra.mxu0 %v1863
        %v8177 = vpop.f32.mrf.mxu0
        %v8178 = vadd.f32 %v8137, %v8177
        %v8179 = vpop.f32.mrf.mxu0
        %v8180 = vadd.f32 %v8139, %v8179
        %v8181 = vpop.f32.mrf.mxu0
        %v8182 = vpop.f32.mrf.mxu0
        %8183 = vdwg.mxu0
        %8184 = vmatprep.subr.bf16.mxu0 %v6454
        %8185 = vmatpush1.bf16.msra.mxu0 %v6453
        %8186 = vmatprep.subr.bf16.mxu0 %v6446
        %8187 = vmatpush1.bf16.msra.mxu0 %v6445
        %8188 = vmatprep.subr.bf16.mxu0 %v6438
        %8189 = vmatpush1.bf16.msra.mxu0 %v6437
        %8190 = vmatprep.subr.bf16.mxu0 %v6430
        %8191 = vmatpush1.bf16.msra.mxu0 %v6429
        %8192 = vmatprep.subr.bf16.mxu0 %v6422
        %8193 = vmatpush1.bf16.msra.mxu0 %v6421
        %8194 = vmatprep.subr.bf16.mxu0 %v6414
        %8195 = vmatpush1.bf16.msra.mxu0 %v6413
        %8196 = vmatprep.subr.bf16.mxu0 %v6406
        %8197 = vmatpush1.bf16.msra.mxu0 %v6405
        %8198 = vmatprep.subr.bf16.mxu0 %v6398
        %8199 = vmatpush1.bf16.msra.mxu0 %v6397
        %8200 = vmatprep.subr.bf16.mxu0 %v6518
        %8201 = vmatpush2.bf16.msra.mxu0 %v6517
        %8202 = vmatprep.subr.bf16.mxu0 %v6510
        %8203 = vmatpush2.bf16.msra.mxu0 %v6509
        %8204 = vmatprep.subr.bf16.mxu0 %v6502
        %8205 = vmatpush2.bf16.msra.mxu0 %v6501
        %8206 = vmatprep.subr.bf16.mxu0 %v6494
        %8207 = vmatpush2.bf16.msra.mxu0 %v6493
        %8208 = vmatprep.subr.bf16.mxu0 %v6486
        %8209 = vmatpush2.bf16.msra.mxu0 %v6485
        %8210 = vmatprep.subr.bf16.mxu0 %v6478
        %8211 = vmatpush2.bf16.msra.mxu0 %v6477
        %8212 = vmatprep.subr.bf16.mxu0 %v6470
        %8213 = vmatpush2.bf16.msra.mxu0 %v6469
        %8214 = vmatprep.subr.bf16.mxu0 %v6462
        %8215 = vmatpush2.bf16.msra.mxu0 %v6461
        %8216 = vmatprep.mubr.bf16.mxu0 %v1866
        %8217 = vmatmul.mubr.bf16.gmra.mxu0 %v1865
        %v8218 = vpop.f32.mrf.mxu0
        %v8219 = vadd.f32 %v8178, %v8218
        %v8220 = vpop.f32.mrf.mxu0
        %v8221 = vadd.f32 %v8180, %v8220
        %v8222 = vpop.f32.mrf.mxu0
        %v8223 = vpop.f32.mrf.mxu0
        %8224 = vdwg.mxu0
        %8225 = vmatprep.subr.bf16.mxu0 %v6582
        %8226 = vmatpush1.bf16.msra.mxu0 %v6581
        %8227 = vmatprep.subr.bf16.mxu0 %v6574
        %8228 = vmatpush1.bf16.msra.mxu0 %v6573
        %8229 = vmatprep.subr.bf16.mxu0 %v6566
        %8230 = vmatpush1.bf16.msra.mxu0 %v6565
        %8231 = vmatprep.subr.bf16.mxu0 %v6558
        %8232 = vmatpush1.bf16.msra.mxu0 %v6557
        %8233 = vmatprep.subr.bf16.mxu0 %v6550
        %8234 = vmatpush1.bf16.msra.mxu0 %v6549
        %8235 = vmatprep.subr.bf16.mxu0 %v6542
        %8236 = vmatpush1.bf16.msra.mxu0 %v6541
        %8237 = vmatprep.subr.bf16.mxu0 %v6534
        %8238 = vmatpush1.bf16.msra.mxu0 %v6533
        %8239 = vmatprep.subr.bf16.mxu0 %v6526
        %8240 = vmatpush1.bf16.msra.mxu0 %v6525
        %8241 = vmatprep.subr.bf16.mxu0 %v6646
        %8242 = vmatpush2.bf16.msra.mxu0 %v6645
        %8243 = vmatprep.subr.bf16.mxu0 %v6638
        %8244 = vmatpush2.bf16.msra.mxu0 %v6637
        %8245 = vmatprep.subr.bf16.mxu0 %v6630
        %8246 = vmatpush2.bf16.msra.mxu0 %v6629
        %8247 = vmatprep.subr.bf16.mxu0 %v6622
        %8248 = vmatpush2.bf16.msra.mxu0 %v6621
        %8249 = vmatprep.subr.bf16.mxu0 %v6614
        %8250 = vmatpush2.bf16.msra.mxu0 %v6613
        %8251 = vmatprep.subr.bf16.mxu0 %v6606
        %8252 = vmatpush2.bf16.msra.mxu0 %v6605
        %8253 = vmatprep.subr.bf16.mxu0 %v6598
        %8254 = vmatpush2.bf16.msra.mxu0 %v6597
        %8255 = vmatprep.subr.bf16.mxu0 %v6590
        %8256 = vmatpush2.bf16.msra.mxu0 %v6589
        %8257 = vmatprep.mubr.bf16.mxu0 %v1868
        %8258 = vmatmul.mubr.bf16.gmra.mxu0 %v1867
        %v8259 = vpop.f32.mrf.mxu0
        %v8260 = vadd.f32 %v8219, %v8259
        %v8261 = vpop.f32.mrf.mxu0
        %v8262 = vadd.f32 %v8221, %v8261
        %v8263 = vpop.f32.mrf.mxu0
        %v8264 = vpop.f32.mrf.mxu0
        %8265 = vdwg.mxu0
        %8266 = vmatprep.subr.bf16.mxu0 %v6710
        %8267 = vmatpush1.bf16.msra.mxu0 %v6709
        %8268 = vmatprep.subr.bf16.mxu0 %v6702
        %8269 = vmatpush1.bf16.msra.mxu0 %v6701
        %8270 = vmatprep.subr.bf16.mxu0 %v6694
        %8271 = vmatpush1.bf16.msra.mxu0 %v6693
        %8272 = vmatprep.subr.bf16.mxu0 %v6686
        %8273 = vmatpush1.bf16.msra.mxu0 %v6685
        %8274 = vmatprep.subr.bf16.mxu0 %v6678
        %8275 = vmatpush1.bf16.msra.mxu0 %v6677
        %8276 = vmatprep.subr.bf16.mxu0 %v6670
        %8277 = vmatpush1.bf16.msra.mxu0 %v6669
        %8278 = vmatprep.subr.bf16.mxu0 %v6662
        %8279 = vmatpush1.bf16.msra.mxu0 %v6661
        %8280 = vmatprep.subr.bf16.mxu0 %v6654
        %8281 = vmatpush1.bf16.msra.mxu0 %v6653
        %8282 = vmatprep.subr.bf16.mxu0 %v6774
        %8283 = vmatpush2.bf16.msra.mxu0 %v6773
        %8284 = vmatprep.subr.bf16.mxu0 %v6766
        %8285 = vmatpush2.bf16.msra.mxu0 %v6765
        %8286 = vmatprep.subr.bf16.mxu0 %v6758
        %8287 = vmatpush2.bf16.msra.mxu0 %v6757
        %8288 = vmatprep.subr.bf16.mxu0 %v6750
        %8289 = vmatpush2.bf16.msra.mxu0 %v6749
        %8290 = vmatprep.subr.bf16.mxu0 %v6742
        %8291 = vmatpush2.bf16.msra.mxu0 %v6741
        %8292 = vmatprep.subr.bf16.mxu0 %v6734
        %8293 = vmatpush2.bf16.msra.mxu0 %v6733
        %8294 = vmatprep.subr.bf16.mxu0 %v6726
        %8295 = vmatpush2.bf16.msra.mxu0 %v6725
        %8296 = vmatprep.subr.bf16.mxu0 %v6718
        %8297 = vmatpush2.bf16.msra.mxu0 %v6717
        %8298 = vmatprep.mubr.bf16.mxu0 %v1870
        %8299 = vmatmul.mubr.bf16.gmra.mxu0 %v1869
        %v8300 = vpop.f32.mrf.mxu0
        %v8301 = vadd.f32 %v8260, %v8300
        %v8302 = vpop.f32.mrf.mxu0
        %v8303 = vadd.f32 %v8262, %v8302
        %v8304 = vpop.f32.mrf.mxu0
        %v8305 = vpop.f32.mrf.mxu0
        %8306 = vdwg.mxu0
        %8307 = vmatprep.subr.bf16.mxu0 %v6838
        %8308 = vmatpush1.bf16.msra.mxu0 %v6837
        %8309 = vmatprep.subr.bf16.mxu0 %v6830
        %8310 = vmatpush1.bf16.msra.mxu0 %v6829
        %8311 = vmatprep.subr.bf16.mxu0 %v6822
        %8312 = vmatpush1.bf16.msra.mxu0 %v6821
        %8313 = vmatprep.subr.bf16.mxu0 %v6814
        %8314 = vmatpush1.bf16.msra.mxu0 %v6813
        %8315 = vmatprep.subr.bf16.mxu0 %v6806
        %8316 = vmatpush1.bf16.msra.mxu0 %v6805
        %8317 = vmatprep.subr.bf16.mxu0 %v6798
        %8318 = vmatpush1.bf16.msra.mxu0 %v6797
        %8319 = vmatprep.subr.bf16.mxu0 %v6790
        %8320 = vmatpush1.bf16.msra.mxu0 %v6789
        %8321 = vmatprep.subr.bf16.mxu0 %v6782
        %8322 = vmatpush1.bf16.msra.mxu0 %v6781
        %8323 = vmatprep.subr.bf16.mxu0 %v6902
        %8324 = vmatpush2.bf16.msra.mxu0 %v6901
        %8325 = vmatprep.subr.bf16.mxu0 %v6894
        %8326 = vmatpush2.bf16.msra.mxu0 %v6893
        %8327 = vmatprep.subr.bf16.mxu0 %v6886
        %8328 = vmatpush2.bf16.msra.mxu0 %v6885
        %8329 = vmatprep.subr.bf16.mxu0 %v6878
        %8330 = vmatpush2.bf16.msra.mxu0 %v6877
        %8331 = vmatprep.subr.bf16.mxu0 %v6870
        %8332 = vmatpush2.bf16.msra.mxu0 %v6869
        %8333 = vmatprep.subr.bf16.mxu0 %v6862
        %8334 = vmatpush2.bf16.msra.mxu0 %v6861
        %8335 = vmatprep.subr.bf16.mxu0 %v6854
        %8336 = vmatpush2.bf16.msra.mxu0 %v6853
        %8337 = vmatprep.subr.bf16.mxu0 %v6846
        %8338 = vmatpush2.bf16.msra.mxu0 %v6845
        %8339 = vmatprep.mubr.bf16.mxu0 %v1872
        %8340 = vmatmul.mubr.bf16.gmra.mxu0 %v1871
        %v8341 = vpop.f32.mrf.mxu0
        %v8342 = vadd.f32 %v8301, %v8341
        %v8343 = vpop.f32.mrf.mxu0
        %v8344 = vadd.f32 %v8303, %v8343
        %v8345 = vpop.f32.mrf.mxu0
        %v8346 = vpop.f32.mrf.mxu0
        %8347 = vdwg.mxu0
        %8348 = vmatprep.subr.bf16.mxu0 %v6966
        %8349 = vmatpush1.bf16.msra.mxu0 %v6965
        %8350 = vmatprep.subr.bf16.mxu0 %v6958
        %8351 = vmatpush1.bf16.msra.mxu0 %v6957
        %8352 = vmatprep.subr.bf16.mxu0 %v6950
        %8353 = vmatpush1.bf16.msra.mxu0 %v6949
        %8354 = vmatprep.subr.bf16.mxu0 %v6942
        %8355 = vmatpush1.bf16.msra.mxu0 %v6941
        %8356 = vmatprep.subr.bf16.mxu0 %v6934
        %8357 = vmatpush1.bf16.msra.mxu0 %v6933
        %8358 = vmatprep.subr.bf16.mxu0 %v6926
        %8359 = vmatpush1.bf16.msra.mxu0 %v6925
        %8360 = vmatprep.subr.bf16.mxu0 %v6918
        %8361 = vmatpush1.bf16.msra.mxu0 %v6917
        %8362 = vmatprep.subr.bf16.mxu0 %v6910
        %8363 = vmatpush1.bf16.msra.mxu0 %v6909
        %8364 = vmatprep.subr.bf16.mxu0 %v7030
        %8365 = vmatpush2.bf16.msra.mxu0 %v7029
        %8366 = vmatprep.subr.bf16.mxu0 %v7022
        %8367 = vmatpush2.bf16.msra.mxu0 %v7021
        %8368 = vmatprep.subr.bf16.mxu0 %v7014
        %8369 = vmatpush2.bf16.msra.mxu0 %v7013
        %8370 = vmatprep.subr.bf16.mxu0 %v7006
        %8371 = vmatpush2.bf16.msra.mxu0 %v7005
        %8372 = vmatprep.subr.bf16.mxu0 %v6998
        %8373 = vmatpush2.bf16.msra.mxu0 %v6997
        %8374 = vmatprep.subr.bf16.mxu0 %v6990
        %8375 = vmatpush2.bf16.msra.mxu0 %v6989
        %8376 = vmatprep.subr.bf16.mxu0 %v6982
        %8377 = vmatpush2.bf16.msra.mxu0 %v6981
        %8378 = vmatprep.subr.bf16.mxu0 %v6974
        %8379 = vmatpush2.bf16.msra.mxu0 %v6973
        %8380 = vmatprep.mubr.bf16.mxu0 %v1874
        %8381 = vmatmul.mubr.bf16.gmra.mxu0 %v1873
        %v8382 = vpop.f32.mrf.mxu0
        %v8383 = vadd.f32 %v8342, %v8382
        %v8384 = vpop.f32.mrf.mxu0
        %v8385 = vadd.f32 %v8344, %v8384
        %v8386 = vpop.f32.mrf.mxu0
        %v8387 = vpop.f32.mrf.mxu0
        %8388 = vdwg.mxu0
        %8389 = vmatprep.subr.bf16.mxu0 %v6072
        %8390 = vmatpush1.bf16.msra.mxu0 %v6071
        %8391 = vmatprep.subr.bf16.mxu0 %v6064
        %8392 = vmatpush1.bf16.msra.mxu0 %v6063
        %8393 = vmatprep.subr.bf16.mxu0 %v6056
        %8394 = vmatpush1.bf16.msra.mxu0 %v6055
        %8395 = vmatprep.subr.bf16.mxu0 %v6048
        %8396 = vmatpush1.bf16.msra.mxu0 %v6047
        %8397 = vmatprep.subr.bf16.mxu0 %v6040
        %8398 = vmatpush1.bf16.msra.mxu0 %v6039
        %8399 = vmatprep.subr.bf16.mxu0 %v6032
        %8400 = vmatpush1.bf16.msra.mxu0 %v6031
        %8401 = vmatprep.subr.bf16.mxu0 %v6024
        %8402 = vmatpush1.bf16.msra.mxu0 %v6023
        %8403 = vmatprep.subr.bf16.mxu0 %v6016
        %8404 = vmatpush1.bf16.msra.mxu0 %v6015
        %8405 = vmatprep.subr.bf16.mxu0 %v6136
        %8406 = vmatpush2.bf16.msra.mxu0 %v6135
        %8407 = vmatprep.subr.bf16.mxu0 %v6128
        %8408 = vmatpush2.bf16.msra.mxu0 %v6127
        %8409 = vmatprep.subr.bf16.mxu0 %v6120
        %8410 = vmatpush2.bf16.msra.mxu0 %v6119
        %8411 = vmatprep.subr.bf16.mxu0 %v6112
        %8412 = vmatpush2.bf16.msra.mxu0 %v6111
        %8413 = vmatprep.subr.bf16.mxu0 %v6104
        %8414 = vmatpush2.bf16.msra.mxu0 %v6103
        %8415 = vmatprep.subr.bf16.mxu0 %v6096
        %8416 = vmatpush2.bf16.msra.mxu0 %v6095
        %8417 = vmatprep.subr.bf16.mxu0 %v6088
        %8418 = vmatpush2.bf16.msra.mxu0 %v6087
        %8419 = vmatprep.subr.bf16.mxu0 %v6080
        %8420 = vmatpush2.bf16.msra.mxu0 %v6079
        %8421 = vmatprep.mubr.bf16.mxu0 %v1860
        %8422 = vmatmul.mubr.bf16.gmra.mxu0 %v1859
        %v8423 = vpop.f32.mrf.mxu0
        %v8424 = vadd.f32 %v2912, %v8423
        %v8425 = vpop.f32.mrf.mxu0
        %v8426 = vadd.f32 %v2916, %v8425
        %v8427 = vpop.f32.mrf.mxu0
        %v8428 = vpop.f32.mrf.mxu0
        %8429 = vdwg.mxu0
        %8430 = vmatprep.subr.bf16.mxu0 %v6200
        %8431 = vmatpush1.bf16.msra.mxu0 %v6199
        %8432 = vmatprep.subr.bf16.mxu0 %v6192
        %8433 = vmatpush1.bf16.msra.mxu0 %v6191
        %8434 = vmatprep.subr.bf16.mxu0 %v6184
        %8435 = vmatpush1.bf16.msra.mxu0 %v6183
        %8436 = vmatprep.subr.bf16.mxu0 %v6176
        %8437 = vmatpush1.bf16.msra.mxu0 %v6175
        %8438 = vmatprep.subr.bf16.mxu0 %v6168
        %8439 = vmatpush1.bf16.msra.mxu0 %v6167
        %8440 = vmatprep.subr.bf16.mxu0 %v6160
        %8441 = vmatpush1.bf16.msra.mxu0 %v6159
        %8442 = vmatprep.subr.bf16.mxu0 %v6152
        %8443 = vmatpush1.bf16.msra.mxu0 %v6151
        %8444 = vmatprep.subr.bf16.mxu0 %v6144
        %8445 = vmatpush1.bf16.msra.mxu0 %v6143
        %8446 = vmatprep.subr.bf16.mxu0 %v6264
        %8447 = vmatpush2.bf16.msra.mxu0 %v6263
        %8448 = vmatprep.subr.bf16.mxu0 %v6256
        %8449 = vmatpush2.bf16.msra.mxu0 %v6255
        %8450 = vmatprep.subr.bf16.mxu0 %v6248
        %8451 = vmatpush2.bf16.msra.mxu0 %v6247
        %8452 = vmatprep.subr.bf16.mxu0 %v6240
        %8453 = vmatpush2.bf16.msra.mxu0 %v6239
        %8454 = vmatprep.subr.bf16.mxu0 %v6232
        %8455 = vmatpush2.bf16.msra.mxu0 %v6231
        %8456 = vmatprep.subr.bf16.mxu0 %v6224
        %8457 = vmatpush2.bf16.msra.mxu0 %v6223
        %8458 = vmatprep.subr.bf16.mxu0 %v6216
        %8459 = vmatpush2.bf16.msra.mxu0 %v6215
        %8460 = vmatprep.subr.bf16.mxu0 %v6208
        %8461 = vmatpush2.bf16.msra.mxu0 %v6207
        %8462 = vmatprep.mubr.bf16.mxu0 %v1862
        %8463 = vmatmul.mubr.bf16.gmra.mxu0 %v1861
        %v8464 = vpop.f32.mrf.mxu0
        %v8465 = vadd.f32 %v8424, %v8464
        %v8466 = vpop.f32.mrf.mxu0
        %v8467 = vadd.f32 %v8426, %v8466
        %v8468 = vpop.f32.mrf.mxu0
        %v8469 = vpop.f32.mrf.mxu0
        %8470 = vdwg.mxu0
        %8471 = vmatprep.subr.bf16.mxu0 %v6328
        %8472 = vmatpush1.bf16.msra.mxu0 %v6327
        %8473 = vmatprep.subr.bf16.mxu0 %v6320
        %8474 = vmatpush1.bf16.msra.mxu0 %v6319
        %8475 = vmatprep.subr.bf16.mxu0 %v6312
        %8476 = vmatpush1.bf16.msra.mxu0 %v6311
        %8477 = vmatprep.subr.bf16.mxu0 %v6304
        %8478 = vmatpush1.bf16.msra.mxu0 %v6303
        %8479 = vmatprep.subr.bf16.mxu0 %v6296
        %8480 = vmatpush1.bf16.msra.mxu0 %v6295
        %8481 = vmatprep.subr.bf16.mxu0 %v6288
        %8482 = vmatpush1.bf16.msra.mxu0 %v6287
        %8483 = vmatprep.subr.bf16.mxu0 %v6280
        %8484 = vmatpush1.bf16.msra.mxu0 %v6279
        %8485 = vmatprep.subr.bf16.mxu0 %v6272
        %8486 = vmatpush1.bf16.msra.mxu0 %v6271
        %8487 = vmatprep.subr.bf16.mxu0 %v6392
        %8488 = vmatpush2.bf16.msra.mxu0 %v6391
        %8489 = vmatprep.subr.bf16.mxu0 %v6384
        %8490 = vmatpush2.bf16.msra.mxu0 %v6383
        %8491 = vmatprep.subr.bf16.mxu0 %v6376
        %8492 = vmatpush2.bf16.msra.mxu0 %v6375
        %8493 = vmatprep.subr.bf16.mxu0 %v6368
        %8494 = vmatpush2.bf16.msra.mxu0 %v6367
        %8495 = vmatprep.subr.bf16.mxu0 %v6360
        %8496 = vmatpush2.bf16.msra.mxu0 %v6359
        %8497 = vmatprep.subr.bf16.mxu0 %v6352
        %8498 = vmatpush2.bf16.msra.mxu0 %v6351
        %8499 = vmatprep.subr.bf16.mxu0 %v6344
        %8500 = vmatpush2.bf16.msra.mxu0 %v6343
        %8501 = vmatprep.subr.bf16.mxu0 %v6336
        %8502 = vmatpush2.bf16.msra.mxu0 %v6335
        %8503 = vmatprep.mubr.bf16.mxu0 %v1864
        %8504 = vmatmul.mubr.bf16.gmra.mxu0 %v1863
        %v8505 = vpop.f32.mrf.mxu0
        %v8506 = vadd.f32 %v8465, %v8505
        %v8507 = vpop.f32.mrf.mxu0
        %v8508 = vadd.f32 %v8467, %v8507
        %v8509 = vpop.f32.mrf.mxu0
        %v8510 = vpop.f32.mrf.mxu0
        %8511 = vdwg.mxu0
        %8512 = vmatprep.subr.bf16.mxu0 %v6456
        %8513 = vmatpush1.bf16.msra.mxu0 %v6455
        %8514 = vmatprep.subr.bf16.mxu0 %v6448
        %8515 = vmatpush1.bf16.msra.mxu0 %v6447
        %8516 = vmatprep.subr.bf16.mxu0 %v6440
        %8517 = vmatpush1.bf16.msra.mxu0 %v6439
        %8518 = vmatprep.subr.bf16.mxu0 %v6432
        %8519 = vmatpush1.bf16.msra.mxu0 %v6431
        %8520 = vmatprep.subr.bf16.mxu0 %v6424
        %8521 = vmatpush1.bf16.msra.mxu0 %v6423
        %8522 = vmatprep.subr.bf16.mxu0 %v6416
        %8523 = vmatpush1.bf16.msra.mxu0 %v6415
        %8524 = vmatprep.subr.bf16.mxu0 %v6408
        %8525 = vmatpush1.bf16.msra.mxu0 %v6407
        %8526 = vmatprep.subr.bf16.mxu0 %v6400
        %8527 = vmatpush1.bf16.msra.mxu0 %v6399
        %8528 = vmatprep.subr.bf16.mxu0 %v6520
        %8529 = vmatpush2.bf16.msra.mxu0 %v6519
        %8530 = vmatprep.subr.bf16.mxu0 %v6512
        %8531 = vmatpush2.bf16.msra.mxu0 %v6511
        %8532 = vmatprep.subr.bf16.mxu0 %v6504
        %8533 = vmatpush2.bf16.msra.mxu0 %v6503
        %8534 = vmatprep.subr.bf16.mxu0 %v6496
        %8535 = vmatpush2.bf16.msra.mxu0 %v6495
        %8536 = vmatprep.subr.bf16.mxu0 %v6488
        %8537 = vmatpush2.bf16.msra.mxu0 %v6487
        %8538 = vmatprep.subr.bf16.mxu0 %v6480
        %8539 = vmatpush2.bf16.msra.mxu0 %v6479
        %8540 = vmatprep.subr.bf16.mxu0 %v6472
        %8541 = vmatpush2.bf16.msra.mxu0 %v6471
        %8542 = vmatprep.subr.bf16.mxu0 %v6464
        %8543 = vmatpush2.bf16.msra.mxu0 %v6463
        %8544 = vmatprep.mubr.bf16.mxu0 %v1866
        %8545 = vmatmul.mubr.bf16.gmra.mxu0 %v1865
        %v8546 = vpop.f32.mrf.mxu0
        %v8547 = vadd.f32 %v8506, %v8546
        %v8548 = vpop.f32.mrf.mxu0
        %v8549 = vadd.f32 %v8508, %v8548
        %v8550 = vpop.f32.mrf.mxu0
        %v8551 = vpop.f32.mrf.mxu0
        %8552 = vdwg.mxu0
        %8553 = vmatprep.subr.bf16.mxu0 %v6584
        %8554 = vmatpush1.bf16.msra.mxu0 %v6583
        %8555 = vmatprep.subr.bf16.mxu0 %v6576
        %8556 = vmatpush1.bf16.msra.mxu0 %v6575
        %8557 = vmatprep.subr.bf16.mxu0 %v6568
        %8558 = vmatpush1.bf16.msra.mxu0 %v6567
        %8559 = vmatprep.subr.bf16.mxu0 %v6560
        %8560 = vmatpush1.bf16.msra.mxu0 %v6559
        %8561 = vmatprep.subr.bf16.mxu0 %v6552
        %8562 = vmatpush1.bf16.msra.mxu0 %v6551
        %8563 = vmatprep.subr.bf16.mxu0 %v6544
        %8564 = vmatpush1.bf16.msra.mxu0 %v6543
        %8565 = vmatprep.subr.bf16.mxu0 %v6536
        %8566 = vmatpush1.bf16.msra.mxu0 %v6535
        %8567 = vmatprep.subr.bf16.mxu0 %v6528
        %8568 = vmatpush1.bf16.msra.mxu0 %v6527
        %8569 = vmatprep.subr.bf16.mxu0 %v6648
        %8570 = vmatpush2.bf16.msra.mxu0 %v6647
        %8571 = vmatprep.subr.bf16.mxu0 %v6640
        %8572 = vmatpush2.bf16.msra.mxu0 %v6639
        %8573 = vmatprep.subr.bf16.mxu0 %v6632
        %8574 = vmatpush2.bf16.msra.mxu0 %v6631
        %8575 = vmatprep.subr.bf16.mxu0 %v6624
        %8576 = vmatpush2.bf16.msra.mxu0 %v6623
        %8577 = vmatprep.subr.bf16.mxu0 %v6616
        %8578 = vmatpush2.bf16.msra.mxu0 %v6615
        %8579 = vmatprep.subr.bf16.mxu0 %v6608
        %8580 = vmatpush2.bf16.msra.mxu0 %v6607
        %8581 = vmatprep.subr.bf16.mxu0 %v6600
        %8582 = vmatpush2.bf16.msra.mxu0 %v6599
        %8583 = vmatprep.subr.bf16.mxu0 %v6592
        %8584 = vmatpush2.bf16.msra.mxu0 %v6591
        %8585 = vmatprep.mubr.bf16.mxu0 %v1868
        %8586 = vmatmul.mubr.bf16.gmra.mxu0 %v1867
        %v8587 = vpop.f32.mrf.mxu0
        %v8588 = vadd.f32 %v8547, %v8587
        %v8589 = vpop.f32.mrf.mxu0
        %v8590 = vadd.f32 %v8549, %v8589
        %v8591 = vpop.f32.mrf.mxu0
        %v8592 = vpop.f32.mrf.mxu0
        %8593 = vdwg.mxu0
        %8594 = vmatprep.subr.bf16.mxu0 %v6712
        %8595 = vmatpush1.bf16.msra.mxu0 %v6711
        %8596 = vmatprep.subr.bf16.mxu0 %v6704
        %8597 = vmatpush1.bf16.msra.mxu0 %v6703
        %8598 = vmatprep.subr.bf16.mxu0 %v6696
        %8599 = vmatpush1.bf16.msra.mxu0 %v6695
        %8600 = vmatprep.subr.bf16.mxu0 %v6688
        %8601 = vmatpush1.bf16.msra.mxu0 %v6687
        %8602 = vmatprep.subr.bf16.mxu0 %v6680
        %8603 = vmatpush1.bf16.msra.mxu0 %v6679
        %8604 = vmatprep.subr.bf16.mxu0 %v6672
        %8605 = vmatpush1.bf16.msra.mxu0 %v6671
        %8606 = vmatprep.subr.bf16.mxu0 %v6664
        %8607 = vmatpush1.bf16.msra.mxu0 %v6663
        %8608 = vmatprep.subr.bf16.mxu0 %v6656
        %8609 = vmatpush1.bf16.msra.mxu0 %v6655
        %8610 = vmatprep.subr.bf16.mxu0 %v6776
        %8611 = vmatpush2.bf16.msra.mxu0 %v6775
        %8612 = vmatprep.subr.bf16.mxu0 %v6768
        %8613 = vmatpush2.bf16.msra.mxu0 %v6767
        %8614 = vmatprep.subr.bf16.mxu0 %v6760
        %8615 = vmatpush2.bf16.msra.mxu0 %v6759
        %8616 = vmatprep.subr.bf16.mxu0 %v6752
        %8617 = vmatpush2.bf16.msra.mxu0 %v6751
        %8618 = vmatprep.subr.bf16.mxu0 %v6744
        %8619 = vmatpush2.bf16.msra.mxu0 %v6743
        %8620 = vmatprep.subr.bf16.mxu0 %v6736
        %8621 = vmatpush2.bf16.msra.mxu0 %v6735
        %8622 = vmatprep.subr.bf16.mxu0 %v6728
        %8623 = vmatpush2.bf16.msra.mxu0 %v6727
        %8624 = vmatprep.subr.bf16.mxu0 %v6720
        %8625 = vmatpush2.bf16.msra.mxu0 %v6719
        %8626 = vmatprep.mubr.bf16.mxu0 %v1870
        %8627 = vmatmul.mubr.bf16.gmra.mxu0 %v1869
        %v8628 = vpop.f32.mrf.mxu0
        %v8629 = vadd.f32 %v8588, %v8628
        %v8630 = vpop.f32.mrf.mxu0
        %v8631 = vadd.f32 %v8590, %v8630
        %v8632 = vpop.f32.mrf.mxu0
        %v8633 = vpop.f32.mrf.mxu0
        %8634 = vdwg.mxu0
        %8635 = vmatprep.subr.bf16.mxu0 %v6840
        %8636 = vmatpush1.bf16.msra.mxu0 %v6839
        %8637 = vmatprep.subr.bf16.mxu0 %v6832
        %8638 = vmatpush1.bf16.msra.mxu0 %v6831
        %8639 = vmatprep.subr.bf16.mxu0 %v6824
        %8640 = vmatpush1.bf16.msra.mxu0 %v6823
        %8641 = vmatprep.subr.bf16.mxu0 %v6816
        %8642 = vmatpush1.bf16.msra.mxu0 %v6815
        %8643 = vmatprep.subr.bf16.mxu0 %v6808
        %8644 = vmatpush1.bf16.msra.mxu0 %v6807
        %8645 = vmatprep.subr.bf16.mxu0 %v6800
        %8646 = vmatpush1.bf16.msra.mxu0 %v6799
        %8647 = vmatprep.subr.bf16.mxu0 %v6792
        %8648 = vmatpush1.bf16.msra.mxu0 %v6791
        %8649 = vmatprep.subr.bf16.mxu0 %v6784
        %8650 = vmatpush1.bf16.msra.mxu0 %v6783
        %8651 = vmatprep.subr.bf16.mxu0 %v6904
        %8652 = vmatpush2.bf16.msra.mxu0 %v6903
        %8653 = vmatprep.subr.bf16.mxu0 %v6896
        %8654 = vmatpush2.bf16.msra.mxu0 %v6895
        %8655 = vmatprep.subr.bf16.mxu0 %v6888
        %8656 = vmatpush2.bf16.msra.mxu0 %v6887
        %8657 = vmatprep.subr.bf16.mxu0 %v6880
        %8658 = vmatpush2.bf16.msra.mxu0 %v6879
        %8659 = vmatprep.subr.bf16.mxu0 %v6872
        %8660 = vmatpush2.bf16.msra.mxu0 %v6871
        %8661 = vmatprep.subr.bf16.mxu0 %v6864
        %8662 = vmatpush2.bf16.msra.mxu0 %v6863
        %8663 = vmatprep.subr.bf16.mxu0 %v6856
        %8664 = vmatpush2.bf16.msra.mxu0 %v6855
        %8665 = vmatprep.subr.bf16.mxu0 %v6848
        %8666 = vmatpush2.bf16.msra.mxu0 %v6847
        %8667 = vmatprep.mubr.bf16.mxu0 %v1872
        %8668 = vmatmul.mubr.bf16.gmra.mxu0 %v1871
        %v8669 = vpop.f32.mrf.mxu0
        %v8670 = vadd.f32 %v8629, %v8669
        %v8671 = vpop.f32.mrf.mxu0
        %v8672 = vadd.f32 %v8631, %v8671
        %v8673 = vpop.f32.mrf.mxu0
        %v8674 = vpop.f32.mrf.mxu0
        %8675 = vdwg.mxu0
        %8676 = vmatprep.subr.bf16.mxu0 %v6968
        %8677 = vmatpush1.bf16.msra.mxu0 %v6967
        %8678 = vmatprep.subr.bf16.mxu0 %v6960
        %8679 = vmatpush1.bf16.msra.mxu0 %v6959
        %8680 = vmatprep.subr.bf16.mxu0 %v6952
        %8681 = vmatpush1.bf16.msra.mxu0 %v6951
        %8682 = vmatprep.subr.bf16.mxu0 %v6944
        %8683 = vmatpush1.bf16.msra.mxu0 %v6943
        %8684 = vmatprep.subr.bf16.mxu0 %v6936
        %8685 = vmatpush1.bf16.msra.mxu0 %v6935
        %8686 = vmatprep.subr.bf16.mxu0 %v6928
        %8687 = vmatpush1.bf16.msra.mxu0 %v6927
        %8688 = vmatprep.subr.bf16.mxu0 %v6920
        %8689 = vmatpush1.bf16.msra.mxu0 %v6919
        %8690 = vmatprep.subr.bf16.mxu0 %v6912
        %8691 = vmatpush1.bf16.msra.mxu0 %v6911
        %8692 = vmatprep.subr.bf16.mxu0 %v7032
        %8693 = vmatpush2.bf16.msra.mxu0 %v7031
        %8694 = vmatprep.subr.bf16.mxu0 %v7024
        %8695 = vmatpush2.bf16.msra.mxu0 %v7023
        %8696 = vmatprep.subr.bf16.mxu0 %v7016
        %8697 = vmatpush2.bf16.msra.mxu0 %v7015
        %8698 = vmatprep.subr.bf16.mxu0 %v7008
        %8699 = vmatpush2.bf16.msra.mxu0 %v7007
        %8700 = vmatprep.subr.bf16.mxu0 %v7000
        %8701 = vmatpush2.bf16.msra.mxu0 %v6999
        %8702 = vmatprep.subr.bf16.mxu0 %v6992
        %8703 = vmatpush2.bf16.msra.mxu0 %v6991
        %8704 = vmatprep.subr.bf16.mxu0 %v6984
        %8705 = vmatpush2.bf16.msra.mxu0 %v6983
        %8706 = vmatprep.subr.bf16.mxu0 %v6976
        %8707 = vmatpush2.bf16.msra.mxu0 %v6975
        %8708 = vmatprep.mubr.bf16.mxu0 %v1874
        %8709 = vmatmul.mubr.bf16.gmra.mxu0 %v1873
        %v8710 = vpop.f32.mrf.mxu0
        %v8711 = vadd.f32 %v8670, %v8710
        %v8712 = vpop.f32.mrf.mxu0
        %v8713 = vadd.f32 %v8672, %v8712
        %v8714 = vpop.f32.mrf.mxu0
        %v8715 = vpop.f32.mrf.mxu0
        %8716 = vdwg.mxu0
        %8717 = vmatprep.subr.bf16.mxu0 %v6074
        %8718 = vmatpush1.bf16.msra.mxu0 %v6073
        %8719 = vmatprep.subr.bf16.mxu0 %v6066
        %8720 = vmatpush1.bf16.msra.mxu0 %v6065
        %8721 = vmatprep.subr.bf16.mxu0 %v6058
        %8722 = vmatpush1.bf16.msra.mxu0 %v6057
        %8723 = vmatprep.subr.bf16.mxu0 %v6050
        %8724 = vmatpush1.bf16.msra.mxu0 %v6049
        %8725 = vmatprep.subr.bf16.mxu0 %v6042
        %8726 = vmatpush1.bf16.msra.mxu0 %v6041
        %8727 = vmatprep.subr.bf16.mxu0 %v6034
        %8728 = vmatpush1.bf16.msra.mxu0 %v6033
        %8729 = vmatprep.subr.bf16.mxu0 %v6026
        %8730 = vmatpush1.bf16.msra.mxu0 %v6025
        %8731 = vmatprep.subr.bf16.mxu0 %v6018
        %8732 = vmatpush1.bf16.msra.mxu0 %v6017
        %8733 = vmatprep.subr.bf16.mxu0 %v6138
        %8734 = vmatpush2.bf16.msra.mxu0 %v6137
        %8735 = vmatprep.subr.bf16.mxu0 %v6130
        %8736 = vmatpush2.bf16.msra.mxu0 %v6129
        %8737 = vmatprep.subr.bf16.mxu0 %v6122
        %8738 = vmatpush2.bf16.msra.mxu0 %v6121
        %8739 = vmatprep.subr.bf16.mxu0 %v6114
        %8740 = vmatpush2.bf16.msra.mxu0 %v6113
        %8741 = vmatprep.subr.bf16.mxu0 %v6106
        %8742 = vmatpush2.bf16.msra.mxu0 %v6105
        %8743 = vmatprep.subr.bf16.mxu0 %v6098
        %8744 = vmatpush2.bf16.msra.mxu0 %v6097
        %8745 = vmatprep.subr.bf16.mxu0 %v6090
        %8746 = vmatpush2.bf16.msra.mxu0 %v6089
        %8747 = vmatprep.subr.bf16.mxu0 %v6082
        %8748 = vmatpush2.bf16.msra.mxu0 %v6081
        %8749 = vmatprep.mubr.bf16.mxu0 %v1860
        %8750 = vmatmul.mubr.bf16.gmra.mxu0 %v1859
        %v8751 = vpop.f32.mrf.mxu0
        %v8752 = vadd.f32 %v2920, %v8751
        %v8753 = vpop.f32.mrf.mxu0
        %v8754 = vadd.f32 %v2924, %v8753
        %v8755 = vpop.f32.mrf.mxu0
        %v8756 = vpop.f32.mrf.mxu0
        %8757 = vdwg.mxu0
        %8758 = vmatprep.subr.bf16.mxu0 %v6202
        %8759 = vmatpush1.bf16.msra.mxu0 %v6201
        %8760 = vmatprep.subr.bf16.mxu0 %v6194
        %8761 = vmatpush1.bf16.msra.mxu0 %v6193
        %8762 = vmatprep.subr.bf16.mxu0 %v6186
        %8763 = vmatpush1.bf16.msra.mxu0 %v6185
        %8764 = vmatprep.subr.bf16.mxu0 %v6178
        %8765 = vmatpush1.bf16.msra.mxu0 %v6177
        %8766 = vmatprep.subr.bf16.mxu0 %v6170
        %8767 = vmatpush1.bf16.msra.mxu0 %v6169
        %8768 = vmatprep.subr.bf16.mxu0 %v6162
        %8769 = vmatpush1.bf16.msra.mxu0 %v6161
        %8770 = vmatprep.subr.bf16.mxu0 %v6154
        %8771 = vmatpush1.bf16.msra.mxu0 %v6153
        %8772 = vmatprep.subr.bf16.mxu0 %v6146
        %8773 = vmatpush1.bf16.msra.mxu0 %v6145
        %8774 = vmatprep.subr.bf16.mxu0 %v6266
        %8775 = vmatpush2.bf16.msra.mxu0 %v6265
        %8776 = vmatprep.subr.bf16.mxu0 %v6258
        %8777 = vmatpush2.bf16.msra.mxu0 %v6257
        %8778 = vmatprep.subr.bf16.mxu0 %v6250
        %8779 = vmatpush2.bf16.msra.mxu0 %v6249
        %8780 = vmatprep.subr.bf16.mxu0 %v6242
        %8781 = vmatpush2.bf16.msra.mxu0 %v6241
        %8782 = vmatprep.subr.bf16.mxu0 %v6234
        %8783 = vmatpush2.bf16.msra.mxu0 %v6233
        %8784 = vmatprep.subr.bf16.mxu0 %v6226
        %8785 = vmatpush2.bf16.msra.mxu0 %v6225
        %8786 = vmatprep.subr.bf16.mxu0 %v6218
        %8787 = vmatpush2.bf16.msra.mxu0 %v6217
        %8788 = vmatprep.subr.bf16.mxu0 %v6210
        %8789 = vmatpush2.bf16.msra.mxu0 %v6209
        %8790 = vmatprep.mubr.bf16.mxu0 %v1862
        %8791 = vmatmul.mubr.bf16.gmra.mxu0 %v1861
        %v8792 = vpop.f32.mrf.mxu0
        %v8793 = vadd.f32 %v8752, %v8792
        %v8794 = vpop.f32.mrf.mxu0
        %v8795 = vadd.f32 %v8754, %v8794
        %v8796 = vpop.f32.mrf.mxu0
        %v8797 = vpop.f32.mrf.mxu0
        %8798 = vdwg.mxu0
        %8799 = vmatprep.subr.bf16.mxu0 %v6330
        %8800 = vmatpush1.bf16.msra.mxu0 %v6329
        %8801 = vmatprep.subr.bf16.mxu0 %v6322
        %8802 = vmatpush1.bf16.msra.mxu0 %v6321
        %8803 = vmatprep.subr.bf16.mxu0 %v6314
        %8804 = vmatpush1.bf16.msra.mxu0 %v6313
        %8805 = vmatprep.subr.bf16.mxu0 %v6306
        %8806 = vmatpush1.bf16.msra.mxu0 %v6305
        %8807 = vmatprep.subr.bf16.mxu0 %v6298
        %8808 = vmatpush1.bf16.msra.mxu0 %v6297
        %8809 = vmatprep.subr.bf16.mxu0 %v6290
        %8810 = vmatpush1.bf16.msra.mxu0 %v6289
        %8811 = vmatprep.subr.bf16.mxu0 %v6282
        %8812 = vmatpush1.bf16.msra.mxu0 %v6281
        %8813 = vmatprep.subr.bf16.mxu0 %v6274
        %8814 = vmatpush1.bf16.msra.mxu0 %v6273
        %8815 = vmatprep.subr.bf16.mxu0 %v6394
        %8816 = vmatpush2.bf16.msra.mxu0 %v6393
        %8817 = vmatprep.subr.bf16.mxu0 %v6386
        %8818 = vmatpush2.bf16.msra.mxu0 %v6385
        %8819 = vmatprep.subr.bf16.mxu0 %v6378
        %8820 = vmatpush2.bf16.msra.mxu0 %v6377
        %8821 = vmatprep.subr.bf16.mxu0 %v6370
        %8822 = vmatpush2.bf16.msra.mxu0 %v6369
        %8823 = vmatprep.subr.bf16.mxu0 %v6362
        %8824 = vmatpush2.bf16.msra.mxu0 %v6361
        %8825 = vmatprep.subr.bf16.mxu0 %v6354
        %8826 = vmatpush2.bf16.msra.mxu0 %v6353
        %8827 = vmatprep.subr.bf16.mxu0 %v6346
        %8828 = vmatpush2.bf16.msra.mxu0 %v6345
        %8829 = vmatprep.subr.bf16.mxu0 %v6338
        %8830 = vmatpush2.bf16.msra.mxu0 %v6337
        %8831 = vmatprep.mubr.bf16.mxu0 %v1864
        %8832 = vmatmul.mubr.bf16.gmra.mxu0 %v1863
        %v8833 = vpop.f32.mrf.mxu0
        %v8834 = vadd.f32 %v8793, %v8833
        %v8835 = vpop.f32.mrf.mxu0
        %v8836 = vadd.f32 %v8795, %v8835
        %v8837 = vpop.f32.mrf.mxu0
        %v8838 = vpop.f32.mrf.mxu0
        %8839 = vdwg.mxu0
        %8840 = vmatprep.subr.bf16.mxu0 %v6458
        %8841 = vmatpush1.bf16.msra.mxu0 %v6457
        %8842 = vmatprep.subr.bf16.mxu0 %v6450
        %8843 = vmatpush1.bf16.msra.mxu0 %v6449
        %8844 = vmatprep.subr.bf16.mxu0 %v6442
        %8845 = vmatpush1.bf16.msra.mxu0 %v6441
        %8846 = vmatprep.subr.bf16.mxu0 %v6434
        %8847 = vmatpush1.bf16.msra.mxu0 %v6433
        %8848 = vmatprep.subr.bf16.mxu0 %v6426
        %8849 = vmatpush1.bf16.msra.mxu0 %v6425
        %8850 = vmatprep.subr.bf16.mxu0 %v6418
        %8851 = vmatpush1.bf16.msra.mxu0 %v6417
        %8852 = vmatprep.subr.bf16.mxu0 %v6410
        %8853 = vmatpush1.bf16.msra.mxu0 %v6409
        %8854 = vmatprep.subr.bf16.mxu0 %v6402
        %8855 = vmatpush1.bf16.msra.mxu0 %v6401
        %8856 = vmatprep.subr.bf16.mxu0 %v6522
        %8857 = vmatpush2.bf16.msra.mxu0 %v6521
        %8858 = vmatprep.subr.bf16.mxu0 %v6514
        %8859 = vmatpush2.bf16.msra.mxu0 %v6513
        %8860 = vmatprep.subr.bf16.mxu0 %v6506
        %8861 = vmatpush2.bf16.msra.mxu0 %v6505
        %8862 = vmatprep.subr.bf16.mxu0 %v6498
        %8863 = vmatpush2.bf16.msra.mxu0 %v6497
        %8864 = vmatprep.subr.bf16.mxu0 %v6490
        %8865 = vmatpush2.bf16.msra.mxu0 %v6489
        %8866 = vmatprep.subr.bf16.mxu0 %v6482
        %8867 = vmatpush2.bf16.msra.mxu0 %v6481
        %8868 = vmatprep.subr.bf16.mxu0 %v6474
        %8869 = vmatpush2.bf16.msra.mxu0 %v6473
        %8870 = vmatprep.subr.bf16.mxu0 %v6466
        %8871 = vmatpush2.bf16.msra.mxu0 %v6465
        %8872 = vmatprep.mubr.bf16.mxu0 %v1866
        %8873 = vmatmul.mubr.bf16.gmra.mxu0 %v1865
        %v8874 = vpop.f32.mrf.mxu0
        %v8875 = vadd.f32 %v8834, %v8874
        %v8876 = vpop.f32.mrf.mxu0
        %v8877 = vadd.f32 %v8836, %v8876
        %v8878 = vpop.f32.mrf.mxu0
        %v8879 = vpop.f32.mrf.mxu0
        %8880 = vdwg.mxu0
        %8881 = vmatprep.subr.bf16.mxu0 %v6586
        %8882 = vmatpush1.bf16.msra.mxu0 %v6585
        %8883 = vmatprep.subr.bf16.mxu0 %v6578
        %8884 = vmatpush1.bf16.msra.mxu0 %v6577
        %8885 = vmatprep.subr.bf16.mxu0 %v6570
        %8886 = vmatpush1.bf16.msra.mxu0 %v6569
        %8887 = vmatprep.subr.bf16.mxu0 %v6562
        %8888 = vmatpush1.bf16.msra.mxu0 %v6561
        %8889 = vmatprep.subr.bf16.mxu0 %v6554
        %8890 = vmatpush1.bf16.msra.mxu0 %v6553
        %8891 = vmatprep.subr.bf16.mxu0 %v6546
        %8892 = vmatpush1.bf16.msra.mxu0 %v6545
        %8893 = vmatprep.subr.bf16.mxu0 %v6538
        %8894 = vmatpush1.bf16.msra.mxu0 %v6537
        %8895 = vmatprep.subr.bf16.mxu0 %v6530
        %8896 = vmatpush1.bf16.msra.mxu0 %v6529
        %8897 = vmatprep.subr.bf16.mxu0 %v6650
        %8898 = vmatpush2.bf16.msra.mxu0 %v6649
        %8899 = vmatprep.subr.bf16.mxu0 %v6642
        %8900 = vmatpush2.bf16.msra.mxu0 %v6641
        %8901 = vmatprep.subr.bf16.mxu0 %v6634
        %8902 = vmatpush2.bf16.msra.mxu0 %v6633
        %8903 = vmatprep.subr.bf16.mxu0 %v6626
        %8904 = vmatpush2.bf16.msra.mxu0 %v6625
        %8905 = vmatprep.subr.bf16.mxu0 %v6618
        %8906 = vmatpush2.bf16.msra.mxu0 %v6617
        %8907 = vmatprep.subr.bf16.mxu0 %v6610
        %8908 = vmatpush2.bf16.msra.mxu0 %v6609
        %8909 = vmatprep.subr.bf16.mxu0 %v6602
        %8910 = vmatpush2.bf16.msra.mxu0 %v6601
        %8911 = vmatprep.subr.bf16.mxu0 %v6594
        %8912 = vmatpush2.bf16.msra.mxu0 %v6593
        %8913 = vmatprep.mubr.bf16.mxu0 %v1868
        %8914 = vmatmul.mubr.bf16.gmra.mxu0 %v1867
        %v8915 = vpop.f32.mrf.mxu0
        %v8916 = vadd.f32 %v8875, %v8915
        %v8917 = vpop.f32.mrf.mxu0
        %v8918 = vadd.f32 %v8877, %v8917
        %v8919 = vpop.f32.mrf.mxu0
        %v8920 = vpop.f32.mrf.mxu0
        %8921 = vdwg.mxu0
        %8922 = vmatprep.subr.bf16.mxu0 %v6714
        %8923 = vmatpush1.bf16.msra.mxu0 %v6713
        %8924 = vmatprep.subr.bf16.mxu0 %v6706
        %8925 = vmatpush1.bf16.msra.mxu0 %v6705
        %8926 = vmatprep.subr.bf16.mxu0 %v6698
        %8927 = vmatpush1.bf16.msra.mxu0 %v6697
        %8928 = vmatprep.subr.bf16.mxu0 %v6690
        %8929 = vmatpush1.bf16.msra.mxu0 %v6689
        %8930 = vmatprep.subr.bf16.mxu0 %v6682
        %8931 = vmatpush1.bf16.msra.mxu0 %v6681
        %8932 = vmatprep.subr.bf16.mxu0 %v6674
        %8933 = vmatpush1.bf16.msra.mxu0 %v6673
        %8934 = vmatprep.subr.bf16.mxu0 %v6666
        %8935 = vmatpush1.bf16.msra.mxu0 %v6665
        %8936 = vmatprep.subr.bf16.mxu0 %v6658
        %8937 = vmatpush1.bf16.msra.mxu0 %v6657
        %8938 = vmatprep.subr.bf16.mxu0 %v6778
        %8939 = vmatpush2.bf16.msra.mxu0 %v6777
        %8940 = vmatprep.subr.bf16.mxu0 %v6770
        %8941 = vmatpush2.bf16.msra.mxu0 %v6769
        %8942 = vmatprep.subr.bf16.mxu0 %v6762
        %8943 = vmatpush2.bf16.msra.mxu0 %v6761
        %8944 = vmatprep.subr.bf16.mxu0 %v6754
        %8945 = vmatpush2.bf16.msra.mxu0 %v6753
        %8946 = vmatprep.subr.bf16.mxu0 %v6746
        %8947 = vmatpush2.bf16.msra.mxu0 %v6745
        %8948 = vmatprep.subr.bf16.mxu0 %v6738
        %8949 = vmatpush2.bf16.msra.mxu0 %v6737
        %8950 = vmatprep.subr.bf16.mxu0 %v6730
        %8951 = vmatpush2.bf16.msra.mxu0 %v6729
        %8952 = vmatprep.subr.bf16.mxu0 %v6722
        %8953 = vmatpush2.bf16.msra.mxu0 %v6721
        %8954 = vmatprep.mubr.bf16.mxu0 %v1870
        %8955 = vmatmul.mubr.bf16.gmra.mxu0 %v1869
        %v8956 = vpop.f32.mrf.mxu0
        %v8957 = vadd.f32 %v8916, %v8956
        %v8958 = vpop.f32.mrf.mxu0
        %v8959 = vadd.f32 %v8918, %v8958
        %v8960 = vpop.f32.mrf.mxu0
        %v8961 = vpop.f32.mrf.mxu0
        %8962 = vdwg.mxu0
        %8963 = vmatprep.subr.bf16.mxu0 %v6842
        %8964 = vmatpush1.bf16.msra.mxu0 %v6841
        %8965 = vmatprep.subr.bf16.mxu0 %v6834
        %8966 = vmatpush1.bf16.msra.mxu0 %v6833
        %8967 = vmatprep.subr.bf16.mxu0 %v6826
        %8968 = vmatpush1.bf16.msra.mxu0 %v6825
        %8969 = vmatprep.subr.bf16.mxu0 %v6818
        %8970 = vmatpush1.bf16.msra.mxu0 %v6817
        %8971 = vmatprep.subr.bf16.mxu0 %v6810
        %8972 = vmatpush1.bf16.msra.mxu0 %v6809
        %8973 = vmatprep.subr.bf16.mxu0 %v6802
        %8974 = vmatpush1.bf16.msra.mxu0 %v6801
        %8975 = vmatprep.subr.bf16.mxu0 %v6794
        %8976 = vmatpush1.bf16.msra.mxu0 %v6793
        %8977 = vmatprep.subr.bf16.mxu0 %v6786
        %8978 = vmatpush1.bf16.msra.mxu0 %v6785
        %8979 = vmatprep.subr.bf16.mxu0 %v6906
        %8980 = vmatpush2.bf16.msra.mxu0 %v6905
        %8981 = vmatprep.subr.bf16.mxu0 %v6898
        %8982 = vmatpush2.bf16.msra.mxu0 %v6897
        %8983 = vmatprep.subr.bf16.mxu0 %v6890
        %8984 = vmatpush2.bf16.msra.mxu0 %v6889
        %8985 = vmatprep.subr.bf16.mxu0 %v6882
        %8986 = vmatpush2.bf16.msra.mxu0 %v6881
        %8987 = vmatprep.subr.bf16.mxu0 %v6874
        %8988 = vmatpush2.bf16.msra.mxu0 %v6873
        %8989 = vmatprep.subr.bf16.mxu0 %v6866
        %8990 = vmatpush2.bf16.msra.mxu0 %v6865
        %8991 = vmatprep.subr.bf16.mxu0 %v6858
        %8992 = vmatpush2.bf16.msra.mxu0 %v6857
        %8993 = vmatprep.subr.bf16.mxu0 %v6850
        %8994 = vmatpush2.bf16.msra.mxu0 %v6849
        %8995 = vmatprep.mubr.bf16.mxu0 %v1872
        %8996 = vmatmul.mubr.bf16.gmra.mxu0 %v1871
        %v8997 = vpop.f32.mrf.mxu0
        %v8998 = vadd.f32 %v8957, %v8997
        %v8999 = vpop.f32.mrf.mxu0
        %v9000 = vadd.f32 %v8959, %v8999
        %v9001 = vpop.f32.mrf.mxu0
        %v9002 = vpop.f32.mrf.mxu0
        %9003 = vdwg.mxu0
        %9004 = vmatprep.subr.bf16.mxu0 %v6970
        %9005 = vmatpush1.bf16.msra.mxu0 %v6969
        %9006 = vmatprep.subr.bf16.mxu0 %v6962
        %9007 = vmatpush1.bf16.msra.mxu0 %v6961
        %9008 = vmatprep.subr.bf16.mxu0 %v6954
        %9009 = vmatpush1.bf16.msra.mxu0 %v6953
        %9010 = vmatprep.subr.bf16.mxu0 %v6946
        %9011 = vmatpush1.bf16.msra.mxu0 %v6945
        %9012 = vmatprep.subr.bf16.mxu0 %v6938
        %9013 = vmatpush1.bf16.msra.mxu0 %v6937
        %9014 = vmatprep.subr.bf16.mxu0 %v6930
        %9015 = vmatpush1.bf16.msra.mxu0 %v6929
        %9016 = vmatprep.subr.bf16.mxu0 %v6922
        %9017 = vmatpush1.bf16.msra.mxu0 %v6921
        %9018 = vmatprep.subr.bf16.mxu0 %v6914
        %9019 = vmatpush1.bf16.msra.mxu0 %v6913
        %9020 = vmatprep.subr.bf16.mxu0 %v7034
        %9021 = vmatpush2.bf16.msra.mxu0 %v7033
        %9022 = vmatprep.subr.bf16.mxu0 %v7026
        %9023 = vmatpush2.bf16.msra.mxu0 %v7025
        %9024 = vmatprep.subr.bf16.mxu0 %v7018
        %9025 = vmatpush2.bf16.msra.mxu0 %v7017
        %9026 = vmatprep.subr.bf16.mxu0 %v7010
        %9027 = vmatpush2.bf16.msra.mxu0 %v7009
        %9028 = vmatprep.subr.bf16.mxu0 %v7002
        %9029 = vmatpush2.bf16.msra.mxu0 %v7001
        %9030 = vmatprep.subr.bf16.mxu0 %v6994
        %9031 = vmatpush2.bf16.msra.mxu0 %v6993
        %9032 = vmatprep.subr.bf16.mxu0 %v6986
        %9033 = vmatpush2.bf16.msra.mxu0 %v6985
        %9034 = vmatprep.subr.bf16.mxu0 %v6978
        %9035 = vmatpush2.bf16.msra.mxu0 %v6977
        %9036 = vmatprep.mubr.bf16.mxu0 %v1874
        %9037 = vmatmul.mubr.bf16.gmra.mxu0 %v1873
        %v9038 = vpop.f32.mrf.mxu0
        %v9039 = vadd.f32 %v8998, %v9038
        %v9040 = vpop.f32.mrf.mxu0
        %v9041 = vadd.f32 %v9000, %v9040
        %v9042 = vpop.f32.mrf.mxu0
        %v9043 = vpop.f32.mrf.mxu0
        %9044 = vdwg.mxu0
        %9045 = vmatprep.subr.bf16.mxu0 %v6076
        %9046 = vmatpush1.bf16.msra.mxu0 %v6075
        %9047 = vmatprep.subr.bf16.mxu0 %v6068
        %9048 = vmatpush1.bf16.msra.mxu0 %v6067
        %9049 = vmatprep.subr.bf16.mxu0 %v6060
        %9050 = vmatpush1.bf16.msra.mxu0 %v6059
        %9051 = vmatprep.subr.bf16.mxu0 %v6052
        %9052 = vmatpush1.bf16.msra.mxu0 %v6051
        %9053 = vmatprep.subr.bf16.mxu0 %v6044
        %9054 = vmatpush1.bf16.msra.mxu0 %v6043
        %9055 = vmatprep.subr.bf16.mxu0 %v6036
        %9056 = vmatpush1.bf16.msra.mxu0 %v6035
        %9057 = vmatprep.subr.bf16.mxu0 %v6028
        %9058 = vmatpush1.bf16.msra.mxu0 %v6027
        %9059 = vmatprep.subr.bf16.mxu0 %v6020
        %9060 = vmatpush1.bf16.msra.mxu0 %v6019
        %9061 = vmatprep.subr.bf16.mxu0 %v6140
        %9062 = vmatpush2.bf16.msra.mxu0 %v6139
        %9063 = vmatprep.subr.bf16.mxu0 %v6132
        %9064 = vmatpush2.bf16.msra.mxu0 %v6131
        %9065 = vmatprep.subr.bf16.mxu0 %v6124
        %9066 = vmatpush2.bf16.msra.mxu0 %v6123
        %9067 = vmatprep.subr.bf16.mxu0 %v6116
        %9068 = vmatpush2.bf16.msra.mxu0 %v6115
        %9069 = vmatprep.subr.bf16.mxu0 %v6108
        %9070 = vmatpush2.bf16.msra.mxu0 %v6107
        %9071 = vmatprep.subr.bf16.mxu0 %v6100
        %9072 = vmatpush2.bf16.msra.mxu0 %v6099
        %9073 = vmatprep.subr.bf16.mxu0 %v6092
        %9074 = vmatpush2.bf16.msra.mxu0 %v6091
        %9075 = vmatprep.subr.bf16.mxu0 %v6084
        %9076 = vmatpush2.bf16.msra.mxu0 %v6083
        %9077 = vmatprep.mubr.bf16.mxu0 %v1860
        %9078 = vmatmul.mubr.bf16.gmra.mxu0 %v1859
        %v9079 = vpop.f32.mrf.mxu0
        %v9080 = vadd.f32 %v2928, %v9079
        %v9081 = vpop.f32.mrf.mxu0
        %v9082 = vadd.f32 %v2932, %v9081
        %v9083 = vpop.f32.mrf.mxu0
        %v9084 = vpop.f32.mrf.mxu0
        %9085 = vdwg.mxu0
        %9086 = vmatprep.subr.bf16.mxu0 %v6204
        %9087 = vmatpush1.bf16.msra.mxu0 %v6203
        %9088 = vmatprep.subr.bf16.mxu0 %v6196
        %9089 = vmatpush1.bf16.msra.mxu0 %v6195
        %9090 = vmatprep.subr.bf16.mxu0 %v6188
        %9091 = vmatpush1.bf16.msra.mxu0 %v6187
        %9092 = vmatprep.subr.bf16.mxu0 %v6180
        %9093 = vmatpush1.bf16.msra.mxu0 %v6179
        %9094 = vmatprep.subr.bf16.mxu0 %v6172
        %9095 = vmatpush1.bf16.msra.mxu0 %v6171
        %9096 = vmatprep.subr.bf16.mxu0 %v6164
        %9097 = vmatpush1.bf16.msra.mxu0 %v6163
        %9098 = vmatprep.subr.bf16.mxu0 %v6156
        %9099 = vmatpush1.bf16.msra.mxu0 %v6155
        %9100 = vmatprep.subr.bf16.mxu0 %v6148
        %9101 = vmatpush1.bf16.msra.mxu0 %v6147
        %9102 = vmatprep.subr.bf16.mxu0 %v6268
        %9103 = vmatpush2.bf16.msra.mxu0 %v6267
        %9104 = vmatprep.subr.bf16.mxu0 %v6260
        %9105 = vmatpush2.bf16.msra.mxu0 %v6259
        %9106 = vmatprep.subr.bf16.mxu0 %v6252
        %9107 = vmatpush2.bf16.msra.mxu0 %v6251
        %9108 = vmatprep.subr.bf16.mxu0 %v6244
        %9109 = vmatpush2.bf16.msra.mxu0 %v6243
        %9110 = vmatprep.subr.bf16.mxu0 %v6236
        %9111 = vmatpush2.bf16.msra.mxu0 %v6235
        %9112 = vmatprep.subr.bf16.mxu0 %v6228
        %9113 = vmatpush2.bf16.msra.mxu0 %v6227
        %9114 = vmatprep.subr.bf16.mxu0 %v6220
        %9115 = vmatpush2.bf16.msra.mxu0 %v6219
        %9116 = vmatprep.subr.bf16.mxu0 %v6212
        %9117 = vmatpush2.bf16.msra.mxu0 %v6211
        %9118 = vmatprep.mubr.bf16.mxu0 %v1862
        %9119 = vmatmul.mubr.bf16.gmra.mxu0 %v1861
        %v9120 = vpop.f32.mrf.mxu0
        %v9121 = vadd.f32 %v9080, %v9120
        %v9122 = vpop.f32.mrf.mxu0
        %v9123 = vadd.f32 %v9082, %v9122
        %v9124 = vpop.f32.mrf.mxu0
        %v9125 = vpop.f32.mrf.mxu0
        %9126 = vdwg.mxu0
        %9127 = vmatprep.subr.bf16.mxu0 %v6332
        %9128 = vmatpush1.bf16.msra.mxu0 %v6331
        %9129 = vmatprep.subr.bf16.mxu0 %v6324
        %9130 = vmatpush1.bf16.msra.mxu0 %v6323
        %9131 = vmatprep.subr.bf16.mxu0 %v6316
        %9132 = vmatpush1.bf16.msra.mxu0 %v6315
        %9133 = vmatprep.subr.bf16.mxu0 %v6308
        %9134 = vmatpush1.bf16.msra.mxu0 %v6307
        %9135 = vmatprep.subr.bf16.mxu0 %v6300
        %9136 = vmatpush1.bf16.msra.mxu0 %v6299
        %9137 = vmatprep.subr.bf16.mxu0 %v6292
        %9138 = vmatpush1.bf16.msra.mxu0 %v6291
        %9139 = vmatprep.subr.bf16.mxu0 %v6284
        %9140 = vmatpush1.bf16.msra.mxu0 %v6283
        %9141 = vmatprep.subr.bf16.mxu0 %v6276
        %9142 = vmatpush1.bf16.msra.mxu0 %v6275
        %9143 = vmatprep.subr.bf16.mxu0 %v6396
        %9144 = vmatpush2.bf16.msra.mxu0 %v6395
        %9145 = vmatprep.subr.bf16.mxu0 %v6388
        %9146 = vmatpush2.bf16.msra.mxu0 %v6387
        %9147 = vmatprep.subr.bf16.mxu0 %v6380
        %9148 = vmatpush2.bf16.msra.mxu0 %v6379
        %9149 = vmatprep.subr.bf16.mxu0 %v6372
        %9150 = vmatpush2.bf16.msra.mxu0 %v6371
        %9151 = vmatprep.subr.bf16.mxu0 %v6364
        %9152 = vmatpush2.bf16.msra.mxu0 %v6363
        %9153 = vmatprep.subr.bf16.mxu0 %v6356
        %9154 = vmatpush2.bf16.msra.mxu0 %v6355
        %9155 = vmatprep.subr.bf16.mxu0 %v6348
        %9156 = vmatpush2.bf16.msra.mxu0 %v6347
        %9157 = vmatprep.subr.bf16.mxu0 %v6340
        %9158 = vmatpush2.bf16.msra.mxu0 %v6339
        %9159 = vmatprep.mubr.bf16.mxu0 %v1864
        %9160 = vmatmul.mubr.bf16.gmra.mxu0 %v1863
        %v9161 = vpop.f32.mrf.mxu0
        %v9162 = vadd.f32 %v9121, %v9161
        %v9163 = vpop.f32.mrf.mxu0
        %v9164 = vadd.f32 %v9123, %v9163
        %v9165 = vpop.f32.mrf.mxu0
        %v9166 = vpop.f32.mrf.mxu0
        %9167 = vdwg.mxu0
        %9168 = vmatprep.subr.bf16.mxu0 %v6460
        %9169 = vmatpush1.bf16.msra.mxu0 %v6459
        %9170 = vmatprep.subr.bf16.mxu0 %v6452
        %9171 = vmatpush1.bf16.msra.mxu0 %v6451
        %9172 = vmatprep.subr.bf16.mxu0 %v6444
        %9173 = vmatpush1.bf16.msra.mxu0 %v6443
        %9174 = vmatprep.subr.bf16.mxu0 %v6436
        %9175 = vmatpush1.bf16.msra.mxu0 %v6435
        %9176 = vmatprep.subr.bf16.mxu0 %v6428
        %9177 = vmatpush1.bf16.msra.mxu0 %v6427
        %9178 = vmatprep.subr.bf16.mxu0 %v6420
        %9179 = vmatpush1.bf16.msra.mxu0 %v6419
        %9180 = vmatprep.subr.bf16.mxu0 %v6412
        %9181 = vmatpush1.bf16.msra.mxu0 %v6411
        %9182 = vmatprep.subr.bf16.mxu0 %v6404
        %9183 = vmatpush1.bf16.msra.mxu0 %v6403
        %9184 = vmatprep.subr.bf16.mxu0 %v6524
        %9185 = vmatpush2.bf16.msra.mxu0 %v6523
        %9186 = vmatprep.subr.bf16.mxu0 %v6516
        %9187 = vmatpush2.bf16.msra.mxu0 %v6515
        %9188 = vmatprep.subr.bf16.mxu0 %v6508
        %9189 = vmatpush2.bf16.msra.mxu0 %v6507
        %9190 = vmatprep.subr.bf16.mxu0 %v6500
        %9191 = vmatpush2.bf16.msra.mxu0 %v6499
        %9192 = vmatprep.subr.bf16.mxu0 %v6492
        %9193 = vmatpush2.bf16.msra.mxu0 %v6491
        %9194 = vmatprep.subr.bf16.mxu0 %v6484
        %9195 = vmatpush2.bf16.msra.mxu0 %v6483
        %9196 = vmatprep.subr.bf16.mxu0 %v6476
        %9197 = vmatpush2.bf16.msra.mxu0 %v6475
        %9198 = vmatprep.subr.bf16.mxu0 %v6468
        %9199 = vmatpush2.bf16.msra.mxu0 %v6467
        %9200 = vmatprep.mubr.bf16.mxu0 %v1866
        %9201 = vmatmul.mubr.bf16.gmra.mxu0 %v1865
        %v9202 = vpop.f32.mrf.mxu0
        %v9203 = vadd.f32 %v9162, %v9202
        %v9204 = vpop.f32.mrf.mxu0
        %v9205 = vadd.f32 %v9164, %v9204
        %v9206 = vpop.f32.mrf.mxu0
        %v9207 = vpop.f32.mrf.mxu0
        %9208 = vdwg.mxu0
        %9209 = vmatprep.subr.bf16.mxu0 %v6588
        %9210 = vmatpush1.bf16.msra.mxu0 %v6587
        %9211 = vmatprep.subr.bf16.mxu0 %v6580
        %9212 = vmatpush1.bf16.msra.mxu0 %v6579
        %9213 = vmatprep.subr.bf16.mxu0 %v6572
        %9214 = vmatpush1.bf16.msra.mxu0 %v6571
        %9215 = vmatprep.subr.bf16.mxu0 %v6564
        %9216 = vmatpush1.bf16.msra.mxu0 %v6563
        %9217 = vmatprep.subr.bf16.mxu0 %v6556
        %9218 = vmatpush1.bf16.msra.mxu0 %v6555
        %9219 = vmatprep.subr.bf16.mxu0 %v6548
        %9220 = vmatpush1.bf16.msra.mxu0 %v6547
        %9221 = vmatprep.subr.bf16.mxu0 %v6540
        %9222 = vmatpush1.bf16.msra.mxu0 %v6539
        %9223 = vmatprep.subr.bf16.mxu0 %v6532
        %9224 = vmatpush1.bf16.msra.mxu0 %v6531
        %9225 = vmatprep.subr.bf16.mxu0 %v6652
        %9226 = vmatpush2.bf16.msra.mxu0 %v6651
        %9227 = vmatprep.subr.bf16.mxu0 %v6644
        %9228 = vmatpush2.bf16.msra.mxu0 %v6643
        %9229 = vmatprep.subr.bf16.mxu0 %v6636
        %9230 = vmatpush2.bf16.msra.mxu0 %v6635
        %9231 = vmatprep.subr.bf16.mxu0 %v6628
        %9232 = vmatpush2.bf16.msra.mxu0 %v6627
        %9233 = vmatprep.subr.bf16.mxu0 %v6620
        %9234 = vmatpush2.bf16.msra.mxu0 %v6619
        %9235 = vmatprep.subr.bf16.mxu0 %v6612
        %9236 = vmatpush2.bf16.msra.mxu0 %v6611
        %9237 = vmatprep.subr.bf16.mxu0 %v6604
        %9238 = vmatpush2.bf16.msra.mxu0 %v6603
        %9239 = vmatprep.subr.bf16.mxu0 %v6596
        %9240 = vmatpush2.bf16.msra.mxu0 %v6595
        %9241 = vmatprep.mubr.bf16.mxu0 %v1868
        %9242 = vmatmul.mubr.bf16.gmra.mxu0 %v1867
        %v9243 = vpop.f32.mrf.mxu0
        %v9244 = vadd.f32 %v9203, %v9243
        %v9245 = vpop.f32.mrf.mxu0
        %v9246 = vadd.f32 %v9205, %v9245
        %v9247 = vpop.f32.mrf.mxu0
        %v9248 = vpop.f32.mrf.mxu0
        %9249 = vdwg.mxu0
        %9250 = vmatprep.subr.bf16.mxu0 %v6716
        %9251 = vmatpush1.bf16.msra.mxu0 %v6715
        %9252 = vmatprep.subr.bf16.mxu0 %v6708
        %9253 = vmatpush1.bf16.msra.mxu0 %v6707
        %9254 = vmatprep.subr.bf16.mxu0 %v6700
        %9255 = vmatpush1.bf16.msra.mxu0 %v6699
        %9256 = vmatprep.subr.bf16.mxu0 %v6692
        %9257 = vmatpush1.bf16.msra.mxu0 %v6691
        %9258 = vmatprep.subr.bf16.mxu0 %v6684
        %9259 = vmatpush1.bf16.msra.mxu0 %v6683
        %9260 = vmatprep.subr.bf16.mxu0 %v6676
        %9261 = vmatpush1.bf16.msra.mxu0 %v6675
        %9262 = vmatprep.subr.bf16.mxu0 %v6668
        %9263 = vmatpush1.bf16.msra.mxu0 %v6667
        %9264 = vmatprep.subr.bf16.mxu0 %v6660
        %9265 = vmatpush1.bf16.msra.mxu0 %v6659
        %9266 = vmatprep.subr.bf16.mxu0 %v6780
        %9267 = vmatpush2.bf16.msra.mxu0 %v6779
        %9268 = vmatprep.subr.bf16.mxu0 %v6772
        %9269 = vmatpush2.bf16.msra.mxu0 %v6771
        %9270 = vmatprep.subr.bf16.mxu0 %v6764
        %9271 = vmatpush2.bf16.msra.mxu0 %v6763
        %9272 = vmatprep.subr.bf16.mxu0 %v6756
        %9273 = vmatpush2.bf16.msra.mxu0 %v6755
        %9274 = vmatprep.subr.bf16.mxu0 %v6748
        %9275 = vmatpush2.bf16.msra.mxu0 %v6747
        %9276 = vmatprep.subr.bf16.mxu0 %v6740
        %9277 = vmatpush2.bf16.msra.mxu0 %v6739
        %9278 = vmatprep.subr.bf16.mxu0 %v6732
        %9279 = vmatpush2.bf16.msra.mxu0 %v6731
        %9280 = vmatprep.subr.bf16.mxu0 %v6724
        %9281 = vmatpush2.bf16.msra.mxu0 %v6723
        %9282 = vmatprep.mubr.bf16.mxu0 %v1870
        %9283 = vmatmul.mubr.bf16.gmra.mxu0 %v1869
        %v9284 = vpop.f32.mrf.mxu0
        %v9285 = vadd.f32 %v9244, %v9284
        %v9286 = vpop.f32.mrf.mxu0
        %v9287 = vadd.f32 %v9246, %v9286
        %v9288 = vpop.f32.mrf.mxu0
        %v9289 = vpop.f32.mrf.mxu0
        %9290 = vdwg.mxu0
        %9291 = vmatprep.subr.bf16.mxu0 %v6844
        %9292 = vmatpush1.bf16.msra.mxu0 %v6843
        %9293 = vmatprep.subr.bf16.mxu0 %v6836
        %9294 = vmatpush1.bf16.msra.mxu0 %v6835
        %9295 = vmatprep.subr.bf16.mxu0 %v6828
        %9296 = vmatpush1.bf16.msra.mxu0 %v6827
        %9297 = vmatprep.subr.bf16.mxu0 %v6820
        %9298 = vmatpush1.bf16.msra.mxu0 %v6819
        %9299 = vmatprep.subr.bf16.mxu0 %v6812
        %9300 = vmatpush1.bf16.msra.mxu0 %v6811
        %9301 = vmatprep.subr.bf16.mxu0 %v6804
        %9302 = vmatpush1.bf16.msra.mxu0 %v6803
        %9303 = vmatprep.subr.bf16.mxu0 %v6796
        %9304 = vmatpush1.bf16.msra.mxu0 %v6795
        %9305 = vmatprep.subr.bf16.mxu0 %v6788
        %9306 = vmatpush1.bf16.msra.mxu0 %v6787
        %9307 = vmatprep.subr.bf16.mxu0 %v6908
        %9308 = vmatpush2.bf16.msra.mxu0 %v6907
        %9309 = vmatprep.subr.bf16.mxu0 %v6900
        %9310 = vmatpush2.bf16.msra.mxu0 %v6899
        %9311 = vmatprep.subr.bf16.mxu0 %v6892
        %9312 = vmatpush2.bf16.msra.mxu0 %v6891
        %9313 = vmatprep.subr.bf16.mxu0 %v6884
        %9314 = vmatpush2.bf16.msra.mxu0 %v6883
        %9315 = vmatprep.subr.bf16.mxu0 %v6876
        %9316 = vmatpush2.bf16.msra.mxu0 %v6875
        %9317 = vmatprep.subr.bf16.mxu0 %v6868
        %9318 = vmatpush2.bf16.msra.mxu0 %v6867
        %9319 = vmatprep.subr.bf16.mxu0 %v6860
        %9320 = vmatpush2.bf16.msra.mxu0 %v6859
        %9321 = vmatprep.subr.bf16.mxu0 %v6852
        %9322 = vmatpush2.bf16.msra.mxu0 %v6851
        %9323 = vmatprep.mubr.bf16.mxu0 %v1872
        %9324 = vmatmul.mubr.bf16.gmra.mxu0 %v1871
        %v9325 = vpop.f32.mrf.mxu0
        %v9326 = vadd.f32 %v9285, %v9325
        %v9327 = vpop.f32.mrf.mxu0
        %v9328 = vadd.f32 %v9287, %v9327
        %v9329 = vpop.f32.mrf.mxu0
        %v9330 = vpop.f32.mrf.mxu0
        %9331 = vdwg.mxu0
        %9332 = vmatprep.subr.bf16.mxu0 %v6972
        %9333 = vmatpush1.bf16.msra.mxu0 %v6971
        %9334 = vmatprep.subr.bf16.mxu0 %v6964
        %9335 = vmatpush1.bf16.msra.mxu0 %v6963
        %9336 = vmatprep.subr.bf16.mxu0 %v6956
        %9337 = vmatpush1.bf16.msra.mxu0 %v6955
        %9338 = vmatprep.subr.bf16.mxu0 %v6948
        %9339 = vmatpush1.bf16.msra.mxu0 %v6947
        %9340 = vmatprep.subr.bf16.mxu0 %v6940
        %9341 = vmatpush1.bf16.msra.mxu0 %v6939
        %9342 = vmatprep.subr.bf16.mxu0 %v6932
        %9343 = vmatpush1.bf16.msra.mxu0 %v6931
        %9344 = vmatprep.subr.bf16.mxu0 %v6924
        %9345 = vmatpush1.bf16.msra.mxu0 %v6923
        %9346 = vmatprep.subr.bf16.mxu0 %v6916
        %9347 = vmatpush1.bf16.msra.mxu0 %v6915
        %9348 = vmatprep.subr.bf16.mxu0 %v7036
        %9349 = vmatpush2.bf16.msra.mxu0 %v7035
        %9350 = vmatprep.subr.bf16.mxu0 %v7028
        %9351 = vmatpush2.bf16.msra.mxu0 %v7027
        %9352 = vmatprep.subr.bf16.mxu0 %v7020
        %9353 = vmatpush2.bf16.msra.mxu0 %v7019
        %9354 = vmatprep.subr.bf16.mxu0 %v7012
        %9355 = vmatpush2.bf16.msra.mxu0 %v7011
        %9356 = vmatprep.subr.bf16.mxu0 %v7004
        %9357 = vmatpush2.bf16.msra.mxu0 %v7003
        %9358 = vmatprep.subr.bf16.mxu0 %v6996
        %9359 = vmatpush2.bf16.msra.mxu0 %v6995
        %9360 = vmatprep.subr.bf16.mxu0 %v6988
        %9361 = vmatpush2.bf16.msra.mxu0 %v6987
        %9362 = vmatprep.subr.bf16.mxu0 %v6980
        %9363 = vmatpush2.bf16.msra.mxu0 %v6979
        %9364 = vmatprep.mubr.bf16.mxu0 %v1874
        %9365 = vmatmul.mubr.bf16.gmra.mxu0 %v1873
        %v9366 = vpop.f32.mrf.mxu0
        %v9367 = vadd.f32 %v9326, %v9366
        %v9368 = vpop.f32.mrf.mxu0
        %v9369 = vadd.f32 %v9328, %v9368
        %v9370 = vpop.f32.mrf.mxu0
        %v9371 = vpop.f32.mrf.mxu0
        %9372 = vdwg.mxu0
        %v9373 = vlaneseq
        %v9374 = vshrl.u32 %v9373, 7
        %vm9375 = vcmp.lt.s32.totalorder %v9374, 2
        %v9376 = vsel %vm9375, 1, 0
        %v9377 = vcvt.s32.f32 %v9376
        %v9378 = vmul.f32 %v8383, %v9377
        %v9379 = vmul.f32 %v8385, %v9377
        %v9380 = vmul.f32 %v8711, %v9377
        %v9381 = vmul.f32 %v8713, %v9377
        %v9382 = vmul.f32 %v9039, %v9377
        %v9383 = vmul.f32 %v9041, %v9377
        %v9384 = vmul.f32 %v9367, %v9377
        %v9385 = vmul.f32 %v9369, %v9377
        %v9386 = vrot.slane %v9378, 4
        %v9387 = vadd.f32 %v9378, %v9386
        %v9388 = vrot.slane %v9387, 2
        %v9389 = vadd.f32 %v9387, %v9388
        %v9390 = vrot.slane %v9389, 1
        %v9391 = vadd.f32 %v9389, %v9390
        %v9392 = vrot.slane %v9379, 4
        %v9393 = vadd.f32 %v9379, %v9392
        %v9394 = vrot.slane %v9393, 2
        %v9395 = vadd.f32 %v9393, %v9394
        %v9396 = vrot.slane %v9395, 1
        %v9397 = vadd.f32 %v9395, %v9396
        %v9398 = vrot.slane %v9380, 4
        %v9399 = vadd.f32 %v9380, %v9398
        %v9400 = vrot.slane %v9399, 2
        %v9401 = vadd.f32 %v9399, %v9400
        %v9402 = vrot.slane %v9401, 1
        %v9403 = vadd.f32 %v9401, %v9402
        %v9404 = vrot.slane %v9381, 4
        %v9405 = vadd.f32 %v9381, %v9404
        %v9406 = vrot.slane %v9405, 2
        %v9407 = vadd.f32 %v9405, %v9406
        %v9408 = vrot.slane %v9407, 1
        %v9409 = vadd.f32 %v9407, %v9408
        %v9410 = vrot.slane %v9382, 4
        %v9411 = vadd.f32 %v9382, %v9410
        %v9412 = vrot.slane %v9411, 2
        %v9413 = vadd.f32 %v9411, %v9412
        %v9414 = vrot.slane %v9413, 1
        %v9415 = vadd.f32 %v9413, %v9414
        %v9416 = vrot.slane %v9383, 4
        %v9417 = vadd.f32 %v9383, %v9416
        %v9418 = vrot.slane %v9417, 2
        %v9419 = vadd.f32 %v9417, %v9418
        %v9420 = vrot.slane %v9419, 1
        %v9421 = vadd.f32 %v9419, %v9420
        %v9422 = vrot.slane %v9384, 4
        %v9423 = vadd.f32 %v9384, %v9422
        %v9424 = vrot.slane %v9423, 2
        %v9425 = vadd.f32 %v9423, %v9424
        %v9426 = vrot.slane %v9425, 1
        %v9427 = vadd.f32 %v9425, %v9426
        %v9428 = vrot.slane %v9385, 4
        %v9429 = vadd.f32 %v9385, %v9428
        %v9430 = vrot.slane %v9429, 2
        %v9431 = vadd.f32 %v9429, %v9430
        %v9432 = vrot.slane %v9431, 1
        %v9433 = vadd.f32 %v9431, %v9432
        %v9434 = vmul.f32 %v9391, 0.5
        %v9435 = vmul.f32 %v9397, 0.5
        %v9436 = vmul.f32 %v9403, 0.5
        %v9437 = vmul.f32 %v9409, 0.5
        %v9438 = vmul.f32 %v9415, 0.5
        %v9439 = vmul.f32 %v9421, 0.5
        %v9440 = vmul.f32 %v9427, 0.5
        %v9441 = vmul.f32 %v9433, 0.5
        %v9442 = vsub.f32 %v8383, %v9434
        %v9443 = vsub.f32 %v8385, %v9435
        %v9444 = vsub.f32 %v8711, %v9436
        %v9445 = vsub.f32 %v8713, %v9437
        %v9446 = vsub.f32 %v9039, %v9438
        %v9447 = vsub.f32 %v9041, %v9439
        %v9448 = vsub.f32 %v9367, %v9440
        %v9449 = vsub.f32 %v9369, %v9441
        %v9450 = vmul.f32 %v9442, %v9377
        %v9451 = vmul.f32 %v9443, %v9377
        %v9452 = vmul.f32 %v9444, %v9377
        %v9453 = vmul.f32 %v9445, %v9377
        %v9454 = vmul.f32 %v9446, %v9377
        %v9455 = vmul.f32 %v9447, %v9377
        %v9456 = vmul.f32 %v9448, %v9377
        %v9457 = vmul.f32 %v9449, %v9377
        %v9458 = vmul.f32 %v9450, %v9450
        %v9459 = vmul.f32 %v9451, %v9451
        %v9460 = vmul.f32 %v9452, %v9452
        %v9461 = vmul.f32 %v9453, %v9453
        %v9462 = vmul.f32 %v9454, %v9454
        %v9463 = vmul.f32 %v9455, %v9455
        %v9464 = vmul.f32 %v9456, %v9456
        %v9465 = vmul.f32 %v9457, %v9457
        %v9466 = vrot.slane %v9458, 4
        %v9467 = vadd.f32 %v9458, %v9466
        %v9468 = vrot.slane %v9467, 2
        %v9469 = vadd.f32 %v9467, %v9468
        %v9470 = vrot.slane %v9469, 1
        %v9471 = vadd.f32 %v9469, %v9470
        %v9472 = vrot.slane %v9459, 4
        %v9473 = vadd.f32 %v9459, %v9472
        %v9474 = vrot.slane %v9473, 2
        %v9475 = vadd.f32 %v9473, %v9474
        %v9476 = vrot.slane %v9475, 1
        %v9477 = vadd.f32 %v9475, %v9476
        %v9478 = vrot.slane %v9460, 4
        %v9479 = vadd.f32 %v9460, %v9478
        %v9480 = vrot.slane %v9479, 2
        %v9481 = vadd.f32 %v9479, %v9480
        %v9482 = vrot.slane %v9481, 1
        %v9483 = vadd.f32 %v9481, %v9482
        %v9484 = vrot.slane %v9461, 4
        %v9485 = vadd.f32 %v9461, %v9484
        %v9486 = vrot.slane %v9485, 2
        %v9487 = vadd.f32 %v9485, %v9486
        %v9488 = vrot.slane %v9487, 1
        %v9489 = vadd.f32 %v9487, %v9488
        %v9490 = vrot.slane %v9462, 4
        %v9491 = vadd.f32 %v9462, %v9490
        %v9492 = vrot.slane %v9491, 2
        %v9493 = vadd.f32 %v9491, %v9492
        %v9494 = vrot.slane %v9493, 1
        %v9495 = vadd.f32 %v9493, %v9494
        %v9496 = vrot.slane %v9463, 4
        %v9497 = vadd.f32 %v9463, %v9496
        %v9498 = vrot.slane %v9497, 2
        %v9499 = vadd.f32 %v9497, %v9498
        %v9500 = vrot.slane %v9499, 1
        %v9501 = vadd.f32 %v9499, %v9500
        %v9502 = vrot.slane %v9464, 4
        %v9503 = vadd.f32 %v9464, %v9502
        %v9504 = vrot.slane %v9503, 2
        %v9505 = vadd.f32 %v9503, %v9504
        %v9506 = vrot.slane %v9505, 1
        %v9507 = vadd.f32 %v9505, %v9506
        %v9508 = vrot.slane %v9465, 4
        %v9509 = vadd.f32 %v9465, %v9508
        %v9510 = vrot.slane %v9509, 2
        %v9511 = vadd.f32 %v9509, %v9510
        %v9512 = vrot.slane %v9511, 1
        %v9513 = vadd.f32 %v9511, %v9512
        %v9514 = vmul.f32 %v9471, 0.5
        %v9515 = vmul.f32 %v9477, 0.5
        %v9516 = vmul.f32 %v9483, 0.5
        %v9517 = vmul.f32 %v9489, 0.5
        %v9518 = vmul.f32 %v9495, 0.5
        %v9519 = vmul.f32 %v9501, 0.5
        %v9520 = vmul.f32 %v9507, 0.5
        %v9521 = vmul.f32 %v9513, 0.5
        %v9522 = vadd.f32 %v9514, 0.8
        %v9523 = vadd.f32 %v9515, 0.8
        %v9524 = vadd.f32 %v9516, 0.8
        %v9525 = vadd.f32 %v9517, 0.8
        %v9526 = vadd.f32 %v9518, 0.8
        %v9527 = vadd.f32 %v9519, 0.8
        %v9528 = vadd.f32 %v9520, 0.8
        %v9529 = vadd.f32 %v9521, 0.8
        %v9530 = vrsqrt.pop %v9522
        %v9531 = vrsqrt.pop %v9523
        %v9532 = vrsqrt.pop %v9524
        %v9533 = vrsqrt.pop %v9525
        %v9534 = vrsqrt.pop %v9526
        %v9535 = vrsqrt.pop %v9527
        %v9536 = vrsqrt.pop %v9528
        %v9537 = vrsqrt.pop %v9529
        %v9538 = vmul.f32 %v9442, %v9530
        %v9539 = vmul.f32 %v9443, %v9531
        %v9540 = vmul.f32 %v9444, %v9532
        %v9541 = vmul.f32 %v9445, %v9533
        %v9542 = vmul.f32 %v9446, %v9534
        %v9543 = vmul.f32 %v9447, %v9535
        %v9544 = vmul.f32 %v9448, %v9536
        %v9545 = vmul.f32 %v9449, %v9537
        %v9546 = vld [vmem:[%s461] sm:$0xff]
        %v9548 = vlaneseq
        %v9549 = vshrl.u32 %v9548, 7
        %v9550 = vsub.s32 0, %v9549
        %v9551 = vrot.slane %v9546, %v9550
        %v9552 = vlaneseq
        %v9553 = vshrl.u32 %v9552, 7
        %v9554 = vsub.s32 1, %v9553
        %v9555 = vrot.slane %v9546, %v9554
        %v9556 = vlaneseq
        %v9557 = vshrl.u32 %v9556, 7
        %v9558 = vsub.s32 2, %v9557
        %v9559 = vrot.slane %v9546, %v9558
        %v9560 = vlaneseq
        %v9561 = vshrl.u32 %v9560, 7
        %v9562 = vsub.s32 3, %v9561
        %v9563 = vrot.slane %v9546, %v9562
        %v9564 = vlaneseq
        %v9565 = vshrl.u32 %v9564, 7
        %v9566 = vsub.s32 4, %v9565
        %v9567 = vrot.slane %v9546, %v9566
        %v9568 = vlaneseq
        %v9569 = vshrl.u32 %v9568, 7
        %v9570 = vsub.s32 5, %v9569
        %v9571 = vrot.slane %v9546, %v9570
        %v9572 = vlaneseq
        %v9573 = vshrl.u32 %v9572, 7
        %v9574 = vsub.s32 6, %v9573
        %v9575 = vrot.slane %v9546, %v9574
        %v9576 = vlaneseq
        %v9577 = vshrl.u32 %v9576, 7
        %v9578 = vsub.s32 7, %v9577
        %v9579 = vrot.slane %v9546, %v9578
        %v9588 = vmul.f32 %v9538, %v9551
        %v9589 = vmul.f32 %v9539, %v9555
        %v9590 = vmul.f32 %v9540, %v9559
        %v9591 = vmul.f32 %v9541, %v9563
        %v9592 = vmul.f32 %v9542, %v9567
        %v9593 = vmul.f32 %v9543, %v9571
        %v9594 = vmul.f32 %v9544, %v9575
        %v9595 = vmul.f32 %v9545, %v9579
        %v9596 = vld [vmem:[%s470] sm:$0xff]
        %v9598 = vlaneseq
        %v9599 = vshrl.u32 %v9598, 7
        %v9600 = vsub.s32 0, %v9599
        %v9601 = vrot.slane %v9596, %v9600
        %v9602 = vlaneseq
        %v9603 = vshrl.u32 %v9602, 7
        %v9604 = vsub.s32 1, %v9603
        %v9605 = vrot.slane %v9596, %v9604
        %v9606 = vlaneseq
        %v9607 = vshrl.u32 %v9606, 7
        %v9608 = vsub.s32 2, %v9607
        %v9609 = vrot.slane %v9596, %v9608
        %v9610 = vlaneseq
        %v9611 = vshrl.u32 %v9610, 7
        %v9612 = vsub.s32 3, %v9611
        %v9613 = vrot.slane %v9596, %v9612
        %v9614 = vlaneseq
        %v9615 = vshrl.u32 %v9614, 7
        %v9616 = vsub.s32 4, %v9615
        %v9617 = vrot.slane %v9596, %v9616
        %v9618 = vlaneseq
        %v9619 = vshrl.u32 %v9618, 7
        %v9620 = vsub.s32 5, %v9619
        %v9621 = vrot.slane %v9596, %v9620
        %v9622 = vlaneseq
        %v9623 = vshrl.u32 %v9622, 7
        %v9624 = vsub.s32 6, %v9623
        %v9625 = vrot.slane %v9596, %v9624
        %v9626 = vlaneseq
        %v9627 = vshrl.u32 %v9626, 7
        %v9628 = vsub.s32 7, %v9627
        %v9629 = vrot.slane %v9596, %v9628
        %v9638 = vadd.f32 %v9588, %v9601
        %v9639 = vadd.f32 %v9589, %v9605
        %v9640 = vadd.f32 %v9590, %v9609
        %v9641 = vadd.f32 %v9591, %v9613
        %v9642 = vadd.f32 %v9592, %v9617
        %v9643 = vadd.f32 %v9593, %v9621
        %v9644 = vadd.f32 %v9594, %v9625
        %v9645 = vadd.f32 %v9595, %v9629
        %vm9646 = vcmp.gt.f32.partialorder %v9638, 0.0
        %vm9647 = vcmp.gt.f32.partialorder %v9639, 0.0
        %vm9648 = vcmp.gt.f32.partialorder %v9640, 0.0
        %vm9649 = vcmp.gt.f32.partialorder %v9641, 0.0
        %vm9650 = vcmp.gt.f32.partialorder %v9642, 0.0
        %vm9651 = vcmp.gt.f32.partialorder %v9643, 0.0
        %vm9652 = vcmp.gt.f32.partialorder %v9644, 0.0
        %vm9653 = vcmp.gt.f32.partialorder %v9645, 0.0
        %v9654 = vmul.f32 %v9638, 0.2
        %v9655 = vmul.f32 %v9639, 0.2
        %v9656 = vmul.f32 %v9640, 0.2
        %v9657 = vmul.f32 %v9641, 0.2
        %v9658 = vmul.f32 %v9642, 0.2
        %v9659 = vmul.f32 %v9643, 0.2
        %v9660 = vmul.f32 %v9644, 0.2
        %v9661 = vmul.f32 %v9645, 0.2
        %v9662 = vsel %vm9646, %v9638, %v9654
        %v9663 = vsel %vm9647, %v9639, %v9655
        %v9664 = vsel %vm9648, %v9640, %v9656
        %v9665 = vsel %vm9649, %v9641, %v9657
        %v9666 = vsel %vm9650, %v9642, %v9658
        %v9667 = vsel %vm9651, %v9643, %v9659
        %v9668 = vsel %vm9652, %v9644, %v9660
        %v9669 = vsel %vm9653, %v9645, %v9661
        %s9670 = smul.u32 %s28, 1024
        // Predicated region
        $region93: #{cond_flow_forward.1} parent=55 // pred_check
          %p9671 = pneg %p1807
        $region94: #{cond_flow_forward.1} parent=55 // pred_check_branch
          %9673 = sbr.rel (%p9671) target = $region96
        $region95: #{cond_flow_forward.1} parent=55 // pred_region
          %s9674 = sshra.s32 %s9670, 7
          %s9675 = sand.u32 %s9670, 127
          %s9676 = smul.addr %s9674, 8
          %s9677 = scalar_lea.vmem [#allocation2], %s9676
          %9678 = vst [vmem:[%s9677] sm:$0xff] %v9662
          %9679 = vst [vmem:[%s9677 + $0x8] sm:$0xff] %v9663
          %9680 = vst [vmem:[%s9677 + $0x10] sm:$0xff] %v9664
          %9681 = vst [vmem:[%s9677 + $0x18] sm:$0xff] %v9665
          %9682 = vst [vmem:[%s9677 + $0x20] sm:$0xff] %v9666
          %9683 = vst [vmem:[%s9677 + $0x28] sm:$0xff] %v9667
          %9684 = vst [vmem:[%s9677 + $0x30] sm:$0xff] %v9668
          %9685 = vst [vmem:[%s9677 + $0x38] sm:$0xff] %v9669
        $region96: #{cond_flow_forward.1} parent=55 // pred_fallthru
          _
        %p9686 = scmp.eq.s32.totalorder %s1806, 1
        // Predicated region
        $region97: #{cond_flow_forward.1} parent=55 // pred_check
          %p9687 = pneg %p9686
        $region98: #{cond_flow_forward.1} parent=55 // pred_check_branch
          %9689 = sbr.rel (%p9687) target = $region100
        $region99: #{cond_flow_forward.1} parent=55 // pred_region
          %s9690 = sshra.s32 %s9670, 7
          %s9691 = sand.u32 %s9670, 127
          %s9692 = smul.addr %s9690, 8
          %s9693 = scalar_lea.vmem [#allocation3], %s9692
          %9694 = vst [vmem:[%s9693] sm:$0xff] %v9662
          %9695 = vst [vmem:[%s9693 + $0x8] sm:$0xff] %v9663
          %9696 = vst [vmem:[%s9693 + $0x10] sm:$0xff] %v9664
          %9697 = vst [vmem:[%s9693 + $0x18] sm:$0xff] %v9665
          %9698 = vst [vmem:[%s9693 + $0x20] sm:$0xff] %v9666
          %9699 = vst [vmem:[%s9693 + $0x28] sm:$0xff] %v9667
          %9700 = vst [vmem:[%s9693 + $0x30] sm:$0xff] %v9668
          %9701 = vst [vmem:[%s9693 + $0x38] sm:$0xff] %v9669
        $region100: #{cond_flow_forward.1} parent=55 // pred_fallthru
          _
        %p9702 = scmp.eq.s32.totalorder %s27, 2
        %p9703 = scmp.eq.s32.totalorder %s28, 1
        %p9704 = pnand %p9702, %p9703
        %p9705 = pneg %p9704
        // Predicated region
        $region101: #{cond_flow_forward.1} parent=55 // pred_check
          _
        $region102: #{cond_flow_forward.1} parent=55 // pred_check_branch
          %9707 = sbr.rel (%p9704) target = $region104
        $region103: #{cond_flow_forward.1} parent=55 // pred_region
          %v9708 = vld [vmem:[#allocation2] sm:$0xff]
          %v9709 = vld [vmem:[#allocation2 + $0x8] sm:$0xff]
          %v9710 = vld [vmem:[#allocation2 + $0x10] sm:$0xff]
          %v9711 = vld [vmem:[#allocation2 + $0x18] sm:$0xff]
          %v9712 = vld [vmem:[#allocation2 + $0x20] sm:$0xff]
          %v9713 = vld [vmem:[#allocation2 + $0x28] sm:$0xff]
          %v9714 = vld [vmem:[#allocation2 + $0x30] sm:$0xff]
          %v9715 = vld [vmem:[#allocation2 + $0x38] sm:$0xff]
          %v9716 = vld [vmem:[#allocation2 + $0x40] sm:$0xff]
          %v9717 = vld [vmem:[#allocation2 + $0x48] sm:$0xff]
          %v9718 = vld [vmem:[#allocation2 + $0x50] sm:$0xff]
          %v9719 = vld [vmem:[#allocation2 + $0x58] sm:$0xff]
          %v9720 = vld [vmem:[#allocation2 + $0x60] sm:$0xff]
          %v9721 = vld [vmem:[#allocation2 + $0x68] sm:$0xff]
          %v9722 = vld [vmem:[#allocation2 + $0x70] sm:$0xff]
          %v9723 = vld [vmem:[#allocation2 + $0x78] sm:$0xff]
          %v9724 = vpack.c.bf16 %v9708, %v9708
          %v9725 = vpack.c.bf16 %v9709, %v9709
          %v9726 = vpack.c.bf16 %v9710, %v9710
          %v9727 = vpack.c.bf16 %v9711, %v9711
          %v9728 = vpack.c.bf16 %v9712, %v9712
          %v9729 = vpack.c.bf16 %v9713, %v9713
          %v9730 = vpack.c.bf16 %v9714, %v9714
          %v9731 = vpack.c.bf16 %v9715, %v9715
          %v9732 = vpack.c.bf16 %v9716, %v9716
          %v9733 = vpack.c.bf16 %v9717, %v9717
          %v9734 = vpack.c.bf16 %v9718, %v9718
          %v9735 = vpack.c.bf16 %v9719, %v9719
          %v9736 = vpack.c.bf16 %v9720, %v9720
          %v9737 = vpack.c.bf16 %v9721, %v9721
          %v9738 = vpack.c.bf16 %v9722, %v9722
          %v9739 = vpack.c.bf16 %v9723, %v9723
          %v9740 = vld [vmem:[#allocation12] sm:$0xf]
          %v9741 = vld [vmem:[#allocation12 + $0x4] sm:$0xf]
          %v9742 = vld [vmem:[#allocation12 + $0x8] sm:$0xf]
          %v9743 = vld [vmem:[#allocation12 + $0xc] sm:$0xf]
          %v9744 = vld [vmem:[#allocation12 + $0x10] sm:$0xf]
          %v9745 = vld [vmem:[#allocation12 + $0x14] sm:$0xf]
          %v9746 = vld [vmem:[#allocation12 + $0x18] sm:$0xf]
          %v9747 = vld [vmem:[#allocation12 + $0x1c] sm:$0xf]
          %v9748 = vld [vmem:[#allocation12 + $0x20] sm:$0xf]
          %v9749 = vld [vmem:[#allocation12 + $0x24] sm:$0xf]
          %v9750 = vld [vmem:[#allocation12 + $0x28] sm:$0xf]
          %v9751 = vld [vmem:[#allocation12 + $0x2c] sm:$0xf]
          %v9752 = vld [vmem:[#allocation12 + $0x30] sm:$0xf]
          %v9753 = vld [vmem:[#allocation12 + $0x34] sm:$0xf]
          %v9754 = vld [vmem:[#allocation12 + $0x38] sm:$0xf]
          %v9755 = vld [vmem:[#allocation12 + $0x3c] sm:$0xf]
          %v9756 = vld [vmem:[#allocation12 + $0x40] sm:$0xf]
          %v9757 = vld [vmem:[#allocation12 + $0x44] sm:$0xf]
          %v9758 = vld [vmem:[#allocation12 + $0x48] sm:$0xf]
          %v9759 = vld [vmem:[#allocation12 + $0x4c] sm:$0xf]
          %v9760 = vld [vmem:[#allocation12 + $0x50] sm:$0xf]
          %v9761 = vld [vmem:[#allocation12 + $0x54] sm:$0xf]
          %v9762 = vld [vmem:[#allocation12 + $0x58] sm:$0xf]
          %v9763 = vld [vmem:[#allocation12 + $0x5c] sm:$0xf]
          %v9764 = vld [vmem:[#allocation12 + $0x60] sm:$0xf]
          %v9765 = vld [vmem:[#allocation12 + $0x64] sm:$0xf]
          %v9766 = vld [vmem:[#allocation12 + $0x68] sm:$0xf]
          %v9767 = vld [vmem:[#allocation12 + $0x6c] sm:$0xf]
          %v9768 = vld [vmem:[#allocation12 + $0x70] sm:$0xf]
          %v9769 = vld [vmem:[#allocation12 + $0x74] sm:$0xf]
          %v9770 = vld [vmem:[#allocation12 + $0x78] sm:$0xf]
          %v9771 = vld [vmem:[#allocation12 + $0x7c] sm:$0xf]
          %v9772 = vld [vmem:[#allocation12 + $0x80] sm:$0xf]
          %v9773 = vld [vmem:[#allocation12 + $0x84] sm:$0xf]
          %v9774 = vld [vmem:[#allocation12 + $0x88] sm:$0xf]
          %v9775 = vld [vmem:[#allocation12 + $0x8c] sm:$0xf]
          %v9776 = vld [vmem:[#allocation12 + $0x90] sm:$0xf]
          %v9777 = vld [vmem:[#allocation12 + $0x94] sm:$0xf]
          %v9778 = vld [vmem:[#allocation12 + $0x98] sm:$0xf]
          %v9779 = vld [vmem:[#allocation12 + $0x9c] sm:$0xf]
          %v9780 = vld [vmem:[#allocation12 + $0xa0] sm:$0xf]
          %v9781 = vld [vmem:[#allocation12 + $0xa4] sm:$0xf]
          %v9782 = vld [vmem:[#allocation12 + $0xa8] sm:$0xf]
          %v9783 = vld [vmem:[#allocation12 + $0xac] sm:$0xf]
          %v9784 = vld [vmem:[#allocation12 + $0xb0] sm:$0xf]
          %v9785 = vld [vmem:[#allocation12 + $0xb4] sm:$0xf]
          %v9786 = vld [vmem:[#allocation12 + $0xb8] sm:$0xf]
          %v9787 = vld [vmem:[#allocation12 + $0xbc] sm:$0xf]
          %v9788 = vld [vmem:[#allocation12 + $0xc0] sm:$0xf]
          %v9789 = vld [vmem:[#allocation12 + $0xc4] sm:$0xf]
          %v9790 = vld [vmem:[#allocation12 + $0xc8] sm:$0xf]
          %v9791 = vld [vmem:[#allocation12 + $0xcc] sm:$0xf]
          %v9792 = vld [vmem:[#allocation12 + $0xd0] sm:$0xf]
          %v9793 = vld [vmem:[#allocation12 + $0xd4] sm:$0xf]
          %v9794 = vld [vmem:[#allocation12 + $0xd8] sm:$0xf]
          %v9795 = vld [vmem:[#allocation12 + $0xdc] sm:$0xf]
          %v9796 = vld [vmem:[#allocation12 + $0xe0] sm:$0xf]
          %v9797 = vld [vmem:[#allocation12 + $0xe4] sm:$0xf]
          %v9798 = vld [vmem:[#allocation12 + $0xe8] sm:$0xf]
          %v9799 = vld [vmem:[#allocation12 + $0xec] sm:$0xf]
          %v9800 = vld [vmem:[#allocation12 + $0xf0] sm:$0xf]
          %v9801 = vld [vmem:[#allocation12 + $0xf4] sm:$0xf]
          %v9802 = vld [vmem:[#allocation12 + $0xf8] sm:$0xf]
          %v9803 = vld [vmem:[#allocation12 + $0xfc] sm:$0xf]
          %v9804 = vld [vmem:[#allocation12 + $0x100] sm:$0xf]
          %v9805 = vld [vmem:[#allocation12 + $0x104] sm:$0xf]
          %v9806 = vld [vmem:[#allocation12 + $0x108] sm:$0xf]
          %v9807 = vld [vmem:[#allocation12 + $0x10c] sm:$0xf]
          %v9808 = vld [vmem:[#allocation12 + $0x110] sm:$0xf]
          %v9809 = vld [vmem:[#allocation12 + $0x114] sm:$0xf]
          %v9810 = vld [vmem:[#allocation12 + $0x118] sm:$0xf]
          %v9811 = vld [vmem:[#allocation12 + $0x11c] sm:$0xf]
          %v9812 = vld [vmem:[#allocation12 + $0x120] sm:$0xf]
          %v9813 = vld [vmem:[#allocation12 + $0x124] sm:$0xf]
          %v9814 = vld [vmem:[#allocation12 + $0x128] sm:$0xf]
          %v9815 = vld [vmem:[#allocation12 + $0x12c] sm:$0xf]
          %v9816 = vld [vmem:[#allocation12 + $0x130] sm:$0xf]
          %v9817 = vld [vmem:[#allocation12 + $0x134] sm:$0xf]
          %v9818 = vld [vmem:[#allocation12 + $0x138] sm:$0xf]
          %v9819 = vld [vmem:[#allocation12 + $0x13c] sm:$0xf]
          %v9820 = vld [vmem:[#allocation12 + $0x140] sm:$0xf]
          %v9821 = vld [vmem:[#allocation12 + $0x144] sm:$0xf]
          %v9822 = vld [vmem:[#allocation12 + $0x148] sm:$0xf]
          %v9823 = vld [vmem:[#allocation12 + $0x14c] sm:$0xf]
          %v9824 = vld [vmem:[#allocation12 + $0x150] sm:$0xf]
          %v9825 = vld [vmem:[#allocation12 + $0x154] sm:$0xf]
          %v9826 = vld [vmem:[#allocation12 + $0x158] sm:$0xf]
          %v9827 = vld [vmem:[#allocation12 + $0x15c] sm:$0xf]
          %v9828 = vld [vmem:[#allocation12 + $0x160] sm:$0xf]
          %v9829 = vld [vmem:[#allocation12 + $0x164] sm:$0xf]
          %v9830 = vld [vmem:[#allocation12 + $0x168] sm:$0xf]
          %v9831 = vld [vmem:[#allocation12 + $0x16c] sm:$0xf]
          %v9832 = vld [vmem:[#allocation12 + $0x170] sm:$0xf]
          %v9833 = vld [vmem:[#allocation12 + $0x174] sm:$0xf]
          %v9834 = vld [vmem:[#allocation12 + $0x178] sm:$0xf]
          %v9835 = vld [vmem:[#allocation12 + $0x17c] sm:$0xf]
          %v9836 = vld [vmem:[#allocation12 + $0x180] sm:$0xf]
          %v9837 = vld [vmem:[#allocation12 + $0x184] sm:$0xf]
          %v9838 = vld [vmem:[#allocation12 + $0x188] sm:$0xf]
          %v9839 = vld [vmem:[#allocation12 + $0x18c] sm:$0xf]
          %v9840 = vld [vmem:[#allocation12 + $0x190] sm:$0xf]
          %v9841 = vld [vmem:[#allocation12 + $0x194] sm:$0xf]
          %v9842 = vld [vmem:[#allocation12 + $0x198] sm:$0xf]
          %v9843 = vld [vmem:[#allocation12 + $0x19c] sm:$0xf]
          %v9844 = vld [vmem:[#allocation12 + $0x1a0] sm:$0xf]
          %v9845 = vld [vmem:[#allocation12 + $0x1a4] sm:$0xf]
          %v9846 = vld [vmem:[#allocation12 + $0x1a8] sm:$0xf]
          %v9847 = vld [vmem:[#allocation12 + $0x1ac] sm:$0xf]
          %v9848 = vld [vmem:[#allocation12 + $0x1b0] sm:$0xf]
          %v9849 = vld [vmem:[#allocation12 + $0x1b4] sm:$0xf]
          %v9850 = vld [vmem:[#allocation12 + $0x1b8] sm:$0xf]
          %v9851 = vld [vmem:[#allocation12 + $0x1bc] sm:$0xf]
          %v9852 = vld [vmem:[#allocation12 + $0x1c0] sm:$0xf]
          %v9853 = vld [vmem:[#allocation12 + $0x1c4] sm:$0xf]
          %v9854 = vld [vmem:[#allocation12 + $0x1c8] sm:$0xf]
          %v9855 = vld [vmem:[#allocation12 + $0x1cc] sm:$0xf]
          %v9856 = vld [vmem:[#allocation12 + $0x1d0] sm:$0xf]
          %v9857 = vld [vmem:[#allocation12 + $0x1d4] sm:$0xf]
          %v9858 = vld [vmem:[#allocation12 + $0x1d8] sm:$0xf]
          %v9859 = vld [vmem:[#allocation12 + $0x1dc] sm:$0xf]
          %v9860 = vld [vmem:[#allocation12 + $0x1e0] sm:$0xf]
          %v9861 = vld [vmem:[#allocation12 + $0x1e4] sm:$0xf]
          %v9862 = vld [vmem:[#allocation12 + $0x1e8] sm:$0xf]
          %v9863 = vld [vmem:[#allocation12 + $0x1ec] sm:$0xf]
          %v9864 = vld [vmem:[#allocation12 + $0x1f0] sm:$0xf]
          %v9865 = vld [vmem:[#allocation12 + $0x1f4] sm:$0xf]
          %v9866 = vld [vmem:[#allocation12 + $0x1f8] sm:$0xf]
          %v9867 = vld [vmem:[#allocation12 + $0x1fc] sm:$0xf]
          %v9868 = vld [vmem:[#allocation12 + $0x200] sm:$0xf]
          %v9869 = vld [vmem:[#allocation12 + $0x204] sm:$0xf]
          %v9870 = vld [vmem:[#allocation12 + $0x208] sm:$0xf]
          %v9871 = vld [vmem:[#allocation12 + $0x20c] sm:$0xf]
          %v9872 = vld [vmem:[#allocation12 + $0x210] sm:$0xf]
          %v9873 = vld [vmem:[#allocation12 + $0x214] sm:$0xf]
          %v9874 = vld [vmem:[#allocation12 + $0x218] sm:$0xf]
          %v9875 = vld [vmem:[#allocation12 + $0x21c] sm:$0xf]
          %v9876 = vld [vmem:[#allocation12 + $0x220] sm:$0xf]
          %v9877 = vld [vmem:[#allocation12 + $0x224] sm:$0xf]
          %v9878 = vld [vmem:[#allocation12 + $0x228] sm:$0xf]
          %v9879 = vld [vmem:[#allocation12 + $0x22c] sm:$0xf]
          %v9880 = vld [vmem:[#allocation12 + $0x230] sm:$0xf]
          %v9881 = vld [vmem:[#allocation12 + $0x234] sm:$0xf]
          %v9882 = vld [vmem:[#allocation12 + $0x238] sm:$0xf]
          %v9883 = vld [vmem:[#allocation12 + $0x23c] sm:$0xf]
          %v9884 = vld [vmem:[#allocation12 + $0x240] sm:$0xf]
          %v9885 = vld [vmem:[#allocation12 + $0x244] sm:$0xf]
          %v9886 = vld [vmem:[#allocation12 + $0x248] sm:$0xf]
          %v9887 = vld [vmem:[#allocation12 + $0x24c] sm:$0xf]
          %v9888 = vld [vmem:[#allocation12 + $0x250] sm:$0xf]
          %v9889 = vld [vmem:[#allocation12 + $0x254] sm:$0xf]
          %v9890 = vld [vmem:[#allocation12 + $0x258] sm:$0xf]
          %v9891 = vld [vmem:[#allocation12 + $0x25c] sm:$0xf]
          %v9892 = vld [vmem:[#allocation12 + $0x260] sm:$0xf]
          %v9893 = vld [vmem:[#allocation12 + $0x264] sm:$0xf]
          %v9894 = vld [vmem:[#allocation12 + $0x268] sm:$0xf]
          %v9895 = vld [vmem:[#allocation12 + $0x26c] sm:$0xf]
          %v9896 = vld [vmem:[#allocation12 + $0x270] sm:$0xf]
          %v9897 = vld [vmem:[#allocation12 + $0x274] sm:$0xf]
          %v9898 = vld [vmem:[#allocation12 + $0x278] sm:$0xf]
          %v9899 = vld [vmem:[#allocation12 + $0x27c] sm:$0xf]
          %v9900 = vld [vmem:[#allocation12 + $0x280] sm:$0xf]
          %v9901 = vld [vmem:[#allocation12 + $0x284] sm:$0xf]
          %v9902 = vld [vmem:[#allocation12 + $0x288] sm:$0xf]
          %v9903 = vld [vmem:[#allocation12 + $0x28c] sm:$0xf]
          %v9904 = vld [vmem:[#allocation12 + $0x290] sm:$0xf]
          %v9905 = vld [vmem:[#allocation12 + $0x294] sm:$0xf]
          %v9906 = vld [vmem:[#allocation12 + $0x298] sm:$0xf]
          %v9907 = vld [vmem:[#allocation12 + $0x29c] sm:$0xf]
          %v9908 = vld [vmem:[#allocation12 + $0x2a0] sm:$0xf]
          %v9909 = vld [vmem:[#allocation12 + $0x2a4] sm:$0xf]
          %v9910 = vld [vmem:[#allocation12 + $0x2a8] sm:$0xf]
          %v9911 = vld [vmem:[#allocation12 + $0x2ac] sm:$0xf]
          %v9912 = vld [vmem:[#allocation12 + $0x2b0] sm:$0xf]
          %v9913 = vld [vmem:[#allocation12 + $0x2b4] sm:$0xf]
          %v9914 = vld [vmem:[#allocation12 + $0x2b8] sm:$0xf]
          %v9915 = vld [vmem:[#allocation12 + $0x2bc] sm:$0xf]
          %v9916 = vld [vmem:[#allocation12 + $0x2c0] sm:$0xf]
          %v9917 = vld [vmem:[#allocation12 + $0x2c4] sm:$0xf]
          %v9918 = vld [vmem:[#allocation12 + $0x2c8] sm:$0xf]
          %v9919 = vld [vmem:[#allocation12 + $0x2cc] sm:$0xf]
          %v9920 = vld [vmem:[#allocation12 + $0x2d0] sm:$0xf]
          %v9921 = vld [vmem:[#allocation12 + $0x2d4] sm:$0xf]
          %v9922 = vld [vmem:[#allocation12 + $0x2d8] sm:$0xf]
          %v9923 = vld [vmem:[#allocation12 + $0x2dc] sm:$0xf]
          %v9924 = vld [vmem:[#allocation12 + $0x2e0] sm:$0xf]
          %v9925 = vld [vmem:[#allocation12 + $0x2e4] sm:$0xf]
          %v9926 = vld [vmem:[#allocation12 + $0x2e8] sm:$0xf]
          %v9927 = vld [vmem:[#allocation12 + $0x2ec] sm:$0xf]
          %v9928 = vld [vmem:[#allocation12 + $0x2f0] sm:$0xf]
          %v9929 = vld [vmem:[#allocation12 + $0x2f4] sm:$0xf]
          %v9930 = vld [vmem:[#allocation12 + $0x2f8] sm:$0xf]
          %v9931 = vld [vmem:[#allocation12 + $0x2fc] sm:$0xf]
          %v9932 = vld [vmem:[#allocation12 + $0x300] sm:$0xf]
          %v9933 = vld [vmem:[#allocation12 + $0x304] sm:$0xf]
          %v9934 = vld [vmem:[#allocation12 + $0x308] sm:$0xf]
          %v9935 = vld [vmem:[#allocation12 + $0x30c] sm:$0xf]
          %v9936 = vld [vmem:[#allocation12 + $0x310] sm:$0xf]
          %v9937 = vld [vmem:[#allocation12 + $0x314] sm:$0xf]
          %v9938 = vld [vmem:[#allocation12 + $0x318] sm:$0xf]
          %v9939 = vld [vmem:[#allocation12 + $0x31c] sm:$0xf]
          %v9940 = vld [vmem:[#allocation12 + $0x320] sm:$0xf]
          %v9941 = vld [vmem:[#allocation12 + $0x324] sm:$0xf]
          %v9942 = vld [vmem:[#allocation12 + $0x328] sm:$0xf]
          %v9943 = vld [vmem:[#allocation12 + $0x32c] sm:$0xf]
          %v9944 = vld [vmem:[#allocation12 + $0x330] sm:$0xf]
          %v9945 = vld [vmem:[#allocation12 + $0x334] sm:$0xf]
          %v9946 = vld [vmem:[#allocation12 + $0x338] sm:$0xf]
          %v9947 = vld [vmem:[#allocation12 + $0x33c] sm:$0xf]
          %v9948 = vld [vmem:[#allocation12 + $0x340] sm:$0xf]
          %v9949 = vld [vmem:[#allocation12 + $0x344] sm:$0xf]
          %v9950 = vld [vmem:[#allocation12 + $0x348] sm:$0xf]
          %v9951 = vld [vmem:[#allocation12 + $0x34c] sm:$0xf]
          %v9952 = vld [vmem:[#allocation12 + $0x350] sm:$0xf]
          %v9953 = vld [vmem:[#allocation12 + $0x354] sm:$0xf]
          %v9954 = vld [vmem:[#allocation12 + $0x358] sm:$0xf]
          %v9955 = vld [vmem:[#allocation12 + $0x35c] sm:$0xf]
          %v9956 = vld [vmem:[#allocation12 + $0x360] sm:$0xf]
          %v9957 = vld [vmem:[#allocation12 + $0x364] sm:$0xf]
          %v9958 = vld [vmem:[#allocation12 + $0x368] sm:$0xf]
          %v9959 = vld [vmem:[#allocation12 + $0x36c] sm:$0xf]
          %v9960 = vld [vmem:[#allocation12 + $0x370] sm:$0xf]
          %v9961 = vld [vmem:[#allocation12 + $0x374] sm:$0xf]
          %v9962 = vld [vmem:[#allocation12 + $0x378] sm:$0xf]
          %v9963 = vld [vmem:[#allocation12 + $0x37c] sm:$0xf]
          %v9964 = vld [vmem:[#allocation12 + $0x380] sm:$0xf]
          %v9965 = vld [vmem:[#allocation12 + $0x384] sm:$0xf]
          %v9966 = vld [vmem:[#allocation12 + $0x388] sm:$0xf]
          %v9967 = vld [vmem:[#allocation12 + $0x38c] sm:$0xf]
          %v9968 = vld [vmem:[#allocation12 + $0x390] sm:$0xf]
          %v9969 = vld [vmem:[#allocation12 + $0x394] sm:$0xf]
          %v9970 = vld [vmem:[#allocation12 + $0x398] sm:$0xf]
          %v9971 = vld [vmem:[#allocation12 + $0x39c] sm:$0xf]
          %v9972 = vld [vmem:[#allocation12 + $0x3a0] sm:$0xf]
          %v9973 = vld [vmem:[#allocation12 + $0x3a4] sm:$0xf]
          %v9974 = vld [vmem:[#allocation12 + $0x3a8] sm:$0xf]
          %v9975 = vld [vmem:[#allocation12 + $0x3ac] sm:$0xf]
          %v9976 = vld [vmem:[#allocation12 + $0x3b0] sm:$0xf]
          %v9977 = vld [vmem:[#allocation12 + $0x3b4] sm:$0xf]
          %v9978 = vld [vmem:[#allocation12 + $0x3b8] sm:$0xf]
          %v9979 = vld [vmem:[#allocation12 + $0x3bc] sm:$0xf]
          %v9980 = vld [vmem:[#allocation12 + $0x3c0] sm:$0xf]
          %v9981 = vld [vmem:[#allocation12 + $0x3c4] sm:$0xf]
          %v9982 = vld [vmem:[#allocation12 + $0x3c8] sm:$0xf]
          %v9983 = vld [vmem:[#allocation12 + $0x3cc] sm:$0xf]
          %v9984 = vld [vmem:[#allocation12 + $0x3d0] sm:$0xf]
          %v9985 = vld [vmem:[#allocation12 + $0x3d4] sm:$0xf]
          %v9986 = vld [vmem:[#allocation12 + $0x3d8] sm:$0xf]
          %v9987 = vld [vmem:[#allocation12 + $0x3dc] sm:$0xf]
          %v9988 = vld [vmem:[#allocation12 + $0x3e0] sm:$0xf]
          %v9989 = vld [vmem:[#allocation12 + $0x3e4] sm:$0xf]
          %v9990 = vld [vmem:[#allocation12 + $0x3e8] sm:$0xf]
          %v9991 = vld [vmem:[#allocation12 + $0x3ec] sm:$0xf]
          %v9992 = vld [vmem:[#allocation12 + $0x3f0] sm:$0xf]
          %v9993 = vld [vmem:[#allocation12 + $0x3f4] sm:$0xf]
          %v9994 = vld [vmem:[#allocation12 + $0x3f8] sm:$0xf]
          %v9995 = vld [vmem:[#allocation12 + $0x3fc] sm:$0xf]
          %v9996 = vld [vmem:[#allocation13] sm:$0x1]
          %v9998 = vlaneseq
          %v9999 = vshrl.u32 %v9998, 7
          %v10000 = vsub.s32 0, %v9999
          %v10001 = vrot.slane %v9996, %v10000
          %v10259 = vunpack.c.l.b16 %v9740
          %v10260 = vunpack.c.l.b16 %v9741
          %v10261 = vunpack.c.l.b16 %v9742
          %v10262 = vunpack.c.l.b16 %v9743
          %v10263 = vunpack.c.l.b16 %v9744
          %v10264 = vunpack.c.l.b16 %v9745
          %v10265 = vunpack.c.l.b16 %v9746
          %v10266 = vunpack.c.l.b16 %v9747
          %v10267 = vunpack.c.l.b16 %v9748
          %v10268 = vunpack.c.l.b16 %v9749
          %v10269 = vunpack.c.l.b16 %v9750
          %v10270 = vunpack.c.l.b16 %v9751
          %v10271 = vunpack.c.l.b16 %v9752
          %v10272 = vunpack.c.l.b16 %v9753
          %v10273 = vunpack.c.l.b16 %v9754
          %v10274 = vunpack.c.l.b16 %v9755
          %v10275 = vunpack.c.l.b16 %v9756
          %v10276 = vunpack.c.l.b16 %v9757
          %v10277 = vunpack.c.l.b16 %v9758
          %v10278 = vunpack.c.l.b16 %v9759
          %v10279 = vunpack.c.l.b16 %v9760
          %v10280 = vunpack.c.l.b16 %v9761
          %v10281 = vunpack.c.l.b16 %v9762
          %v10282 = vunpack.c.l.b16 %v9763
          %v10283 = vunpack.c.l.b16 %v9764
          %v10284 = vunpack.c.l.b16 %v9765
          %v10285 = vunpack.c.l.b16 %v9766
          %v10286 = vunpack.c.l.b16 %v9767
          %v10287 = vunpack.c.l.b16 %v9768
          %v10288 = vunpack.c.l.b16 %v9769
          %v10289 = vunpack.c.l.b16 %v9770
          %v10290 = vunpack.c.l.b16 %v9771
          %v10291 = vunpack.c.l.b16 %v9772
          %v10292 = vunpack.c.l.b16 %v9773
          %v10293 = vunpack.c.l.b16 %v9774
          %v10294 = vunpack.c.l.b16 %v9775
          %v10295 = vunpack.c.l.b16 %v9776
          %v10296 = vunpack.c.l.b16 %v9777
          %v10297 = vunpack.c.l.b16 %v9778
          %v10298 = vunpack.c.l.b16 %v9779
          %v10299 = vunpack.c.l.b16 %v9780
          %v10300 = vunpack.c.l.b16 %v9781
          %v10301 = vunpack.c.l.b16 %v9782
          %v10302 = vunpack.c.l.b16 %v9783
          %v10303 = vunpack.c.l.b16 %v9784
          %v10304 = vunpack.c.l.b16 %v9785
          %v10305 = vunpack.c.l.b16 %v9786
          %v10306 = vunpack.c.l.b16 %v9787
          %v10307 = vunpack.c.l.b16 %v9788
          %v10308 = vunpack.c.l.b16 %v9789
          %v10309 = vunpack.c.l.b16 %v9790
          %v10310 = vunpack.c.l.b16 %v9791
          %v10311 = vunpack.c.l.b16 %v9792
          %v10312 = vunpack.c.l.b16 %v9793
          %v10313 = vunpack.c.l.b16 %v9794
          %v10314 = vunpack.c.l.b16 %v9795
          %v10315 = vunpack.c.l.b16 %v9796
          %v10316 = vunpack.c.l.b16 %v9797
          %v10317 = vunpack.c.l.b16 %v9798
          %v10318 = vunpack.c.l.b16 %v9799
          %v10319 = vunpack.c.l.b16 %v9800
          %v10320 = vunpack.c.l.b16 %v9801
          %v10321 = vunpack.c.l.b16 %v9802
          %v10322 = vunpack.c.l.b16 %v9803
          %v10323 = vunpack.c.l.b16 %v9804
          %v10324 = vunpack.c.l.b16 %v9805
          %v10325 = vunpack.c.l.b16 %v9806
          %v10326 = vunpack.c.l.b16 %v9807
          %v10327 = vunpack.c.l.b16 %v9808
          %v10328 = vunpack.c.l.b16 %v9809
          %v10329 = vunpack.c.l.b16 %v9810
          %v10330 = vunpack.c.l.b16 %v9811
          %v10331 = vunpack.c.l.b16 %v9812
          %v10332 = vunpack.c.l.b16 %v9813
          %v10333 = vunpack.c.l.b16 %v9814
          %v10334 = vunpack.c.l.b16 %v9815
          %v10335 = vunpack.c.l.b16 %v9816
          %v10336 = vunpack.c.l.b16 %v9817
          %v10337 = vunpack.c.l.b16 %v9818
          %v10338 = vunpack.c.l.b16 %v9819
          %v10339 = vunpack.c.l.b16 %v9820
          %v10340 = vunpack.c.l.b16 %v9821
          %v10341 = vunpack.c.l.b16 %v9822
          %v10342 = vunpack.c.l.b16 %v9823
          %v10343 = vunpack.c.l.b16 %v9824
          %v10344 = vunpack.c.l.b16 %v9825
          %v10345 = vunpack.c.l.b16 %v9826
          %v10346 = vunpack.c.l.b16 %v9827
          %v10347 = vunpack.c.l.b16 %v9828
          %v10348 = vunpack.c.l.b16 %v9829
          %v10349 = vunpack.c.l.b16 %v9830
          %v10350 = vunpack.c.l.b16 %v9831
          %v10351 = vunpack.c.l.b16 %v9832
          %v10352 = vunpack.c.l.b16 %v9833
          %v10353 = vunpack.c.l.b16 %v9834
          %v10354 = vunpack.c.l.b16 %v9835
          %v10355 = vunpack.c.l.b16 %v9836
          %v10356 = vunpack.c.l.b16 %v9837
          %v10357 = vunpack.c.l.b16 %v9838
          %v10358 = vunpack.c.l.b16 %v9839
          %v10359 = vunpack.c.l.b16 %v9840
          %v10360 = vunpack.c.l.b16 %v9841
          %v10361 = vunpack.c.l.b16 %v9842
          %v10362 = vunpack.c.l.b16 %v9843
          %v10363 = vunpack.c.l.b16 %v9844
          %v10364 = vunpack.c.l.b16 %v9845
          %v10365 = vunpack.c.l.b16 %v9846
          %v10366 = vunpack.c.l.b16 %v9847
          %v10367 = vunpack.c.l.b16 %v9848
          %v10368 = vunpack.c.l.b16 %v9849
          %v10369 = vunpack.c.l.b16 %v9850
          %v10370 = vunpack.c.l.b16 %v9851
          %v10371 = vunpack.c.l.b16 %v9852
          %v10372 = vunpack.c.l.b16 %v9853
          %v10373 = vunpack.c.l.b16 %v9854
          %v10374 = vunpack.c.l.b16 %v9855
          %v10375 = vunpack.c.l.b16 %v9856
          %v10376 = vunpack.c.l.b16 %v9857
          %v10377 = vunpack.c.l.b16 %v9858
          %v10378 = vunpack.c.l.b16 %v9859
          %v10379 = vunpack.c.l.b16 %v9860
          %v10380 = vunpack.c.l.b16 %v9861
          %v10381 = vunpack.c.l.b16 %v9862
          %v10382 = vunpack.c.l.b16 %v9863
          %v10383 = vunpack.c.l.b16 %v9864
          %v10384 = vunpack.c.l.b16 %v9865
          %v10385 = vunpack.c.l.b16 %v9866
          %v10386 = vunpack.c.l.b16 %v9867
          %v10387 = vunpack.c.l.b16 %v9868
          %v10388 = vunpack.c.l.b16 %v9869
          %v10389 = vunpack.c.l.b16 %v9870
          %v10390 = vunpack.c.l.b16 %v9871
          %v10391 = vunpack.c.l.b16 %v9872
          %v10392 = vunpack.c.l.b16 %v9873
          %v10393 = vunpack.c.l.b16 %v9874
          %v10394 = vunpack.c.l.b16 %v9875
          %v10395 = vunpack.c.l.b16 %v9876
          %v10396 = vunpack.c.l.b16 %v9877
          %v10397 = vunpack.c.l.b16 %v9878
          %v10398 = vunpack.c.l.b16 %v9879
          %v10399 = vunpack.c.l.b16 %v9880
          %v10400 = vunpack.c.l.b16 %v9881
          %v10401 = vunpack.c.l.b16 %v9882
          %v10402 = vunpack.c.l.b16 %v9883
          %v10403 = vunpack.c.l.b16 %v9884
          %v10404 = vunpack.c.l.b16 %v9885
          %v10405 = vunpack.c.l.b16 %v9886
          %v10406 = vunpack.c.l.b16 %v9887
          %v10407 = vunpack.c.l.b16 %v9888
          %v10408 = vunpack.c.l.b16 %v9889
          %v10409 = vunpack.c.l.b16 %v9890
          %v10410 = vunpack.c.l.b16 %v9891
          %v10411 = vunpack.c.l.b16 %v9892
          %v10412 = vunpack.c.l.b16 %v9893
          %v10413 = vunpack.c.l.b16 %v9894
          %v10414 = vunpack.c.l.b16 %v9895
          %v10415 = vunpack.c.l.b16 %v9896
          %v10416 = vunpack.c.l.b16 %v9897
          %v10417 = vunpack.c.l.b16 %v9898
          %v10418 = vunpack.c.l.b16 %v9899
          %v10419 = vunpack.c.l.b16 %v9900
          %v10420 = vunpack.c.l.b16 %v9901
          %v10421 = vunpack.c.l.b16 %v9902
          %v10422 = vunpack.c.l.b16 %v9903
          %v10423 = vunpack.c.l.b16 %v9904
          %v10424 = vunpack.c.l.b16 %v9905
          %v10425 = vunpack.c.l.b16 %v9906
          %v10426 = vunpack.c.l.b16 %v9907
          %v10427 = vunpack.c.l.b16 %v9908
          %v10428 = vunpack.c.l.b16 %v9909
          %v10429 = vunpack.c.l.b16 %v9910
          %v10430 = vunpack.c.l.b16 %v9911
          %v10431 = vunpack.c.l.b16 %v9912
          %v10432 = vunpack.c.l.b16 %v9913
          %v10433 = vunpack.c.l.b16 %v9914
          %v10434 = vunpack.c.l.b16 %v9915
          %v10435 = vunpack.c.l.b16 %v9916
          %v10436 = vunpack.c.l.b16 %v9917
          %v10437 = vunpack.c.l.b16 %v9918
          %v10438 = vunpack.c.l.b16 %v9919
          %v10439 = vunpack.c.l.b16 %v9920
          %v10440 = vunpack.c.l.b16 %v9921
          %v10441 = vunpack.c.l.b16 %v9922
          %v10442 = vunpack.c.l.b16 %v9923
          %v10443 = vunpack.c.l.b16 %v9924
          %v10444 = vunpack.c.l.b16 %v9925
          %v10445 = vunpack.c.l.b16 %v9926
          %v10446 = vunpack.c.l.b16 %v9927
          %v10447 = vunpack.c.l.b16 %v9928
          %v10448 = vunpack.c.l.b16 %v9929
          %v10449 = vunpack.c.l.b16 %v9930
          %v10450 = vunpack.c.l.b16 %v9931
          %v10451 = vunpack.c.l.b16 %v9932
          %v10452 = vunpack.c.l.b16 %v9933
          %v10453 = vunpack.c.l.b16 %v9934
          %v10454 = vunpack.c.l.b16 %v9935
          %v10455 = vunpack.c.l.b16 %v9936
          %v10456 = vunpack.c.l.b16 %v9937
          %v10457 = vunpack.c.l.b16 %v9938
          %v10458 = vunpack.c.l.b16 %v9939
          %v10459 = vunpack.c.l.b16 %v9940
          %v10460 = vunpack.c.l.b16 %v9941
          %v10461 = vunpack.c.l.b16 %v9942
          %v10462 = vunpack.c.l.b16 %v9943
          %v10463 = vunpack.c.l.b16 %v9944
          %v10464 = vunpack.c.l.b16 %v9945
          %v10465 = vunpack.c.l.b16 %v9946
          %v10466 = vunpack.c.l.b16 %v9947
          %v10467 = vunpack.c.l.b16 %v9948
          %v10468 = vunpack.c.l.b16 %v9949
          %v10469 = vunpack.c.l.b16 %v9950
          %v10470 = vunpack.c.l.b16 %v9951
          %v10471 = vunpack.c.l.b16 %v9952
          %v10472 = vunpack.c.l.b16 %v9953
          %v10473 = vunpack.c.l.b16 %v9954
          %v10474 = vunpack.c.l.b16 %v9955
          %v10475 = vunpack.c.l.b16 %v9956
          %v10476 = vunpack.c.l.b16 %v9957
          %v10477 = vunpack.c.l.b16 %v9958
          %v10478 = vunpack.c.l.b16 %v9959
          %v10479 = vunpack.c.l.b16 %v9960
          %v10480 = vunpack.c.l.b16 %v9961
          %v10481 = vunpack.c.l.b16 %v9962
          %v10482 = vunpack.c.l.b16 %v9963
          %v10483 = vunpack.c.l.b16 %v9964
          %v10484 = vunpack.c.l.b16 %v9965
          %v10485 = vunpack.c.l.b16 %v9966
          %v10486 = vunpack.c.l.b16 %v9967
          %v10487 = vunpack.c.l.b16 %v9968
          %v10488 = vunpack.c.l.b16 %v9969
          %v10489 = vunpack.c.l.b16 %v9970
          %v10490 = vunpack.c.l.b16 %v9971
          %v10491 = vunpack.c.l.b16 %v9972
          %v10492 = vunpack.c.l.b16 %v9973
          %v10493 = vunpack.c.l.b16 %v9974
          %v10494 = vunpack.c.l.b16 %v9975
          %v10495 = vunpack.c.l.b16 %v9976
          %v10496 = vunpack.c.l.b16 %v9977
          %v10497 = vunpack.c.l.b16 %v9978
          %v10498 = vunpack.c.l.b16 %v9979
          %v10499 = vunpack.c.l.b16 %v9980
          %v10500 = vunpack.c.l.b16 %v9981
          %v10501 = vunpack.c.l.b16 %v9982
          %v10502 = vunpack.c.l.b16 %v9983
          %v10503 = vunpack.c.l.b16 %v9984
          %v10504 = vunpack.c.l.b16 %v9985
          %v10505 = vunpack.c.l.b16 %v9986
          %v10506 = vunpack.c.l.b16 %v9987
          %v10507 = vunpack.c.l.b16 %v9988
          %v10508 = vunpack.c.l.b16 %v9989
          %v10509 = vunpack.c.l.b16 %v9990
          %v10510 = vunpack.c.l.b16 %v9991
          %v10511 = vunpack.c.l.b16 %v9992
          %v10512 = vunpack.c.l.b16 %v9993
          %v10513 = vunpack.c.l.b16 %v9994
          %v10514 = vunpack.c.l.b16 %v9995
          %v10515 = vpack.c.b16 %v10260, %v10259
          %v10516 = vpack.c.b16 %v10262, %v10261
          %v10517 = vpack.c.b16 %v10264, %v10263
          %v10518 = vpack.c.b16 %v10266, %v10265
          %v10519 = vpack.c.b16 %v10268, %v10267
          %v10520 = vpack.c.b16 %v10270, %v10269
          %v10521 = vpack.c.b16 %v10272, %v10271
          %v10522 = vpack.c.b16 %v10274, %v10273
          %v10523 = vpack.c.b16 %v10276, %v10275
          %v10524 = vpack.c.b16 %v10278, %v10277
          %v10525 = vpack.c.b16 %v10280, %v10279
          %v10526 = vpack.c.b16 %v10282, %v10281
          %v10527 = vpack.c.b16 %v10284, %v10283
          %v10528 = vpack.c.b16 %v10286, %v10285
          %v10529 = vpack.c.b16 %v10288, %v10287
          %v10530 = vpack.c.b16 %v10290, %v10289
          %v10531 = vpack.c.b16 %v10292, %v10291
          %v10532 = vpack.c.b16 %v10294, %v10293
          %v10533 = vpack.c.b16 %v10296, %v10295
          %v10534 = vpack.c.b16 %v10298, %v10297
          %v10535 = vpack.c.b16 %v10300, %v10299
          %v10536 = vpack.c.b16 %v10302, %v10301
          %v10537 = vpack.c.b16 %v10304, %v10303
          %v10538 = vpack.c.b16 %v10306, %v10305
          %v10539 = vpack.c.b16 %v10308, %v10307
          %v10540 = vpack.c.b16 %v10310, %v10309
          %v10541 = vpack.c.b16 %v10312, %v10311
          %v10542 = vpack.c.b16 %v10314, %v10313
          %v10543 = vpack.c.b16 %v10316, %v10315
          %v10544 = vpack.c.b16 %v10318, %v10317
          %v10545 = vpack.c.b16 %v10320, %v10319
          %v10546 = vpack.c.b16 %v10322, %v10321
          %v10547 = vpack.c.b16 %v10324, %v10323
          %v10548 = vpack.c.b16 %v10326, %v10325
          %v10549 = vpack.c.b16 %v10328, %v10327
          %v10550 = vpack.c.b16 %v10330, %v10329
          %v10551 = vpack.c.b16 %v10332, %v10331
          %v10552 = vpack.c.b16 %v10334, %v10333
          %v10553 = vpack.c.b16 %v10336, %v10335
          %v10554 = vpack.c.b16 %v10338, %v10337
          %v10555 = vpack.c.b16 %v10340, %v10339
          %v10556 = vpack.c.b16 %v10342, %v10341
          %v10557 = vpack.c.b16 %v10344, %v10343
          %v10558 = vpack.c.b16 %v10346, %v10345
          %v10559 = vpack.c.b16 %v10348, %v10347
          %v10560 = vpack.c.b16 %v10350, %v10349
          %v10561 = vpack.c.b16 %v10352, %v10351
          %v10562 = vpack.c.b16 %v10354, %v10353
          %v10563 = vpack.c.b16 %v10356, %v10355
          %v10564 = vpack.c.b16 %v10358, %v10357
          %v10565 = vpack.c.b16 %v10360, %v10359
          %v10566 = vpack.c.b16 %v10362, %v10361
          %v10567 = vpack.c.b16 %v10364, %v10363
          %v10568 = vpack.c.b16 %v10366, %v10365
          %v10569 = vpack.c.b16 %v10368, %v10367
          %v10570 = vpack.c.b16 %v10370, %v10369
          %v10571 = vpack.c.b16 %v10372, %v10371
          %v10572 = vpack.c.b16 %v10374, %v10373
          %v10573 = vpack.c.b16 %v10376, %v10375
          %v10574 = vpack.c.b16 %v10378, %v10377
          %v10575 = vpack.c.b16 %v10380, %v10379
          %v10576 = vpack.c.b16 %v10382, %v10381
          %v10577 = vpack.c.b16 %v10384, %v10383
          %v10578 = vpack.c.b16 %v10386, %v10385
          %v10579 = vpack.c.b16 %v10388, %v10387
          %v10580 = vpack.c.b16 %v10390, %v10389
          %v10581 = vpack.c.b16 %v10392, %v10391
          %v10582 = vpack.c.b16 %v10394, %v10393
          %v10583 = vpack.c.b16 %v10396, %v10395
          %v10584 = vpack.c.b16 %v10398, %v10397
          %v10585 = vpack.c.b16 %v10400, %v10399
          %v10586 = vpack.c.b16 %v10402, %v10401
          %v10587 = vpack.c.b16 %v10404, %v10403
          %v10588 = vpack.c.b16 %v10406, %v10405
          %v10589 = vpack.c.b16 %v10408, %v10407
          %v10590 = vpack.c.b16 %v10410, %v10409
          %v10591 = vpack.c.b16 %v10412, %v10411
          %v10592 = vpack.c.b16 %v10414, %v10413
          %v10593 = vpack.c.b16 %v10416, %v10415
          %v10594 = vpack.c.b16 %v10418, %v10417
          %v10595 = vpack.c.b16 %v10420, %v10419
          %v10596 = vpack.c.b16 %v10422, %v10421
          %v10597 = vpack.c.b16 %v10424, %v10423
          %v10598 = vpack.c.b16 %v10426, %v10425
          %v10599 = vpack.c.b16 %v10428, %v10427
          %v10600 = vpack.c.b16 %v10430, %v10429
          %v10601 = vpack.c.b16 %v10432, %v10431
          %v10602 = vpack.c.b16 %v10434, %v10433
          %v10603 = vpack.c.b16 %v10436, %v10435
          %v10604 = vpack.c.b16 %v10438, %v10437
          %v10605 = vpack.c.b16 %v10440, %v10439
          %v10606 = vpack.c.b16 %v10442, %v10441
          %v10607 = vpack.c.b16 %v10444, %v10443
          %v10608 = vpack.c.b16 %v10446, %v10445
          %v10609 = vpack.c.b16 %v10448, %v10447
          %v10610 = vpack.c.b16 %v10450, %v10449
          %v10611 = vpack.c.b16 %v10452, %v10451
          %v10612 = vpack.c.b16 %v10454, %v10453
          %v10613 = vpack.c.b16 %v10456, %v10455
          %v10614 = vpack.c.b16 %v10458, %v10457
          %v10615 = vpack.c.b16 %v10460, %v10459
          %v10616 = vpack.c.b16 %v10462, %v10461
          %v10617 = vpack.c.b16 %v10464, %v10463
          %v10618 = vpack.c.b16 %v10466, %v10465
          %v10619 = vpack.c.b16 %v10468, %v10467
          %v10620 = vpack.c.b16 %v10470, %v10469
          %v10621 = vpack.c.b16 %v10472, %v10471
          %v10622 = vpack.c.b16 %v10474, %v10473
          %v10623 = vpack.c.b16 %v10476, %v10475
          %v10624 = vpack.c.b16 %v10478, %v10477
          %v10625 = vpack.c.b16 %v10480, %v10479
          %v10626 = vpack.c.b16 %v10482, %v10481
          %v10627 = vpack.c.b16 %v10484, %v10483
          %v10628 = vpack.c.b16 %v10486, %v10485
          %v10629 = vpack.c.b16 %v10488, %v10487
          %v10630 = vpack.c.b16 %v10490, %v10489
          %v10631 = vpack.c.b16 %v10492, %v10491
          %v10632 = vpack.c.b16 %v10494, %v10493
          %v10633 = vpack.c.b16 %v10496, %v10495
          %v10634 = vpack.c.b16 %v10498, %v10497
          %v10635 = vpack.c.b16 %v10500, %v10499
          %v10636 = vpack.c.b16 %v10502, %v10501
          %v10637 = vpack.c.b16 %v10504, %v10503
          %v10638 = vpack.c.b16 %v10506, %v10505
          %v10639 = vpack.c.b16 %v10508, %v10507
          %v10640 = vpack.c.b16 %v10510, %v10509
          %v10641 = vpack.c.b16 %v10512, %v10511
          %v10642 = vpack.c.b16 %v10514, %v10513
          %10771 = vmatprep.subr.bf16.mxu0 0
          %10772 = vmatpush1.bf16.msra.mxu0 %v10522
          %10773 = vmatprep.subr.bf16.mxu0 0
          %10774 = vmatpush1.bf16.msra.mxu0 %v10521
          %10775 = vmatprep.subr.bf16.mxu0 0
          %10776 = vmatpush1.bf16.msra.mxu0 %v10520
          %10777 = vmatprep.subr.bf16.mxu0 0
          %10778 = vmatpush1.bf16.msra.mxu0 %v10519
          %10779 = vmatprep.subr.bf16.mxu0 0
          %10780 = vmatpush1.bf16.msra.mxu0 %v10518
          %10781 = vmatprep.subr.bf16.mxu0 0
          %10782 = vmatpush1.bf16.msra.mxu0 %v10517
          %10783 = vmatprep.subr.bf16.mxu0 0
          %10784 = vmatpush1.bf16.msra.mxu0 %v10516
          %10785 = vmatprep.subr.bf16.mxu0 0
          %10786 = vmatpush1.bf16.msra.mxu0 %v10515
          %10787 = vmatprep.subr.bf16.mxu0 0
          %10788 = vmatpush2.bf16.msra.mxu0 %v10530
          %10789 = vmatprep.subr.bf16.mxu0 0
          %10790 = vmatpush2.bf16.msra.mxu0 %v10529
          %10791 = vmatprep.subr.bf16.mxu0 0
          %10792 = vmatpush2.bf16.msra.mxu0 %v10528
          %10793 = vmatprep.subr.bf16.mxu0 0
          %10794 = vmatpush2.bf16.msra.mxu0 %v10527
          %10795 = vmatprep.subr.bf16.mxu0 0
          %10796 = vmatpush2.bf16.msra.mxu0 %v10526
          %10797 = vmatprep.subr.bf16.mxu0 0
          %10798 = vmatpush2.bf16.msra.mxu0 %v10525
          %10799 = vmatprep.subr.bf16.mxu0 0
          %10800 = vmatpush2.bf16.msra.mxu0 %v10524
          %10801 = vmatprep.subr.bf16.mxu0 0
          %10802 = vmatpush2.bf16.msra.mxu0 %v10523
          %10803 = vmatprep.mubr.bf16.mxu0 %v9725
          %10804 = vmatmul.mubr.bf16.gmra.mxu0 %v9724
          %v10805 = vpop.f32.mrf.mxu0
          %v10806 = vadd.f32 %v10001, %v10805
          %v10807 = vpop.f32.mrf.mxu0
          %v10808 = vpop.f32.mrf.mxu0
          %v10809 = vpop.f32.mrf.mxu0
          %10810 = vdwg.mxu0
          %10811 = vmatprep.subr.bf16.mxu0 0
          %10812 = vmatpush1.bf16.msra.mxu0 %v10538
          %10813 = vmatprep.subr.bf16.mxu0 0
          %10814 = vmatpush1.bf16.msra.mxu0 %v10537
          %10815 = vmatprep.subr.bf16.mxu0 0
          %10816 = vmatpush1.bf16.msra.mxu0 %v10536
          %10817 = vmatprep.subr.bf16.mxu0 0
          %10818 = vmatpush1.bf16.msra.mxu0 %v10535
          %10819 = vmatprep.subr.bf16.mxu0 0
          %10820 = vmatpush1.bf16.msra.mxu0 %v10534
          %10821 = vmatprep.subr.bf16.mxu0 0
          %10822 = vmatpush1.bf16.msra.mxu0 %v10533
          %10823 = vmatprep.subr.bf16.mxu0 0
          %10824 = vmatpush1.bf16.msra.mxu0 %v10532
          %10825 = vmatprep.subr.bf16.mxu0 0
          %10826 = vmatpush1.bf16.msra.mxu0 %v10531
          %10827 = vmatprep.subr.bf16.mxu0 0
          %10828 = vmatpush2.bf16.msra.mxu0 %v10546
          %10829 = vmatprep.subr.bf16.mxu0 0
          %10830 = vmatpush2.bf16.msra.mxu0 %v10545
          %10831 = vmatprep.subr.bf16.mxu0 0
          %10832 = vmatpush2.bf16.msra.mxu0 %v10544
          %10833 = vmatprep.subr.bf16.mxu0 0
          %10834 = vmatpush2.bf16.msra.mxu0 %v10543
          %10835 = vmatprep.subr.bf16.mxu0 0
          %10836 = vmatpush2.bf16.msra.mxu0 %v10542
          %10837 = vmatprep.subr.bf16.mxu0 0
          %10838 = vmatpush2.bf16.msra.mxu0 %v10541
          %10839 = vmatprep.subr.bf16.mxu0 0
          %10840 = vmatpush2.bf16.msra.mxu0 %v10540
          %10841 = vmatprep.subr.bf16.mxu0 0
          %10842 = vmatpush2.bf16.msra.mxu0 %v10539
          %10843 = vmatprep.mubr.bf16.mxu0 %v9727
          %10844 = vmatmul.mubr.bf16.gmra.mxu0 %v9726
          %v10845 = vpop.f32.mrf.mxu0
          %v10846 = vadd.f32 %v10806, %v10845
          %v10847 = vpop.f32.mrf.mxu0
          %v10848 = vpop.f32.mrf.mxu0
          %v10849 = vpop.f32.mrf.mxu0
          %10850 = vdwg.mxu0
          %10851 = vmatprep.subr.bf16.mxu0 0
          %10852 = vmatpush1.bf16.msra.mxu0 %v10554
          %10853 = vmatprep.subr.bf16.mxu0 0
          %10854 = vmatpush1.bf16.msra.mxu0 %v10553
          %10855 = vmatprep.subr.bf16.mxu0 0
          %10856 = vmatpush1.bf16.msra.mxu0 %v10552
          %10857 = vmatprep.subr.bf16.mxu0 0
          %10858 = vmatpush1.bf16.msra.mxu0 %v10551
          %10859 = vmatprep.subr.bf16.mxu0 0
          %10860 = vmatpush1.bf16.msra.mxu0 %v10550
          %10861 = vmatprep.subr.bf16.mxu0 0
          %10862 = vmatpush1.bf16.msra.mxu0 %v10549
          %10863 = vmatprep.subr.bf16.mxu0 0
          %10864 = vmatpush1.bf16.msra.mxu0 %v10548
          %10865 = vmatprep.subr.bf16.mxu0 0
          %10866 = vmatpush1.bf16.msra.mxu0 %v10547
          %10867 = vmatprep.subr.bf16.mxu0 0
          %10868 = vmatpush2.bf16.msra.mxu0 %v10562
          %10869 = vmatprep.subr.bf16.mxu0 0
          %10870 = vmatpush2.bf16.msra.mxu0 %v10561
          %10871 = vmatprep.subr.bf16.mxu0 0
          %10872 = vmatpush2.bf16.msra.mxu0 %v10560
          %10873 = vmatprep.subr.bf16.mxu0 0
          %10874 = vmatpush2.bf16.msra.mxu0 %v10559
          %10875 = vmatprep.subr.bf16.mxu0 0
          %10876 = vmatpush2.bf16.msra.mxu0 %v10558
          %10877 = vmatprep.subr.bf16.mxu0 0
          %10878 = vmatpush2.bf16.msra.mxu0 %v10557
          %10879 = vmatprep.subr.bf16.mxu0 0
          %10880 = vmatpush2.bf16.msra.mxu0 %v10556
          %10881 = vmatprep.subr.bf16.mxu0 0
          %10882 = vmatpush2.bf16.msra.mxu0 %v10555
          %10883 = vmatprep.mubr.bf16.mxu0 %v9729
          %10884 = vmatmul.mubr.bf16.gmra.mxu0 %v9728
          %v10885 = vpop.f32.mrf.mxu0
          %v10886 = vadd.f32 %v10846, %v10885
          %v10887 = vpop.f32.mrf.mxu0
          %v10888 = vpop.f32.mrf.mxu0
          %v10889 = vpop.f32.mrf.mxu0
          %10890 = vdwg.mxu0
          %10891 = vmatprep.subr.bf16.mxu0 0
          %10892 = vmatpush1.bf16.msra.mxu0 %v10570
          %10893 = vmatprep.subr.bf16.mxu0 0
          %10894 = vmatpush1.bf16.msra.mxu0 %v10569
          %10895 = vmatprep.subr.bf16.mxu0 0
          %10896 = vmatpush1.bf16.msra.mxu0 %v10568
          %10897 = vmatprep.subr.bf16.mxu0 0
          %10898 = vmatpush1.bf16.msra.mxu0 %v10567
          %10899 = vmatprep.subr.bf16.mxu0 0
          %10900 = vmatpush1.bf16.msra.mxu0 %v10566
          %10901 = vmatprep.subr.bf16.mxu0 0
          %10902 = vmatpush1.bf16.msra.mxu0 %v10565
          %10903 = vmatprep.subr.bf16.mxu0 0
          %10904 = vmatpush1.bf16.msra.mxu0 %v10564
          %10905 = vmatprep.subr.bf16.mxu0 0
          %10906 = vmatpush1.bf16.msra.mxu0 %v10563
          %10907 = vmatprep.subr.bf16.mxu0 0
          %10908 = vmatpush2.bf16.msra.mxu0 %v10578
          %10909 = vmatprep.subr.bf16.mxu0 0
          %10910 = vmatpush2.bf16.msra.mxu0 %v10577
          %10911 = vmatprep.subr.bf16.mxu0 0
          %10912 = vmatpush2.bf16.msra.mxu0 %v10576
          %10913 = vmatprep.subr.bf16.mxu0 0
          %10914 = vmatpush2.bf16.msra.mxu0 %v10575
          %10915 = vmatprep.subr.bf16.mxu0 0
          %10916 = vmatpush2.bf16.msra.mxu0 %v10574
          %10917 = vmatprep.subr.bf16.mxu0 0
          %10918 = vmatpush2.bf16.msra.mxu0 %v10573
          %10919 = vmatprep.subr.bf16.mxu0 0
          %10920 = vmatpush2.bf16.msra.mxu0 %v10572
          %10921 = vmatprep.subr.bf16.mxu0 0
          %10922 = vmatpush2.bf16.msra.mxu0 %v10571
          %10923 = vmatprep.mubr.bf16.mxu0 %v9731
          %10924 = vmatmul.mubr.bf16.gmra.mxu0 %v9730
          %v10925 = vpop.f32.mrf.mxu0
          %v10926 = vadd.f32 %v10886, %v10925
          %v10927 = vpop.f32.mrf.mxu0
          %v10928 = vpop.f32.mrf.mxu0
          %v10929 = vpop.f32.mrf.mxu0
          %10930 = vdwg.mxu0
          %10931 = vmatprep.subr.bf16.mxu0 0
          %10932 = vmatpush1.bf16.msra.mxu0 %v10586
          %10933 = vmatprep.subr.bf16.mxu0 0
          %10934 = vmatpush1.bf16.msra.mxu0 %v10585
          %10935 = vmatprep.subr.bf16.mxu0 0
          %10936 = vmatpush1.bf16.msra.mxu0 %v10584
          %10937 = vmatprep.subr.bf16.mxu0 0
          %10938 = vmatpush1.bf16.msra.mxu0 %v10583
          %10939 = vmatprep.subr.bf16.mxu0 0
          %10940 = vmatpush1.bf16.msra.mxu0 %v10582
          %10941 = vmatprep.subr.bf16.mxu0 0
          %10942 = vmatpush1.bf16.msra.mxu0 %v10581
          %10943 = vmatprep.subr.bf16.mxu0 0
          %10944 = vmatpush1.bf16.msra.mxu0 %v10580
          %10945 = vmatprep.subr.bf16.mxu0 0
          %10946 = vmatpush1.bf16.msra.mxu0 %v10579
          %10947 = vmatprep.subr.bf16.mxu0 0
          %10948 = vmatpush2.bf16.msra.mxu0 %v10594
          %10949 = vmatprep.subr.bf16.mxu0 0
          %10950 = vmatpush2.bf16.msra.mxu0 %v10593
          %10951 = vmatprep.subr.bf16.mxu0 0
          %10952 = vmatpush2.bf16.msra.mxu0 %v10592
          %10953 = vmatprep.subr.bf16.mxu0 0
          %10954 = vmatpush2.bf16.msra.mxu0 %v10591
          %10955 = vmatprep.subr.bf16.mxu0 0
          %10956 = vmatpush2.bf16.msra.mxu0 %v10590
          %10957 = vmatprep.subr.bf16.mxu0 0
          %10958 = vmatpush2.bf16.msra.mxu0 %v10589
          %10959 = vmatprep.subr.bf16.mxu0 0
          %10960 = vmatpush2.bf16.msra.mxu0 %v10588
          %10961 = vmatprep.subr.bf16.mxu0 0
          %10962 = vmatpush2.bf16.msra.mxu0 %v10587
          %10963 = vmatprep.mubr.bf16.mxu0 %v9733
          %10964 = vmatmul.mubr.bf16.gmra.mxu0 %v9732
          %v10965 = vpop.f32.mrf.mxu0
          %v10966 = vadd.f32 %v10926, %v10965
          %v10967 = vpop.f32.mrf.mxu0
          %v10968 = vpop.f32.mrf.mxu0
          %v10969 = vpop.f32.mrf.mxu0
          %10970 = vdwg.mxu0
          %10971 = vmatprep.subr.bf16.mxu0 0
          %10972 = vmatpush1.bf16.msra.mxu0 %v10602
          %10973 = vmatprep.subr.bf16.mxu0 0
          %10974 = vmatpush1.bf16.msra.mxu0 %v10601
          %10975 = vmatprep.subr.bf16.mxu0 0
          %10976 = vmatpush1.bf16.msra.mxu0 %v10600
          %10977 = vmatprep.subr.bf16.mxu0 0
          %10978 = vmatpush1.bf16.msra.mxu0 %v10599
          %10979 = vmatprep.subr.bf16.mxu0 0
          %10980 = vmatpush1.bf16.msra.mxu0 %v10598
          %10981 = vmatprep.subr.bf16.mxu0 0
          %10982 = vmatpush1.bf16.msra.mxu0 %v10597
          %10983 = vmatprep.subr.bf16.mxu0 0
          %10984 = vmatpush1.bf16.msra.mxu0 %v10596
          %10985 = vmatprep.subr.bf16.mxu0 0
          %10986 = vmatpush1.bf16.msra.mxu0 %v10595
          %10987 = vmatprep.subr.bf16.mxu0 0
          %10988 = vmatpush2.bf16.msra.mxu0 %v10610
          %10989 = vmatprep.subr.bf16.mxu0 0
          %10990 = vmatpush2.bf16.msra.mxu0 %v10609
          %10991 = vmatprep.subr.bf16.mxu0 0
          %10992 = vmatpush2.bf16.msra.mxu0 %v10608
          %10993 = vmatprep.subr.bf16.mxu0 0
          %10994 = vmatpush2.bf16.msra.mxu0 %v10607
          %10995 = vmatprep.subr.bf16.mxu0 0
          %10996 = vmatpush2.bf16.msra.mxu0 %v10606
          %10997 = vmatprep.subr.bf16.mxu0 0
          %10998 = vmatpush2.bf16.msra.mxu0 %v10605
          %10999 = vmatprep.subr.bf16.mxu0 0
          %11000 = vmatpush2.bf16.msra.mxu0 %v10604
          %11001 = vmatprep.subr.bf16.mxu0 0
          %11002 = vmatpush2.bf16.msra.mxu0 %v10603
          %11003 = vmatprep.mubr.bf16.mxu0 %v9735
          %11004 = vmatmul.mubr.bf16.gmra.mxu0 %v9734
          %v11005 = vpop.f32.mrf.mxu0
          %v11006 = vadd.f32 %v10966, %v11005
          %v11007 = vpop.f32.mrf.mxu0
          %v11008 = vpop.f32.mrf.mxu0
          %v11009 = vpop.f32.mrf.mxu0
          %11010 = vdwg.mxu0
          %11011 = vmatprep.subr.bf16.mxu0 0
          %11012 = vmatpush1.bf16.msra.mxu0 %v10618
          %11013 = vmatprep.subr.bf16.mxu0 0
          %11014 = vmatpush1.bf16.msra.mxu0 %v10617
          %11015 = vmatprep.subr.bf16.mxu0 0
          %11016 = vmatpush1.bf16.msra.mxu0 %v10616
          %11017 = vmatprep.subr.bf16.mxu0 0
          %11018 = vmatpush1.bf16.msra.mxu0 %v10615
          %11019 = vmatprep.subr.bf16.mxu0 0
          %11020 = vmatpush1.bf16.msra.mxu0 %v10614
          %11021 = vmatprep.subr.bf16.mxu0 0
          %11022 = vmatpush1.bf16.msra.mxu0 %v10613
          %11023 = vmatprep.subr.bf16.mxu0 0
          %11024 = vmatpush1.bf16.msra.mxu0 %v10612
          %11025 = vmatprep.subr.bf16.mxu0 0
          %11026 = vmatpush1.bf16.msra.mxu0 %v10611
          %11027 = vmatprep.subr.bf16.mxu0 0
          %11028 = vmatpush2.bf16.msra.mxu0 %v10626
          %11029 = vmatprep.subr.bf16.mxu0 0
          %11030 = vmatpush2.bf16.msra.mxu0 %v10625
          %11031 = vmatprep.subr.bf16.mxu0 0
          %11032 = vmatpush2.bf16.msra.mxu0 %v10624
          %11033 = vmatprep.subr.bf16.mxu0 0
          %11034 = vmatpush2.bf16.msra.mxu0 %v10623
          %11035 = vmatprep.subr.bf16.mxu0 0
          %11036 = vmatpush2.bf16.msra.mxu0 %v10622
          %11037 = vmatprep.subr.bf16.mxu0 0
          %11038 = vmatpush2.bf16.msra.mxu0 %v10621
          %11039 = vmatprep.subr.bf16.mxu0 0
          %11040 = vmatpush2.bf16.msra.mxu0 %v10620
          %11041 = vmatprep.subr.bf16.mxu0 0
          %11042 = vmatpush2.bf16.msra.mxu0 %v10619
          %11043 = vmatprep.mubr.bf16.mxu0 %v9737
          %11044 = vmatmul.mubr.bf16.gmra.mxu0 %v9736
          %v11045 = vpop.f32.mrf.mxu0
          %v11046 = vadd.f32 %v11006, %v11045
          %v11047 = vpop.f32.mrf.mxu0
          %v11048 = vpop.f32.mrf.mxu0
          %v11049 = vpop.f32.mrf.mxu0
          %11050 = vdwg.mxu0
          %11051 = vmatprep.subr.bf16.mxu0 0
          %11052 = vmatpush1.bf16.msra.mxu0 %v10634
          %11053 = vmatprep.subr.bf16.mxu0 0
          %11054 = vmatpush1.bf16.msra.mxu0 %v10633
          %11055 = vmatprep.subr.bf16.mxu0 0
          %11056 = vmatpush1.bf16.msra.mxu0 %v10632
          %11057 = vmatprep.subr.bf16.mxu0 0
          %11058 = vmatpush1.bf16.msra.mxu0 %v10631
          %11059 = vmatprep.subr.bf16.mxu0 0
          %11060 = vmatpush1.bf16.msra.mxu0 %v10630
          %11061 = vmatprep.subr.bf16.mxu0 0
          %11062 = vmatpush1.bf16.msra.mxu0 %v10629
          %11063 = vmatprep.subr.bf16.mxu0 0
          %11064 = vmatpush1.bf16.msra.mxu0 %v10628
          %11065 = vmatprep.subr.bf16.mxu0 0
          %11066 = vmatpush1.bf16.msra.mxu0 %v10627
          %11067 = vmatprep.subr.bf16.mxu0 0
          %11068 = vmatpush2.bf16.msra.mxu0 %v10642
          %11069 = vmatprep.subr.bf16.mxu0 0
          %11070 = vmatpush2.bf16.msra.mxu0 %v10641
          %11071 = vmatprep.subr.bf16.mxu0 0
          %11072 = vmatpush2.bf16.msra.mxu0 %v10640
          %11073 = vmatprep.subr.bf16.mxu0 0
          %11074 = vmatpush2.bf16.msra.mxu0 %v10639
          %11075 = vmatprep.subr.bf16.mxu0 0
          %11076 = vmatpush2.bf16.msra.mxu0 %v10638
          %11077 = vmatprep.subr.bf16.mxu0 0
          %11078 = vmatpush2.bf16.msra.mxu0 %v10637
          %11079 = vmatprep.subr.bf16.mxu0 0
          %11080 = vmatpush2.bf16.msra.mxu0 %v10636
          %11081 = vmatprep.subr.bf16.mxu0 0
          %11082 = vmatpush2.bf16.msra.mxu0 %v10635
          %11083 = vmatprep.mubr.bf16.mxu0 %v9739
          %11084 = vmatmul.mubr.bf16.gmra.mxu0 %v9738
          %v11085 = vpop.f32.mrf.mxu0
          %v11086 = vadd.f32 %v11046, %v11085
          %v11087 = vpop.f32.mrf.mxu0
          %v11088 = vpop.f32.mrf.mxu0
          %v11089 = vpop.f32.mrf.mxu0
          %11090 = vdwg.mxu0
          %11091 = vst [vmem:[%s9] sm:$0xff] %v11086
        $region104: #{cond_flow_forward.1} parent=55 // pred_fallthru
          _
        // Predicated region
        $region105: #{cond_flow_forward.1} parent=55 // pred_check
          %p11092 = pneg %p265
        $region106: #{cond_flow_forward.1} parent=55 // pred_check_branch
          %11094 = sbr.rel (%p11092) target = $region108
        $region107: #{cond_flow_forward.1} parent=55 // pred_region
          _
        $region108: #{cond_flow_forward.1} parent=55 // pred_fallthru
          _
        // Predicated region
        $region109: #{cond_flow_forward.1} parent=55 // pred_check
          %p11095 = pneg %p265
        $region110: #{cond_flow_forward.1} parent=55 // pred_check_branch
          %11097 = sbr.rel (%p11095) target = $region112
        $region111: #{cond_flow_forward.1} parent=55 // pred_region
          _
        $region112: #{cond_flow_forward.1} parent=55 // pred_fallthru
          _
      $region56: #{cond_flow_forward.1} parent=5 // pred_fallthru
        _
      %p11098 = scmp.le.s32.totalorder 2, %s18
      // Predicated region
      $region113: #{cond_flow_forward.1} parent=5 // pred_check
        %p11099 = pneg %p11098
      $region114: #{cond_flow_forward.1} parent=5 // pred_check_branch
        %11101 = sbr.rel (%p11099) target = $region116
      $region115: #{cond_flow_forward.1} parent=5 // pred_region
        %s11102 = ssub.s32 %s18, 2
      $region116: #{cond_flow_forward.1} parent=5 // pred_fallthru
        _
    $region6: #{cond_flow_forward.1} parent=1 // loop_footer
      %s22 = sadd.s32 1, %s18
    $region7: #{cond_flow_forward.1} parent=1 // loop_footer_branch
      %17 = sbr.rel target = $region3
    $region8: #{cond_flow_forward.1} parent=1 // loop_exit
      _
    %11103 = vsyncpa [#allocation5], 1
    %s11104 = scalar_lea.sflag [#allocation5], 1
    %11105 = vsyncpa %s11104, 1
    %11106 = vsyncpa [#allocation7], 1
    %11107 = vsyncpa [#allocation14], 1

</llo_original>
